<compile_context>
chip_gen: v7x
topology: tpu7x:2x2x1
jax: 0.10.0
libtpu: 0.0.40
codegen_flags: <defaults>
</compile_context>

<pallas_src>
import functools

import jax
import jax.numpy as jnp
from jax.experimental import pallas as pl
from jax.experimental.pallas import tpu as pltpu


def _round_up(x, m):
    return (x + m - 1) // m * m


def _reflect(i, n):
    """torch ReflectionPad index (no edge repeat) for a source axis of length n."""
    if i < 0:
        return -i
    if i >= n:
        return 2 * (n - 1) - i
    return i


def decoder_configs(dim, output_dim=1):
    """(cin, cout, kernel, pad, norm, activation) per Conv2dBlock of Decoder."""
    cfgs = []
    for _ in range(3):
        cfgs.append((dim, dim // 2, 3, 1, "ln", "relu"))
        dim //= 2
    cfgs.append((dim, output_dim, 7, 3, "none", "tanh"))
    return tuple(cfgs)


# --------------------------------------------------------------------------- #
# Fused decoder kernel: one sample per grid step, all 4 conv blocks in VMEM    #
# --------------------------------------------------------------------------- #
def _decoder_kernel(x_ref, w_ref, bgb_ref, o_ref, xpad_ref, *,
                    cfgs, C_buf, H, W, eps):
    """x_ref   : (1, C_buf, H*W)     content sample, channel-padded, NCHW-flat
       w_ref   : (C_buf, sum k^2*C_buf)  tap-stacked conv weights, all layers
       bgb_ref : (C_buf, 3*L)        per layer columns: [bias, gamma, beta]
       o_ref   : (1, Cout_last, H*W) output image, NCHW-flat (lane dense)
       xpad_ref: (C_buf, PADW)       flat reflect-padded activation scratch
    """
    # The over-computed output columns read a short tail past the padded image;
    # zero the scratch once so those reads are always finite.
    xpad_ref[...] = jnp.zeros(xpad_ref.shape, xpad_ref.dtype)

    y = x_ref[0]            # (C_buf, H*W); valid data = first W cols of each row
    pitch = W               # flat row pitch of `y`
    w_off = 0
    n_layers = len(cfgs)

    for l, (_cin, cout, k, p, norm, act) in enumerate(cfgs):
        Wp, Hp = W + 2 * p, H + 2 * p
        M = H * Wp          # over-computed output positions: m = oh*Wp + ow, ow in [0,Wp)

        # ---- in-kernel reflect pad: assemble (C_buf, Hp*Wp) flat, row pitch Wp ----
        for hp in range(Hp):
            hs = _reflect(hp - p, H)
            src = hs * pitch
            base = hp * Wp
            xpad_ref[:, base + p:base + p + W] = y[:, src:src + W]
            for j in range(p):      # left reflect columns
                xpad_ref[:, base + j:base + j + 1] = \
                    y[:, src + p - j:src + p - j + 1]
            for j in range(p):      # right reflect columns
                xpad_ref[:, base + p + W + j:base + p + W + j + 1] = \
                    y[:, src + W - 2 - j:src + W - 1 - j]

        # ---- conv: one tap-stacked MXU contraction (K = k*k*C_buf) ----
        K_l = k * k * C_buf
        taps = [xpad_ref[:, kh * Wp + kw: kh * Wp + kw + M]
                for kh in range(k) for kw in range(k)]
        xstk = jnp.concatenate(taps, axis=0)                        # (K_l, M)
        acc = jnp.dot(w_ref[:, w_off:w_off + K_l], xstk,
                      preferred_element_type=jnp.float32)           # (C_buf, M)
        w_off += K_l
        acc = acc + bgb_ref[:, 3 * l:3 * l + 1]                     # conv bias

        if norm == "ln":
            # Per-sample LayerNorm over the valid (cout, H, W) entries only.
            if Wp > W:
                row = jnp.concatenate(
                    [jnp.ones((C_buf, W), jnp.float32),
                     jnp.zeros((C_buf, Wp - W), jnp.float32)], axis=1)
            else:
                row = jnp.ones((C_buf, Wp), jnp.float32)
            col_ok = jnp.concatenate([row] * H, axis=1) > 0.5       # (C_buf, M)
            chan = jax.lax.broadcasted_iota(jnp.int32, (C_buf, M), 0)
            mask = col_ok & (chan < cout)
            n_valid = float(cout * H * W)
            s1 = jnp.sum(jnp.sum(jnp.where(mask, acc, 0.0), axis=1, keepdims=True),
                         axis=0, keepdims=True)
            mean = s1 / n_valid
            d = jnp.where(mask, acc - mean, 0.0)
            s2 = jnp.sum(jnp.sum(d * d, axis=1, keepdims=True),
                         axis=0, keepdims=True)
            std = jnp.sqrt(s2 / (n_valid - 1.0))        # torch .std(): Bessel-corrected
            inv = 1.0 / (std + eps)
            scale = bgb_ref[:, 3 * l + 1:3 * l + 2] * inv           # gamma/(std+eps)
            shift = bgb_ref[:, 3 * l + 2:3 * l + 3] - mean * scale
            acc = acc * scale + shift                               # single FMA epilogue

        if l == n_layers - 1:
            # Final layer: activation on valid channel rows only, compact valid
            # (oh, ow < W) columns into the lane-dense (Cout_last, H*W) output.
            accv = acc[:cout, :]
            if act == "relu":
                accv = jnp.maximum(accv, 0.0)
            elif act == "tanh":
                accv = jnp.tanh(accv)
            for oh in range(H):
                o_ref[0, :, oh * W:(oh + 1) * W] = accv[:, oh * Wp:oh * Wp + W]
        else:
            if act == "relu":
                acc = jnp.maximum(acc, 0.0)
            elif act == "tanh":
                acc = jnp.tanh(acc)
            y = acc
            pitch = Wp


# --------------------------------------------------------------------------- #
# One-time parameter packing (hoisted out of the forward path)                 #
# --------------------------------------------------------------------------- #
def pack_decoder_params(cfgs, dec_params, C_buf):
    w_cols, bgb_cols = [], []
    for (cin, cout, k, _p, norm, _act), (w, b, g, bt) in zip(cfgs, dec_params):
        w_p = jnp.pad(w, ((0, C_buf - cout), (0, C_buf - cin), (0, 0), (0, 0)))
        # contraction index (kh*k + kw)*C_buf + ci  == kernel's tap-stack row order
        w_stk = jnp.transpose(w_p, (0, 2, 3, 1)).reshape(C_buf, k * k * C_buf)
        w_cols.append(w_stk)
        b_p = jnp.pad(b, (0, C_buf - cout))
        if norm == "ln":
            g_p = jnp.pad(g, (0, C_buf - cout))      # zeros in padded channels -> LN
            bt_p = jnp.pad(bt, (0, C_buf - cout))    # output stays exactly 0 there
        else:
            g_p = jnp.ones((C_buf,), jnp.float32)
            bt_p = jnp.zeros((C_buf,), jnp.float32)
        bgb_cols += [b_p, g_p, bt_p]
    w_all = jnp.concatenate(w_cols, axis=1).astype(jnp.float32)   # (C_buf, sum k^2*C_buf)
    bgb = jnp.stack(bgb_cols, axis=1).astype(jnp.float32)         # (C_buf, 3*L)
    return w_all, bgb


# --------------------------------------------------------------------------- #
# Ada_Decoder forward                                                          #
# --------------------------------------------------------------------------- #
def ada_decoder_forward(a, z, w_all, bgb, *, cfgs, eps=1e-5):
    """Ada_Decoder.forward(a, z, type) == decode(a, z).

    The MLP over the style code is dead code for this Decoder (no AdaIN modules:
    get_num_adain_params() == 0, assign_adain_params() is a no-op) so it is not run.
    """
    del z
    N, Cin, H, W = a.shape
    C_buf = w_all.shape[0]
    out_ch = cfgs[-1][1]

    x = a
    if Cin < C_buf:
        x = jnp.pad(x, ((0, 0), (0, C_buf - Cin), (0, 0), (0, 0)))
    xf = x.reshape(N, C_buf, H * W)

    padw = 0
    flops = 0
    for (_cin, _cout, k, p, _norm, _act) in cfgs:
        Wp, Hp = W + 2 * p, H + 2 * p
        M = H * Wp
        padw = max(padw, Hp * Wp, M + (k - 1) * (Wp + 1))
        flops += 2 * C_buf * (k * k * C_buf) * M
    PADW = _round_up(padw, 128)
    flops *= N
    transcendentals = N * out_ch * H * W
    bytes_accessed = 4 * (int(xf.size) + int(w_all.size) + int(bgb.size)
                          + N * out_ch * H * W)

    kern = functools.partial(_decoder_kernel, cfgs=cfgs, C_buf=C_buf,
                             H=H, W=W, eps=eps)
    out = pl.pallas_call(
        kern,
        out_shape=jax.ShapeDtypeStruct((N, out_ch, H * W), jnp.float32),
        grid_spec=pltpu.PrefetchScalarGridSpec(
            num_scalar_prefetch=0,
            grid=(N,),
            in_specs=[
                pl.BlockSpec((1, C_buf, H * W), lambda n: (n, 0, 0)),
                pl.BlockSpec(w_all.shape, lambda n: (0, 0)),
                pl.BlockSpec(bgb.shape, lambda n: (0, 0)),
            ],
            out_specs=pl.BlockSpec((1, out_ch, H * W), lambda n: (n, 0, 0)),
            scratch_shapes=[pltpu.VMEM((C_buf, PADW), jnp.float32)],
        ),
        compiler_params=pltpu.CompilerParams(
            dimension_semantics=("parallel",)),
        cost_estimate=pl.CostEstimate(
            flops=flops, transcendentals=transcendentals,
            bytes_accessed=bytes_accessed),
    )(xf, w_all, bgb)
    return out.reshape(N, out_ch, H, W)


# --------------------------------------------------------------------------- #
# Parameter init + pure-JAX reference                                          #
# --------------------------------------------------------------------------- #
def init_params(key, cfgs):
    dec_params = []
    for (cin, cout, k, _p, norm, _act) in cfgs:
        key, kw_, kb_, kg_ = jax.random.split(key, 4)
        fan_in = cin * k * k
        w = jax.random.normal(kw_, (cout, cin, k, k), dtype=jnp.float32)
        w = w / jnp.sqrt(float(fan_in))
        b = 0.1 * jax.random.normal(kb_, (cout,), dtype=jnp.float32)
        if norm == "ln":
            g = jax.random.uniform(kg_, (cout,), dtype=jnp.float32)  # torch .uniform_()
            bt = jnp.zeros((cout,), jnp.float32)
        else:
            g, bt = None, None
        dec_params.append((w, b, g, bt))
    return tuple(dec_params)


def _ref_decoder_forward(a, cfgs, dec_params, eps=1e-5):
    """Pure-JAX reference (lax.conv + LayerNorm + activation) for verification."""
    x = a
    for (_cin, _cout, k, p, norm, act), (w, b, g, bt) in zip(cfgs, dec_params):
        xp = jnp.pad(x, ((0, 0), (0, 0), (p, p), (p, p)), mode="reflect")
        out = jax.lax.conv_general_dilated(
            xp, w, (1, 1), "VALID",
            dimension_numbers=("NCHW", "OIHW", "NCHW"),
            precision=jax.lax.Precision.HIGHEST)
        out = out + b.reshape(1, -1, 1, 1)
        if norm == "ln":
            nb = out.shape[0]
            flat = out.reshape(nb, -1)
            mean = flat.mean(axis=1).reshape(nb, 1, 1, 1)
            std = jnp.std(flat, axis=1, ddof=1).reshape(nb, 1, 1, 1)
            out = (out - mean) / (std + eps)
            out = out * g.reshape(1, -1, 1, 1) + bt.reshape(1, -1, 1, 1)
        if act == "relu":
            out = jnp.maximum(out, 0.0)
        elif act == "tanh":
            out = jnp.tanh(out)
        x = out
    return x


if __name__ == "__main__":
    # Ada_Decoder(decoder_type, anatomy_out_channels=8, z_length=8, num_mask_channels)
    N, ANATOMY_CH, Z_LEN, H, W = 2, 8, 8, 16, 16

    key = jax.random.PRNGKey(0)
    key, ka, kz = jax.random.split(key, 3)
    a = jax.random.normal(ka, (N, ANATOMY_CH, H, W), dtype=jnp.float32)  # content
    z = jax.random.normal(kz, (N, Z_LEN), dtype=jnp.float32)             # style (unused: no AdaIN)

    cfgs = decoder_configs(ANATOMY_CH, output_dim=1)
    dec_params = init_params(key, cfgs)

    C_buf = max(_round_up(max(cin, cout), 8) for (cin, cout, *_r) in cfgs)
    w_all, bgb = pack_decoder_params(cfgs, dec_params, C_buf)

    fwd = jax.jit(functools.partial(ada_decoder_forward, cfgs=cfgs))
    out = fwd(a, z, w_all, bgb)
    jax.block_until_ready(out)

    ref = _ref_decoder_forward(a, cfgs, dec_params)
    assert out.shape == (N, 1, H, W), out.shape
    max_err = float(jnp.max(jnp.abs(out - ref)))
    assert jnp.allclose(out, ref, atol=1e-3, rtol=1e-3), \
        f"mismatch vs JAX reference (max abs err {max_err:.3e})"

    print("KERNEL_OK")
</pallas_src>

<mosaic_0001>
module attributes {stable_mosaic.version = 11 : i64} {
  func.func @_decoder_kernel(%arg0: i32, %arg1: memref<1x8x256xf32, #tpu.memory_space<vmem>>, %arg2: memref<8x608xf32, #tpu.memory_space<vmem>>, %arg3: memref<8x12xf32, #tpu.memory_space<vmem>>, %arg4: memref<1x1x256xf32, #tpu.memory_space<vmem>>, %arg5: memref<8x512xf32, #tpu.memory_space<vmem>>) attributes {dimension_semantics = [#tpu.dimension_semantics<parallel>], iteration_bounds = array<i64: 2>, scalar_prefetch = 0 : i64, scratch_operands = 1 : i64, tpu.core_type = #tpu.core_type<tc>, window_params = [{transform_indices = @transform_0, window_bounds = array<i64: 1, 8, 256>}, {pipeline_mode = #tpu.pipeline_mode<synchronous>, transform_indices = @transform_1, window_bounds = array<i64: 8, 608>}, {pipeline_mode = #tpu.pipeline_mode<synchronous>, transform_indices = @transform_2, window_bounds = array<i64: 8, 12>}, {transform_indices = @transform_3, window_bounds = array<i64: 1, 1, 256>}]} {
    %cst = arith.constant 0.000000e+00 : f32
    %0 = vector.broadcast %cst : f32 to vector<8x512xf32>
    %c0 = arith.constant 0 : index
    %c0_0 = arith.constant 0 : index
    %1 = vector.load %arg5[%c0, %c0_0] : memref<8x512xf32, #tpu.memory_space<vmem>>, vector<8x512xf32>
    tpu.vector_store %arg5[%c0, %c0_0], %0 {strides = array<i32>} : memref<8x512xf32, #tpu.memory_space<vmem>>, vector<8x512xf32>,
    %c0_1 = arith.constant 0 : index
    %c0_2 = arith.constant 0 : index
    %c0_3 = arith.constant 0 : index
    %2 = vector.load %arg1[%c0_1, %c0_2, %c0_3] : memref<1x8x256xf32, #tpu.memory_space<vmem>>, vector<1x8x256xf32>
    %3 = vector.shape_cast %2 : vector<1x8x256xf32> to vector<8x256xf32>
    %4 = vector.extract_strided_slice %3 {offsets = [0, 16], sizes = [8, 16], strides = [1, 1]} : vector<8x256xf32> to vector<8x16xf32>
    %c0_4 = arith.constant 0 : index
    %c1 = arith.constant 1 : index
    %5 = vector.load %arg5[%c0_4, %c1] : memref<8x512xf32, #tpu.memory_space<vmem>>, vector<8x16xf32>
    tpu.vector_store %arg5[%c0_4, %c1], %4 {strides = array<i32>} : memref<8x512xf32, #tpu.memory_space<vmem>>, vector<8x16xf32>,
    %6 = vector.extract_strided_slice %3 {offsets = [0, 17], sizes = [8, 1], strides = [1, 1]} : vector<8x256xf32> to vector<8x1xf32>
    %c0_5 = arith.constant 0 : index
    %c0_6 = arith.constant 0 : index
    %7 = vector.load %arg5[%c0_5, %c0_6] : memref<8x512xf32, #tpu.memory_space<vmem>>, vector<8x1xf32>
    tpu.vector_store %arg5[%c0_5, %c0_6], %6 {strides = array<i32>} : memref<8x512xf32, #tpu.memory_space<vmem>>, vector<8x1xf32>,
    %8 = vector.extract_strided_slice %3 {offsets = [0, 30], sizes = [8, 1], strides = [1, 1]} : vector<8x256xf32> to vector<8x1xf32>
    %c0_7 = arith.constant 0 : index
    %c17 = arith.constant 17 : index
    %9 = vector.load %arg5[%c0_7, %c17] : memref<8x512xf32, #tpu.memory_space<vmem>>, vector<8x1xf32>
    tpu.vector_store %arg5[%c0_7, %c17], %8 {strides = array<i32>} : memref<8x512xf32, #tpu.memory_space<vmem>>, vector<8x1xf32>,
    %10 = vector.extract_strided_slice %3 {offsets = [0, 0], sizes = [8, 16], strides = [1, 1]} : vector<8x256xf32> to vector<8x16xf32>
    %c0_8 = arith.constant 0 : index
    %c19 = arith.constant 19 : index
    %11 = vector.load %arg5[%c0_8, %c19] : memref<8x512xf32, #tpu.memory_space<vmem>>, vector<8x16xf32>
    tpu.vector_store %arg5[%c0_8, %c19], %10 {strides = array<i32>} : memref<8x512xf32, #tpu.memory_space<vmem>>, vector<8x16xf32>,
    %12 = vector.extract_strided_slice %3 {offsets = [0, 1], sizes = [8, 1], strides = [1, 1]} : vector<8x256xf32> to vector<8x1xf32>
    %c0_9 = arith.constant 0 : index
    %c18 = arith.constant 18 : index
    %13 = vector.load %arg5[%c0_9, %c18] : memref<8x512xf32, #tpu.memory_space<vmem>>, vector<8x1xf32>
    tpu.vector_store %arg5[%c0_9, %c18], %12 {strides = array<i32>} : memref<8x512xf32, #tpu.memory_space<vmem>>, vector<8x1xf32>,
    %14 = vector.extract_strided_slice %3 {offsets = [0, 14], sizes = [8, 1], strides = [1, 1]} : vector<8x256xf32> to vector<8x1xf32>
    %c0_10 = arith.constant 0 : index
    %c35 = arith.constant 35 : index
    %15 = vector.load %arg5[%c0_10, %c35] : memref<8x512xf32, #tpu.memory_space<vmem>>, vector<8x1xf32>
    tpu.vector_store %arg5[%c0_10, %c35], %14 {strides = array<i32>} : memref<8x512xf32, #tpu.memory_space<vmem>>, vector<8x1xf32>,
    %16 = vector.extract_strided_slice %3 {offsets = [0, 16], sizes = [8, 16], strides = [1, 1]} : vector<8x256xf32> to vector<8x16xf32>
    %c0_11 = arith.constant 0 : index
    %c37 = arith.constant 37 : index
    %17 = vector.load %arg5[%c0_11, %c37] : memref<8x512xf32, #tpu.memory_space<vmem>>, vector<8x16xf32>
    tpu.vector_store %arg5[%c0_11, %c37], %16 {strides = array<i32>} : memref<8x512xf32, #tpu.memory_space<vmem>>, vector<8x16xf32>,
    %18 = vector.extract_strided_slice %3 {offsets = [0, 17], sizes = [8, 1], strides = [1, 1]} : vector<8x256xf32> to vector<8x1xf32>
    %c0_12 = arith.constant 0 : index
    %c36 = arith.constant 36 : index
    %19 = vector.load %arg5[%c0_12, %c36] : memref<8x512xf32, #tpu.memory_space<vmem>>, vector<8x1xf32>
    tpu.vector_store %arg5[%c0_12, %c36], %18 {strides = array<i32>} : memref<8x512xf32, #tpu.memory_space<vmem>>, vector<8x1xf32>,
    %20 = vector.extract_strided_slice %3 {offsets = [0, 30], sizes = [8, 1], strides = [1, 1]} : vector<8x256xf32> to vector<8x1xf32>
    %c0_13 = arith.constant 0 : index
    %c53 = arith.constant 53 : index
    %21 = vector.load %arg5[%c0_13, %c53] : memref<8x512xf32, #tpu.memory_space<vmem>>, vector<8x1xf32>
    tpu.vector_store %arg5[%c0_13, %c53], %20 {strides = array<i32>} : memref<8x512xf32, #tpu.memory_space<vmem>>, vector<8x1xf32>,
    %22 = vector.extract_strided_slice %3 {offsets = [0, 32], sizes = [8, 16], strides = [1, 1]} : vector<8x256xf32> to vector<8x16xf32>
    %c0_14 = arith.constant 0 : index
    %c55 = arith.constant 55 : index
    %23 = vector.load %arg5[%c0_14, %c55] : memref<8x512xf32, #tpu.memory_space<vmem>>, vector<8x16xf32>
    tpu.vector_store %arg5[%c0_14, %c55], %22 {strides = array<i32>} : memref<8x512xf32, #tpu.memory_space<vmem>>, vector<8x16xf32>,
    %24 = vector.extract_strided_slice %3 {offsets = [0, 33], sizes = [8, 1], strides = [1, 1]} : vector<8x256xf32> to vector<8x1xf32>
    %c0_15 = arith.constant 0 : index
    %c54 = arith.constant 54 : index
    %25 = vector.load %arg5[%c0_15, %c54] : memref<8x512xf32, #tpu.memory_space<vmem>>, vector<8x1xf32>
    tpu.vector_store %arg5[%c0_15, %c54], %24 {strides = array<i32>} : memref<8x512xf32, #tpu.memory_space<vmem>>, vector<8x1xf32>,
    %26 = vector.extract_strided_slice %3 {offsets = [0, 46], sizes = [8, 1], strides = [1, 1]} : vector<8x256xf32> to vector<8x1xf32>
    %c0_16 = arith.constant 0 : index
    %c71 = arith.constant 71 : index
    %27 = vector.load %arg5[%c0_16, %c71] : memref<8x512xf32, #tpu.memory_space<vmem>>, vector<8x1xf32>
    tpu.vector_store %arg5[%c0_16, %c71], %26 {strides = array<i32>} : memref<8x512xf32, #tpu.memory_space<vmem>>, vector<8x1xf32>,
    %28 = vector.extract_strided_slice %3 {offsets = [0, 48], sizes = [8, 16], strides = [1, 1]} : vector<8x256xf32> to vector<8x16xf32>
    %c0_17 = arith.constant 0 : index
    %c73 = arith.constant 73 : index
    %29 = vector.load %arg5[%c0_17, %c73] : memref<8x512xf32, #tpu.memory_space<vmem>>, vector<8x16xf32>
    tpu.vector_store %arg5[%c0_17, %c73], %28 {strides = array<i32>} : memref<8x512xf32, #tpu.memory_space<vmem>>, vector<8x16xf32>,
    %30 = vector.extract_strided_slice %3 {offsets = [0, 49], sizes = [8, 1], strides = [1, 1]} : vector<8x256xf32> to vector<8x1xf32>
    %c0_18 = arith.constant 0 : index
    %c72 = arith.constant 72 : index
    %31 = vector.load %arg5[%c0_18, %c72] : memref<8x512xf32, #tpu.memory_space<vmem>>, vector<8x1xf32>
    tpu.vector_store %arg5[%c0_18, %c72], %30 {strides = array<i32>} : memref<8x512xf32, #tpu.memory_space<vmem>>, vector<8x1xf32>,
    %32 = vector.extract_strided_slice %3 {offsets = [0, 62], sizes = [8, 1], strides = [1, 1]} : vector<8x256xf32> to vector<8x1xf32>
    %c0_19 = arith.constant 0 : index
    %c89 = arith.constant 89 : index
    %33 = vector.load %arg5[%c0_19, %c89] : memref<8x512xf32, #tpu.memory_space<vmem>>, vector<8x1xf32>
    tpu.vector_store %arg5[%c0_19, %c89], %32 {strides = array<i32>} : memref<8x512xf32, #tpu.memory_space<vmem>>, vector<8x1xf32>,
    %34 = vector.extract_strided_slice %3 {offsets = [0, 64], sizes = [8, 16], strides = [1, 1]} : vector<8x256xf32> to vector<8x16xf32>
    %c0_20 = arith.constant 0 : index
    %c91 = arith.constant 91 : index
    %35 = vector.load %arg5[%c0_20, %c91] : memref<8x512xf32, #tpu.memory_space<vmem>>, vector<8x16xf32>
    tpu.vector_store %arg5[%c0_20, %c91], %34 {strides = array<i32>} : memref<8x512xf32, #tpu.memory_space<vmem>>, vector<8x16xf32>,
    %36 = vector.extract_strided_slice %3 {offsets = [0, 65], sizes = [8, 1], strides = [1, 1]} : vector<8x256xf32> to vector<8x1xf32>
    %c0_21 = arith.constant 0 : index
    %c90 = arith.constant 90 : index
    %37 = vector.load %arg5[%c0_21, %c90] : memref<8x512xf32, #tpu.memory_space<vmem>>, vector<8x1xf32>
    tpu.vector_store %arg5[%c0_21, %c90], %36 {strides = array<i32>} : memref<8x512xf32, #tpu.memory_space<vmem>>, vector<8x1xf32>,
    %38 = vector.extract_strided_slice %3 {offsets = [0, 78], sizes = [8, 1], strides = [1, 1]} : vector<8x256xf32> to vector<8x1xf32>
    %c0_22 = arith.constant 0 : index
    %c107 = arith.constant 107 : index
    %39 = vector.load %arg5[%c0_22, %c107] : memref<8x512xf32, #tpu.memory_space<vmem>>, vector<8x1xf32>
    tpu.vector_store %arg5[%c0_22, %c107], %38 {strides = array<i32>} : memref<8x512xf32, #tpu.memory_space<vmem>>, vector<8x1xf32>,
    %40 = vector.extract_strided_slice %3 {offsets = [0, 80], sizes = [8, 16], strides = [1, 1]} : vector<8x256xf32> to vector<8x16xf32>
    %c0_23 = arith.constant 0 : index
    %c109 = arith.constant 109 : index
    %41 = vector.load %arg5[%c0_23, %c109] : memref<8x512xf32, #tpu.memory_space<vmem>>, vector<8x16xf32>
    tpu.vector_store %arg5[%c0_23, %c109], %40 {strides = array<i32>} : memref<8x512xf32, #tpu.memory_space<vmem>>, vector<8x16xf32>,
    %42 = vector.extract_strided_slice %3 {offsets = [0, 81], sizes = [8, 1], strides = [1, 1]} : vector<8x256xf32> to vector<8x1xf32>
    %c0_24 = arith.constant 0 : index
    %c108 = arith.constant 108 : index
    %43 = vector.load %arg5[%c0_24, %c108] : memref<8x512xf32, #tpu.memory_space<vmem>>, vector<8x1xf32>
    tpu.vector_store %arg5[%c0_24, %c108], %42 {strides = array<i32>} : memref<8x512xf32, #tpu.memory_space<vmem>>, vector<8x1xf32>,
    %44 = vector.extract_strided_slice %3 {offsets = [0, 94], sizes = [8, 1], strides = [1, 1]} : vector<8x256xf32> to vector<8x1xf32>
    %c0_25 = arith.constant 0 : index
    %c125 = arith.constant 125 : index
    %45 = vector.load %arg5[%c0_25, %c125] : memref<8x512xf32, #tpu.memory_space<vmem>>, vector<8x1xf32>
    tpu.vector_store %arg5[%c0_25, %c125], %44 {strides = array<i32>} : memref<8x512xf32, #tpu.memory_space<vmem>>, vector<8x1xf32>,
    %46 = vector.extract_strided_slice %3 {offsets = [0, 96], sizes = [8, 16], strides = [1, 1]} : vector<8x256xf32> to vector<8x16xf32>
    %c0_26 = arith.constant 0 : index
    %c127 = arith.constant 127 : index
    %47 = vector.load %arg5[%c0_26, %c127] : memref<8x512xf32, #tpu.memory_space<vmem>>, vector<8x16xf32>
    tpu.vector_store %arg5[%c0_26, %c127], %46 {strides = array<i32>} : memref<8x512xf32, #tpu.memory_space<vmem>>, vector<8x16xf32>,
    %48 = vector.extract_strided_slice %3 {offsets = [0, 97], sizes = [8, 1], strides = [1, 1]} : vector<8x256xf32> to vector<8x1xf32>
    %c0_27 = arith.constant 0 : index
    %c126 = arith.constant 126 : index
    %49 = vector.load %arg5[%c0_27, %c126] : memref<8x512xf32, #tpu.memory_space<vmem>>, vector<8x1xf32>
    tpu.vector_store %arg5[%c0_27, %c126], %48 {strides = array<i32>} : memref<8x512xf32, #tpu.memory_space<vmem>>, vector<8x1xf32>,
    %50 = vector.extract_strided_slice %3 {offsets = [0, 110], sizes = [8, 1], strides = [1, 1]} : vector<8x256xf32> to vector<8x1xf32>
    %c0_28 = arith.constant 0 : index
    %c143 = arith.constant 143 : index
    %51 = vector.load %arg5[%c0_28, %c143] : memref<8x512xf32, #tpu.memory_space<vmem>>, vector<8x1xf32>
    tpu.vector_store %arg5[%c0_28, %c143], %50 {strides = array<i32>} : memref<8x512xf32, #tpu.memory_space<vmem>>, vector<8x1xf32>,
    %52 = vector.extract_strided_slice %3 {offsets = [0, 112], sizes = [8, 16], strides = [1, 1]} : vector<8x256xf32> to vector<8x16xf32>
    %c0_29 = arith.constant 0 : index
    %c145 = arith.constant 145 : index
    %53 = vector.load %arg5[%c0_29, %c145] : memref<8x512xf32, #tpu.memory_space<vmem>>, vector<8x16xf32>
    tpu.vector_store %arg5[%c0_29, %c145], %52 {strides = array<i32>} : memref<8x512xf32, #tpu.memory_space<vmem>>, vector<8x16xf32>,
    %54 = vector.extract_strided_slice %3 {offsets = [0, 113], sizes = [8, 1], strides = [1, 1]} : vector<8x256xf32> to vector<8x1xf32>
    %c0_30 = arith.constant 0 : index
    %c144 = arith.constant 144 : index
    %55 = vector.load %arg5[%c0_30, %c144] : memref<8x512xf32, #tpu.memory_space<vmem>>, vector<8x1xf32>
    tpu.vector_store %arg5[%c0_30, %c144], %54 {strides = array<i32>} : memref<8x512xf32, #tpu.memory_space<vmem>>, vector<8x1xf32>,
    %56 = vector.extract_strided_slice %3 {offsets = [0, 126], sizes = [8, 1], strides = [1, 1]} : vector<8x256xf32> to vector<8x1xf32>
    %c0_31 = arith.constant 0 : index
    %c161 = arith.constant 161 : index
    %57 = vector.load %arg5[%c0_31, %c161] : memref<8x512xf32, #tpu.memory_space<vmem>>, vector<8x1xf32>
    tpu.vector_store %arg5[%c0_31, %c161], %56 {strides = array<i32>} : memref<8x512xf32, #tpu.memory_space<vmem>>, vector<8x1xf32>,
    %58 = vector.extract_strided_slice %3 {offsets = [0, 128], sizes = [8, 16], strides = [1, 1]} : vector<8x256xf32> to vector<8x16xf32>
    %c0_32 = arith.constant 0 : index
    %c163 = arith.constant 163 : index
    %59 = vector.load %arg5[%c0_32, %c163] : memref<8x512xf32, #tpu.memory_space<vmem>>, vector<8x16xf32>
    tpu.vector_store %arg5[%c0_32, %c163], %58 {strides = array<i32>} : memref<8x512xf32, #tpu.memory_space<vmem>>, vector<8x16xf32>,
    %60 = vector.extract_strided_slice %3 {offsets = [0, 129], sizes = [8, 1], strides = [1, 1]} : vector<8x256xf32> to vector<8x1xf32>
    %c0_33 = arith.constant 0 : index
    %c162 = arith.constant 162 : index
    %61 = vector.load %arg5[%c0_33, %c162] : memref<8x512xf32, #tpu.memory_space<vmem>>, vector<8x1xf32>
    tpu.vector_store %arg5[%c0_33, %c162], %60 {strides = array<i32>} : memref<8x512xf32, #tpu.memory_space<vmem>>, vector<8x1xf32>,
    %62 = vector.extract_strided_slice %3 {offsets = [0, 142], sizes = [8, 1], strides = [1, 1]} : vector<8x256xf32> to vector<8x1xf32>
    %c0_34 = arith.constant 0 : index
    %c179 = arith.constant 179 : index
    %63 = vector.load %arg5[%c0_34, %c179] : memref<8x512xf32, #tpu.memory_space<vmem>>, vector<8x1xf32>
    tpu.vector_store %arg5[%c0_34, %c179], %62 {strides = array<i32>} : memref<8x512xf32, #tpu.memory_space<vmem>>, vector<8x1xf32>,
    %64 = vector.extract_strided_slice %3 {offsets = [0, 144], sizes = [8, 16], strides = [1, 1]} : vector<8x256xf32> to vector<8x16xf32>
    %c0_35 = arith.constant 0 : index
    %c181 = arith.constant 181 : index
    %65 = vector.load %arg5[%c0_35, %c181] : memref<8x512xf32, #tpu.memory_space<vmem>>, vector<8x16xf32>
    tpu.vector_store %arg5[%c0_35, %c181], %64 {strides = array<i32>} : memref<8x512xf32, #tpu.memory_space<vmem>>, vector<8x16xf32>,
    %66 = vector.extract_strided_slice %3 {offsets = [0, 145], sizes = [8, 1], strides = [1, 1]} : vector<8x256xf32> to vector<8x1xf32>
    %c0_36 = arith.constant 0 : index
    %c180 = arith.constant 180 : index
    %67 = vector.load %arg5[%c0_36, %c180] : memref<8x512xf32, #tpu.memory_space<vmem>>, vector<8x1xf32>
    tpu.vector_store %arg5[%c0_36, %c180], %66 {strides = array<i32>} : memref<8x512xf32, #tpu.memory_space<vmem>>, vector<8x1xf32>,
    %68 = vector.extract_strided_slice %3 {offsets = [0, 158], sizes = [8, 1], strides = [1, 1]} : vector<8x256xf32> to vector<8x1xf32>
    %c0_37 = arith.constant 0 : index
    %c197 = arith.constant 197 : index
    %69 = vector.load %arg5[%c0_37, %c197] : memref<8x512xf32, #tpu.memory_space<vmem>>, vector<8x1xf32>
    tpu.vector_store %arg5[%c0_37, %c197], %68 {strides = array<i32>} : memref<8x512xf32, #tpu.memory_space<vmem>>, vector<8x1xf32>,
    %70 = vector.extract_strided_slice %3 {offsets = [0, 160], sizes = [8, 16], strides = [1, 1]} : vector<8x256xf32> to vector<8x16xf32>
    %c0_38 = arith.constant 0 : index
    %c199 = arith.constant 199 : index
    %71 = vector.load %arg5[%c0_38, %c199] : memref<8x512xf32, #tpu.memory_space<vmem>>, vector<8x16xf32>
    tpu.vector_store %arg5[%c0_38, %c199], %70 {strides = array<i32>} : memref<8x512xf32, #tpu.memory_space<vmem>>, vector<8x16xf32>,
    %72 = vector.extract_strided_slice %3 {offsets = [0, 161], sizes = [8, 1], strides = [1, 1]} : vector<8x256xf32> to vector<8x1xf32>
    %c0_39 = arith.constant 0 : index
    %c198 = arith.constant 198 : index
    %73 = vector.load %arg5[%c0_39, %c198] : memref<8x512xf32, #tpu.memory_space<vmem>>, vector<8x1xf32>
    tpu.vector_store %arg5[%c0_39, %c198], %72 {strides = array<i32>} : memref<8x512xf32, #tpu.memory_space<vmem>>, vector<8x1xf32>,
    %74 = vector.extract_strided_slice %3 {offsets = [0, 174], sizes = [8, 1], strides = [1, 1]} : vector<8x256xf32> to vector<8x1xf32>
    %c0_40 = arith.constant 0 : index
    %c215 = arith.constant 215 : index
    %75 = vector.load %arg5[%c0_40, %c215] : memref<8x512xf32, #tpu.memory_space<vmem>>, vector<8x1xf32>
    tpu.vector_store %arg5[%c0_40, %c215], %74 {strides = array<i32>} : memref<8x512xf32, #tpu.memory_space<vmem>>, vector<8x1xf32>,
    %76 = vector.extract_strided_slice %3 {offsets = [0, 176], sizes = [8, 16], strides = [1, 1]} : vector<8x256xf32> to vector<8x16xf32>
    %c0_41 = arith.constant 0 : index
    %c217 = arith.constant 217 : index
    %77 = vector.load %arg5[%c0_41, %c217] : memref<8x512xf32, #tpu.memory_space<vmem>>, vector<8x16xf32>
    tpu.vector_store %arg5[%c0_41, %c217], %76 {strides = array<i32>} : memref<8x512xf32, #tpu.memory_space<vmem>>, vector<8x16xf32>,
    %78 = vector.extract_strided_slice %3 {offsets = [0, 177], sizes = [8, 1], strides = [1, 1]} : vector<8x256xf32> to vector<8x1xf32>
    %c0_42 = arith.constant 0 : index
    %c216 = arith.constant 216 : index
    %79 = vector.load %arg5[%c0_42, %c216] : memref<8x512xf32, #tpu.memory_space<vmem>>, vector<8x1xf32>
    tpu.vector_store %arg5[%c0_42, %c216], %78 {strides = array<i32>} : memref<8x512xf32, #tpu.memory_space<vmem>>, vector<8x1xf32>,
    %80 = vector.extract_strided_slice %3 {offsets = [0, 190], sizes = [8, 1], strides = [1, 1]} : vector<8x256xf32> to vector<8x1xf32>
    %c0_43 = arith.constant 0 : index
    %c233 = arith.constant 233 : index
    %81 = vector.load %arg5[%c0_43, %c233] : memref<8x512xf32, #tpu.memory_space<vmem>>, vector<8x1xf32>
    tpu.vector_store %arg5[%c0_43, %c233], %80 {strides = array<i32>} : memref<8x512xf32, #tpu.memory_space<vmem>>, vector<8x1xf32>,
    %82 = vector.extract_strided_slice %3 {offsets = [0, 192], sizes = [8, 16], strides = [1, 1]} : vector<8x256xf32> to vector<8x16xf32>
    %c0_44 = arith.constant 0 : index
    %c235 = arith.constant 235 : index
    %83 = vector.load %arg5[%c0_44, %c235] : memref<8x512xf32, #tpu.memory_space<vmem>>, vector<8x16xf32>
    tpu.vector_store %arg5[%c0_44, %c235], %82 {strides = array<i32>} : memref<8x512xf32, #tpu.memory_space<vmem>>, vector<8x16xf32>,
    %84 = vector.extract_strided_slice %3 {offsets = [0, 193], sizes = [8, 1], strides = [1, 1]} : vector<8x256xf32> to vector<8x1xf32>
    %c0_45 = arith.constant 0 : index
    %c234 = arith.constant 234 : index
    %85 = vector.load %arg5[%c0_45, %c234] : memref<8x512xf32, #tpu.memory_space<vmem>>, vector<8x1xf32>
    tpu.vector_store %arg5[%c0_45, %c234], %84 {strides = array<i32>} : memref<8x512xf32, #tpu.memory_space<vmem>>, vector<8x1xf32>,
    %86 = vector.extract_strided_slice %3 {offsets = [0, 206], sizes = [8, 1], strides = [1, 1]} : vector<8x256xf32> to vector<8x1xf32>
    %c0_46 = arith.constant 0 : index
    %c251 = arith.constant 251 : index
    %87 = vector.load %arg5[%c0_46, %c251] : memref<8x512xf32, #tpu.memory_space<vmem>>, vector<8x1xf32>
    tpu.vector_store %arg5[%c0_46, %c251], %86 {strides = array<i32>} : memref<8x512xf32, #tpu.memory_space<vmem>>, vector<8x1xf32>,
    %88 = vector.extract_strided_slice %3 {offsets = [0, 208], sizes = [8, 16], strides = [1, 1]} : vector<8x256xf32> to vector<8x16xf32>
    %c0_47 = arith.constant 0 : index
    %c253 = arith.constant 253 : index
    %89 = vector.load %arg5[%c0_47, %c253] : memref<8x512xf32, #tpu.memory_space<vmem>>, vector<8x16xf32>
    tpu.vector_store %arg5[%c0_47, %c253], %88 {strides = array<i32>} : memref<8x512xf32, #tpu.memory_space<vmem>>, vector<8x16xf32>,
    %90 = vector.extract_strided_slice %3 {offsets = [0, 209], sizes = [8, 1], strides = [1, 1]} : vector<8x256xf32> to vector<8x1xf32>
    %c0_48 = arith.constant 0 : index
    %c252 = arith.constant 252 : index
    %91 = vector.load %arg5[%c0_48, %c252] : memref<8x512xf32, #tpu.memory_space<vmem>>, vector<8x1xf32>
    tpu.vector_store %arg5[%c0_48, %c252], %90 {strides = array<i32>} : memref<8x512xf32, #tpu.memory_space<vmem>>, vector<8x1xf32>,
    %92 = vector.extract_strided_slice %3 {offsets = [0, 222], sizes = [8, 1], strides = [1, 1]} : vector<8x256xf32> to vector<8x1xf32>
    %c0_49 = arith.constant 0 : index
    %c269 = arith.constant 269 : index
    %93 = vector.load %arg5[%c0_49, %c269] : memref<8x512xf32, #tpu.memory_space<vmem>>, vector<8x1xf32>
    tpu.vector_store %arg5[%c0_49, %c269], %92 {strides = array<i32>} : memref<8x512xf32, #tpu.memory_space<vmem>>, vector<8x1xf32>,
    %94 = vector.extract_strided_slice %3 {offsets = [0, 224], sizes = [8, 16], strides = [1, 1]} : vector<8x256xf32> to vector<8x16xf32>
    %c0_50 = arith.constant 0 : index
    %c271 = arith.constant 271 : index
    %95 = vector.load %arg5[%c0_50, %c271] : memref<8x512xf32, #tpu.memory_space<vmem>>, vector<8x16xf32>
    tpu.vector_store %arg5[%c0_50, %c271], %94 {strides = array<i32>} : memref<8x512xf32, #tpu.memory_space<vmem>>, vector<8x16xf32>,
    %96 = vector.extract_strided_slice %3 {offsets = [0, 225], sizes = [8, 1], strides = [1, 1]} : vector<8x256xf32> to vector<8x1xf32>
    %c0_51 = arith.constant 0 : index
    %c270 = arith.constant 270 : index
    %97 = vector.load %arg5[%c0_51, %c270] : memref<8x512xf32, #tpu.memory_space<vmem>>, vector<8x1xf32>
    tpu.vector_store %arg5[%c0_51, %c270], %96 {strides = array<i32>} : memref<8x512xf32, #tpu.memory_space<vmem>>, vector<8x1xf32>,
    %98 = vector.extract_strided_slice %3 {offsets = [0, 238], sizes = [8, 1], strides = [1, 1]} : vector<8x256xf32> to vector<8x1xf32>
    %c0_52 = arith.constant 0 : index
    %c287 = arith.constant 287 : index
    %99 = vector.load %arg5[%c0_52, %c287] : memref<8x512xf32, #tpu.memory_space<vmem>>, vector<8x1xf32>
    tpu.vector_store %arg5[%c0_52, %c287], %98 {strides = array<i32>} : memref<8x512xf32, #tpu.memory_space<vmem>>, vector<8x1xf32>,
    %100 = vector.extract_strided_slice %3 {offsets = [0, 240], sizes = [8, 16], strides = [1, 1]} : vector<8x256xf32> to vector<8x16xf32>
    %c0_53 = arith.constant 0 : index
    %c289 = arith.constant 289 : index
    %101 = vector.load %arg5[%c0_53, %c289] : memref<8x512xf32, #tpu.memory_space<vmem>>, vector<8x16xf32>
    tpu.vector_store %arg5[%c0_53, %c289], %100 {strides = array<i32>} : memref<8x512xf32, #tpu.memory_space<vmem>>, vector<8x16xf32>,
    %102 = vector.extract_strided_slice %3 {offsets = [0, 241], sizes = [8, 1], strides = [1, 1]} : vector<8x256xf32> to vector<8x1xf32>
    %c0_54 = arith.constant 0 : index
    %c288 = arith.constant 288 : index
    %103 = vector.load %arg5[%c0_54, %c288] : memref<8x512xf32, #tpu.memory_space<vmem>>, vector<8x1xf32>
    tpu.vector_store %arg5[%c0_54, %c288], %102 {strides = array<i32>} : memref<8x512xf32, #tpu.memory_space<vmem>>, vector<8x1xf32>,
    %104 = vector.extract_strided_slice %3 {offsets = [0, 254], sizes = [8, 1], strides = [1, 1]} : vector<8x256xf32> to vector<8x1xf32>
    %c0_55 = arith.constant 0 : index
    %c305 = arith.constant 305 : index
    %105 = vector.load %arg5[%c0_55, %c305] : memref<8x512xf32, #tpu.memory_space<vmem>>, vector<8x1xf32>
    tpu.vector_store %arg5[%c0_55, %c305], %104 {strides = array<i32>} : memref<8x512xf32, #tpu.memory_space<vmem>>, vector<8x1xf32>,
    %106 = vector.extract_strided_slice %3 {offsets = [0, 224], sizes = [8, 16], strides = [1, 1]} : vector<8x256xf32> to vector<8x16xf32>
    %c0_56 = arith.constant 0 : index
    %c307 = arith.constant 307 : index
    %107 = vector.load %arg5[%c0_56, %c307] : memref<8x512xf32, #tpu.memory_space<vmem>>, vector<8x16xf32>
    tpu.vector_store %arg5[%c0_56, %c307], %106 {strides = array<i32>} : memref<8x512xf32, #tpu.memory_space<vmem>>, vector<8x16xf32>,
    %108 = vector.extract_strided_slice %3 {offsets = [0, 225], sizes = [8, 1], strides = [1, 1]} : vector<8x256xf32> to vector<8x1xf32>
    %c0_57 = arith.constant 0 : index
    %c306 = arith.constant 306 : index
    %109 = vector.load %arg5[%c0_57, %c306] : memref<8x512xf32, #tpu.memory_space<vmem>>, vector<8x1xf32>
    tpu.vector_store %arg5[%c0_57, %c306], %108 {strides = array<i32>} : memref<8x512xf32, #tpu.memory_space<vmem>>, vector<8x1xf32>,
    %110 = vector.extract_strided_slice %3 {offsets = [0, 238], sizes = [8, 1], strides = [1, 1]} : vector<8x256xf32> to vector<8x1xf32>
    %c0_58 = arith.constant 0 : index
    %c323 = arith.constant 323 : index
    %111 = vector.load %arg5[%c0_58, %c323] : memref<8x512xf32, #tpu.memory_space<vmem>>, vector<8x1xf32>
    tpu.vector_store %arg5[%c0_58, %c323], %110 {strides = array<i32>} : memref<8x512xf32, #tpu.memory_space<vmem>>, vector<8x1xf32>,
    %c0_59 = arith.constant 0 : index
    %c0_60 = arith.constant 0 : index
    %112 = vector.load %arg5[%c0_59, %c0_60] : memref<8x512xf32, #tpu.memory_space<vmem>>, vector<8x288xf32>
    %c0_61 = arith.constant 0 : index
    %c1_62 = arith.constant 1 : index
    %113 = vector.load %arg5[%c0_61, %c1_62] : memref<8x512xf32, #tpu.memory_space<vmem>>, vector<8x288xf32>
    %c0_63 = arith.constant 0 : index
    %c2 = arith.constant 2 : index
    %114 = vector.load %arg5[%c0_63, %c2] : memref<8x512xf32, #tpu.memory_space<vmem>>, vector<8x288xf32>
    %c0_64 = arith.constant 0 : index
    %c18_65 = arith.constant 18 : index
    %115 = vector.load %arg5[%c0_64, %c18_65] : memref<8x512xf32, #tpu.memory_space<vmem>>, vector<8x288xf32>
    %c0_66 = arith.constant 0 : index
    %c19_67 = arith.constant 19 : index
    %116 = vector.load %arg5[%c0_66, %c19_67] : memref<8x512xf32, #tpu.memory_space<vmem>>, vector<8x288xf32>
    %c0_68 = arith.constant 0 : index
    %c20 = arith.constant 20 : index
    %117 = vector.load %arg5[%c0_68, %c20] : memref<8x512xf32, #tpu.memory_space<vmem>>, vector<8x288xf32>
    %c0_69 = arith.constant 0 : index
    %c36_70 = arith.constant 36 : index
    %118 = vector.load %arg5[%c0_69, %c36_70] : memref<8x512xf32, #tpu.memory_space<vmem>>, vector<8x288xf32>
    %c0_71 = arith.constant 0 : index
    %c37_72 = arith.constant 37 : index
    %119 = vector.load %arg5[%c0_71, %c37_72] : memref<8x512xf32, #tpu.memory_space<vmem>>, vector<8x288xf32>
    %c0_73 = arith.constant 0 : index
    %c38 = arith.constant 38 : index
    %120 = vector.load %arg5[%c0_73, %c38] : memref<8x512xf32, #tpu.memory_space<vmem>>, vector<8x288xf32>
    %121 = tpu.concatenate %112, %113, %114, %115, %116, %117, %118, %119, %120 in 0 : vector<8x288xf32>, vector<8x288xf32>, vector<8x288xf32>, vector<8x288xf32>, vector<8x288xf32>, vector<8x288xf32>, vector<8x288xf32>, vector<8x288xf32>, vector<8x288xf32> -> vector<72x288xf32>
    %c0_74 = arith.constant 0 : index
    %c0_75 = arith.constant 0 : index
    %122 = vector.load %arg2[%c0_74, %c0_75] : memref<8x608xf32, #tpu.memory_space<vmem>>, vector<8x72xf32>
    %cst_76 = arith.constant dense<0.000000e+00> : vector<8x288xf32>
    %123 = tpu.matmul %122, %121, %cst_76 {dimension_numbers = #tpu.dot_dimension_numbers<[1], [0], [0], [1], [0, 0, 1, 1], [], []>} : vector<8x72xf32>, vector<72x288xf32>, vector<8x288xf32> -> vector<8x288xf32>
    %c0_77 = arith.constant 0 : index
    %c0_78 = arith.constant 0 : index
    %124 = vector.load %arg3[%c0_77, %c0_78] : memref<8x12xf32, #tpu.memory_space<vmem>>, vector<8x1xf32>
    %125 = vector.broadcast %124 : vector<8x1xf32> to vector<8x288xf32>
    %126 = arith.addf %123, %125 : vector<8x288xf32>
    %cst_79 = arith.constant 1.000000e+00 : f32
    %127 = vector.broadcast %cst_79 : f32 to vector<8x16xf32>
    %cst_80 = arith.constant 0.000000e+00 : f32
    %128 = vector.broadcast %cst_80 : f32 to vector<8x2xf32>
    %129 = tpu.concatenate %127, %128 in 1 : vector<8x16xf32>, vector<8x2xf32> -> vector<8x18xf32>
    %130 = tpu.concatenate %129, %129, %129, %129, %129, %129, %129, %129, %129, %129, %129, %129, %129, %129, %129, %129 in 1 : vector<8x18xf32>, vector<8x18xf32>, vector<8x18xf32>, vector<8x18xf32>, vector<8x18xf32>, vector<8x18xf32>, vector<8x18xf32>, vector<8x18xf32>, vector<8x18xf32>, vector<8x18xf32>, vector<8x18xf32>, vector<8x18xf32>, vector<8x18xf32>, vector<8x18xf32>, vector<8x18xf32>, vector<8x18xf32> -> vector<8x288xf32>
    %cst_81 = arith.constant 5.000000e-01 : f32
    %131 = vector.broadcast %cst_81 : f32 to vector<8x288xf32>
    %132 = arith.cmpf ogt, %130, %131 : vector<8x288xf32>
    %133 = tpu.iota {dimensions = array<i32: 0>} : vector<8x288xi32>
    %c4_i32 = arith.constant 4 : i32
    %134 = vector.broadcast %c4_i32 : i32 to vector<8x288xi32>
    %135 = arith.cmpi slt, %133, %134 : vector<8x288xi32>
    %136 = arith.andi %132, %135 : vector<8x288xi1>
    %cst_82 = arith.constant 0.000000e+00 : f32
    %137 = vector.broadcast %cst_82 : f32 to vector<8x288xf32>
    %138 = arith.select %136, %126, %137 : vector<8x288xi1>, vector<8x288xf32>
    %cst_83 = arith.constant dense<0.000000e+00> : vector<8xf32>
    %139 = vector.multi_reduction <add>, %138, %cst_83 [1] : vector<8x288xf32> to vector<8xf32>
    %140 = vector.shape_cast %139 : vector<8xf32> to vector<8x1xf32>
    %cst_84 = arith.constant dense<0.000000e+00> : vector<1xf32>
    %141 = vector.multi_reduction <add>, %140, %cst_84 [0] : vector<8x1xf32> to vector<1xf32>
    %142 = vector.shape_cast %141 : vector<1xf32> to vector<1x1xf32>
    %cst_85 = arith.constant 1.024000e+03 : f32
    %143 = vector.broadcast %cst_85 : f32 to vector<1x1xf32>
    %144 = arith.divf %142, %143 : vector<1x1xf32>
    %145 = vector.broadcast %144 : vector<1x1xf32> to vector<8x288xf32>
    %146 = arith.subf %126, %145 : vector<8x288xf32>
    %cst_86 = arith.constant 0.000000e+00 : f32
    %147 = vector.broadcast %cst_86 : f32 to vector<8x288xf32>
    %148 = arith.select %136, %146, %147 : vector<8x288xi1>, vector<8x288xf32>
    %149 = arith.mulf %148, %148 : vector<8x288xf32>
    %cst_87 = arith.constant dense<0.000000e+00> : vector<8xf32>
    %150 = vector.multi_reduction <add>, %149, %cst_87 [1] : vector<8x288xf32> to vector<8xf32>
    %151 = vector.shape_cast %150 : vector<8xf32> to vector<8x1xf32>
    %cst_88 = arith.constant dense<0.000000e+00> : vector<1xf32>
    %152 = vector.multi_reduction <add>, %151, %cst_88 [0] : vector<8x1xf32> to vector<1xf32>
    %153 = vector.shape_cast %152 : vector<1xf32> to vector<1x1xf32>
    %cst_89 = arith.constant 1.023000e+03 : f32
    %154 = vector.broadcast %cst_89 : f32 to vector<1x1xf32>
    %155 = arith.divf %153, %154 : vector<1x1xf32>
    %156 = math.sqrt %155 : vector<1x1xf32>
    %cst_90 = arith.constant 9.99999974E-6 : f32
    %157 = vector.broadcast %cst_90 : f32 to vector<1x1xf32>
    %158 = arith.addf %156, %157 : vector<1x1xf32>
    %cst_91 = arith.constant 1.000000e+00 : f32
    %159 = vector.broadcast %cst_91 : f32 to vector<1x1xf32>
    %160 = arith.divf %159, %158 : vector<1x1xf32>
    %c0_92 = arith.constant 0 : index
    %c1_93 = arith.constant 1 : index
    %161 = vector.load %arg3[%c0_92, %c1_93] : memref<8x12xf32, #tpu.memory_space<vmem>>, vector<8x1xf32>
    %162 = vector.broadcast %160 : vector<1x1xf32> to vector<8x1xf32>
    %163 = arith.mulf %161, %162 : vector<8x1xf32>
    %c0_94 = arith.constant 0 : index
    %c2_95 = arith.constant 2 : index
    %164 = vector.load %arg3[%c0_94, %c2_95] : memref<8x12xf32, #tpu.memory_space<vmem>>, vector<8x1xf32>
    %165 = vector.broadcast %144 : vector<1x1xf32> to vector<8x1xf32>
    %166 = arith.mulf %165, %163 : vector<8x1xf32>
    %167 = arith.subf %164, %166 : vector<8x1xf32>
    %168 = vector.broadcast %163 : vector<8x1xf32> to vector<8x288xf32>
    %169 = arith.mulf %126, %168 : vector<8x288xf32>
    %170 = vector.broadcast %167 : vector<8x1xf32> to vector<8x288xf32>
    %171 = arith.addf %169, %170 : vector<8x288xf32>
    %cst_96 = arith.constant 0.000000e+00 : f32
    %172 = vector.broadcast %cst_96 : f32 to vector<8x288xf32>
    %173 = arith.maximumf %171, %172 : vector<8x288xf32>
    %174 = vector.extract_strided_slice %173 {offsets = [0, 18], sizes = [8, 16], strides = [1, 1]} : vector<8x288xf32> to vector<8x16xf32>
    %c0_97 = arith.constant 0 : index
    %c1_98 = arith.constant 1 : index
    %175 = vector.load %arg5[%c0_97, %c1_98] : memref<8x512xf32, #tpu.memory_space<vmem>>, vector<8x16xf32>
    tpu.vector_store %arg5[%c0_97, %c1_98], %174 {strides = array<i32>} : memref<8x512xf32, #tpu.memory_space<vmem>>, vector<8x16xf32>,
    %176 = vector.extract_strided_slice %173 {offsets = [0, 19], sizes = [8, 1], strides = [1, 1]} : vector<8x288xf32> to vector<8x1xf32>
    %c0_99 = arith.constant 0 : index
    %c0_100 = arith.constant 0 : index
    %177 = vector.load %arg5[%c0_99, %c0_100] : memref<8x512xf32, #tpu.memory_space<vmem>>, vector<8x1xf32>
    tpu.vector_store %arg5[%c0_99, %c0_100], %176 {strides = array<i32>} : memref<8x512xf32, #tpu.memory_space<vmem>>, vector<8x1xf32>,
    %178 = vector.extract_strided_slice %173 {offsets = [0, 32], sizes = [8, 1], strides = [1, 1]} : vector<8x288xf32> to vector<8x1xf32>
    %c0_101 = arith.constant 0 : index
    %c17_102 = arith.constant 17 : index
    %179 = vector.load %arg5[%c0_101, %c17_102] : memref<8x512xf32, #tpu.memory_space<vmem>>, vector<8x1xf32>
    tpu.vector_store %arg5[%c0_101, %c17_102], %178 {strides = array<i32>} : memref<8x512xf32, #tpu.memory_space<vmem>>, vector<8x1xf32>,
    %180 = vector.extract_strided_slice %173 {offsets = [0, 0], sizes = [8, 16], strides = [1, 1]} : vector<8x288xf32> to vector<8x16xf32>
    %c0_103 = arith.constant 0 : index
    %c19_104 = arith.constant 19 : index
    %181 = vector.load %arg5[%c0_103, %c19_104] : memref<8x512xf32, #tpu.memory_space<vmem>>, vector<8x16xf32>
    tpu.vector_store %arg5[%c0_103, %c19_104], %180 {strides = array<i32>} : memref<8x512xf32, #tpu.memory_space<vmem>>, vector<8x16xf32>,
    %182 = vector.extract_strided_slice %173 {offsets = [0, 1], sizes = [8, 1], strides = [1, 1]} : vector<8x288xf32> to vector<8x1xf32>
    %c0_105 = arith.constant 0 : index
    %c18_106 = arith.constant 18 : index
    %183 = vector.load %arg5[%c0_105, %c18_106] : memref<8x512xf32, #tpu.memory_space<vmem>>, vector<8x1xf32>
    tpu.vector_store %arg5[%c0_105, %c18_106], %182 {strides = array<i32>} : memref<8x512xf32, #tpu.memory_space<vmem>>, vector<8x1xf32>,
    %184 = vector.extract_strided_slice %173 {offsets = [0, 14], sizes = [8, 1], strides = [1, 1]} : vector<8x288xf32> to vector<8x1xf32>
    %c0_107 = arith.constant 0 : index
    %c35_108 = arith.constant 35 : index
    %185 = vector.load %arg5[%c0_107, %c35_108] : memref<8x512xf32, #tpu.memory_space<vmem>>, vector<8x1xf32>
    tpu.vector_store %arg5[%c0_107, %c35_108], %184 {strides = array<i32>} : memref<8x512xf32, #tpu.memory_space<vmem>>, vector<8x1xf32>,
    %186 = vector.extract_strided_slice %173 {offsets = [0, 18], sizes = [8, 16], strides = [1, 1]} : vector<8x288xf32> to vector<8x16xf32>
    %c0_109 = arith.constant 0 : index
    %c37_110 = arith.constant 37 : index
    %187 = vector.load %arg5[%c0_109, %c37_110] : memref<8x512xf32, #tpu.memory_space<vmem>>, vector<8x16xf32>
    tpu.vector_store %arg5[%c0_109, %c37_110], %186 {strides = array<i32>} : memref<8x512xf32, #tpu.memory_space<vmem>>, vector<8x16xf32>,
    %188 = vector.extract_strided_slice %173 {offsets = [0, 19], sizes = [8, 1], strides = [1, 1]} : vector<8x288xf32> to vector<8x1xf32>
    %c0_111 = arith.constant 0 : index
    %c36_112 = arith.constant 36 : index
    %189 = vector.load %arg5[%c0_111, %c36_112] : memref<8x512xf32, #tpu.memory_space<vmem>>, vector<8x1xf32>
    tpu.vector_store %arg5[%c0_111, %c36_112], %188 {strides = array<i32>} : memref<8x512xf32, #tpu.memory_space<vmem>>, vector<8x1xf32>,
    %190 = vector.extract_strided_slice %173 {offsets = [0, 32], sizes = [8, 1], strides = [1, 1]} : vector<8x288xf32> to vector<8x1xf32>
    %c0_113 = arith.constant 0 : index
    %c53_114 = arith.constant 53 : index
    %191 = vector.load %arg5[%c0_113, %c53_114] : memref<8x512xf32, #tpu.memory_space<vmem>>, vector<8x1xf32>
    tpu.vector_store %arg5[%c0_113, %c53_114], %190 {strides = array<i32>} : memref<8x512xf32, #tpu.memory_space<vmem>>, vector<8x1xf32>,
    %192 = vector.extract_strided_slice %173 {offsets = [0, 36], sizes = [8, 16], strides = [1, 1]} : vector<8x288xf32> to vector<8x16xf32>
    %c0_115 = arith.constant 0 : index
    %c55_116 = arith.constant 55 : index
    %193 = vector.load %arg5[%c0_115, %c55_116] : memref<8x512xf32, #tpu.memory_space<vmem>>, vector<8x16xf32>
    tpu.vector_store %arg5[%c0_115, %c55_116], %192 {strides = array<i32>} : memref<8x512xf32, #tpu.memory_space<vmem>>, vector<8x16xf32>,
    %194 = vector.extract_strided_slice %173 {offsets = [0, 37], sizes = [8, 1], strides = [1, 1]} : vector<8x288xf32> to vector<8x1xf32>
    %c0_117 = arith.constant 0 : index
    %c54_118 = arith.constant 54 : index
    %195 = vector.load %arg5[%c0_117, %c54_118] : memref<8x512xf32, #tpu.memory_space<vmem>>, vector<8x1xf32>
    tpu.vector_store %arg5[%c0_117, %c54_118], %194 {strides = array<i32>} : memref<8x512xf32, #tpu.memory_space<vmem>>, vector<8x1xf32>,
    %196 = vector.extract_strided_slice %173 {offsets = [0, 50], sizes = [8, 1], strides = [1, 1]} : vector<8x288xf32> to vector<8x1xf32>
    %c0_119 = arith.constant 0 : index
    %c71_120 = arith.constant 71 : index
    %197 = vector.load %arg5[%c0_119, %c71_120] : memref<8x512xf32, #tpu.memory_space<vmem>>, vector<8x1xf32>
    tpu.vector_store %arg5[%c0_119, %c71_120], %196 {strides = array<i32>} : memref<8x512xf32, #tpu.memory_space<vmem>>, vector<8x1xf32>,
    %198 = vector.extract_strided_slice %173 {offsets = [0, 54], sizes = [8, 16], strides = [1, 1]} : vector<8x288xf32> to vector<8x16xf32>
    %c0_121 = arith.constant 0 : index
    %c73_122 = arith.constant 73 : index
    %199 = vector.load %arg5[%c0_121, %c73_122] : memref<8x512xf32, #tpu.memory_space<vmem>>, vector<8x16xf32>
    tpu.vector_store %arg5[%c0_121, %c73_122], %198 {strides = array<i32>} : memref<8x512xf32, #tpu.memory_space<vmem>>, vector<8x16xf32>,
    %200 = vector.extract_strided_slice %173 {offsets = [0, 55], sizes = [8, 1], strides = [1, 1]} : vector<8x288xf32> to vector<8x1xf32>
    %c0_123 = arith.constant 0 : index
    %c72_124 = arith.constant 72 : index
    %201 = vector.load %arg5[%c0_123, %c72_124] : memref<8x512xf32, #tpu.memory_space<vmem>>, vector<8x1xf32>
    tpu.vector_store %arg5[%c0_123, %c72_124], %200 {strides = array<i32>} : memref<8x512xf32, #tpu.memory_space<vmem>>, vector<8x1xf32>,
    %202 = vector.extract_strided_slice %173 {offsets = [0, 68], sizes = [8, 1], strides = [1, 1]} : vector<8x288xf32> to vector<8x1xf32>
    %c0_125 = arith.constant 0 : index
    %c89_126 = arith.constant 89 : index
    %203 = vector.load %arg5[%c0_125, %c89_126] : memref<8x512xf32, #tpu.memory_space<vmem>>, vector<8x1xf32>
    tpu.vector_store %arg5[%c0_125, %c89_126], %202 {strides = array<i32>} : memref<8x512xf32, #tpu.memory_space<vmem>>, vector<8x1xf32>,
    %204 = vector.extract_strided_slice %173 {offsets = [0, 72], sizes = [8, 16], strides = [1, 1]} : vector<8x288xf32> to vector<8x16xf32>
    %c0_127 = arith.constant 0 : index
    %c91_128 = arith.constant 91 : index
    %205 = vector.load %arg5[%c0_127, %c91_128] : memref<8x512xf32, #tpu.memory_space<vmem>>, vector<8x16xf32>
    tpu.vector_store %arg5[%c0_127, %c91_128], %204 {strides = array<i32>} : memref<8x512xf32, #tpu.memory_space<vmem>>, vector<8x16xf32>,
    %206 = vector.extract_strided_slice %173 {offsets = [0, 73], sizes = [8, 1], strides = [1, 1]} : vector<8x288xf32> to vector<8x1xf32>
    %c0_129 = arith.constant 0 : index
    %c90_130 = arith.constant 90 : index
    %207 = vector.load %arg5[%c0_129, %c90_130] : memref<8x512xf32, #tpu.memory_space<vmem>>, vector<8x1xf32>
    tpu.vector_store %arg5[%c0_129, %c90_130], %206 {strides = array<i32>} : memref<8x512xf32, #tpu.memory_space<vmem>>, vector<8x1xf32>,
    %208 = vector.extract_strided_slice %173 {offsets = [0, 86], sizes = [8, 1], strides = [1, 1]} : vector<8x288xf32> to vector<8x1xf32>
    %c0_131 = arith.constant 0 : index
    %c107_132 = arith.constant 107 : index
    %209 = vector.load %arg5[%c0_131, %c107_132] : memref<8x512xf32, #tpu.memory_space<vmem>>, vector<8x1xf32>
    tpu.vector_store %arg5[%c0_131, %c107_132], %208 {strides = array<i32>} : memref<8x512xf32, #tpu.memory_space<vmem>>, vector<8x1xf32>,
    %210 = vector.extract_strided_slice %173 {offsets = [0, 90], sizes = [8, 16], strides = [1, 1]} : vector<8x288xf32> to vector<8x16xf32>
    %c0_133 = arith.constant 0 : index
    %c109_134 = arith.constant 109 : index
    %211 = vector.load %arg5[%c0_133, %c109_134] : memref<8x512xf32, #tpu.memory_space<vmem>>, vector<8x16xf32>
    tpu.vector_store %arg5[%c0_133, %c109_134], %210 {strides = array<i32>} : memref<8x512xf32, #tpu.memory_space<vmem>>, vector<8x16xf32>,
    %212 = vector.extract_strided_slice %173 {offsets = [0, 91], sizes = [8, 1], strides = [1, 1]} : vector<8x288xf32> to vector<8x1xf32>
    %c0_135 = arith.constant 0 : index
    %c108_136 = arith.constant 108 : index
    %213 = vector.load %arg5[%c0_135, %c108_136] : memref<8x512xf32, #tpu.memory_space<vmem>>, vector<8x1xf32>
    tpu.vector_store %arg5[%c0_135, %c108_136], %212 {strides = array<i32>} : memref<8x512xf32, #tpu.memory_space<vmem>>, vector<8x1xf32>,
    %214 = vector.extract_strided_slice %173 {offsets = [0, 104], sizes = [8, 1], strides = [1, 1]} : vector<8x288xf32> to vector<8x1xf32>
    %c0_137 = arith.constant 0 : index
    %c125_138 = arith.constant 125 : index
    %215 = vector.load %arg5[%c0_137, %c125_138] : memref<8x512xf32, #tpu.memory_space<vmem>>, vector<8x1xf32>
    tpu.vector_store %arg5[%c0_137, %c125_138], %214 {strides = array<i32>} : memref<8x512xf32, #tpu.memory_space<vmem>>, vector<8x1xf32>,
    %216 = vector.extract_strided_slice %173 {offsets = [0, 108], sizes = [8, 16], strides = [1, 1]} : vector<8x288xf32> to vector<8x16xf32>
    %c0_139 = arith.constant 0 : index
    %c127_140 = arith.constant 127 : index
    %217 = vector.load %arg5[%c0_139, %c127_140] : memref<8x512xf32, #tpu.memory_space<vmem>>, vector<8x16xf32>
    tpu.vector_store %arg5[%c0_139, %c127_140], %216 {strides = array<i32>} : memref<8x512xf32, #tpu.memory_space<vmem>>, vector<8x16xf32>,
    %218 = vector.extract_strided_slice %173 {offsets = [0, 109], sizes = [8, 1], strides = [1, 1]} : vector<8x288xf32> to vector<8x1xf32>
    %c0_141 = arith.constant 0 : index
    %c126_142 = arith.constant 126 : index
    %219 = vector.load %arg5[%c0_141, %c126_142] : memref<8x512xf32, #tpu.memory_space<vmem>>, vector<8x1xf32>
    tpu.vector_store %arg5[%c0_141, %c126_142], %218 {strides = array<i32>} : memref<8x512xf32, #tpu.memory_space<vmem>>, vector<8x1xf32>,
    %220 = vector.extract_strided_slice %173 {offsets = [0, 122], sizes = [8, 1], strides = [1, 1]} : vector<8x288xf32> to vector<8x1xf32>
    %c0_143 = arith.constant 0 : index
    %c143_144 = arith.constant 143 : index
    %221 = vector.load %arg5[%c0_143, %c143_144] : memref<8x512xf32, #tpu.memory_space<vmem>>, vector<8x1xf32>
    tpu.vector_store %arg5[%c0_143, %c143_144], %220 {strides = array<i32>} : memref<8x512xf32, #tpu.memory_space<vmem>>, vector<8x1xf32>,
    %222 = vector.extract_strided_slice %173 {offsets = [0, 126], sizes = [8, 16], strides = [1, 1]} : vector<8x288xf32> to vector<8x16xf32>
    %c0_145 = arith.constant 0 : index
    %c145_146 = arith.constant 145 : index
    %223 = vector.load %arg5[%c0_145, %c145_146] : memref<8x512xf32, #tpu.memory_space<vmem>>, vector<8x16xf32>
    tpu.vector_store %arg5[%c0_145, %c145_146], %222 {strides = array<i32>} : memref<8x512xf32, #tpu.memory_space<vmem>>, vector<8x16xf32>,
    %224 = vector.extract_strided_slice %173 {offsets = [0, 127], sizes = [8, 1], strides = [1, 1]} : vector<8x288xf32> to vector<8x1xf32>
    %c0_147 = arith.constant 0 : index
    %c144_148 = arith.constant 144 : index
    %225 = vector.load %arg5[%c0_147, %c144_148] : memref<8x512xf32, #tpu.memory_space<vmem>>, vector<8x1xf32>
    tpu.vector_store %arg5[%c0_147, %c144_148], %224 {strides = array<i32>} : memref<8x512xf32, #tpu.memory_space<vmem>>, vector<8x1xf32>,
    %226 = vector.extract_strided_slice %173 {offsets = [0, 140], sizes = [8, 1], strides = [1, 1]} : vector<8x288xf32> to vector<8x1xf32>
    %c0_149 = arith.constant 0 : index
    %c161_150 = arith.constant 161 : index
    %227 = vector.load %arg5[%c0_149, %c161_150] : memref<8x512xf32, #tpu.memory_space<vmem>>, vector<8x1xf32>
    tpu.vector_store %arg5[%c0_149, %c161_150], %226 {strides = array<i32>} : memref<8x512xf32, #tpu.memory_space<vmem>>, vector<8x1xf32>,
    %228 = vector.extract_strided_slice %173 {offsets = [0, 144], sizes = [8, 16], strides = [1, 1]} : vector<8x288xf32> to vector<8x16xf32>
    %c0_151 = arith.constant 0 : index
    %c163_152 = arith.constant 163 : index
    %229 = vector.load %arg5[%c0_151, %c163_152] : memref<8x512xf32, #tpu.memory_space<vmem>>, vector<8x16xf32>
    tpu.vector_store %arg5[%c0_151, %c163_152], %228 {strides = array<i32>} : memref<8x512xf32, #tpu.memory_space<vmem>>, vector<8x16xf32>,
    %230 = vector.extract_strided_slice %173 {offsets = [0, 145], sizes = [8, 1], strides = [1, 1]} : vector<8x288xf32> to vector<8x1xf32>
    %c0_153 = arith.constant 0 : index
    %c162_154 = arith.constant 162 : index
    %231 = vector.load %arg5[%c0_153, %c162_154] : memref<8x512xf32, #tpu.memory_space<vmem>>, vector<8x1xf32>
    tpu.vector_store %arg5[%c0_153, %c162_154], %230 {strides = array<i32>} : memref<8x512xf32, #tpu.memory_space<vmem>>, vector<8x1xf32>,
    %232 = vector.extract_strided_slice %173 {offsets = [0, 158], sizes = [8, 1], strides = [1, 1]} : vector<8x288xf32> to vector<8x1xf32>
    %c0_155 = arith.constant 0 : index
    %c179_156 = arith.constant 179 : index
    %233 = vector.load %arg5[%c0_155, %c179_156] : memref<8x512xf32, #tpu.memory_space<vmem>>, vector<8x1xf32>
    tpu.vector_store %arg5[%c0_155, %c179_156], %232 {strides = array<i32>} : memref<8x512xf32, #tpu.memory_space<vmem>>, vector<8x1xf32>,
    %234 = vector.extract_strided_slice %173 {offsets = [0, 162], sizes = [8, 16], strides = [1, 1]} : vector<8x288xf32> to vector<8x16xf32>
    %c0_157 = arith.constant 0 : index
    %c181_158 = arith.constant 181 : index
    %235 = vector.load %arg5[%c0_157, %c181_158] : memref<8x512xf32, #tpu.memory_space<vmem>>, vector<8x16xf32>
    tpu.vector_store %arg5[%c0_157, %c181_158], %234 {strides = array<i32>} : memref<8x512xf32, #tpu.memory_space<vmem>>, vector<8x16xf32>,
    %236 = vector.extract_strided_slice %173 {offsets = [0, 163], sizes = [8, 1], strides = [1, 1]} : vector<8x288xf32> to vector<8x1xf32>
    %c0_159 = arith.constant 0 : index
    %c180_160 = arith.constant 180 : index
    %237 = vector.load %arg5[%c0_159, %c180_160] : memref<8x512xf32, #tpu.memory_space<vmem>>, vector<8x1xf32>
    tpu.vector_store %arg5[%c0_159, %c180_160], %236 {strides = array<i32>} : memref<8x512xf32, #tpu.memory_space<vmem>>, vector<8x1xf32>,
    %238 = vector.extract_strided_slice %173 {offsets = [0, 176], sizes = [8, 1], strides = [1, 1]} : vector<8x288xf32> to vector<8x1xf32>
    %c0_161 = arith.constant 0 : index
    %c197_162 = arith.constant 197 : index
    %239 = vector.load %arg5[%c0_161, %c197_162] : memref<8x512xf32, #tpu.memory_space<vmem>>, vector<8x1xf32>
    tpu.vector_store %arg5[%c0_161, %c197_162], %238 {strides = array<i32>} : memref<8x512xf32, #tpu.memory_space<vmem>>, vector<8x1xf32>,
    %240 = vector.extract_strided_slice %173 {offsets = [0, 180], sizes = [8, 16], strides = [1, 1]} : vector<8x288xf32> to vector<8x16xf32>
    %c0_163 = arith.constant 0 : index
    %c199_164 = arith.constant 199 : index
    %241 = vector.load %arg5[%c0_163, %c199_164] : memref<8x512xf32, #tpu.memory_space<vmem>>, vector<8x16xf32>
    tpu.vector_store %arg5[%c0_163, %c199_164], %240 {strides = array<i32>} : memref<8x512xf32, #tpu.memory_space<vmem>>, vector<8x16xf32>,
    %242 = vector.extract_strided_slice %173 {offsets = [0, 181], sizes = [8, 1], strides = [1, 1]} : vector<8x288xf32> to vector<8x1xf32>
    %c0_165 = arith.constant 0 : index
    %c198_166 = arith.constant 198 : index
    %243 = vector.load %arg5[%c0_165, %c198_166] : memref<8x512xf32, #tpu.memory_space<vmem>>, vector<8x1xf32>
    tpu.vector_store %arg5[%c0_165, %c198_166], %242 {strides = array<i32>} : memref<8x512xf32, #tpu.memory_space<vmem>>, vector<8x1xf32>,
    %244 = vector.extract_strided_slice %173 {offsets = [0, 194], sizes = [8, 1], strides = [1, 1]} : vector<8x288xf32> to vector<8x1xf32>
    %c0_167 = arith.constant 0 : index
    %c215_168 = arith.constant 215 : index
    %245 = vector.load %arg5[%c0_167, %c215_168] : memref<8x512xf32, #tpu.memory_space<vmem>>, vector<8x1xf32>
    tpu.vector_store %arg5[%c0_167, %c215_168], %244 {strides = array<i32>} : memref<8x512xf32, #tpu.memory_space<vmem>>, vector<8x1xf32>,
    %246 = vector.extract_strided_slice %173 {offsets = [0, 198], sizes = [8, 16], strides = [1, 1]} : vector<8x288xf32> to vector<8x16xf32>
    %c0_169 = arith.constant 0 : index
    %c217_170 = arith.constant 217 : index
    %247 = vector.load %arg5[%c0_169, %c217_170] : memref<8x512xf32, #tpu.memory_space<vmem>>, vector<8x16xf32>
    tpu.vector_store %arg5[%c0_169, %c217_170], %246 {strides = array<i32>} : memref<8x512xf32, #tpu.memory_space<vmem>>, vector<8x16xf32>,
    %248 = vector.extract_strided_slice %173 {offsets = [0, 199], sizes = [8, 1], strides = [1, 1]} : vector<8x288xf32> to vector<8x1xf32>
    %c0_171 = arith.constant 0 : index
    %c216_172 = arith.constant 216 : index
    %249 = vector.load %arg5[%c0_171, %c216_172] : memref<8x512xf32, #tpu.memory_space<vmem>>, vector<8x1xf32>
    tpu.vector_store %arg5[%c0_171, %c216_172], %248 {strides = array<i32>} : memref<8x512xf32, #tpu.memory_space<vmem>>, vector<8x1xf32>,
    %250 = vector.extract_strided_slice %173 {offsets = [0, 212], sizes = [8, 1], strides = [1, 1]} : vector<8x288xf32> to vector<8x1xf32>
    %c0_173 = arith.constant 0 : index
    %c233_174 = arith.constant 233 : index
    %251 = vector.load %arg5[%c0_173, %c233_174] : memref<8x512xf32, #tpu.memory_space<vmem>>, vector<8x1xf32>
    tpu.vector_store %arg5[%c0_173, %c233_174], %250 {strides = array<i32>} : memref<8x512xf32, #tpu.memory_space<vmem>>, vector<8x1xf32>,
    %252 = vector.extract_strided_slice %173 {offsets = [0, 216], sizes = [8, 16], strides = [1, 1]} : vector<8x288xf32> to vector<8x16xf32>
    %c0_175 = arith.constant 0 : index
    %c235_176 = arith.constant 235 : index
    %253 = vector.load %arg5[%c0_175, %c235_176] : memref<8x512xf32, #tpu.memory_space<vmem>>, vector<8x16xf32>
    tpu.vector_store %arg5[%c0_175, %c235_176], %252 {strides = array<i32>} : memref<8x512xf32, #tpu.memory_space<vmem>>, vector<8x16xf32>,
    %254 = vector.extract_strided_slice %173 {offsets = [0, 217], sizes = [8, 1], strides = [1, 1]} : vector<8x288xf32> to vector<8x1xf32>
    %c0_177 = arith.constant 0 : index
    %c234_178 = arith.constant 234 : index
    %255 = vector.load %arg5[%c0_177, %c234_178] : memref<8x512xf32, #tpu.memory_space<vmem>>, vector<8x1xf32>
    tpu.vector_store %arg5[%c0_177, %c234_178], %254 {strides = array<i32>} : memref<8x512xf32, #tpu.memory_space<vmem>>, vector<8x1xf32>,
    %256 = vector.extract_strided_slice %173 {offsets = [0, 230], sizes = [8, 1], strides = [1, 1]} : vector<8x288xf32> to vector<8x1xf32>
    %c0_179 = arith.constant 0 : index
    %c251_180 = arith.constant 251 : index
    %257 = vector.load %arg5[%c0_179, %c251_180] : memref<8x512xf32, #tpu.memory_space<vmem>>, vector<8x1xf32>
    tpu.vector_store %arg5[%c0_179, %c251_180], %256 {strides = array<i32>} : memref<8x512xf32, #tpu.memory_space<vmem>>, vector<8x1xf32>,
    %258 = vector.extract_strided_slice %173 {offsets = [0, 234], sizes = [8, 16], strides = [1, 1]} : vector<8x288xf32> to vector<8x16xf32>
    %c0_181 = arith.constant 0 : index
    %c253_182 = arith.constant 253 : index
    %259 = vector.load %arg5[%c0_181, %c253_182] : memref<8x512xf32, #tpu.memory_space<vmem>>, vector<8x16xf32>
    tpu.vector_store %arg5[%c0_181, %c253_182], %258 {strides = array<i32>} : memref<8x512xf32, #tpu.memory_space<vmem>>, vector<8x16xf32>,
    %260 = vector.extract_strided_slice %173 {offsets = [0, 235], sizes = [8, 1], strides = [1, 1]} : vector<8x288xf32> to vector<8x1xf32>
    %c0_183 = arith.constant 0 : index
    %c252_184 = arith.constant 252 : index
    %261 = vector.load %arg5[%c0_183, %c252_184] : memref<8x512xf32, #tpu.memory_space<vmem>>, vector<8x1xf32>
    tpu.vector_store %arg5[%c0_183, %c252_184], %260 {strides = array<i32>} : memref<8x512xf32, #tpu.memory_space<vmem>>, vector<8x1xf32>,
    %262 = vector.extract_strided_slice %173 {offsets = [0, 248], sizes = [8, 1], strides = [1, 1]} : vector<8x288xf32> to vector<8x1xf32>
    %c0_185 = arith.constant 0 : index
    %c269_186 = arith.constant 269 : index
    %263 = vector.load %arg5[%c0_185, %c269_186] : memref<8x512xf32, #tpu.memory_space<vmem>>, vector<8x1xf32>
    tpu.vector_store %arg5[%c0_185, %c269_186], %262 {strides = array<i32>} : memref<8x512xf32, #tpu.memory_space<vmem>>, vector<8x1xf32>,
    %264 = vector.extract_strided_slice %173 {offsets = [0, 252], sizes = [8, 16], strides = [1, 1]} : vector<8x288xf32> to vector<8x16xf32>
    %c0_187 = arith.constant 0 : index
    %c271_188 = arith.constant 271 : index
    %265 = vector.load %arg5[%c0_187, %c271_188] : memref<8x512xf32, #tpu.memory_space<vmem>>, vector<8x16xf32>
    tpu.vector_store %arg5[%c0_187, %c271_188], %264 {strides = array<i32>} : memref<8x512xf32, #tpu.memory_space<vmem>>, vector<8x16xf32>,
    %266 = vector.extract_strided_slice %173 {offsets = [0, 253], sizes = [8, 1], strides = [1, 1]} : vector<8x288xf32> to vector<8x1xf32>
    %c0_189 = arith.constant 0 : index
    %c270_190 = arith.constant 270 : index
    %267 = vector.load %arg5[%c0_189, %c270_190] : memref<8x512xf32, #tpu.memory_space<vmem>>, vector<8x1xf32>
    tpu.vector_store %arg5[%c0_189, %c270_190], %266 {strides = array<i32>} : memref<8x512xf32, #tpu.memory_space<vmem>>, vector<8x1xf32>,
    %268 = vector.extract_strided_slice %173 {offsets = [0, 266], sizes = [8, 1], strides = [1, 1]} : vector<8x288xf32> to vector<8x1xf32>
    %c0_191 = arith.constant 0 : index
    %c287_192 = arith.constant 287 : index
    %269 = vector.load %arg5[%c0_191, %c287_192] : memref<8x512xf32, #tpu.memory_space<vmem>>, vector<8x1xf32>
    tpu.vector_store %arg5[%c0_191, %c287_192], %268 {strides = array<i32>} : memref<8x512xf32, #tpu.memory_space<vmem>>, vector<8x1xf32>,
    %270 = vector.extract_strided_slice %173 {offsets = [0, 270], sizes = [8, 16], strides = [1, 1]} : vector<8x288xf32> to vector<8x16xf32>
    %c0_193 = arith.constant 0 : index
    %c289_194 = arith.constant 289 : index
    %271 = vector.load %arg5[%c0_193, %c289_194] : memref<8x512xf32, #tpu.memory_space<vmem>>, vector<8x16xf32>
    tpu.vector_store %arg5[%c0_193, %c289_194], %270 {strides = array<i32>} : memref<8x512xf32, #tpu.memory_space<vmem>>, vector<8x16xf32>,
    %272 = vector.extract_strided_slice %173 {offsets = [0, 271], sizes = [8, 1], strides = [1, 1]} : vector<8x288xf32> to vector<8x1xf32>
    %c0_195 = arith.constant 0 : index
    %c288_196 = arith.constant 288 : index
    %273 = vector.load %arg5[%c0_195, %c288_196] : memref<8x512xf32, #tpu.memory_space<vmem>>, vector<8x1xf32>
    tpu.vector_store %arg5[%c0_195, %c288_196], %272 {strides = array<i32>} : memref<8x512xf32, #tpu.memory_space<vmem>>, vector<8x1xf32>,
    %274 = vector.extract_strided_slice %173 {offsets = [0, 284], sizes = [8, 1], strides = [1, 1]} : vector<8x288xf32> to vector<8x1xf32>
    %c0_197 = arith.constant 0 : index
    %c305_198 = arith.constant 305 : index
    %275 = vector.load %arg5[%c0_197, %c305_198] : memref<8x512xf32, #tpu.memory_space<vmem>>, vector<8x1xf32>
    tpu.vector_store %arg5[%c0_197, %c305_198], %274 {strides = array<i32>} : memref<8x512xf32, #tpu.memory_space<vmem>>, vector<8x1xf32>,
    %276 = vector.extract_strided_slice %173 {offsets = [0, 252], sizes = [8, 16], strides = [1, 1]} : vector<8x288xf32> to vector<8x16xf32>
    %c0_199 = arith.constant 0 : index
    %c307_200 = arith.constant 307 : index
    %277 = vector.load %arg5[%c0_199, %c307_200] : memref<8x512xf32, #tpu.memory_space<vmem>>, vector<8x16xf32>
    tpu.vector_store %arg5[%c0_199, %c307_200], %276 {strides = array<i32>} : memref<8x512xf32, #tpu.memory_space<vmem>>, vector<8x16xf32>,
    %278 = vector.extract_strided_slice %173 {offsets = [0, 253], sizes = [8, 1], strides = [1, 1]} : vector<8x288xf32> to vector<8x1xf32>
    %c0_201 = arith.constant 0 : index
    %c306_202 = arith.constant 306 : index
    %279 = vector.load %arg5[%c0_201, %c306_202] : memref<8x512xf32, #tpu.memory_space<vmem>>, vector<8x1xf32>
    tpu.vector_store %arg5[%c0_201, %c306_202], %278 {strides = array<i32>} : memref<8x512xf32, #tpu.memory_space<vmem>>, vector<8x1xf32>,
    %280 = vector.extract_strided_slice %173 {offsets = [0, 266], sizes = [8, 1], strides = [1, 1]} : vector<8x288xf32> to vector<8x1xf32>
    %c0_203 = arith.constant 0 : index
    %c323_204 = arith.constant 323 : index
    %281 = vector.load %arg5[%c0_203, %c323_204] : memref<8x512xf32, #tpu.memory_space<vmem>>, vector<8x1xf32>
    tpu.vector_store %arg5[%c0_203, %c323_204], %280 {strides = array<i32>} : memref<8x512xf32, #tpu.memory_space<vmem>>, vector<8x1xf32>,
    %c0_205 = arith.constant 0 : index
    %c0_206 = arith.constant 0 : index
    %282 = vector.load %arg5[%c0_205, %c0_206] : memref<8x512xf32, #tpu.memory_space<vmem>>, vector<8x288xf32>
    %c0_207 = arith.constant 0 : index
    %c1_208 = arith.constant 1 : index
    %283 = vector.load %arg5[%c0_207, %c1_208] : memref<8x512xf32, #tpu.memory_space<vmem>>, vector<8x288xf32>
    %c0_209 = arith.constant 0 : index
    %c2_210 = arith.constant 2 : index
    %284 = vector.load %arg5[%c0_209, %c2_210] : memref<8x512xf32, #tpu.memory_space<vmem>>, vector<8x288xf32>
    %c0_211 = arith.constant 0 : index
    %c18_212 = arith.constant 18 : index
    %285 = vector.load %arg5[%c0_211, %c18_212] : memref<8x512xf32, #tpu.memory_space<vmem>>, vector<8x288xf32>
    %c0_213 = arith.constant 0 : index
    %c19_214 = arith.constant 19 : index
    %286 = vector.load %arg5[%c0_213, %c19_214] : memref<8x512xf32, #tpu.memory_space<vmem>>, vector<8x288xf32>
    %c0_215 = arith.constant 0 : index
    %c20_216 = arith.constant 20 : index
    %287 = vector.load %arg5[%c0_215, %c20_216] : memref<8x512xf32, #tpu.memory_space<vmem>>, vector<8x288xf32>
    %c0_217 = arith.constant 0 : index
    %c36_218 = arith.constant 36 : index
    %288 = vector.load %arg5[%c0_217, %c36_218] : memref<8x512xf32, #tpu.memory_space<vmem>>, vector<8x288xf32>
    %c0_219 = arith.constant 0 : index
    %c37_220 = arith.constant 37 : index
    %289 = vector.load %arg5[%c0_219, %c37_220] : memref<8x512xf32, #tpu.memory_space<vmem>>, vector<8x288xf32>
    %c0_221 = arith.constant 0 : index
    %c38_222 = arith.constant 38 : index
    %290 = vector.load %arg5[%c0_221, %c38_222] : memref<8x512xf32, #tpu.memory_space<vmem>>, vector<8x288xf32>
    %291 = tpu.concatenate %282, %283, %284, %285, %286, %287, %288, %289, %290 in 0 : vector<8x288xf32>, vector<8x288xf32>, vector<8x288xf32>, vector<8x288xf32>, vector<8x288xf32>, vector<8x288xf32>, vector<8x288xf32>, vector<8x288xf32>, vector<8x288xf32> -> vector<72x288xf32>
    %c0_223 = arith.constant 0 : index
    %c72_224 = arith.constant 72 : index
    %292 = vector.load %arg2[%c0_223, %c72_224] : memref<8x608xf32, #tpu.memory_space<vmem>>, vector<8x72xf32>
    %cst_225 = arith.constant dense<0.000000e+00> : vector<8x288xf32>
    %293 = tpu.matmul %292, %291, %cst_225 {dimension_numbers = #tpu.dot_dimension_numbers<[1], [0], [0], [1], [0, 0, 1, 1], [], []>} : vector<8x72xf32>, vector<72x288xf32>, vector<8x288xf32> -> vector<8x288xf32>
    %c0_226 = arith.constant 0 : index
    %c3 = arith.constant 3 : index
    %294 = vector.load %arg3[%c0_226, %c3] : memref<8x12xf32, #tpu.memory_space<vmem>>, vector<8x1xf32>
    %295 = vector.broadcast %294 : vector<8x1xf32> to vector<8x288xf32>
    %296 = arith.addf %293, %295 : vector<8x288xf32>
    %cst_227 = arith.constant 1.000000e+00 : f32
    %297 = vector.broadcast %cst_227 : f32 to vector<8x16xf32>
    %cst_228 = arith.constant 0.000000e+00 : f32
    %298 = vector.broadcast %cst_228 : f32 to vector<8x2xf32>
    %299 = tpu.concatenate %297, %298 in 1 : vector<8x16xf32>, vector<8x2xf32> -> vector<8x18xf32>
    %300 = tpu.concatenate %299, %299, %299, %299, %299, %299, %299, %299, %299, %299, %299, %299, %299, %299, %299, %299 in 1 : vector<8x18xf32>, vector<8x18xf32>, vector<8x18xf32>, vector<8x18xf32>, vector<8x18xf32>, vector<8x18xf32>, vector<8x18xf32>, vector<8x18xf32>, vector<8x18xf32>, vector<8x18xf32>, vector<8x18xf32>, vector<8x18xf32>, vector<8x18xf32>, vector<8x18xf32>, vector<8x18xf32>, vector<8x18xf32> -> vector<8x288xf32>
    %cst_229 = arith.constant 5.000000e-01 : f32
    %301 = vector.broadcast %cst_229 : f32 to vector<8x288xf32>
    %302 = arith.cmpf ogt, %300, %301 : vector<8x288xf32>
    %303 = tpu.iota {dimensions = array<i32: 0>} : vector<8x288xi32>
    %c2_i32 = arith.constant 2 : i32
    %304 = vector.broadcast %c2_i32 : i32 to vector<8x288xi32>
    %305 = arith.cmpi slt, %303, %304 : vector<8x288xi32>
    %306 = arith.andi %302, %305 : vector<8x288xi1>
    %cst_230 = arith.constant 0.000000e+00 : f32
    %307 = vector.broadcast %cst_230 : f32 to vector<8x288xf32>
    %308 = arith.select %306, %296, %307 : vector<8x288xi1>, vector<8x288xf32>
    %cst_231 = arith.constant dense<0.000000e+00> : vector<8xf32>
    %309 = vector.multi_reduction <add>, %308, %cst_231 [1] : vector<8x288xf32> to vector<8xf32>
    %310 = vector.shape_cast %309 : vector<8xf32> to vector<8x1xf32>
    %cst_232 = arith.constant dense<0.000000e+00> : vector<1xf32>
    %311 = vector.multi_reduction <add>, %310, %cst_232 [0] : vector<8x1xf32> to vector<1xf32>
    %312 = vector.shape_cast %311 : vector<1xf32> to vector<1x1xf32>
    %cst_233 = arith.constant 5.120000e+02 : f32
    %313 = vector.broadcast %cst_233 : f32 to vector<1x1xf32>
    %314 = arith.divf %312, %313 : vector<1x1xf32>
    %315 = vector.broadcast %314 : vector<1x1xf32> to vector<8x288xf32>
    %316 = arith.subf %296, %315 : vector<8x288xf32>
    %cst_234 = arith.constant 0.000000e+00 : f32
    %317 = vector.broadcast %cst_234 : f32 to vector<8x288xf32>
    %318 = arith.select %306, %316, %317 : vector<8x288xi1>, vector<8x288xf32>
    %319 = arith.mulf %318, %318 : vector<8x288xf32>
    %cst_235 = arith.constant dense<0.000000e+00> : vector<8xf32>
    %320 = vector.multi_reduction <add>, %319, %cst_235 [1] : vector<8x288xf32> to vector<8xf32>
    %321 = vector.shape_cast %320 : vector<8xf32> to vector<8x1xf32>
    %cst_236 = arith.constant dense<0.000000e+00> : vector<1xf32>
    %322 = vector.multi_reduction <add>, %321, %cst_236 [0] : vector<8x1xf32> to vector<1xf32>
    %323 = vector.shape_cast %322 : vector<1xf32> to vector<1x1xf32>
    %cst_237 = arith.constant 5.110000e+02 : f32
    %324 = vector.broadcast %cst_237 : f32 to vector<1x1xf32>
    %325 = arith.divf %323, %324 : vector<1x1xf32>
    %326 = math.sqrt %325 : vector<1x1xf32>
    %cst_238 = arith.constant 9.99999974E-6 : f32
    %327 = vector.broadcast %cst_238 : f32 to vector<1x1xf32>
    %328 = arith.addf %326, %327 : vector<1x1xf32>
    %cst_239 = arith.constant 1.000000e+00 : f32
    %329 = vector.broadcast %cst_239 : f32 to vector<1x1xf32>
    %330 = arith.divf %329, %328 : vector<1x1xf32>
    %c0_240 = arith.constant 0 : index
    %c4 = arith.constant 4 : index
    %331 = vector.load %arg3[%c0_240, %c4] : memref<8x12xf32, #tpu.memory_space<vmem>>, vector<8x1xf32>
    %332 = vector.broadcast %330 : vector<1x1xf32> to vector<8x1xf32>
    %333 = arith.mulf %331, %332 : vector<8x1xf32>
    %c0_241 = arith.constant 0 : index
    %c5 = arith.constant 5 : index
    %334 = vector.load %arg3[%c0_241, %c5] : memref<8x12xf32, #tpu.memory_space<vmem>>, vector<8x1xf32>
    %335 = vector.broadcast %314 : vector<1x1xf32> to vector<8x1xf32>
    %336 = arith.mulf %335, %333 : vector<8x1xf32>
    %337 = arith.subf %334, %336 : vector<8x1xf32>
    %338 = vector.broadcast %333 : vector<8x1xf32> to vector<8x288xf32>
    %339 = arith.mulf %296, %338 : vector<8x288xf32>
    %340 = vector.broadcast %337 : vector<8x1xf32> to vector<8x288xf32>
    %341 = arith.addf %339, %340 : vector<8x288xf32>
    %cst_242 = arith.constant 0.000000e+00 : f32
    %342 = vector.broadcast %cst_242 : f32 to vector<8x288xf32>
    %343 = arith.maximumf %341, %342 : vector<8x288xf32>
    %344 = vector.extract_strided_slice %343 {offsets = [0, 18], sizes = [8, 16], strides = [1, 1]} : vector<8x288xf32> to vector<8x16xf32>
    %c0_243 = arith.constant 0 : index
    %c1_244 = arith.constant 1 : index
    %345 = vector.load %arg5[%c0_243, %c1_244] : memref<8x512xf32, #tpu.memory_space<vmem>>, vector<8x16xf32>
    tpu.vector_store %arg5[%c0_243, %c1_244], %344 {strides = array<i32>} : memref<8x512xf32, #tpu.memory_space<vmem>>, vector<8x16xf32>,
    %346 = vector.extract_strided_slice %343 {offsets = [0, 19], sizes = [8, 1], strides = [1, 1]} : vector<8x288xf32> to vector<8x1xf32>
    %c0_245 = arith.constant 0 : index
    %c0_246 = arith.constant 0 : index
    %347 = vector.load %arg5[%c0_245, %c0_246] : memref<8x512xf32, #tpu.memory_space<vmem>>, vector<8x1xf32>
    tpu.vector_store %arg5[%c0_245, %c0_246], %346 {strides = array<i32>} : memref<8x512xf32, #tpu.memory_space<vmem>>, vector<8x1xf32>,
    %348 = vector.extract_strided_slice %343 {offsets = [0, 32], sizes = [8, 1], strides = [1, 1]} : vector<8x288xf32> to vector<8x1xf32>
    %c0_247 = arith.constant 0 : index
    %c17_248 = arith.constant 17 : index
    %349 = vector.load %arg5[%c0_247, %c17_248] : memref<8x512xf32, #tpu.memory_space<vmem>>, vector<8x1xf32>
    tpu.vector_store %arg5[%c0_247, %c17_248], %348 {strides = array<i32>} : memref<8x512xf32, #tpu.memory_space<vmem>>, vector<8x1xf32>,
    %350 = vector.extract_strided_slice %343 {offsets = [0, 0], sizes = [8, 16], strides = [1, 1]} : vector<8x288xf32> to vector<8x16xf32>
    %c0_249 = arith.constant 0 : index
    %c19_250 = arith.constant 19 : index
    %351 = vector.load %arg5[%c0_249, %c19_250] : memref<8x512xf32, #tpu.memory_space<vmem>>, vector<8x16xf32>
    tpu.vector_store %arg5[%c0_249, %c19_250], %350 {strides = array<i32>} : memref<8x512xf32, #tpu.memory_space<vmem>>, vector<8x16xf32>,
    %352 = vector.extract_strided_slice %343 {offsets = [0, 1], sizes = [8, 1], strides = [1, 1]} : vector<8x288xf32> to vector<8x1xf32>
    %c0_251 = arith.constant 0 : index
    %c18_252 = arith.constant 18 : index
    %353 = vector.load %arg5[%c0_251, %c18_252] : memref<8x512xf32, #tpu.memory_space<vmem>>, vector<8x1xf32>
    tpu.vector_store %arg5[%c0_251, %c18_252], %352 {strides = array<i32>} : memref<8x512xf32, #tpu.memory_space<vmem>>, vector<8x1xf32>,
    %354 = vector.extract_strided_slice %343 {offsets = [0, 14], sizes = [8, 1], strides = [1, 1]} : vector<8x288xf32> to vector<8x1xf32>
    %c0_253 = arith.constant 0 : index
    %c35_254 = arith.constant 35 : index
    %355 = vector.load %arg5[%c0_253, %c35_254] : memref<8x512xf32, #tpu.memory_space<vmem>>, vector<8x1xf32>
    tpu.vector_store %arg5[%c0_253, %c35_254], %354 {strides = array<i32>} : memref<8x512xf32, #tpu.memory_space<vmem>>, vector<8x1xf32>,
    %356 = vector.extract_strided_slice %343 {offsets = [0, 18], sizes = [8, 16], strides = [1, 1]} : vector<8x288xf32> to vector<8x16xf32>
    %c0_255 = arith.constant 0 : index
    %c37_256 = arith.constant 37 : index
    %357 = vector.load %arg5[%c0_255, %c37_256] : memref<8x512xf32, #tpu.memory_space<vmem>>, vector<8x16xf32>
    tpu.vector_store %arg5[%c0_255, %c37_256], %356 {strides = array<i32>} : memref<8x512xf32, #tpu.memory_space<vmem>>, vector<8x16xf32>,
    %358 = vector.extract_strided_slice %343 {offsets = [0, 19], sizes = [8, 1], strides = [1, 1]} : vector<8x288xf32> to vector<8x1xf32>
    %c0_257 = arith.constant 0 : index
    %c36_258 = arith.constant 36 : index
    %359 = vector.load %arg5[%c0_257, %c36_258] : memref<8x512xf32, #tpu.memory_space<vmem>>, vector<8x1xf32>
    tpu.vector_store %arg5[%c0_257, %c36_258], %358 {strides = array<i32>} : memref<8x512xf32, #tpu.memory_space<vmem>>, vector<8x1xf32>,
    %360 = vector.extract_strided_slice %343 {offsets = [0, 32], sizes = [8, 1], strides = [1, 1]} : vector<8x288xf32> to vector<8x1xf32>
    %c0_259 = arith.constant 0 : index
    %c53_260 = arith.constant 53 : index
    %361 = vector.load %arg5[%c0_259, %c53_260] : memref<8x512xf32, #tpu.memory_space<vmem>>, vector<8x1xf32>
    tpu.vector_store %arg5[%c0_259, %c53_260], %360 {strides = array<i32>} : memref<8x512xf32, #tpu.memory_space<vmem>>, vector<8x1xf32>,
    %362 = vector.extract_strided_slice %343 {offsets = [0, 36], sizes = [8, 16], strides = [1, 1]} : vector<8x288xf32> to vector<8x16xf32>
    %c0_261 = arith.constant 0 : index
    %c55_262 = arith.constant 55 : index
    %363 = vector.load %arg5[%c0_261, %c55_262] : memref<8x512xf32, #tpu.memory_space<vmem>>, vector<8x16xf32>
    tpu.vector_store %arg5[%c0_261, %c55_262], %362 {strides = array<i32>} : memref<8x512xf32, #tpu.memory_space<vmem>>, vector<8x16xf32>,
    %364 = vector.extract_strided_slice %343 {offsets = [0, 37], sizes = [8, 1], strides = [1, 1]} : vector<8x288xf32> to vector<8x1xf32>
    %c0_263 = arith.constant 0 : index
    %c54_264 = arith.constant 54 : index
    %365 = vector.load %arg5[%c0_263, %c54_264] : memref<8x512xf32, #tpu.memory_space<vmem>>, vector<8x1xf32>
    tpu.vector_store %arg5[%c0_263, %c54_264], %364 {strides = array<i32>} : memref<8x512xf32, #tpu.memory_space<vmem>>, vector<8x1xf32>,
    %366 = vector.extract_strided_slice %343 {offsets = [0, 50], sizes = [8, 1], strides = [1, 1]} : vector<8x288xf32> to vector<8x1xf32>
    %c0_265 = arith.constant 0 : index
    %c71_266 = arith.constant 71 : index
    %367 = vector.load %arg5[%c0_265, %c71_266] : memref<8x512xf32, #tpu.memory_space<vmem>>, vector<8x1xf32>
    tpu.vector_store %arg5[%c0_265, %c71_266], %366 {strides = array<i32>} : memref<8x512xf32, #tpu.memory_space<vmem>>, vector<8x1xf32>,
    %368 = vector.extract_strided_slice %343 {offsets = [0, 54], sizes = [8, 16], strides = [1, 1]} : vector<8x288xf32> to vector<8x16xf32>
    %c0_267 = arith.constant 0 : index
    %c73_268 = arith.constant 73 : index
    %369 = vector.load %arg5[%c0_267, %c73_268] : memref<8x512xf32, #tpu.memory_space<vmem>>, vector<8x16xf32>
    tpu.vector_store %arg5[%c0_267, %c73_268], %368 {strides = array<i32>} : memref<8x512xf32, #tpu.memory_space<vmem>>, vector<8x16xf32>,
    %370 = vector.extract_strided_slice %343 {offsets = [0, 55], sizes = [8, 1], strides = [1, 1]} : vector<8x288xf32> to vector<8x1xf32>
    %c0_269 = arith.constant 0 : index
    %c72_270 = arith.constant 72 : index
    %371 = vector.load %arg5[%c0_269, %c72_270] : memref<8x512xf32, #tpu.memory_space<vmem>>, vector<8x1xf32>
    tpu.vector_store %arg5[%c0_269, %c72_270], %370 {strides = array<i32>} : memref<8x512xf32, #tpu.memory_space<vmem>>, vector<8x1xf32>,
    %372 = vector.extract_strided_slice %343 {offsets = [0, 68], sizes = [8, 1], strides = [1, 1]} : vector<8x288xf32> to vector<8x1xf32>
    %c0_271 = arith.constant 0 : index
    %c89_272 = arith.constant 89 : index
    %373 = vector.load %arg5[%c0_271, %c89_272] : memref<8x512xf32, #tpu.memory_space<vmem>>, vector<8x1xf32>
    tpu.vector_store %arg5[%c0_271, %c89_272], %372 {strides = array<i32>} : memref<8x512xf32, #tpu.memory_space<vmem>>, vector<8x1xf32>,
    %374 = vector.extract_strided_slice %343 {offsets = [0, 72], sizes = [8, 16], strides = [1, 1]} : vector<8x288xf32> to vector<8x16xf32>
    %c0_273 = arith.constant 0 : index
    %c91_274 = arith.constant 91 : index
    %375 = vector.load %arg5[%c0_273, %c91_274] : memref<8x512xf32, #tpu.memory_space<vmem>>, vector<8x16xf32>
    tpu.vector_store %arg5[%c0_273, %c91_274], %374 {strides = array<i32>} : memref<8x512xf32, #tpu.memory_space<vmem>>, vector<8x16xf32>,
    %376 = vector.extract_strided_slice %343 {offsets = [0, 73], sizes = [8, 1], strides = [1, 1]} : vector<8x288xf32> to vector<8x1xf32>
    %c0_275 = arith.constant 0 : index
    %c90_276 = arith.constant 90 : index
    %377 = vector.load %arg5[%c0_275, %c90_276] : memref<8x512xf32, #tpu.memory_space<vmem>>, vector<8x1xf32>
    tpu.vector_store %arg5[%c0_275, %c90_276], %376 {strides = array<i32>} : memref<8x512xf32, #tpu.memory_space<vmem>>, vector<8x1xf32>,
    %378 = vector.extract_strided_slice %343 {offsets = [0, 86], sizes = [8, 1], strides = [1, 1]} : vector<8x288xf32> to vector<8x1xf32>
    %c0_277 = arith.constant 0 : index
    %c107_278 = arith.constant 107 : index
    %379 = vector.load %arg5[%c0_277, %c107_278] : memref<8x512xf32, #tpu.memory_space<vmem>>, vector<8x1xf32>
    tpu.vector_store %arg5[%c0_277, %c107_278], %378 {strides = array<i32>} : memref<8x512xf32, #tpu.memory_space<vmem>>, vector<8x1xf32>,
    %380 = vector.extract_strided_slice %343 {offsets = [0, 90], sizes = [8, 16], strides = [1, 1]} : vector<8x288xf32> to vector<8x16xf32>
    %c0_279 = arith.constant 0 : index
    %c109_280 = arith.constant 109 : index
    %381 = vector.load %arg5[%c0_279, %c109_280] : memref<8x512xf32, #tpu.memory_space<vmem>>, vector<8x16xf32>
    tpu.vector_store %arg5[%c0_279, %c109_280], %380 {strides = array<i32>} : memref<8x512xf32, #tpu.memory_space<vmem>>, vector<8x16xf32>,
    %382 = vector.extract_strided_slice %343 {offsets = [0, 91], sizes = [8, 1], strides = [1, 1]} : vector<8x288xf32> to vector<8x1xf32>
    %c0_281 = arith.constant 0 : index
    %c108_282 = arith.constant 108 : index
    %383 = vector.load %arg5[%c0_281, %c108_282] : memref<8x512xf32, #tpu.memory_space<vmem>>, vector<8x1xf32>
    tpu.vector_store %arg5[%c0_281, %c108_282], %382 {strides = array<i32>} : memref<8x512xf32, #tpu.memory_space<vmem>>, vector<8x1xf32>,
    %384 = vector.extract_strided_slice %343 {offsets = [0, 104], sizes = [8, 1], strides = [1, 1]} : vector<8x288xf32> to vector<8x1xf32>
    %c0_283 = arith.constant 0 : index
    %c125_284 = arith.constant 125 : index
    %385 = vector.load %arg5[%c0_283, %c125_284] : memref<8x512xf32, #tpu.memory_space<vmem>>, vector<8x1xf32>
    tpu.vector_store %arg5[%c0_283, %c125_284], %384 {strides = array<i32>} : memref<8x512xf32, #tpu.memory_space<vmem>>, vector<8x1xf32>,
    %386 = vector.extract_strided_slice %343 {offsets = [0, 108], sizes = [8, 16], strides = [1, 1]} : vector<8x288xf32> to vector<8x16xf32>
    %c0_285 = arith.constant 0 : index
    %c127_286 = arith.constant 127 : index
    %387 = vector.load %arg5[%c0_285, %c127_286] : memref<8x512xf32, #tpu.memory_space<vmem>>, vector<8x16xf32>
    tpu.vector_store %arg5[%c0_285, %c127_286], %386 {strides = array<i32>} : memref<8x512xf32, #tpu.memory_space<vmem>>, vector<8x16xf32>,
    %388 = vector.extract_strided_slice %343 {offsets = [0, 109], sizes = [8, 1], strides = [1, 1]} : vector<8x288xf32> to vector<8x1xf32>
    %c0_287 = arith.constant 0 : index
    %c126_288 = arith.constant 126 : index
    %389 = vector.load %arg5[%c0_287, %c126_288] : memref<8x512xf32, #tpu.memory_space<vmem>>, vector<8x1xf32>
    tpu.vector_store %arg5[%c0_287, %c126_288], %388 {strides = array<i32>} : memref<8x512xf32, #tpu.memory_space<vmem>>, vector<8x1xf32>,
    %390 = vector.extract_strided_slice %343 {offsets = [0, 122], sizes = [8, 1], strides = [1, 1]} : vector<8x288xf32> to vector<8x1xf32>
    %c0_289 = arith.constant 0 : index
    %c143_290 = arith.constant 143 : index
    %391 = vector.load %arg5[%c0_289, %c143_290] : memref<8x512xf32, #tpu.memory_space<vmem>>, vector<8x1xf32>
    tpu.vector_store %arg5[%c0_289, %c143_290], %390 {strides = array<i32>} : memref<8x512xf32, #tpu.memory_space<vmem>>, vector<8x1xf32>,
    %392 = vector.extract_strided_slice %343 {offsets = [0, 126], sizes = [8, 16], strides = [1, 1]} : vector<8x288xf32> to vector<8x16xf32>
    %c0_291 = arith.constant 0 : index
    %c145_292 = arith.constant 145 : index
    %393 = vector.load %arg5[%c0_291, %c145_292] : memref<8x512xf32, #tpu.memory_space<vmem>>, vector<8x16xf32>
    tpu.vector_store %arg5[%c0_291, %c145_292], %392 {strides = array<i32>} : memref<8x512xf32, #tpu.memory_space<vmem>>, vector<8x16xf32>,
    %394 = vector.extract_strided_slice %343 {offsets = [0, 127], sizes = [8, 1], strides = [1, 1]} : vector<8x288xf32> to vector<8x1xf32>
    %c0_293 = arith.constant 0 : index
    %c144_294 = arith.constant 144 : index
    %395 = vector.load %arg5[%c0_293, %c144_294] : memref<8x512xf32, #tpu.memory_space<vmem>>, vector<8x1xf32>
    tpu.vector_store %arg5[%c0_293, %c144_294], %394 {strides = array<i32>} : memref<8x512xf32, #tpu.memory_space<vmem>>, vector<8x1xf32>,
    %396 = vector.extract_strided_slice %343 {offsets = [0, 140], sizes = [8, 1], strides = [1, 1]} : vector<8x288xf32> to vector<8x1xf32>
    %c0_295 = arith.constant 0 : index
    %c161_296 = arith.constant 161 : index
    %397 = vector.load %arg5[%c0_295, %c161_296] : memref<8x512xf32, #tpu.memory_space<vmem>>, vector<8x1xf32>
    tpu.vector_store %arg5[%c0_295, %c161_296], %396 {strides = array<i32>} : memref<8x512xf32, #tpu.memory_space<vmem>>, vector<8x1xf32>,
    %398 = vector.extract_strided_slice %343 {offsets = [0, 144], sizes = [8, 16], strides = [1, 1]} : vector<8x288xf32> to vector<8x16xf32>
    %c0_297 = arith.constant 0 : index
    %c163_298 = arith.constant 163 : index
    %399 = vector.load %arg5[%c0_297, %c163_298] : memref<8x512xf32, #tpu.memory_space<vmem>>, vector<8x16xf32>
    tpu.vector_store %arg5[%c0_297, %c163_298], %398 {strides = array<i32>} : memref<8x512xf32, #tpu.memory_space<vmem>>, vector<8x16xf32>,
    %400 = vector.extract_strided_slice %343 {offsets = [0, 145], sizes = [8, 1], strides = [1, 1]} : vector<8x288xf32> to vector<8x1xf32>
    %c0_299 = arith.constant 0 : index
    %c162_300 = arith.constant 162 : index
    %401 = vector.load %arg5[%c0_299, %c162_300] : memref<8x512xf32, #tpu.memory_space<vmem>>, vector<8x1xf32>
    tpu.vector_store %arg5[%c0_299, %c162_300], %400 {strides = array<i32>} : memref<8x512xf32, #tpu.memory_space<vmem>>, vector<8x1xf32>,
    %402 = vector.extract_strided_slice %343 {offsets = [0, 158], sizes = [8, 1], strides = [1, 1]} : vector<8x288xf32> to vector<8x1xf32>
    %c0_301 = arith.constant 0 : index
    %c179_302 = arith.constant 179 : index
    %403 = vector.load %arg5[%c0_301, %c179_302] : memref<8x512xf32, #tpu.memory_space<vmem>>, vector<8x1xf32>
    tpu.vector_store %arg5[%c0_301, %c179_302], %402 {strides = array<i32>} : memref<8x512xf32, #tpu.memory_space<vmem>>, vector<8x1xf32>,
    %404 = vector.extract_strided_slice %343 {offsets = [0, 162], sizes = [8, 16], strides = [1, 1]} : vector<8x288xf32> to vector<8x16xf32>
    %c0_303 = arith.constant 0 : index
    %c181_304 = arith.constant 181 : index
    %405 = vector.load %arg5[%c0_303, %c181_304] : memref<8x512xf32, #tpu.memory_space<vmem>>, vector<8x16xf32>
    tpu.vector_store %arg5[%c0_303, %c181_304], %404 {strides = array<i32>} : memref<8x512xf32, #tpu.memory_space<vmem>>, vector<8x16xf32>,
    %406 = vector.extract_strided_slice %343 {offsets = [0, 163], sizes = [8, 1], strides = [1, 1]} : vector<8x288xf32> to vector<8x1xf32>
    %c0_305 = arith.constant 0 : index
    %c180_306 = arith.constant 180 : index
    %407 = vector.load %arg5[%c0_305, %c180_306] : memref<8x512xf32, #tpu.memory_space<vmem>>, vector<8x1xf32>
    tpu.vector_store %arg5[%c0_305, %c180_306], %406 {strides = array<i32>} : memref<8x512xf32, #tpu.memory_space<vmem>>, vector<8x1xf32>,
    %408 = vector.extract_strided_slice %343 {offsets = [0, 176], sizes = [8, 1], strides = [1, 1]} : vector<8x288xf32> to vector<8x1xf32>
    %c0_307 = arith.constant 0 : index
    %c197_308 = arith.constant 197 : index
    %409 = vector.load %arg5[%c0_307, %c197_308] : memref<8x512xf32, #tpu.memory_space<vmem>>, vector<8x1xf32>
    tpu.vector_store %arg5[%c0_307, %c197_308], %408 {strides = array<i32>} : memref<8x512xf32, #tpu.memory_space<vmem>>, vector<8x1xf32>,
    %410 = vector.extract_strided_slice %343 {offsets = [0, 180], sizes = [8, 16], strides = [1, 1]} : vector<8x288xf32> to vector<8x16xf32>
    %c0_309 = arith.constant 0 : index
    %c199_310 = arith.constant 199 : index
    %411 = vector.load %arg5[%c0_309, %c199_310] : memref<8x512xf32, #tpu.memory_space<vmem>>, vector<8x16xf32>
    tpu.vector_store %arg5[%c0_309, %c199_310], %410 {strides = array<i32>} : memref<8x512xf32, #tpu.memory_space<vmem>>, vector<8x16xf32>,
    %412 = vector.extract_strided_slice %343 {offsets = [0, 181], sizes = [8, 1], strides = [1, 1]} : vector<8x288xf32> to vector<8x1xf32>
    %c0_311 = arith.constant 0 : index
    %c198_312 = arith.constant 198 : index
    %413 = vector.load %arg5[%c0_311, %c198_312] : memref<8x512xf32, #tpu.memory_space<vmem>>, vector<8x1xf32>
    tpu.vector_store %arg5[%c0_311, %c198_312], %412 {strides = array<i32>} : memref<8x512xf32, #tpu.memory_space<vmem>>, vector<8x1xf32>,
    %414 = vector.extract_strided_slice %343 {offsets = [0, 194], sizes = [8, 1], strides = [1, 1]} : vector<8x288xf32> to vector<8x1xf32>
    %c0_313 = arith.constant 0 : index
    %c215_314 = arith.constant 215 : index
    %415 = vector.load %arg5[%c0_313, %c215_314] : memref<8x512xf32, #tpu.memory_space<vmem>>, vector<8x1xf32>
    tpu.vector_store %arg5[%c0_313, %c215_314], %414 {strides = array<i32>} : memref<8x512xf32, #tpu.memory_space<vmem>>, vector<8x1xf32>,
    %416 = vector.extract_strided_slice %343 {offsets = [0, 198], sizes = [8, 16], strides = [1, 1]} : vector<8x288xf32> to vector<8x16xf32>
    %c0_315 = arith.constant 0 : index
    %c217_316 = arith.constant 217 : index
    %417 = vector.load %arg5[%c0_315, %c217_316] : memref<8x512xf32, #tpu.memory_space<vmem>>, vector<8x16xf32>
    tpu.vector_store %arg5[%c0_315, %c217_316], %416 {strides = array<i32>} : memref<8x512xf32, #tpu.memory_space<vmem>>, vector<8x16xf32>,
    %418 = vector.extract_strided_slice %343 {offsets = [0, 199], sizes = [8, 1], strides = [1, 1]} : vector<8x288xf32> to vector<8x1xf32>
    %c0_317 = arith.constant 0 : index
    %c216_318 = arith.constant 216 : index
    %419 = vector.load %arg5[%c0_317, %c216_318] : memref<8x512xf32, #tpu.memory_space<vmem>>, vector<8x1xf32>
    tpu.vector_store %arg5[%c0_317, %c216_318], %418 {strides = array<i32>} : memref<8x512xf32, #tpu.memory_space<vmem>>, vector<8x1xf32>,
    %420 = vector.extract_strided_slice %343 {offsets = [0, 212], sizes = [8, 1], strides = [1, 1]} : vector<8x288xf32> to vector<8x1xf32>
    %c0_319 = arith.constant 0 : index
    %c233_320 = arith.constant 233 : index
    %421 = vector.load %arg5[%c0_319, %c233_320] : memref<8x512xf32, #tpu.memory_space<vmem>>, vector<8x1xf32>
    tpu.vector_store %arg5[%c0_319, %c233_320], %420 {strides = array<i32>} : memref<8x512xf32, #tpu.memory_space<vmem>>, vector<8x1xf32>,
    %422 = vector.extract_strided_slice %343 {offsets = [0, 216], sizes = [8, 16], strides = [1, 1]} : vector<8x288xf32> to vector<8x16xf32>
    %c0_321 = arith.constant 0 : index
    %c235_322 = arith.constant 235 : index
    %423 = vector.load %arg5[%c0_321, %c235_322] : memref<8x512xf32, #tpu.memory_space<vmem>>, vector<8x16xf32>
    tpu.vector_store %arg5[%c0_321, %c235_322], %422 {strides = array<i32>} : memref<8x512xf32, #tpu.memory_space<vmem>>, vector<8x16xf32>,
    %424 = vector.extract_strided_slice %343 {offsets = [0, 217], sizes = [8, 1], strides = [1, 1]} : vector<8x288xf32> to vector<8x1xf32>
    %c0_323 = arith.constant 0 : index
    %c234_324 = arith.constant 234 : index
    %425 = vector.load %arg5[%c0_323, %c234_324] : memref<8x512xf32, #tpu.memory_space<vmem>>, vector<8x1xf32>
    tpu.vector_store %arg5[%c0_323, %c234_324], %424 {strides = array<i32>} : memref<8x512xf32, #tpu.memory_space<vmem>>, vector<8x1xf32>,
    %426 = vector.extract_strided_slice %343 {offsets = [0, 230], sizes = [8, 1], strides = [1, 1]} : vector<8x288xf32> to vector<8x1xf32>
    %c0_325 = arith.constant 0 : index
    %c251_326 = arith.constant 251 : index
    %427 = vector.load %arg5[%c0_325, %c251_326] : memref<8x512xf32, #tpu.memory_space<vmem>>, vector<8x1xf32>
    tpu.vector_store %arg5[%c0_325, %c251_326], %426 {strides = array<i32>} : memref<8x512xf32, #tpu.memory_space<vmem>>, vector<8x1xf32>,
    %428 = vector.extract_strided_slice %343 {offsets = [0, 234], sizes = [8, 16], strides = [1, 1]} : vector<8x288xf32> to vector<8x16xf32>
    %c0_327 = arith.constant 0 : index
    %c253_328 = arith.constant 253 : index
    %429 = vector.load %arg5[%c0_327, %c253_328] : memref<8x512xf32, #tpu.memory_space<vmem>>, vector<8x16xf32>
    tpu.vector_store %arg5[%c0_327, %c253_328], %428 {strides = array<i32>} : memref<8x512xf32, #tpu.memory_space<vmem>>, vector<8x16xf32>,
    %430 = vector.extract_strided_slice %343 {offsets = [0, 235], sizes = [8, 1], strides = [1, 1]} : vector<8x288xf32> to vector<8x1xf32>
    %c0_329 = arith.constant 0 : index
    %c252_330 = arith.constant 252 : index
    %431 = vector.load %arg5[%c0_329, %c252_330] : memref<8x512xf32, #tpu.memory_space<vmem>>, vector<8x1xf32>
    tpu.vector_store %arg5[%c0_329, %c252_330], %430 {strides = array<i32>} : memref<8x512xf32, #tpu.memory_space<vmem>>, vector<8x1xf32>,
    %432 = vector.extract_strided_slice %343 {offsets = [0, 248], sizes = [8, 1], strides = [1, 1]} : vector<8x288xf32> to vector<8x1xf32>
    %c0_331 = arith.constant 0 : index
    %c269_332 = arith.constant 269 : index
    %433 = vector.load %arg5[%c0_331, %c269_332] : memref<8x512xf32, #tpu.memory_space<vmem>>, vector<8x1xf32>
    tpu.vector_store %arg5[%c0_331, %c269_332], %432 {strides = array<i32>} : memref<8x512xf32, #tpu.memory_space<vmem>>, vector<8x1xf32>,
    %434 = vector.extract_strided_slice %343 {offsets = [0, 252], sizes = [8, 16], strides = [1, 1]} : vector<8x288xf32> to vector<8x16xf32>
    %c0_333 = arith.constant 0 : index
    %c271_334 = arith.constant 271 : index
    %435 = vector.load %arg5[%c0_333, %c271_334] : memref<8x512xf32, #tpu.memory_space<vmem>>, vector<8x16xf32>
    tpu.vector_store %arg5[%c0_333, %c271_334], %434 {strides = array<i32>} : memref<8x512xf32, #tpu.memory_space<vmem>>, vector<8x16xf32>,
    %436 = vector.extract_strided_slice %343 {offsets = [0, 253], sizes = [8, 1], strides = [1, 1]} : vector<8x288xf32> to vector<8x1xf32>
    %c0_335 = arith.constant 0 : index
    %c270_336 = arith.constant 270 : index
    %437 = vector.load %arg5[%c0_335, %c270_336] : memref<8x512xf32, #tpu.memory_space<vmem>>, vector<8x1xf32>
    tpu.vector_store %arg5[%c0_335, %c270_336], %436 {strides = array<i32>} : memref<8x512xf32, #tpu.memory_space<vmem>>, vector<8x1xf32>,
    %438 = vector.extract_strided_slice %343 {offsets = [0, 266], sizes = [8, 1], strides = [1, 1]} : vector<8x288xf32> to vector<8x1xf32>
    %c0_337 = arith.constant 0 : index
    %c287_338 = arith.constant 287 : index
    %439 = vector.load %arg5[%c0_337, %c287_338] : memref<8x512xf32, #tpu.memory_space<vmem>>, vector<8x1xf32>
    tpu.vector_store %arg5[%c0_337, %c287_338], %438 {strides = array<i32>} : memref<8x512xf32, #tpu.memory_space<vmem>>, vector<8x1xf32>,
    %440 = vector.extract_strided_slice %343 {offsets = [0, 270], sizes = [8, 16], strides = [1, 1]} : vector<8x288xf32> to vector<8x16xf32>
    %c0_339 = arith.constant 0 : index
    %c289_340 = arith.constant 289 : index
    %441 = vector.load %arg5[%c0_339, %c289_340] : memref<8x512xf32, #tpu.memory_space<vmem>>, vector<8x16xf32>
    tpu.vector_store %arg5[%c0_339, %c289_340], %440 {strides = array<i32>} : memref<8x512xf32, #tpu.memory_space<vmem>>, vector<8x16xf32>,
    %442 = vector.extract_strided_slice %343 {offsets = [0, 271], sizes = [8, 1], strides = [1, 1]} : vector<8x288xf32> to vector<8x1xf32>
    %c0_341 = arith.constant 0 : index
    %c288_342 = arith.constant 288 : index
    %443 = vector.load %arg5[%c0_341, %c288_342] : memref<8x512xf32, #tpu.memory_space<vmem>>, vector<8x1xf32>
    tpu.vector_store %arg5[%c0_341, %c288_342], %442 {strides = array<i32>} : memref<8x512xf32, #tpu.memory_space<vmem>>, vector<8x1xf32>,
    %444 = vector.extract_strided_slice %343 {offsets = [0, 284], sizes = [8, 1], strides = [1, 1]} : vector<8x288xf32> to vector<8x1xf32>
    %c0_343 = arith.constant 0 : index
    %c305_344 = arith.constant 305 : index
    %445 = vector.load %arg5[%c0_343, %c305_344] : memref<8x512xf32, #tpu.memory_space<vmem>>, vector<8x1xf32>
    tpu.vector_store %arg5[%c0_343, %c305_344], %444 {strides = array<i32>} : memref<8x512xf32, #tpu.memory_space<vmem>>, vector<8x1xf32>,
    %446 = vector.extract_strided_slice %343 {offsets = [0, 252], sizes = [8, 16], strides = [1, 1]} : vector<8x288xf32> to vector<8x16xf32>
    %c0_345 = arith.constant 0 : index
    %c307_346 = arith.constant 307 : index
    %447 = vector.load %arg5[%c0_345, %c307_346] : memref<8x512xf32, #tpu.memory_space<vmem>>, vector<8x16xf32>
    tpu.vector_store %arg5[%c0_345, %c307_346], %446 {strides = array<i32>} : memref<8x512xf32, #tpu.memory_space<vmem>>, vector<8x16xf32>,
    %448 = vector.extract_strided_slice %343 {offsets = [0, 253], sizes = [8, 1], strides = [1, 1]} : vector<8x288xf32> to vector<8x1xf32>
    %c0_347 = arith.constant 0 : index
    %c306_348 = arith.constant 306 : index
    %449 = vector.load %arg5[%c0_347, %c306_348] : memref<8x512xf32, #tpu.memory_space<vmem>>, vector<8x1xf32>
    tpu.vector_store %arg5[%c0_347, %c306_348], %448 {strides = array<i32>} : memref<8x512xf32, #tpu.memory_space<vmem>>, vector<8x1xf32>,
    %450 = vector.extract_strided_slice %343 {offsets = [0, 266], sizes = [8, 1], strides = [1, 1]} : vector<8x288xf32> to vector<8x1xf32>
    %c0_349 = arith.constant 0 : index
    %c323_350 = arith.constant 323 : index
    %451 = vector.load %arg5[%c0_349, %c323_350] : memref<8x512xf32, #tpu.memory_space<vmem>>, vector<8x1xf32>
    tpu.vector_store %arg5[%c0_349, %c323_350], %450 {strides = array<i32>} : memref<8x512xf32, #tpu.memory_space<vmem>>, vector<8x1xf32>,
    %c0_351 = arith.constant 0 : index
    %c0_352 = arith.constant 0 : index
    %452 = vector.load %arg5[%c0_351, %c0_352] : memref<8x512xf32, #tpu.memory_space<vmem>>, vector<8x288xf32>
    %c0_353 = arith.constant 0 : index
    %c1_354 = arith.constant 1 : index
    %453 = vector.load %arg5[%c0_353, %c1_354] : memref<8x512xf32, #tpu.memory_space<vmem>>, vector<8x288xf32>
    %c0_355 = arith.constant 0 : index
    %c2_356 = arith.constant 2 : index
    %454 = vector.load %arg5[%c0_355, %c2_356] : memref<8x512xf32, #tpu.memory_space<vmem>>, vector<8x288xf32>
    %c0_357 = arith.constant 0 : index
    %c18_358 = arith.constant 18 : index
    %455 = vector.load %arg5[%c0_357, %c18_358] : memref<8x512xf32, #tpu.memory_space<vmem>>, vector<8x288xf32>
    %c0_359 = arith.constant 0 : index
    %c19_360 = arith.constant 19 : index
    %456 = vector.load %arg5[%c0_359, %c19_360] : memref<8x512xf32, #tpu.memory_space<vmem>>, vector<8x288xf32>
    %c0_361 = arith.constant 0 : index
    %c20_362 = arith.constant 20 : index
    %457 = vector.load %arg5[%c0_361, %c20_362] : memref<8x512xf32, #tpu.memory_space<vmem>>, vector<8x288xf32>
    %c0_363 = arith.constant 0 : index
    %c36_364 = arith.constant 36 : index
    %458 = vector.load %arg5[%c0_363, %c36_364] : memref<8x512xf32, #tpu.memory_space<vmem>>, vector<8x288xf32>
    %c0_365 = arith.constant 0 : index
    %c37_366 = arith.constant 37 : index
    %459 = vector.load %arg5[%c0_365, %c37_366] : memref<8x512xf32, #tpu.memory_space<vmem>>, vector<8x288xf32>
    %c0_367 = arith.constant 0 : index
    %c38_368 = arith.constant 38 : index
    %460 = vector.load %arg5[%c0_367, %c38_368] : memref<8x512xf32, #tpu.memory_space<vmem>>, vector<8x288xf32>
    %461 = tpu.concatenate %452, %453, %454, %455, %456, %457, %458, %459, %460 in 0 : vector<8x288xf32>, vector<8x288xf32>, vector<8x288xf32>, vector<8x288xf32>, vector<8x288xf32>, vector<8x288xf32>, vector<8x288xf32>, vector<8x288xf32>, vector<8x288xf32> -> vector<72x288xf32>
    %c0_369 = arith.constant 0 : index
    %c144_370 = arith.constant 144 : index
    %462 = vector.load %arg2[%c0_369, %c144_370] : memref<8x608xf32, #tpu.memory_space<vmem>>, vector<8x72xf32>
    %cst_371 = arith.constant dense<0.000000e+00> : vector<8x288xf32>
    %463 = tpu.matmul %462, %461, %cst_371 {dimension_numbers = #tpu.dot_dimension_numbers<[1], [0], [0], [1], [0, 0, 1, 1], [], []>} : vector<8x72xf32>, vector<72x288xf32>, vector<8x288xf32> -> vector<8x288xf32>
    %c0_372 = arith.constant 0 : index
    %c6 = arith.constant 6 : index
    %464 = vector.load %arg3[%c0_372, %c6] : memref<8x12xf32, #tpu.memory_space<vmem>>, vector<8x1xf32>
    %465 = vector.broadcast %464 : vector<8x1xf32> to vector<8x288xf32>
    %466 = arith.addf %463, %465 : vector<8x288xf32>
    %cst_373 = arith.constant 1.000000e+00 : f32
    %467 = vector.broadcast %cst_373 : f32 to vector<8x16xf32>
    %cst_374 = arith.constant 0.000000e+00 : f32
    %468 = vector.broadcast %cst_374 : f32 to vector<8x2xf32>
    %469 = tpu.concatenate %467, %468 in 1 : vector<8x16xf32>, vector<8x2xf32> -> vector<8x18xf32>
    %470 = tpu.concatenate %469, %469, %469, %469, %469, %469, %469, %469, %469, %469, %469, %469, %469, %469, %469, %469 in 1 : vector<8x18xf32>, vector<8x18xf32>, vector<8x18xf32>, vector<8x18xf32>, vector<8x18xf32>, vector<8x18xf32>, vector<8x18xf32>, vector<8x18xf32>, vector<8x18xf32>, vector<8x18xf32>, vector<8x18xf32>, vector<8x18xf32>, vector<8x18xf32>, vector<8x18xf32>, vector<8x18xf32>, vector<8x18xf32> -> vector<8x288xf32>
    %cst_375 = arith.constant 5.000000e-01 : f32
    %471 = vector.broadcast %cst_375 : f32 to vector<8x288xf32>
    %472 = arith.cmpf ogt, %470, %471 : vector<8x288xf32>
    %473 = tpu.iota {dimensions = array<i32: 0>} : vector<8x288xi32>
    %c1_i32 = arith.constant 1 : i32
    %474 = vector.broadcast %c1_i32 : i32 to vector<8x288xi32>
    %475 = arith.cmpi slt, %473, %474 : vector<8x288xi32>
    %476 = arith.andi %472, %475 : vector<8x288xi1>
    %cst_376 = arith.constant 0.000000e+00 : f32
    %477 = vector.broadcast %cst_376 : f32 to vector<8x288xf32>
    %478 = arith.select %476, %466, %477 : vector<8x288xi1>, vector<8x288xf32>
    %cst_377 = arith.constant dense<0.000000e+00> : vector<8xf32>
    %479 = vector.multi_reduction <add>, %478, %cst_377 [1] : vector<8x288xf32> to vector<8xf32>
    %480 = vector.shape_cast %479 : vector<8xf32> to vector<8x1xf32>
    %cst_378 = arith.constant dense<0.000000e+00> : vector<1xf32>
    %481 = vector.multi_reduction <add>, %480, %cst_378 [0] : vector<8x1xf32> to vector<1xf32>
    %482 = vector.shape_cast %481 : vector<1xf32> to vector<1x1xf32>
    %cst_379 = arith.constant 2.560000e+02 : f32
    %483 = vector.broadcast %cst_379 : f32 to vector<1x1xf32>
    %484 = arith.divf %482, %483 : vector<1x1xf32>
    %485 = vector.broadcast %484 : vector<1x1xf32> to vector<8x288xf32>
    %486 = arith.subf %466, %485 : vector<8x288xf32>
    %cst_380 = arith.constant 0.000000e+00 : f32
    %487 = vector.broadcast %cst_380 : f32 to vector<8x288xf32>
    %488 = arith.select %476, %486, %487 : vector<8x288xi1>, vector<8x288xf32>
    %489 = arith.mulf %488, %488 : vector<8x288xf32>
    %cst_381 = arith.constant dense<0.000000e+00> : vector<8xf32>
    %490 = vector.multi_reduction <add>, %489, %cst_381 [1] : vector<8x288xf32> to vector<8xf32>
    %491 = vector.shape_cast %490 : vector<8xf32> to vector<8x1xf32>
    %cst_382 = arith.constant dense<0.000000e+00> : vector<1xf32>
    %492 = vector.multi_reduction <add>, %491, %cst_382 [0] : vector<8x1xf32> to vector<1xf32>
    %493 = vector.shape_cast %492 : vector<1xf32> to vector<1x1xf32>
    %cst_383 = arith.constant 2.550000e+02 : f32
    %494 = vector.broadcast %cst_383 : f32 to vector<1x1xf32>
    %495 = arith.divf %493, %494 : vector<1x1xf32>
    %496 = math.sqrt %495 : vector<1x1xf32>
    %cst_384 = arith.constant 9.99999974E-6 : f32
    %497 = vector.broadcast %cst_384 : f32 to vector<1x1xf32>
    %498 = arith.addf %496, %497 : vector<1x1xf32>
    %cst_385 = arith.constant 1.000000e+00 : f32
    %499 = vector.broadcast %cst_385 : f32 to vector<1x1xf32>
    %500 = arith.divf %499, %498 : vector<1x1xf32>
    %c0_386 = arith.constant 0 : index
    %c7 = arith.constant 7 : index
    %501 = vector.load %arg3[%c0_386, %c7] : memref<8x12xf32, #tpu.memory_space<vmem>>, vector<8x1xf32>
    %502 = vector.broadcast %500 : vector<1x1xf32> to vector<8x1xf32>
    %503 = arith.mulf %501, %502 : vector<8x1xf32>
    %c0_387 = arith.constant 0 : index
    %c8 = arith.constant 8 : index
    %504 = vector.load %arg3[%c0_387, %c8] : memref<8x12xf32, #tpu.memory_space<vmem>>, vector<8x1xf32>
    %505 = vector.broadcast %484 : vector<1x1xf32> to vector<8x1xf32>
    %506 = arith.mulf %505, %503 : vector<8x1xf32>
    %507 = arith.subf %504, %506 : vector<8x1xf32>
    %508 = vector.broadcast %503 : vector<8x1xf32> to vector<8x288xf32>
    %509 = arith.mulf %466, %508 : vector<8x288xf32>
    %510 = vector.broadcast %507 : vector<8x1xf32> to vector<8x288xf32>
    %511 = arith.addf %509, %510 : vector<8x288xf32>
    %cst_388 = arith.constant 0.000000e+00 : f32
    %512 = vector.broadcast %cst_388 : f32 to vector<8x288xf32>
    %513 = arith.maximumf %511, %512 : vector<8x288xf32>
    %514 = vector.extract_strided_slice %513 {offsets = [0, 54], sizes = [8, 16], strides = [1, 1]} : vector<8x288xf32> to vector<8x16xf32>
    %c0_389 = arith.constant 0 : index
    %c3_390 = arith.constant 3 : index
    %515 = vector.load %arg5[%c0_389, %c3_390] : memref<8x512xf32, #tpu.memory_space<vmem>>, vector<8x16xf32>
    tpu.vector_store %arg5[%c0_389, %c3_390], %514 {strides = array<i32>} : memref<8x512xf32, #tpu.memory_space<vmem>>, vector<8x16xf32>,
    %516 = vector.extract_strided_slice %513 {offsets = [0, 57], sizes = [8, 1], strides = [1, 1]} : vector<8x288xf32> to vector<8x1xf32>
    %c0_391 = arith.constant 0 : index
    %c0_392 = arith.constant 0 : index
    %517 = vector.load %arg5[%c0_391, %c0_392] : memref<8x512xf32, #tpu.memory_space<vmem>>, vector<8x1xf32>
    tpu.vector_store %arg5[%c0_391, %c0_392], %516 {strides = array<i32>} : memref<8x512xf32, #tpu.memory_space<vmem>>, vector<8x1xf32>,
    %518 = vector.extract_strided_slice %513 {offsets = [0, 56], sizes = [8, 1], strides = [1, 1]} : vector<8x288xf32> to vector<8x1xf32>
    %c0_393 = arith.constant 0 : index
    %c1_394 = arith.constant 1 : index
    %519 = vector.load %arg5[%c0_393, %c1_394] : memref<8x512xf32, #tpu.memory_space<vmem>>, vector<8x1xf32>
    tpu.vector_store %arg5[%c0_393, %c1_394], %518 {strides = array<i32>} : memref<8x512xf32, #tpu.memory_space<vmem>>, vector<8x1xf32>,
    %520 = vector.extract_strided_slice %513 {offsets = [0, 55], sizes = [8, 1], strides = [1, 1]} : vector<8x288xf32> to vector<8x1xf32>
    %c0_395 = arith.constant 0 : index
    %c2_396 = arith.constant 2 : index
    %521 = vector.load %arg5[%c0_395, %c2_396] : memref<8x512xf32, #tpu.memory_space<vmem>>, vector<8x1xf32>
    tpu.vector_store %arg5[%c0_395, %c2_396], %520 {strides = array<i32>} : memref<8x512xf32, #tpu.memory_space<vmem>>, vector<8x1xf32>,
    %522 = vector.extract_strided_slice %513 {offsets = [0, 68], sizes = [8, 1], strides = [1, 1]} : vector<8x288xf32> to vector<8x1xf32>
    %c0_397 = arith.constant 0 : index
    %c19_398 = arith.constant 19 : index
    %523 = vector.load %arg5[%c0_397, %c19_398] : memref<8x512xf32, #tpu.memory_space<vmem>>, vector<8x1xf32>
    tpu.vector_store %arg5[%c0_397, %c19_398], %522 {strides = array<i32>} : memref<8x512xf32, #tpu.memory_space<vmem>>, vector<8x1xf32>,
    %524 = vector.extract_strided_slice %513 {offsets = [0, 67], sizes = [8, 1], strides = [1, 1]} : vector<8x288xf32> to vector<8x1xf32>
    %c0_399 = arith.constant 0 : index
    %c20_400 = arith.constant 20 : index
    %525 = vector.load %arg5[%c0_399, %c20_400] : memref<8x512xf32, #tpu.memory_space<vmem>>, vector<8x1xf32>
    tpu.vector_store %arg5[%c0_399, %c20_400], %524 {strides = array<i32>} : memref<8x512xf32, #tpu.memory_space<vmem>>, vector<8x1xf32>,
    %526 = vector.extract_strided_slice %513 {offsets = [0, 66], sizes = [8, 1], strides = [1, 1]} : vector<8x288xf32> to vector<8x1xf32>
    %c0_401 = arith.constant 0 : index
    %c21 = arith.constant 21 : index
    %527 = vector.load %arg5[%c0_401, %c21] : memref<8x512xf32, #tpu.memory_space<vmem>>, vector<8x1xf32>
    tpu.vector_store %arg5[%c0_401, %c21], %526 {strides = array<i32>} : memref<8x512xf32, #tpu.memory_space<vmem>>, vector<8x1xf32>,
    %528 = vector.extract_strided_slice %513 {offsets = [0, 36], sizes = [8, 16], strides = [1, 1]} : vector<8x288xf32> to vector<8x16xf32>
    %c0_402 = arith.constant 0 : index
    %c25 = arith.constant 25 : index
    %529 = vector.load %arg5[%c0_402, %c25] : memref<8x512xf32, #tpu.memory_space<vmem>>, vector<8x16xf32>
    tpu.vector_store %arg5[%c0_402, %c25], %528 {strides = array<i32>} : memref<8x512xf32, #tpu.memory_space<vmem>>, vector<8x16xf32>,
    %530 = vector.extract_strided_slice %513 {offsets = [0, 39], sizes = [8, 1], strides = [1, 1]} : vector<8x288xf32> to vector<8x1xf32>
    %c0_403 = arith.constant 0 : index
    %c22 = arith.constant 22 : index
    %531 = vector.load %arg5[%c0_403, %c22] : memref<8x512xf32, #tpu.memory_space<vmem>>, vector<8x1xf32>
    tpu.vector_store %arg5[%c0_403, %c22], %530 {strides = array<i32>} : memref<8x512xf32, #tpu.memory_space<vmem>>, vector<8x1xf32>,
    %532 = vector.extract_strided_slice %513 {offsets = [0, 38], sizes = [8, 1], strides = [1, 1]} : vector<8x288xf32> to vector<8x1xf32>
    %c0_404 = arith.constant 0 : index
    %c23 = arith.constant 23 : index
    %533 = vector.load %arg5[%c0_404, %c23] : memref<8x512xf32, #tpu.memory_space<vmem>>, vector<8x1xf32>
    tpu.vector_store %arg5[%c0_404, %c23], %532 {strides = array<i32>} : memref<8x512xf32, #tpu.memory_space<vmem>>, vector<8x1xf32>,
    %534 = vector.extract_strided_slice %513 {offsets = [0, 37], sizes = [8, 1], strides = [1, 1]} : vector<8x288xf32> to vector<8x1xf32>
    %c0_405 = arith.constant 0 : index
    %c24 = arith.constant 24 : index
    %535 = vector.load %arg5[%c0_405, %c24] : memref<8x512xf32, #tpu.memory_space<vmem>>, vector<8x1xf32>
    tpu.vector_store %arg5[%c0_405, %c24], %534 {strides = array<i32>} : memref<8x512xf32, #tpu.memory_space<vmem>>, vector<8x1xf32>,
    %536 = vector.extract_strided_slice %513 {offsets = [0, 50], sizes = [8, 1], strides = [1, 1]} : vector<8x288xf32> to vector<8x1xf32>
    %c0_406 = arith.constant 0 : index
    %c41 = arith.constant 41 : index
    %537 = vector.load %arg5[%c0_406, %c41] : memref<8x512xf32, #tpu.memory_space<vmem>>, vector<8x1xf32>
    tpu.vector_store %arg5[%c0_406, %c41], %536 {strides = array<i32>} : memref<8x512xf32, #tpu.memory_space<vmem>>, vector<8x1xf32>,
    %538 = vector.extract_strided_slice %513 {offsets = [0, 49], sizes = [8, 1], strides = [1, 1]} : vector<8x288xf32> to vector<8x1xf32>
    %c0_407 = arith.constant 0 : index
    %c42 = arith.constant 42 : index
    %539 = vector.load %arg5[%c0_407, %c42] : memref<8x512xf32, #tpu.memory_space<vmem>>, vector<8x1xf32>
    tpu.vector_store %arg5[%c0_407, %c42], %538 {strides = array<i32>} : memref<8x512xf32, #tpu.memory_space<vmem>>, vector<8x1xf32>,
    %540 = vector.extract_strided_slice %513 {offsets = [0, 48], sizes = [8, 1], strides = [1, 1]} : vector<8x288xf32> to vector<8x1xf32>
    %c0_408 = arith.constant 0 : index
    %c43 = arith.constant 43 : index
    %541 = vector.load %arg5[%c0_408, %c43] : memref<8x512xf32, #tpu.memory_space<vmem>>, vector<8x1xf32>
    tpu.vector_store %arg5[%c0_408, %c43], %540 {strides = array<i32>} : memref<8x512xf32, #tpu.memory_space<vmem>>, vector<8x1xf32>,
    %542 = vector.extract_strided_slice %513 {offsets = [0, 18], sizes = [8, 16], strides = [1, 1]} : vector<8x288xf32> to vector<8x16xf32>
    %c0_409 = arith.constant 0 : index
    %c47 = arith.constant 47 : index
    %543 = vector.load %arg5[%c0_409, %c47] : memref<8x512xf32, #tpu.memory_space<vmem>>, vector<8x16xf32>
    tpu.vector_store %arg5[%c0_409, %c47], %542 {strides = array<i32>} : memref<8x512xf32, #tpu.memory_space<vmem>>, vector<8x16xf32>,
    %544 = vector.extract_strided_slice %513 {offsets = [0, 21], sizes = [8, 1], strides = [1, 1]} : vector<8x288xf32> to vector<8x1xf32>
    %c0_410 = arith.constant 0 : index
    %c44 = arith.constant 44 : index
    %545 = vector.load %arg5[%c0_410, %c44] : memref<8x512xf32, #tpu.memory_space<vmem>>, vector<8x1xf32>
    tpu.vector_store %arg5[%c0_410, %c44], %544 {strides = array<i32>} : memref<8x512xf32, #tpu.memory_space<vmem>>, vector<8x1xf32>,
    %546 = vector.extract_strided_slice %513 {offsets = [0, 20], sizes = [8, 1], strides = [1, 1]} : vector<8x288xf32> to vector<8x1xf32>
    %c0_411 = arith.constant 0 : index
    %c45 = arith.constant 45 : index
    %547 = vector.load %arg5[%c0_411, %c45] : memref<8x512xf32, #tpu.memory_space<vmem>>, vector<8x1xf32>
    tpu.vector_store %arg5[%c0_411, %c45], %546 {strides = array<i32>} : memref<8x512xf32, #tpu.memory_space<vmem>>, vector<8x1xf32>,
    %548 = vector.extract_strided_slice %513 {offsets = [0, 19], sizes = [8, 1], strides = [1, 1]} : vector<8x288xf32> to vector<8x1xf32>
    %c0_412 = arith.constant 0 : index
    %c46 = arith.constant 46 : index
    %549 = vector.load %arg5[%c0_412, %c46] : memref<8x512xf32, #tpu.memory_space<vmem>>, vector<8x1xf32>
    tpu.vector_store %arg5[%c0_412, %c46], %548 {strides = array<i32>} : memref<8x512xf32, #tpu.memory_space<vmem>>, vector<8x1xf32>,
    %550 = vector.extract_strided_slice %513 {offsets = [0, 32], sizes = [8, 1], strides = [1, 1]} : vector<8x288xf32> to vector<8x1xf32>
    %c0_413 = arith.constant 0 : index
    %c63 = arith.constant 63 : index
    %551 = vector.load %arg5[%c0_413, %c63] : memref<8x512xf32, #tpu.memory_space<vmem>>, vector<8x1xf32>
    tpu.vector_store %arg5[%c0_413, %c63], %550 {strides = array<i32>} : memref<8x512xf32, #tpu.memory_space<vmem>>, vector<8x1xf32>,
    %552 = vector.extract_strided_slice %513 {offsets = [0, 31], sizes = [8, 1], strides = [1, 1]} : vector<8x288xf32> to vector<8x1xf32>
    %c0_414 = arith.constant 0 : index
    %c64 = arith.constant 64 : index
    %553 = vector.load %arg5[%c0_414, %c64] : memref<8x512xf32, #tpu.memory_space<vmem>>, vector<8x1xf32>
    tpu.vector_store %arg5[%c0_414, %c64], %552 {strides = array<i32>} : memref<8x512xf32, #tpu.memory_space<vmem>>, vector<8x1xf32>,
    %554 = vector.extract_strided_slice %513 {offsets = [0, 30], sizes = [8, 1], strides = [1, 1]} : vector<8x288xf32> to vector<8x1xf32>
    %c0_415 = arith.constant 0 : index
    %c65 = arith.constant 65 : index
    %555 = vector.load %arg5[%c0_415, %c65] : memref<8x512xf32, #tpu.memory_space<vmem>>, vector<8x1xf32>
    tpu.vector_store %arg5[%c0_415, %c65], %554 {strides = array<i32>} : memref<8x512xf32, #tpu.memory_space<vmem>>, vector<8x1xf32>,
    %556 = vector.extract_strided_slice %513 {offsets = [0, 0], sizes = [8, 16], strides = [1, 1]} : vector<8x288xf32> to vector<8x16xf32>
    %c0_416 = arith.constant 0 : index
    %c69 = arith.constant 69 : index
    %557 = vector.load %arg5[%c0_416, %c69] : memref<8x512xf32, #tpu.memory_space<vmem>>, vector<8x16xf32>
    tpu.vector_store %arg5[%c0_416, %c69], %556 {strides = array<i32>} : memref<8x512xf32, #tpu.memory_space<vmem>>, vector<8x16xf32>,
    %558 = vector.extract_strided_slice %513 {offsets = [0, 3], sizes = [8, 1], strides = [1, 1]} : vector<8x288xf32> to vector<8x1xf32>
    %c0_417 = arith.constant 0 : index
    %c66 = arith.constant 66 : index
    %559 = vector.load %arg5[%c0_417, %c66] : memref<8x512xf32, #tpu.memory_space<vmem>>, vector<8x1xf32>
    tpu.vector_store %arg5[%c0_417, %c66], %558 {strides = array<i32>} : memref<8x512xf32, #tpu.memory_space<vmem>>, vector<8x1xf32>,
    %560 = vector.extract_strided_slice %513 {offsets = [0, 2], sizes = [8, 1], strides = [1, 1]} : vector<8x288xf32> to vector<8x1xf32>
    %c0_418 = arith.constant 0 : index
    %c67 = arith.constant 67 : index
    %561 = vector.load %arg5[%c0_418, %c67] : memref<8x512xf32, #tpu.memory_space<vmem>>, vector<8x1xf32>
    tpu.vector_store %arg5[%c0_418, %c67], %560 {strides = array<i32>} : memref<8x512xf32, #tpu.memory_space<vmem>>, vector<8x1xf32>,
    %562 = vector.extract_strided_slice %513 {offsets = [0, 1], sizes = [8, 1], strides = [1, 1]} : vector<8x288xf32> to vector<8x1xf32>
    %c0_419 = arith.constant 0 : index
    %c68 = arith.constant 68 : index
    %563 = vector.load %arg5[%c0_419, %c68] : memref<8x512xf32, #tpu.memory_space<vmem>>, vector<8x1xf32>
    tpu.vector_store %arg5[%c0_419, %c68], %562 {strides = array<i32>} : memref<8x512xf32, #tpu.memory_space<vmem>>, vector<8x1xf32>,
    %564 = vector.extract_strided_slice %513 {offsets = [0, 14], sizes = [8, 1], strides = [1, 1]} : vector<8x288xf32> to vector<8x1xf32>
    %c0_420 = arith.constant 0 : index
    %c85 = arith.constant 85 : index
    %565 = vector.load %arg5[%c0_420, %c85] : memref<8x512xf32, #tpu.memory_space<vmem>>, vector<8x1xf32>
    tpu.vector_store %arg5[%c0_420, %c85], %564 {strides = array<i32>} : memref<8x512xf32, #tpu.memory_space<vmem>>, vector<8x1xf32>,
    %566 = vector.extract_strided_slice %513 {offsets = [0, 13], sizes = [8, 1], strides = [1, 1]} : vector<8x288xf32> to vector<8x1xf32>
    %c0_421 = arith.constant 0 : index
    %c86 = arith.constant 86 : index
    %567 = vector.load %arg5[%c0_421, %c86] : memref<8x512xf32, #tpu.memory_space<vmem>>, vector<8x1xf32>
    tpu.vector_store %arg5[%c0_421, %c86], %566 {strides = array<i32>} : memref<8x512xf32, #tpu.memory_space<vmem>>, vector<8x1xf32>,
    %568 = vector.extract_strided_slice %513 {offsets = [0, 12], sizes = [8, 1], strides = [1, 1]} : vector<8x288xf32> to vector<8x1xf32>
    %c0_422 = arith.constant 0 : index
    %c87 = arith.constant 87 : index
    %569 = vector.load %arg5[%c0_422, %c87] : memref<8x512xf32, #tpu.memory_space<vmem>>, vector<8x1xf32>
    tpu.vector_store %arg5[%c0_422, %c87], %568 {strides = array<i32>} : memref<8x512xf32, #tpu.memory_space<vmem>>, vector<8x1xf32>,
    %570 = vector.extract_strided_slice %513 {offsets = [0, 18], sizes = [8, 16], strides = [1, 1]} : vector<8x288xf32> to vector<8x16xf32>
    %c0_423 = arith.constant 0 : index
    %c91_424 = arith.constant 91 : index
    %571 = vector.load %arg5[%c0_423, %c91_424] : memref<8x512xf32, #tpu.memory_space<vmem>>, vector<8x16xf32>
    tpu.vector_store %arg5[%c0_423, %c91_424], %570 {strides = array<i32>} : memref<8x512xf32, #tpu.memory_space<vmem>>, vector<8x16xf32>,
    %572 = vector.extract_strided_slice %513 {offsets = [0, 21], sizes = [8, 1], strides = [1, 1]} : vector<8x288xf32> to vector<8x1xf32>
    %c0_425 = arith.constant 0 : index
    %c88 = arith.constant 88 : index
    %573 = vector.load %arg5[%c0_425, %c88] : memref<8x512xf32, #tpu.memory_space<vmem>>, vector<8x1xf32>
    tpu.vector_store %arg5[%c0_425, %c88], %572 {strides = array<i32>} : memref<8x512xf32, #tpu.memory_space<vmem>>, vector<8x1xf32>,
    %574 = vector.extract_strided_slice %513 {offsets = [0, 20], sizes = [8, 1], strides = [1, 1]} : vector<8x288xf32> to vector<8x1xf32>
    %c0_426 = arith.constant 0 : index
    %c89_427 = arith.constant 89 : index
    %575 = vector.load %arg5[%c0_426, %c89_427] : memref<8x512xf32, #tpu.memory_space<vmem>>, vector<8x1xf32>
    tpu.vector_store %arg5[%c0_426, %c89_427], %574 {strides = array<i32>} : memref<8x512xf32, #tpu.memory_space<vmem>>, vector<8x1xf32>,
    %576 = vector.extract_strided_slice %513 {offsets = [0, 19], sizes = [8, 1], strides = [1, 1]} : vector<8x288xf32> to vector<8x1xf32>
    %c0_428 = arith.constant 0 : index
    %c90_429 = arith.constant 90 : index
    %577 = vector.load %arg5[%c0_428, %c90_429] : memref<8x512xf32, #tpu.memory_space<vmem>>, vector<8x1xf32>
    tpu.vector_store %arg5[%c0_428, %c90_429], %576 {strides = array<i32>} : memref<8x512xf32, #tpu.memory_space<vmem>>, vector<8x1xf32>,
    %578 = vector.extract_strided_slice %513 {offsets = [0, 32], sizes = [8, 1], strides = [1, 1]} : vector<8x288xf32> to vector<8x1xf32>
    %c0_430 = arith.constant 0 : index
    %c107_431 = arith.constant 107 : index
    %579 = vector.load %arg5[%c0_430, %c107_431] : memref<8x512xf32, #tpu.memory_space<vmem>>, vector<8x1xf32>
    tpu.vector_store %arg5[%c0_430, %c107_431], %578 {strides = array<i32>} : memref<8x512xf32, #tpu.memory_space<vmem>>, vector<8x1xf32>,
    %580 = vector.extract_strided_slice %513 {offsets = [0, 31], sizes = [8, 1], strides = [1, 1]} : vector<8x288xf32> to vector<8x1xf32>
    %c0_432 = arith.constant 0 : index
    %c108_433 = arith.constant 108 : index
    %581 = vector.load %arg5[%c0_432, %c108_433] : memref<8x512xf32, #tpu.memory_space<vmem>>, vector<8x1xf32>
    tpu.vector_store %arg5[%c0_432, %c108_433], %580 {strides = array<i32>} : memref<8x512xf32, #tpu.memory_space<vmem>>, vector<8x1xf32>,
    %582 = vector.extract_strided_slice %513 {offsets = [0, 30], sizes = [8, 1], strides = [1, 1]} : vector<8x288xf32> to vector<8x1xf32>
    %c0_434 = arith.constant 0 : index
    %c109_435 = arith.constant 109 : index
    %583 = vector.load %arg5[%c0_434, %c109_435] : memref<8x512xf32, #tpu.memory_space<vmem>>, vector<8x1xf32>
    tpu.vector_store %arg5[%c0_434, %c109_435], %582 {strides = array<i32>} : memref<8x512xf32, #tpu.memory_space<vmem>>, vector<8x1xf32>,
    %584 = vector.extract_strided_slice %513 {offsets = [0, 36], sizes = [8, 16], strides = [1, 1]} : vector<8x288xf32> to vector<8x16xf32>
    %c0_436 = arith.constant 0 : index
    %c113 = arith.constant 113 : index
    %585 = vector.load %arg5[%c0_436, %c113] : memref<8x512xf32, #tpu.memory_space<vmem>>, vector<8x16xf32>
    tpu.vector_store %arg5[%c0_436, %c113], %584 {strides = array<i32>} : memref<8x512xf32, #tpu.memory_space<vmem>>, vector<8x16xf32>,
    %586 = vector.extract_strided_slice %513 {offsets = [0, 39], sizes = [8, 1], strides = [1, 1]} : vector<8x288xf32> to vector<8x1xf32>
    %c0_437 = arith.constant 0 : index
    %c110 = arith.constant 110 : index
    %587 = vector.load %arg5[%c0_437, %c110] : memref<8x512xf32, #tpu.memory_space<vmem>>, vector<8x1xf32>
    tpu.vector_store %arg5[%c0_437, %c110], %586 {strides = array<i32>} : memref<8x512xf32, #tpu.memory_space<vmem>>, vector<8x1xf32>,
    %588 = vector.extract_strided_slice %513 {offsets = [0, 38], sizes = [8, 1], strides = [1, 1]} : vector<8x288xf32> to vector<8x1xf32>
    %c0_438 = arith.constant 0 : index
    %c111 = arith.constant 111 : index
    %589 = vector.load %arg5[%c0_438, %c111] : memref<8x512xf32, #tpu.memory_space<vmem>>, vector<8x1xf32>
    tpu.vector_store %arg5[%c0_438, %c111], %588 {strides = array<i32>} : memref<8x512xf32, #tpu.memory_space<vmem>>, vector<8x1xf32>,
    %590 = vector.extract_strided_slice %513 {offsets = [0, 37], sizes = [8, 1], strides = [1, 1]} : vector<8x288xf32> to vector<8x1xf32>
    %c0_439 = arith.constant 0 : index
    %c112 = arith.constant 112 : index
    %591 = vector.load %arg5[%c0_439, %c112] : memref<8x512xf32, #tpu.memory_space<vmem>>, vector<8x1xf32>
    tpu.vector_store %arg5[%c0_439, %c112], %590 {strides = array<i32>} : memref<8x512xf32, #tpu.memory_space<vmem>>, vector<8x1xf32>,
    %592 = vector.extract_strided_slice %513 {offsets = [0, 50], sizes = [8, 1], strides = [1, 1]} : vector<8x288xf32> to vector<8x1xf32>
    %c0_440 = arith.constant 0 : index
    %c129 = arith.constant 129 : index
    %593 = vector.load %arg5[%c0_440, %c129] : memref<8x512xf32, #tpu.memory_space<vmem>>, vector<8x1xf32>
    tpu.vector_store %arg5[%c0_440, %c129], %592 {strides = array<i32>} : memref<8x512xf32, #tpu.memory_space<vmem>>, vector<8x1xf32>,
    %594 = vector.extract_strided_slice %513 {offsets = [0, 49], sizes = [8, 1], strides = [1, 1]} : vector<8x288xf32> to vector<8x1xf32>
    %c0_441 = arith.constant 0 : index
    %c130 = arith.constant 130 : index
    %595 = vector.load %arg5[%c0_441, %c130] : memref<8x512xf32, #tpu.memory_space<vmem>>, vector<8x1xf32>
    tpu.vector_store %arg5[%c0_441, %c130], %594 {strides = array<i32>} : memref<8x512xf32, #tpu.memory_space<vmem>>, vector<8x1xf32>,
    %596 = vector.extract_strided_slice %513 {offsets = [0, 48], sizes = [8, 1], strides = [1, 1]} : vector<8x288xf32> to vector<8x1xf32>
    %c0_442 = arith.constant 0 : index
    %c131 = arith.constant 131 : index
    %597 = vector.load %arg5[%c0_442, %c131] : memref<8x512xf32, #tpu.memory_space<vmem>>, vector<8x1xf32>
    tpu.vector_store %arg5[%c0_442, %c131], %596 {strides = array<i32>} : memref<8x512xf32, #tpu.memory_space<vmem>>, vector<8x1xf32>,
    %598 = vector.extract_strided_slice %513 {offsets = [0, 54], sizes = [8, 16], strides = [1, 1]} : vector<8x288xf32> to vector<8x16xf32>
    %c0_443 = arith.constant 0 : index
    %c135 = arith.constant 135 : index
    %599 = vector.load %arg5[%c0_443, %c135] : memref<8x512xf32, #tpu.memory_space<vmem>>, vector<8x16xf32>
    tpu.vector_store %arg5[%c0_443, %c135], %598 {strides = array<i32>} : memref<8x512xf32, #tpu.memory_space<vmem>>, vector<8x16xf32>,
    %600 = vector.extract_strided_slice %513 {offsets = [0, 57], sizes = [8, 1], strides = [1, 1]} : vector<8x288xf32> to vector<8x1xf32>
    %c0_444 = arith.constant 0 : index
    %c132 = arith.constant 132 : index
    %601 = vector.load %arg5[%c0_444, %c132] : memref<8x512xf32, #tpu.memory_space<vmem>>, vector<8x1xf32>
    tpu.vector_store %arg5[%c0_444, %c132], %600 {strides = array<i32>} : memref<8x512xf32, #tpu.memory_space<vmem>>, vector<8x1xf32>,
    %602 = vector.extract_strided_slice %513 {offsets = [0, 56], sizes = [8, 1], strides = [1, 1]} : vector<8x288xf32> to vector<8x1xf32>
    %c0_445 = arith.constant 0 : index
    %c133 = arith.constant 133 : index
    %603 = vector.load %arg5[%c0_445, %c133] : memref<8x512xf32, #tpu.memory_space<vmem>>, vector<8x1xf32>
    tpu.vector_store %arg5[%c0_445, %c133], %602 {strides = array<i32>} : memref<8x512xf32, #tpu.memory_space<vmem>>, vector<8x1xf32>,
    %604 = vector.extract_strided_slice %513 {offsets = [0, 55], sizes = [8, 1], strides = [1, 1]} : vector<8x288xf32> to vector<8x1xf32>
    %c0_446 = arith.constant 0 : index
    %c134 = arith.constant 134 : index
    %605 = vector.load %arg5[%c0_446, %c134] : memref<8x512xf32, #tpu.memory_space<vmem>>, vector<8x1xf32>
    tpu.vector_store %arg5[%c0_446, %c134], %604 {strides = array<i32>} : memref<8x512xf32, #tpu.memory_space<vmem>>, vector<8x1xf32>,
    %606 = vector.extract_strided_slice %513 {offsets = [0, 68], sizes = [8, 1], strides = [1, 1]} : vector<8x288xf32> to vector<8x1xf32>
    %c0_447 = arith.constant 0 : index
    %c151 = arith.constant 151 : index
    %607 = vector.load %arg5[%c0_447, %c151] : memref<8x512xf32, #tpu.memory_space<vmem>>, vector<8x1xf32>
    tpu.vector_store %arg5[%c0_447, %c151], %606 {strides = array<i32>} : memref<8x512xf32, #tpu.memory_space<vmem>>, vector<8x1xf32>,
    %608 = vector.extract_strided_slice %513 {offsets = [0, 67], sizes = [8, 1], strides = [1, 1]} : vector<8x288xf32> to vector<8x1xf32>
    %c0_448 = arith.constant 0 : index
    %c152 = arith.constant 152 : index
    %609 = vector.load %arg5[%c0_448, %c152] : memref<8x512xf32, #tpu.memory_space<vmem>>, vector<8x1xf32>
    tpu.vector_store %arg5[%c0_448, %c152], %608 {strides = array<i32>} : memref<8x512xf32, #tpu.memory_space<vmem>>, vector<8x1xf32>,
    %610 = vector.extract_strided_slice %513 {offsets = [0, 66], sizes = [8, 1], strides = [1, 1]} : vector<8x288xf32> to vector<8x1xf32>
    %c0_449 = arith.constant 0 : index
    %c153 = arith.constant 153 : index
    %611 = vector.load %arg5[%c0_449, %c153] : memref<8x512xf32, #tpu.memory_space<vmem>>, vector<8x1xf32>
    tpu.vector_store %arg5[%c0_449, %c153], %610 {strides = array<i32>} : memref<8x512xf32, #tpu.memory_space<vmem>>, vector<8x1xf32>,
    %612 = vector.extract_strided_slice %513 {offsets = [0, 72], sizes = [8, 16], strides = [1, 1]} : vector<8x288xf32> to vector<8x16xf32>
    %c0_450 = arith.constant 0 : index
    %c157 = arith.constant 157 : index
    %613 = vector.load %arg5[%c0_450, %c157] : memref<8x512xf32, #tpu.memory_space<vmem>>, vector<8x16xf32>
    tpu.vector_store %arg5[%c0_450, %c157], %612 {strides = array<i32>} : memref<8x512xf32, #tpu.memory_space<vmem>>, vector<8x16xf32>,
    %614 = vector.extract_strided_slice %513 {offsets = [0, 75], sizes = [8, 1], strides = [1, 1]} : vector<8x288xf32> to vector<8x1xf32>
    %c0_451 = arith.constant 0 : index
    %c154 = arith.constant 154 : index
    %615 = vector.load %arg5[%c0_451, %c154] : memref<8x512xf32, #tpu.memory_space<vmem>>, vector<8x1xf32>
    tpu.vector_store %arg5[%c0_451, %c154], %614 {strides = array<i32>} : memref<8x512xf32, #tpu.memory_space<vmem>>, vector<8x1xf32>,
    %616 = vector.extract_strided_slice %513 {offsets = [0, 74], sizes = [8, 1], strides = [1, 1]} : vector<8x288xf32> to vector<8x1xf32>
    %c0_452 = arith.constant 0 : index
    %c155 = arith.constant 155 : index
    %617 = vector.load %arg5[%c0_452, %c155] : memref<8x512xf32, #tpu.memory_space<vmem>>, vector<8x1xf32>
    tpu.vector_store %arg5[%c0_452, %c155], %616 {strides = array<i32>} : memref<8x512xf32, #tpu.memory_space<vmem>>, vector<8x1xf32>,
    %618 = vector.extract_strided_slice %513 {offsets = [0, 73], sizes = [8, 1], strides = [1, 1]} : vector<8x288xf32> to vector<8x1xf32>
    %c0_453 = arith.constant 0 : index
    %c156 = arith.constant 156 : index
    %619 = vector.load %arg5[%c0_453, %c156] : memref<8x512xf32, #tpu.memory_space<vmem>>, vector<8x1xf32>
    tpu.vector_store %arg5[%c0_453, %c156], %618 {strides = array<i32>} : memref<8x512xf32, #tpu.memory_space<vmem>>, vector<8x1xf32>,
    %620 = vector.extract_strided_slice %513 {offsets = [0, 86], sizes = [8, 1], strides = [1, 1]} : vector<8x288xf32> to vector<8x1xf32>
    %c0_454 = arith.constant 0 : index
    %c173 = arith.constant 173 : index
    %621 = vector.load %arg5[%c0_454, %c173] : memref<8x512xf32, #tpu.memory_space<vmem>>, vector<8x1xf32>
    tpu.vector_store %arg5[%c0_454, %c173], %620 {strides = array<i32>} : memref<8x512xf32, #tpu.memory_space<vmem>>, vector<8x1xf32>,
    %622 = vector.extract_strided_slice %513 {offsets = [0, 85], sizes = [8, 1], strides = [1, 1]} : vector<8x288xf32> to vector<8x1xf32>
    %c0_455 = arith.constant 0 : index
    %c174 = arith.constant 174 : index
    %623 = vector.load %arg5[%c0_455, %c174] : memref<8x512xf32, #tpu.memory_space<vmem>>, vector<8x1xf32>
    tpu.vector_store %arg5[%c0_455, %c174], %622 {strides = array<i32>} : memref<8x512xf32, #tpu.memory_space<vmem>>, vector<8x1xf32>,
    %624 = vector.extract_strided_slice %513 {offsets = [0, 84], sizes = [8, 1], strides = [1, 1]} : vector<8x288xf32> to vector<8x1xf32>
    %c0_456 = arith.constant 0 : index
    %c175 = arith.constant 175 : index
    %625 = vector.load %arg5[%c0_456, %c175] : memref<8x512xf32, #tpu.memory_space<vmem>>, vector<8x1xf32>
    tpu.vector_store %arg5[%c0_456, %c175], %624 {strides = array<i32>} : memref<8x512xf32, #tpu.memory_space<vmem>>, vector<8x1xf32>,
    %626 = vector.extract_strided_slice %513 {offsets = [0, 90], sizes = [8, 16], strides = [1, 1]} : vector<8x288xf32> to vector<8x16xf32>
    %c0_457 = arith.constant 0 : index
    %c179_458 = arith.constant 179 : index
    %627 = vector.load %arg5[%c0_457, %c179_458] : memref<8x512xf32, #tpu.memory_space<vmem>>, vector<8x16xf32>
    tpu.vector_store %arg5[%c0_457, %c179_458], %626 {strides = array<i32>} : memref<8x512xf32, #tpu.memory_space<vmem>>, vector<8x16xf32>,
    %628 = vector.extract_strided_slice %513 {offsets = [0, 93], sizes = [8, 1], strides = [1, 1]} : vector<8x288xf32> to vector<8x1xf32>
    %c0_459 = arith.constant 0 : index
    %c176 = arith.constant 176 : index
    %629 = vector.load %arg5[%c0_459, %c176] : memref<8x512xf32, #tpu.memory_space<vmem>>, vector<8x1xf32>
    tpu.vector_store %arg5[%c0_459, %c176], %628 {strides = array<i32>} : memref<8x512xf32, #tpu.memory_space<vmem>>, vector<8x1xf32>,
    %630 = vector.extract_strided_slice %513 {offsets = [0, 92], sizes = [8, 1], strides = [1, 1]} : vector<8x288xf32> to vector<8x1xf32>
    %c0_460 = arith.constant 0 : index
    %c177 = arith.constant 177 : index
    %631 = vector.load %arg5[%c0_460, %c177] : memref<8x512xf32, #tpu.memory_space<vmem>>, vector<8x1xf32>
    tpu.vector_store %arg5[%c0_460, %c177], %630 {strides = array<i32>} : memref<8x512xf32, #tpu.memory_space<vmem>>, vector<8x1xf32>,
    %632 = vector.extract_strided_slice %513 {offsets = [0, 91], sizes = [8, 1], strides = [1, 1]} : vector<8x288xf32> to vector<8x1xf32>
    %c0_461 = arith.constant 0 : index
    %c178 = arith.constant 178 : index
    %633 = vector.load %arg5[%c0_461, %c178] : memref<8x512xf32, #tpu.memory_space<vmem>>, vector<8x1xf32>
    tpu.vector_store %arg5[%c0_461, %c178], %632 {strides = array<i32>} : memref<8x512xf32, #tpu.memory_space<vmem>>, vector<8x1xf32>,
    %634 = vector.extract_strided_slice %513 {offsets = [0, 104], sizes = [8, 1], strides = [1, 1]} : vector<8x288xf32> to vector<8x1xf32>
    %c0_462 = arith.constant 0 : index
    %c195 = arith.constant 195 : index
    %635 = vector.load %arg5[%c0_462, %c195] : memref<8x512xf32, #tpu.memory_space<vmem>>, vector<8x1xf32>
    tpu.vector_store %arg5[%c0_462, %c195], %634 {strides = array<i32>} : memref<8x512xf32, #tpu.memory_space<vmem>>, vector<8x1xf32>,
    %636 = vector.extract_strided_slice %513 {offsets = [0, 103], sizes = [8, 1], strides = [1, 1]} : vector<8x288xf32> to vector<8x1xf32>
    %c0_463 = arith.constant 0 : index
    %c196 = arith.constant 196 : index
    %637 = vector.load %arg5[%c0_463, %c196] : memref<8x512xf32, #tpu.memory_space<vmem>>, vector<8x1xf32>
    tpu.vector_store %arg5[%c0_463, %c196], %636 {strides = array<i32>} : memref<8x512xf32, #tpu.memory_space<vmem>>, vector<8x1xf32>,
    %638 = vector.extract_strided_slice %513 {offsets = [0, 102], sizes = [8, 1], strides = [1, 1]} : vector<8x288xf32> to vector<8x1xf32>
    %c0_464 = arith.constant 0 : index
    %c197_465 = arith.constant 197 : index
    %639 = vector.load %arg5[%c0_464, %c197_465] : memref<8x512xf32, #tpu.memory_space<vmem>>, vector<8x1xf32>
    tpu.vector_store %arg5[%c0_464, %c197_465], %638 {strides = array<i32>} : memref<8x512xf32, #tpu.memory_space<vmem>>, vector<8x1xf32>,
    %640 = vector.extract_strided_slice %513 {offsets = [0, 108], sizes = [8, 16], strides = [1, 1]} : vector<8x288xf32> to vector<8x16xf32>
    %c0_466 = arith.constant 0 : index
    %c201 = arith.constant 201 : index
    %641 = vector.load %arg5[%c0_466, %c201] : memref<8x512xf32, #tpu.memory_space<vmem>>, vector<8x16xf32>
    tpu.vector_store %arg5[%c0_466, %c201], %640 {strides = array<i32>} : memref<8x512xf32, #tpu.memory_space<vmem>>, vector<8x16xf32>,
    %642 = vector.extract_strided_slice %513 {offsets = [0, 111], sizes = [8, 1], strides = [1, 1]} : vector<8x288xf32> to vector<8x1xf32>
    %c0_467 = arith.constant 0 : index
    %c198_468 = arith.constant 198 : index
    %643 = vector.load %arg5[%c0_467, %c198_468] : memref<8x512xf32, #tpu.memory_space<vmem>>, vector<8x1xf32>
    tpu.vector_store %arg5[%c0_467, %c198_468], %642 {strides = array<i32>} : memref<8x512xf32, #tpu.memory_space<vmem>>, vector<8x1xf32>,
    %644 = vector.extract_strided_slice %513 {offsets = [0, 110], sizes = [8, 1], strides = [1, 1]} : vector<8x288xf32> to vector<8x1xf32>
    %c0_469 = arith.constant 0 : index
    %c199_470 = arith.constant 199 : index
    %645 = vector.load %arg5[%c0_469, %c199_470] : memref<8x512xf32, #tpu.memory_space<vmem>>, vector<8x1xf32>
    tpu.vector_store %arg5[%c0_469, %c199_470], %644 {strides = array<i32>} : memref<8x512xf32, #tpu.memory_space<vmem>>, vector<8x1xf32>,
    %646 = vector.extract_strided_slice %513 {offsets = [0, 109], sizes = [8, 1], strides = [1, 1]} : vector<8x288xf32> to vector<8x1xf32>
    %c0_471 = arith.constant 0 : index
    %c200 = arith.constant 200 : index
    %647 = vector.load %arg5[%c0_471, %c200] : memref<8x512xf32, #tpu.memory_space<vmem>>, vector<8x1xf32>
    tpu.vector_store %arg5[%c0_471, %c200], %646 {strides = array<i32>} : memref<8x512xf32, #tpu.memory_space<vmem>>, vector<8x1xf32>,
    %648 = vector.extract_strided_slice %513 {offsets = [0, 122], sizes = [8, 1], strides = [1, 1]} : vector<8x288xf32> to vector<8x1xf32>
    %c0_472 = arith.constant 0 : index
    %c217_473 = arith.constant 217 : index
    %649 = vector.load %arg5[%c0_472, %c217_473] : memref<8x512xf32, #tpu.memory_space<vmem>>, vector<8x1xf32>
    tpu.vector_store %arg5[%c0_472, %c217_473], %648 {strides = array<i32>} : memref<8x512xf32, #tpu.memory_space<vmem>>, vector<8x1xf32>,
    %650 = vector.extract_strided_slice %513 {offsets = [0, 121], sizes = [8, 1], strides = [1, 1]} : vector<8x288xf32> to vector<8x1xf32>
    %c0_474 = arith.constant 0 : index
    %c218 = arith.constant 218 : index
    %651 = vector.load %arg5[%c0_474, %c218] : memref<8x512xf32, #tpu.memory_space<vmem>>, vector<8x1xf32>
    tpu.vector_store %arg5[%c0_474, %c218], %650 {strides = array<i32>} : memref<8x512xf32, #tpu.memory_space<vmem>>, vector<8x1xf32>,
    %652 = vector.extract_strided_slice %513 {offsets = [0, 120], sizes = [8, 1], strides = [1, 1]} : vector<8x288xf32> to vector<8x1xf32>
    %c0_475 = arith.constant 0 : index
    %c219 = arith.constant 219 : index
    %653 = vector.load %arg5[%c0_475, %c219] : memref<8x512xf32, #tpu.memory_space<vmem>>, vector<8x1xf32>
    tpu.vector_store %arg5[%c0_475, %c219], %652 {strides = array<i32>} : memref<8x512xf32, #tpu.memory_space<vmem>>, vector<8x1xf32>,
    %654 = vector.extract_strided_slice %513 {offsets = [0, 126], sizes = [8, 16], strides = [1, 1]} : vector<8x288xf32> to vector<8x16xf32>
    %c0_476 = arith.constant 0 : index
    %c223 = arith.constant 223 : index
    %655 = vector.load %arg5[%c0_476, %c223] : memref<8x512xf32, #tpu.memory_space<vmem>>, vector<8x16xf32>
    tpu.vector_store %arg5[%c0_476, %c223], %654 {strides = array<i32>} : memref<8x512xf32, #tpu.memory_space<vmem>>, vector<8x16xf32>,
    %656 = vector.extract_strided_slice %513 {offsets = [0, 129], sizes = [8, 1], strides = [1, 1]} : vector<8x288xf32> to vector<8x1xf32>
    %c0_477 = arith.constant 0 : index
    %c220 = arith.constant 220 : index
    %657 = vector.load %arg5[%c0_477, %c220] : memref<8x512xf32, #tpu.memory_space<vmem>>, vector<8x1xf32>
    tpu.vector_store %arg5[%c0_477, %c220], %656 {strides = array<i32>} : memref<8x512xf32, #tpu.memory_space<vmem>>, vector<8x1xf32>,
    %658 = vector.extract_strided_slice %513 {offsets = [0, 128], sizes = [8, 1], strides = [1, 1]} : vector<8x288xf32> to vector<8x1xf32>
    %c0_478 = arith.constant 0 : index
    %c221 = arith.constant 221 : index
    %659 = vector.load %arg5[%c0_478, %c221] : memref<8x512xf32, #tpu.memory_space<vmem>>, vector<8x1xf32>
    tpu.vector_store %arg5[%c0_478, %c221], %658 {strides = array<i32>} : memref<8x512xf32, #tpu.memory_space<vmem>>, vector<8x1xf32>,
    %660 = vector.extract_strided_slice %513 {offsets = [0, 127], sizes = [8, 1], strides = [1, 1]} : vector<8x288xf32> to vector<8x1xf32>
    %c0_479 = arith.constant 0 : index
    %c222 = arith.constant 222 : index
    %661 = vector.load %arg5[%c0_479, %c222] : memref<8x512xf32, #tpu.memory_space<vmem>>, vector<8x1xf32>
    tpu.vector_store %arg5[%c0_479, %c222], %660 {strides = array<i32>} : memref<8x512xf32, #tpu.memory_space<vmem>>, vector<8x1xf32>,
    %662 = vector.extract_strided_slice %513 {offsets = [0, 140], sizes = [8, 1], strides = [1, 1]} : vector<8x288xf32> to vector<8x1xf32>
    %c0_480 = arith.constant 0 : index
    %c239 = arith.constant 239 : index
    %663 = vector.load %arg5[%c0_480, %c239] : memref<8x512xf32, #tpu.memory_space<vmem>>, vector<8x1xf32>
    tpu.vector_store %arg5[%c0_480, %c239], %662 {strides = array<i32>} : memref<8x512xf32, #tpu.memory_space<vmem>>, vector<8x1xf32>,
    %664 = vector.extract_strided_slice %513 {offsets = [0, 139], sizes = [8, 1], strides = [1, 1]} : vector<8x288xf32> to vector<8x1xf32>
    %c0_481 = arith.constant 0 : index
    %c240 = arith.constant 240 : index
    %665 = vector.load %arg5[%c0_481, %c240] : memref<8x512xf32, #tpu.memory_space<vmem>>, vector<8x1xf32>
    tpu.vector_store %arg5[%c0_481, %c240], %664 {strides = array<i32>} : memref<8x512xf32, #tpu.memory_space<vmem>>, vector<8x1xf32>,
    %666 = vector.extract_strided_slice %513 {offsets = [0, 138], sizes = [8, 1], strides = [1, 1]} : vector<8x288xf32> to vector<8x1xf32>
    %c0_482 = arith.constant 0 : index
    %c241 = arith.constant 241 : index
    %667 = vector.load %arg5[%c0_482, %c241] : memref<8x512xf32, #tpu.memory_space<vmem>>, vector<8x1xf32>
    tpu.vector_store %arg5[%c0_482, %c241], %666 {strides = array<i32>} : memref<8x512xf32, #tpu.memory_space<vmem>>, vector<8x1xf32>,
    %668 = vector.extract_strided_slice %513 {offsets = [0, 144], sizes = [8, 16], strides = [1, 1]} : vector<8x288xf32> to vector<8x16xf32>
    %c0_483 = arith.constant 0 : index
    %c245 = arith.constant 245 : index
    %669 = vector.load %arg5[%c0_483, %c245] : memref<8x512xf32, #tpu.memory_space<vmem>>, vector<8x16xf32>
    tpu.vector_store %arg5[%c0_483, %c245], %668 {strides = array<i32>} : memref<8x512xf32, #tpu.memory_space<vmem>>, vector<8x16xf32>,
    %670 = vector.extract_strided_slice %513 {offsets = [0, 147], sizes = [8, 1], strides = [1, 1]} : vector<8x288xf32> to vector<8x1xf32>
    %c0_484 = arith.constant 0 : index
    %c242 = arith.constant 242 : index
    %671 = vector.load %arg5[%c0_484, %c242] : memref<8x512xf32, #tpu.memory_space<vmem>>, vector<8x1xf32>
    tpu.vector_store %arg5[%c0_484, %c242], %670 {strides = array<i32>} : memref<8x512xf32, #tpu.memory_space<vmem>>, vector<8x1xf32>,
    %672 = vector.extract_strided_slice %513 {offsets = [0, 146], sizes = [8, 1], strides = [1, 1]} : vector<8x288xf32> to vector<8x1xf32>
    %c0_485 = arith.constant 0 : index
    %c243 = arith.constant 243 : index
    %673 = vector.load %arg5[%c0_485, %c243] : memref<8x512xf32, #tpu.memory_space<vmem>>, vector<8x1xf32>
    tpu.vector_store %arg5[%c0_485, %c243], %672 {strides = array<i32>} : memref<8x512xf32, #tpu.memory_space<vmem>>, vector<8x1xf32>,
    %674 = vector.extract_strided_slice %513 {offsets = [0, 145], sizes = [8, 1], strides = [1, 1]} : vector<8x288xf32> to vector<8x1xf32>
    %c0_486 = arith.constant 0 : index
    %c244 = arith.constant 244 : index
    %675 = vector.load %arg5[%c0_486, %c244] : memref<8x512xf32, #tpu.memory_space<vmem>>, vector<8x1xf32>
    tpu.vector_store %arg5[%c0_486, %c244], %674 {strides = array<i32>} : memref<8x512xf32, #tpu.memory_space<vmem>>, vector<8x1xf32>,
    %676 = vector.extract_strided_slice %513 {offsets = [0, 158], sizes = [8, 1], strides = [1, 1]} : vector<8x288xf32> to vector<8x1xf32>
    %c0_487 = arith.constant 0 : index
    %c261 = arith.constant 261 : index
    %677 = vector.load %arg5[%c0_487, %c261] : memref<8x512xf32, #tpu.memory_space<vmem>>, vector<8x1xf32>
    tpu.vector_store %arg5[%c0_487, %c261], %676 {strides = array<i32>} : memref<8x512xf32, #tpu.memory_space<vmem>>, vector<8x1xf32>,
    %678 = vector.extract_strided_slice %513 {offsets = [0, 157], sizes = [8, 1], strides = [1, 1]} : vector<8x288xf32> to vector<8x1xf32>
    %c0_488 = arith.constant 0 : index
    %c262 = arith.constant 262 : index
    %679 = vector.load %arg5[%c0_488, %c262] : memref<8x512xf32, #tpu.memory_space<vmem>>, vector<8x1xf32>
    tpu.vector_store %arg5[%c0_488, %c262], %678 {strides = array<i32>} : memref<8x512xf32, #tpu.memory_space<vmem>>, vector<8x1xf32>,
    %680 = vector.extract_strided_slice %513 {offsets = [0, 156], sizes = [8, 1], strides = [1, 1]} : vector<8x288xf32> to vector<8x1xf32>
    %c0_489 = arith.constant 0 : index
    %c263 = arith.constant 263 : index
    %681 = vector.load %arg5[%c0_489, %c263] : memref<8x512xf32, #tpu.memory_space<vmem>>, vector<8x1xf32>
    tpu.vector_store %arg5[%c0_489, %c263], %680 {strides = array<i32>} : memref<8x512xf32, #tpu.memory_space<vmem>>, vector<8x1xf32>,
    %682 = vector.extract_strided_slice %513 {offsets = [0, 162], sizes = [8, 16], strides = [1, 1]} : vector<8x288xf32> to vector<8x16xf32>
    %c0_490 = arith.constant 0 : index
    %c267 = arith.constant 267 : index
    %683 = vector.load %arg5[%c0_490, %c267] : memref<8x512xf32, #tpu.memory_space<vmem>>, vector<8x16xf32>
    tpu.vector_store %arg5[%c0_490, %c267], %682 {strides = array<i32>} : memref<8x512xf32, #tpu.memory_space<vmem>>, vector<8x16xf32>,
    %684 = vector.extract_strided_slice %513 {offsets = [0, 165], sizes = [8, 1], strides = [1, 1]} : vector<8x288xf32> to vector<8x1xf32>
    %c0_491 = arith.constant 0 : index
    %c264 = arith.constant 264 : index
    %685 = vector.load %arg5[%c0_491, %c264] : memref<8x512xf32, #tpu.memory_space<vmem>>, vector<8x1xf32>
    tpu.vector_store %arg5[%c0_491, %c264], %684 {strides = array<i32>} : memref<8x512xf32, #tpu.memory_space<vmem>>, vector<8x1xf32>,
    %686 = vector.extract_strided_slice %513 {offsets = [0, 164], sizes = [8, 1], strides = [1, 1]} : vector<8x288xf32> to vector<8x1xf32>
    %c0_492 = arith.constant 0 : index
    %c265 = arith.constant 265 : index
    %687 = vector.load %arg5[%c0_492, %c265] : memref<8x512xf32, #tpu.memory_space<vmem>>, vector<8x1xf32>
    tpu.vector_store %arg5[%c0_492, %c265], %686 {strides = array<i32>} : memref<8x512xf32, #tpu.memory_space<vmem>>, vector<8x1xf32>,
    %688 = vector.extract_strided_slice %513 {offsets = [0, 163], sizes = [8, 1], strides = [1, 1]} : vector<8x288xf32> to vector<8x1xf32>
    %c0_493 = arith.constant 0 : index
    %c266 = arith.constant 266 : index
    %689 = vector.load %arg5[%c0_493, %c266] : memref<8x512xf32, #tpu.memory_space<vmem>>, vector<8x1xf32>
    tpu.vector_store %arg5[%c0_493, %c266], %688 {strides = array<i32>} : memref<8x512xf32, #tpu.memory_space<vmem>>, vector<8x1xf32>,
    %690 = vector.extract_strided_slice %513 {offsets = [0, 176], sizes = [8, 1], strides = [1, 1]} : vector<8x288xf32> to vector<8x1xf32>
    %c0_494 = arith.constant 0 : index
    %c283 = arith.constant 283 : index
    %691 = vector.load %arg5[%c0_494, %c283] : memref<8x512xf32, #tpu.memory_space<vmem>>, vector<8x1xf32>
    tpu.vector_store %arg5[%c0_494, %c283], %690 {strides = array<i32>} : memref<8x512xf32, #tpu.memory_space<vmem>>, vector<8x1xf32>,
    %692 = vector.extract_strided_slice %513 {offsets = [0, 175], sizes = [8, 1], strides = [1, 1]} : vector<8x288xf32> to vector<8x1xf32>
    %c0_495 = arith.constant 0 : index
    %c284 = arith.constant 284 : index
    %693 = vector.load %arg5[%c0_495, %c284] : memref<8x512xf32, #tpu.memory_space<vmem>>, vector<8x1xf32>
    tpu.vector_store %arg5[%c0_495, %c284], %692 {strides = array<i32>} : memref<8x512xf32, #tpu.memory_space<vmem>>, vector<8x1xf32>,
    %694 = vector.extract_strided_slice %513 {offsets = [0, 174], sizes = [8, 1], strides = [1, 1]} : vector<8x288xf32> to vector<8x1xf32>
    %c0_496 = arith.constant 0 : index
    %c285 = arith.constant 285 : index
    %695 = vector.load %arg5[%c0_496, %c285] : memref<8x512xf32, #tpu.memory_space<vmem>>, vector<8x1xf32>
    tpu.vector_store %arg5[%c0_496, %c285], %694 {strides = array<i32>} : memref<8x512xf32, #tpu.memory_space<vmem>>, vector<8x1xf32>,
    %696 = vector.extract_strided_slice %513 {offsets = [0, 180], sizes = [8, 16], strides = [1, 1]} : vector<8x288xf32> to vector<8x16xf32>
    %c0_497 = arith.constant 0 : index
    %c289_498 = arith.constant 289 : index
    %697 = vector.load %arg5[%c0_497, %c289_498] : memref<8x512xf32, #tpu.memory_space<vmem>>, vector<8x16xf32>
    tpu.vector_store %arg5[%c0_497, %c289_498], %696 {strides = array<i32>} : memref<8x512xf32, #tpu.memory_space<vmem>>, vector<8x16xf32>,
    %698 = vector.extract_strided_slice %513 {offsets = [0, 183], sizes = [8, 1], strides = [1, 1]} : vector<8x288xf32> to vector<8x1xf32>
    %c0_499 = arith.constant 0 : index
    %c286 = arith.constant 286 : index
    %699 = vector.load %arg5[%c0_499, %c286] : memref<8x512xf32, #tpu.memory_space<vmem>>, vector<8x1xf32>
    tpu.vector_store %arg5[%c0_499, %c286], %698 {strides = array<i32>} : memref<8x512xf32, #tpu.memory_space<vmem>>, vector<8x1xf32>,
    %700 = vector.extract_strided_slice %513 {offsets = [0, 182], sizes = [8, 1], strides = [1, 1]} : vector<8x288xf32> to vector<8x1xf32>
    %c0_500 = arith.constant 0 : index
    %c287_501 = arith.constant 287 : index
    %701 = vector.load %arg5[%c0_500, %c287_501] : memref<8x512xf32, #tpu.memory_space<vmem>>, vector<8x1xf32>
    tpu.vector_store %arg5[%c0_500, %c287_501], %700 {strides = array<i32>} : memref<8x512xf32, #tpu.memory_space<vmem>>, vector<8x1xf32>,
    %702 = vector.extract_strided_slice %513 {offsets = [0, 181], sizes = [8, 1], strides = [1, 1]} : vector<8x288xf32> to vector<8x1xf32>
    %c0_502 = arith.constant 0 : index
    %c288_503 = arith.constant 288 : index
    %703 = vector.load %arg5[%c0_502, %c288_503] : memref<8x512xf32, #tpu.memory_space<vmem>>, vector<8x1xf32>
    tpu.vector_store %arg5[%c0_502, %c288_503], %702 {strides = array<i32>} : memref<8x512xf32, #tpu.memory_space<vmem>>, vector<8x1xf32>,
    %704 = vector.extract_strided_slice %513 {offsets = [0, 194], sizes = [8, 1], strides = [1, 1]} : vector<8x288xf32> to vector<8x1xf32>
    %c0_504 = arith.constant 0 : index
    %c305_505 = arith.constant 305 : index
    %705 = vector.load %arg5[%c0_504, %c305_505] : memref<8x512xf32, #tpu.memory_space<vmem>>, vector<8x1xf32>
    tpu.vector_store %arg5[%c0_504, %c305_505], %704 {strides = array<i32>} : memref<8x512xf32, #tpu.memory_space<vmem>>, vector<8x1xf32>,
    %706 = vector.extract_strided_slice %513 {offsets = [0, 193], sizes = [8, 1], strides = [1, 1]} : vector<8x288xf32> to vector<8x1xf32>
    %c0_506 = arith.constant 0 : index
    %c306_507 = arith.constant 306 : index
    %707 = vector.load %arg5[%c0_506, %c306_507] : memref<8x512xf32, #tpu.memory_space<vmem>>, vector<8x1xf32>
    tpu.vector_store %arg5[%c0_506, %c306_507], %706 {strides = array<i32>} : memref<8x512xf32, #tpu.memory_space<vmem>>, vector<8x1xf32>,
    %708 = vector.extract_strided_slice %513 {offsets = [0, 192], sizes = [8, 1], strides = [1, 1]} : vector<8x288xf32> to vector<8x1xf32>
    %c0_508 = arith.constant 0 : index
    %c307_509 = arith.constant 307 : index
    %709 = vector.load %arg5[%c0_508, %c307_509] : memref<8x512xf32, #tpu.memory_space<vmem>>, vector<8x1xf32>
    tpu.vector_store %arg5[%c0_508, %c307_509], %708 {strides = array<i32>} : memref<8x512xf32, #tpu.memory_space<vmem>>, vector<8x1xf32>,
    %710 = vector.extract_strided_slice %513 {offsets = [0, 198], sizes = [8, 16], strides = [1, 1]} : vector<8x288xf32> to vector<8x16xf32>
    %c0_510 = arith.constant 0 : index
    %c311 = arith.constant 311 : index
    %711 = vector.load %arg5[%c0_510, %c311] : memref<8x512xf32, #tpu.memory_space<vmem>>, vector<8x16xf32>
    tpu.vector_store %arg5[%c0_510, %c311], %710 {strides = array<i32>} : memref<8x512xf32, #tpu.memory_space<vmem>>, vector<8x16xf32>,
    %712 = vector.extract_strided_slice %513 {offsets = [0, 201], sizes = [8, 1], strides = [1, 1]} : vector<8x288xf32> to vector<8x1xf32>
    %c0_511 = arith.constant 0 : index
    %c308 = arith.constant 308 : index
    %713 = vector.load %arg5[%c0_511, %c308] : memref<8x512xf32, #tpu.memory_space<vmem>>, vector<8x1xf32>
    tpu.vector_store %arg5[%c0_511, %c308], %712 {strides = array<i32>} : memref<8x512xf32, #tpu.memory_space<vmem>>, vector<8x1xf32>,
    %714 = vector.extract_strided_slice %513 {offsets = [0, 200], sizes = [8, 1], strides = [1, 1]} : vector<8x288xf32> to vector<8x1xf32>
    %c0_512 = arith.constant 0 : index
    %c309 = arith.constant 309 : index
    %715 = vector.load %arg5[%c0_512, %c309] : memref<8x512xf32, #tpu.memory_space<vmem>>, vector<8x1xf32>
    tpu.vector_store %arg5[%c0_512, %c309], %714 {strides = array<i32>} : memref<8x512xf32, #tpu.memory_space<vmem>>, vector<8x1xf32>,
    %716 = vector.extract_strided_slice %513 {offsets = [0, 199], sizes = [8, 1], strides = [1, 1]} : vector<8x288xf32> to vector<8x1xf32>
    %c0_513 = arith.constant 0 : index
    %c310 = arith.constant 310 : index
    %717 = vector.load %arg5[%c0_513, %c310] : memref<8x512xf32, #tpu.memory_space<vmem>>, vector<8x1xf32>
    tpu.vector_store %arg5[%c0_513, %c310], %716 {strides = array<i32>} : memref<8x512xf32, #tpu.memory_space<vmem>>, vector<8x1xf32>,
    %718 = vector.extract_strided_slice %513 {offsets = [0, 212], sizes = [8, 1], strides = [1, 1]} : vector<8x288xf32> to vector<8x1xf32>
    %c0_514 = arith.constant 0 : index
    %c327 = arith.constant 327 : index
    %719 = vector.load %arg5[%c0_514, %c327] : memref<8x512xf32, #tpu.memory_space<vmem>>, vector<8x1xf32>
    tpu.vector_store %arg5[%c0_514, %c327], %718 {strides = array<i32>} : memref<8x512xf32, #tpu.memory_space<vmem>>, vector<8x1xf32>,
    %720 = vector.extract_strided_slice %513 {offsets = [0, 211], sizes = [8, 1], strides = [1, 1]} : vector<8x288xf32> to vector<8x1xf32>
    %c0_515 = arith.constant 0 : index
    %c328 = arith.constant 328 : index
    %721 = vector.load %arg5[%c0_515, %c328] : memref<8x512xf32, #tpu.memory_space<vmem>>, vector<8x1xf32>
    tpu.vector_store %arg5[%c0_515, %c328], %720 {strides = array<i32>} : memref<8x512xf32, #tpu.memory_space<vmem>>, vector<8x1xf32>,
    %722 = vector.extract_strided_slice %513 {offsets = [0, 210], sizes = [8, 1], strides = [1, 1]} : vector<8x288xf32> to vector<8x1xf32>
    %c0_516 = arith.constant 0 : index
    %c329 = arith.constant 329 : index
    %723 = vector.load %arg5[%c0_516, %c329] : memref<8x512xf32, #tpu.memory_space<vmem>>, vector<8x1xf32>
    tpu.vector_store %arg5[%c0_516, %c329], %722 {strides = array<i32>} : memref<8x512xf32, #tpu.memory_space<vmem>>, vector<8x1xf32>,
    %724 = vector.extract_strided_slice %513 {offsets = [0, 216], sizes = [8, 16], strides = [1, 1]} : vector<8x288xf32> to vector<8x16xf32>
    %c0_517 = arith.constant 0 : index
    %c333 = arith.constant 333 : index
    %725 = vector.load %arg5[%c0_517, %c333] : memref<8x512xf32, #tpu.memory_space<vmem>>, vector<8x16xf32>
    tpu.vector_store %arg5[%c0_517, %c333], %724 {strides = array<i32>} : memref<8x512xf32, #tpu.memory_space<vmem>>, vector<8x16xf32>,
    %726 = vector.extract_strided_slice %513 {offsets = [0, 219], sizes = [8, 1], strides = [1, 1]} : vector<8x288xf32> to vector<8x1xf32>
    %c0_518 = arith.constant 0 : index
    %c330 = arith.constant 330 : index
    %727 = vector.load %arg5[%c0_518, %c330] : memref<8x512xf32, #tpu.memory_space<vmem>>, vector<8x1xf32>
    tpu.vector_store %arg5[%c0_518, %c330], %726 {strides = array<i32>} : memref<8x512xf32, #tpu.memory_space<vmem>>, vector<8x1xf32>,
    %728 = vector.extract_strided_slice %513 {offsets = [0, 218], sizes = [8, 1], strides = [1, 1]} : vector<8x288xf32> to vector<8x1xf32>
    %c0_519 = arith.constant 0 : index
    %c331 = arith.constant 331 : index
    %729 = vector.load %arg5[%c0_519, %c331] : memref<8x512xf32, #tpu.memory_space<vmem>>, vector<8x1xf32>
    tpu.vector_store %arg5[%c0_519, %c331], %728 {strides = array<i32>} : memref<8x512xf32, #tpu.memory_space<vmem>>, vector<8x1xf32>,
    %730 = vector.extract_strided_slice %513 {offsets = [0, 217], sizes = [8, 1], strides = [1, 1]} : vector<8x288xf32> to vector<8x1xf32>
    %c0_520 = arith.constant 0 : index
    %c332 = arith.constant 332 : index
    %731 = vector.load %arg5[%c0_520, %c332] : memref<8x512xf32, #tpu.memory_space<vmem>>, vector<8x1xf32>
    tpu.vector_store %arg5[%c0_520, %c332], %730 {strides = array<i32>} : memref<8x512xf32, #tpu.memory_space<vmem>>, vector<8x1xf32>,
    %732 = vector.extract_strided_slice %513 {offsets = [0, 230], sizes = [8, 1], strides = [1, 1]} : vector<8x288xf32> to vector<8x1xf32>
    %c0_521 = arith.constant 0 : index
    %c349 = arith.constant 349 : index
    %733 = vector.load %arg5[%c0_521, %c349] : memref<8x512xf32, #tpu.memory_space<vmem>>, vector<8x1xf32>
    tpu.vector_store %arg5[%c0_521, %c349], %732 {strides = array<i32>} : memref<8x512xf32, #tpu.memory_space<vmem>>, vector<8x1xf32>,
    %734 = vector.extract_strided_slice %513 {offsets = [0, 229], sizes = [8, 1], strides = [1, 1]} : vector<8x288xf32> to vector<8x1xf32>
    %c0_522 = arith.constant 0 : index
    %c350 = arith.constant 350 : index
    %735 = vector.load %arg5[%c0_522, %c350] : memref<8x512xf32, #tpu.memory_space<vmem>>, vector<8x1xf32>
    tpu.vector_store %arg5[%c0_522, %c350], %734 {strides = array<i32>} : memref<8x512xf32, #tpu.memory_space<vmem>>, vector<8x1xf32>,
    %736 = vector.extract_strided_slice %513 {offsets = [0, 228], sizes = [8, 1], strides = [1, 1]} : vector<8x288xf32> to vector<8x1xf32>
    %c0_523 = arith.constant 0 : index
    %c351 = arith.constant 351 : index
    %737 = vector.load %arg5[%c0_523, %c351] : memref<8x512xf32, #tpu.memory_space<vmem>>, vector<8x1xf32>
    tpu.vector_store %arg5[%c0_523, %c351], %736 {strides = array<i32>} : memref<8x512xf32, #tpu.memory_space<vmem>>, vector<8x1xf32>,
    %738 = vector.extract_strided_slice %513 {offsets = [0, 234], sizes = [8, 16], strides = [1, 1]} : vector<8x288xf32> to vector<8x16xf32>
    %c0_524 = arith.constant 0 : index
    %c355 = arith.constant 355 : index
    %739 = vector.load %arg5[%c0_524, %c355] : memref<8x512xf32, #tpu.memory_space<vmem>>, vector<8x16xf32>
    tpu.vector_store %arg5[%c0_524, %c355], %738 {strides = array<i32>} : memref<8x512xf32, #tpu.memory_space<vmem>>, vector<8x16xf32>,
    %740 = vector.extract_strided_slice %513 {offsets = [0, 237], sizes = [8, 1], strides = [1, 1]} : vector<8x288xf32> to vector<8x1xf32>
    %c0_525 = arith.constant 0 : index
    %c352 = arith.constant 352 : index
    %741 = vector.load %arg5[%c0_525, %c352] : memref<8x512xf32, #tpu.memory_space<vmem>>, vector<8x1xf32>
    tpu.vector_store %arg5[%c0_525, %c352], %740 {strides = array<i32>} : memref<8x512xf32, #tpu.memory_space<vmem>>, vector<8x1xf32>,
    %742 = vector.extract_strided_slice %513 {offsets = [0, 236], sizes = [8, 1], strides = [1, 1]} : vector<8x288xf32> to vector<8x1xf32>
    %c0_526 = arith.constant 0 : index
    %c353 = arith.constant 353 : index
    %743 = vector.load %arg5[%c0_526, %c353] : memref<8x512xf32, #tpu.memory_space<vmem>>, vector<8x1xf32>
    tpu.vector_store %arg5[%c0_526, %c353], %742 {strides = array<i32>} : memref<8x512xf32, #tpu.memory_space<vmem>>, vector<8x1xf32>,
    %744 = vector.extract_strided_slice %513 {offsets = [0, 235], sizes = [8, 1], strides = [1, 1]} : vector<8x288xf32> to vector<8x1xf32>
    %c0_527 = arith.constant 0 : index
    %c354 = arith.constant 354 : index
    %745 = vector.load %arg5[%c0_527, %c354] : memref<8x512xf32, #tpu.memory_space<vmem>>, vector<8x1xf32>
    tpu.vector_store %arg5[%c0_527, %c354], %744 {strides = array<i32>} : memref<8x512xf32, #tpu.memory_space<vmem>>, vector<8x1xf32>,
    %746 = vector.extract_strided_slice %513 {offsets = [0, 248], sizes = [8, 1], strides = [1, 1]} : vector<8x288xf32> to vector<8x1xf32>
    %c0_528 = arith.constant 0 : index
    %c371 = arith.constant 371 : index
    %747 = vector.load %arg5[%c0_528, %c371] : memref<8x512xf32, #tpu.memory_space<vmem>>, vector<8x1xf32>
    tpu.vector_store %arg5[%c0_528, %c371], %746 {strides = array<i32>} : memref<8x512xf32, #tpu.memory_space<vmem>>, vector<8x1xf32>,
    %748 = vector.extract_strided_slice %513 {offsets = [0, 247], sizes = [8, 1], strides = [1, 1]} : vector<8x288xf32> to vector<8x1xf32>
    %c0_529 = arith.constant 0 : index
    %c372 = arith.constant 372 : index
    %749 = vector.load %arg5[%c0_529, %c372] : memref<8x512xf32, #tpu.memory_space<vmem>>, vector<8x1xf32>
    tpu.vector_store %arg5[%c0_529, %c372], %748 {strides = array<i32>} : memref<8x512xf32, #tpu.memory_space<vmem>>, vector<8x1xf32>,
    %750 = vector.extract_strided_slice %513 {offsets = [0, 246], sizes = [8, 1], strides = [1, 1]} : vector<8x288xf32> to vector<8x1xf32>
    %c0_530 = arith.constant 0 : index
    %c373 = arith.constant 373 : index
    %751 = vector.load %arg5[%c0_530, %c373] : memref<8x512xf32, #tpu.memory_space<vmem>>, vector<8x1xf32>
    tpu.vector_store %arg5[%c0_530, %c373], %750 {strides = array<i32>} : memref<8x512xf32, #tpu.memory_space<vmem>>, vector<8x1xf32>,
    %752 = vector.extract_strided_slice %513 {offsets = [0, 252], sizes = [8, 16], strides = [1, 1]} : vector<8x288xf32> to vector<8x16xf32>
    %c0_531 = arith.constant 0 : index
    %c377 = arith.constant 377 : index
    %753 = vector.load %arg5[%c0_531, %c377] : memref<8x512xf32, #tpu.memory_space<vmem>>, vector<8x16xf32>
    tpu.vector_store %arg5[%c0_531, %c377], %752 {strides = array<i32>} : memref<8x512xf32, #tpu.memory_space<vmem>>, vector<8x16xf32>,
    %754 = vector.extract_strided_slice %513 {offsets = [0, 255], sizes = [8, 1], strides = [1, 1]} : vector<8x288xf32> to vector<8x1xf32>
    %c0_532 = arith.constant 0 : index
    %c374 = arith.constant 374 : index
    %755 = vector.load %arg5[%c0_532, %c374] : memref<8x512xf32, #tpu.memory_space<vmem>>, vector<8x1xf32>
    tpu.vector_store %arg5[%c0_532, %c374], %754 {strides = array<i32>} : memref<8x512xf32, #tpu.memory_space<vmem>>, vector<8x1xf32>,
    %756 = vector.extract_strided_slice %513 {offsets = [0, 254], sizes = [8, 1], strides = [1, 1]} : vector<8x288xf32> to vector<8x1xf32>
    %c0_533 = arith.constant 0 : index
    %c375 = arith.constant 375 : index
    %757 = vector.load %arg5[%c0_533, %c375] : memref<8x512xf32, #tpu.memory_space<vmem>>, vector<8x1xf32>
    tpu.vector_store %arg5[%c0_533, %c375], %756 {strides = array<i32>} : memref<8x512xf32, #tpu.memory_space<vmem>>, vector<8x1xf32>,
    %758 = vector.extract_strided_slice %513 {offsets = [0, 253], sizes = [8, 1], strides = [1, 1]} : vector<8x288xf32> to vector<8x1xf32>
    %c0_534 = arith.constant 0 : index
    %c376 = arith.constant 376 : index
    %759 = vector.load %arg5[%c0_534, %c376] : memref<8x512xf32, #tpu.memory_space<vmem>>, vector<8x1xf32>
    tpu.vector_store %arg5[%c0_534, %c376], %758 {strides = array<i32>} : memref<8x512xf32, #tpu.memory_space<vmem>>, vector<8x1xf32>,
    %760 = vector.extract_strided_slice %513 {offsets = [0, 266], sizes = [8, 1], strides = [1, 1]} : vector<8x288xf32> to vector<8x1xf32>
    %c0_535 = arith.constant 0 : index
    %c393 = arith.constant 393 : index
    %761 = vector.load %arg5[%c0_535, %c393] : memref<8x512xf32, #tpu.memory_space<vmem>>, vector<8x1xf32>
    tpu.vector_store %arg5[%c0_535, %c393], %760 {strides = array<i32>} : memref<8x512xf32, #tpu.memory_space<vmem>>, vector<8x1xf32>,
    %762 = vector.extract_strided_slice %513 {offsets = [0, 265], sizes = [8, 1], strides = [1, 1]} : vector<8x288xf32> to vector<8x1xf32>
    %c0_536 = arith.constant 0 : index
    %c394 = arith.constant 394 : index
    %763 = vector.load %arg5[%c0_536, %c394] : memref<8x512xf32, #tpu.memory_space<vmem>>, vector<8x1xf32>
    tpu.vector_store %arg5[%c0_536, %c394], %762 {strides = array<i32>} : memref<8x512xf32, #tpu.memory_space<vmem>>, vector<8x1xf32>,
    %764 = vector.extract_strided_slice %513 {offsets = [0, 264], sizes = [8, 1], strides = [1, 1]} : vector<8x288xf32> to vector<8x1xf32>
    %c0_537 = arith.constant 0 : index
    %c395 = arith.constant 395 : index
    %765 = vector.load %arg5[%c0_537, %c395] : memref<8x512xf32, #tpu.memory_space<vmem>>, vector<8x1xf32>
    tpu.vector_store %arg5[%c0_537, %c395], %764 {strides = array<i32>} : memref<8x512xf32, #tpu.memory_space<vmem>>, vector<8x1xf32>,
    %766 = vector.extract_strided_slice %513 {offsets = [0, 270], sizes = [8, 16], strides = [1, 1]} : vector<8x288xf32> to vector<8x16xf32>
    %c0_538 = arith.constant 0 : index
    %c399 = arith.constant 399 : index
    %767 = vector.load %arg5[%c0_538, %c399] : memref<8x512xf32, #tpu.memory_space<vmem>>, vector<8x16xf32>
    tpu.vector_store %arg5[%c0_538, %c399], %766 {strides = array<i32>} : memref<8x512xf32, #tpu.memory_space<vmem>>, vector<8x16xf32>,
    %768 = vector.extract_strided_slice %513 {offsets = [0, 273], sizes = [8, 1], strides = [1, 1]} : vector<8x288xf32> to vector<8x1xf32>
    %c0_539 = arith.constant 0 : index
    %c396 = arith.constant 396 : index
    %769 = vector.load %arg5[%c0_539, %c396] : memref<8x512xf32, #tpu.memory_space<vmem>>, vector<8x1xf32>
    tpu.vector_store %arg5[%c0_539, %c396], %768 {strides = array<i32>} : memref<8x512xf32, #tpu.memory_space<vmem>>, vector<8x1xf32>,
    %770 = vector.extract_strided_slice %513 {offsets = [0, 272], sizes = [8, 1], strides = [1, 1]} : vector<8x288xf32> to vector<8x1xf32>
    %c0_540 = arith.constant 0 : index
    %c397 = arith.constant 397 : index
    %771 = vector.load %arg5[%c0_540, %c397] : memref<8x512xf32, #tpu.memory_space<vmem>>, vector<8x1xf32>
    tpu.vector_store %arg5[%c0_540, %c397], %770 {strides = array<i32>} : memref<8x512xf32, #tpu.memory_space<vmem>>, vector<8x1xf32>,
    %772 = vector.extract_strided_slice %513 {offsets = [0, 271], sizes = [8, 1], strides = [1, 1]} : vector<8x288xf32> to vector<8x1xf32>
    %c0_541 = arith.constant 0 : index
    %c398 = arith.constant 398 : index
    %773 = vector.load %arg5[%c0_541, %c398] : memref<8x512xf32, #tpu.memory_space<vmem>>, vector<8x1xf32>
    tpu.vector_store %arg5[%c0_541, %c398], %772 {strides = array<i32>} : memref<8x512xf32, #tpu.memory_space<vmem>>, vector<8x1xf32>,
    %774 = vector.extract_strided_slice %513 {offsets = [0, 284], sizes = [8, 1], strides = [1, 1]} : vector<8x288xf32> to vector<8x1xf32>
    %c0_542 = arith.constant 0 : index
    %c415 = arith.constant 415 : index
    %775 = vector.load %arg5[%c0_542, %c415] : memref<8x512xf32, #tpu.memory_space<vmem>>, vector<8x1xf32>
    tpu.vector_store %arg5[%c0_542, %c415], %774 {strides = array<i32>} : memref<8x512xf32, #tpu.memory_space<vmem>>, vector<8x1xf32>,
    %776 = vector.extract_strided_slice %513 {offsets = [0, 283], sizes = [8, 1], strides = [1, 1]} : vector<8x288xf32> to vector<8x1xf32>
    %c0_543 = arith.constant 0 : index
    %c416 = arith.constant 416 : index
    %777 = vector.load %arg5[%c0_543, %c416] : memref<8x512xf32, #tpu.memory_space<vmem>>, vector<8x1xf32>
    tpu.vector_store %arg5[%c0_543, %c416], %776 {strides = array<i32>} : memref<8x512xf32, #tpu.memory_space<vmem>>, vector<8x1xf32>,
    %778 = vector.extract_strided_slice %513 {offsets = [0, 282], sizes = [8, 1], strides = [1, 1]} : vector<8x288xf32> to vector<8x1xf32>
    %c0_544 = arith.constant 0 : index
    %c417 = arith.constant 417 : index
    %779 = vector.load %arg5[%c0_544, %c417] : memref<8x512xf32, #tpu.memory_space<vmem>>, vector<8x1xf32>
    tpu.vector_store %arg5[%c0_544, %c417], %778 {strides = array<i32>} : memref<8x512xf32, #tpu.memory_space<vmem>>, vector<8x1xf32>,
    %780 = vector.extract_strided_slice %513 {offsets = [0, 252], sizes = [8, 16], strides = [1, 1]} : vector<8x288xf32> to vector<8x16xf32>
    %c0_545 = arith.constant 0 : index
    %c421 = arith.constant 421 : index
    %781 = vector.load %arg5[%c0_545, %c421] : memref<8x512xf32, #tpu.memory_space<vmem>>, vector<8x16xf32>
    tpu.vector_store %arg5[%c0_545, %c421], %780 {strides = array<i32>} : memref<8x512xf32, #tpu.memory_space<vmem>>, vector<8x16xf32>,
    %782 = vector.extract_strided_slice %513 {offsets = [0, 255], sizes = [8, 1], strides = [1, 1]} : vector<8x288xf32> to vector<8x1xf32>
    %c0_546 = arith.constant 0 : index
    %c418 = arith.constant 418 : index
    %783 = vector.load %arg5[%c0_546, %c418] : memref<8x512xf32, #tpu.memory_space<vmem>>, vector<8x1xf32>
    tpu.vector_store %arg5[%c0_546, %c418], %782 {strides = array<i32>} : memref<8x512xf32, #tpu.memory_space<vmem>>, vector<8x1xf32>,
    %784 = vector.extract_strided_slice %513 {offsets = [0, 254], sizes = [8, 1], strides = [1, 1]} : vector<8x288xf32> to vector<8x1xf32>
    %c0_547 = arith.constant 0 : index
    %c419 = arith.constant 419 : index
    %785 = vector.load %arg5[%c0_547, %c419] : memref<8x512xf32, #tpu.memory_space<vmem>>, vector<8x1xf32>
    tpu.vector_store %arg5[%c0_547, %c419], %784 {strides = array<i32>} : memref<8x512xf32, #tpu.memory_space<vmem>>, vector<8x1xf32>,
    %786 = vector.extract_strided_slice %513 {offsets = [0, 253], sizes = [8, 1], strides = [1, 1]} : vector<8x288xf32> to vector<8x1xf32>
    %c0_548 = arith.constant 0 : index
    %c420 = arith.constant 420 : index
    %787 = vector.load %arg5[%c0_548, %c420] : memref<8x512xf32, #tpu.memory_space<vmem>>, vector<8x1xf32>
    tpu.vector_store %arg5[%c0_548, %c420], %786 {strides = array<i32>} : memref<8x512xf32, #tpu.memory_space<vmem>>, vector<8x1xf32>,
    %788 = vector.extract_strided_slice %513 {offsets = [0, 266], sizes = [8, 1], strides = [1, 1]} : vector<8x288xf32> to vector<8x1xf32>
    %c0_549 = arith.constant 0 : index
    %c437 = arith.constant 437 : index
    %789 = vector.load %arg5[%c0_549, %c437] : memref<8x512xf32, #tpu.memory_space<vmem>>, vector<8x1xf32>
    tpu.vector_store %arg5[%c0_549, %c437], %788 {strides = array<i32>} : memref<8x512xf32, #tpu.memory_space<vmem>>, vector<8x1xf32>,
    %790 = vector.extract_strided_slice %513 {offsets = [0, 265], sizes = [8, 1], strides = [1, 1]} : vector<8x288xf32> to vector<8x1xf32>
    %c0_550 = arith.constant 0 : index
    %c438 = arith.constant 438 : index
    %791 = vector.load %arg5[%c0_550, %c438] : memref<8x512xf32, #tpu.memory_space<vmem>>, vector<8x1xf32>
    tpu.vector_store %arg5[%c0_550, %c438], %790 {strides = array<i32>} : memref<8x512xf32, #tpu.memory_space<vmem>>, vector<8x1xf32>,
    %792 = vector.extract_strided_slice %513 {offsets = [0, 264], sizes = [8, 1], strides = [1, 1]} : vector<8x288xf32> to vector<8x1xf32>
    %c0_551 = arith.constant 0 : index
    %c439 = arith.constant 439 : index
    %793 = vector.load %arg5[%c0_551, %c439] : memref<8x512xf32, #tpu.memory_space<vmem>>, vector<8x1xf32>
    tpu.vector_store %arg5[%c0_551, %c439], %792 {strides = array<i32>} : memref<8x512xf32, #tpu.memory_space<vmem>>, vector<8x1xf32>,
    %794 = vector.extract_strided_slice %513 {offsets = [0, 234], sizes = [8, 16], strides = [1, 1]} : vector<8x288xf32> to vector<8x16xf32>
    %c0_552 = arith.constant 0 : index
    %c443 = arith.constant 443 : index
    %795 = vector.load %arg5[%c0_552, %c443] : memref<8x512xf32, #tpu.memory_space<vmem>>, vector<8x16xf32>
    tpu.vector_store %arg5[%c0_552, %c443], %794 {strides = array<i32>} : memref<8x512xf32, #tpu.memory_space<vmem>>, vector<8x16xf32>,
    %796 = vector.extract_strided_slice %513 {offsets = [0, 237], sizes = [8, 1], strides = [1, 1]} : vector<8x288xf32> to vector<8x1xf32>
    %c0_553 = arith.constant 0 : index
    %c440 = arith.constant 440 : index
    %797 = vector.load %arg5[%c0_553, %c440] : memref<8x512xf32, #tpu.memory_space<vmem>>, vector<8x1xf32>
    tpu.vector_store %arg5[%c0_553, %c440], %796 {strides = array<i32>} : memref<8x512xf32, #tpu.memory_space<vmem>>, vector<8x1xf32>,
    %798 = vector.extract_strided_slice %513 {offsets = [0, 236], sizes = [8, 1], strides = [1, 1]} : vector<8x288xf32> to vector<8x1xf32>
    %c0_554 = arith.constant 0 : index
    %c441 = arith.constant 441 : index
    %799 = vector.load %arg5[%c0_554, %c441] : memref<8x512xf32, #tpu.memory_space<vmem>>, vector<8x1xf32>
    tpu.vector_store %arg5[%c0_554, %c441], %798 {strides = array<i32>} : memref<8x512xf32, #tpu.memory_space<vmem>>, vector<8x1xf32>,
    %800 = vector.extract_strided_slice %513 {offsets = [0, 235], sizes = [8, 1], strides = [1, 1]} : vector<8x288xf32> to vector<8x1xf32>
    %c0_555 = arith.constant 0 : index
    %c442 = arith.constant 442 : index
    %801 = vector.load %arg5[%c0_555, %c442] : memref<8x512xf32, #tpu.memory_space<vmem>>, vector<8x1xf32>
    tpu.vector_store %arg5[%c0_555, %c442], %800 {strides = array<i32>} : memref<8x512xf32, #tpu.memory_space<vmem>>, vector<8x1xf32>,
    %802 = vector.extract_strided_slice %513 {offsets = [0, 248], sizes = [8, 1], strides = [1, 1]} : vector<8x288xf32> to vector<8x1xf32>
    %c0_556 = arith.constant 0 : index
    %c459 = arith.constant 459 : index
    %803 = vector.load %arg5[%c0_556, %c459] : memref<8x512xf32, #tpu.memory_space<vmem>>, vector<8x1xf32>
    tpu.vector_store %arg5[%c0_556, %c459], %802 {strides = array<i32>} : memref<8x512xf32, #tpu.memory_space<vmem>>, vector<8x1xf32>,
    %804 = vector.extract_strided_slice %513 {offsets = [0, 247], sizes = [8, 1], strides = [1, 1]} : vector<8x288xf32> to vector<8x1xf32>
    %c0_557 = arith.constant 0 : index
    %c460 = arith.constant 460 : index
    %805 = vector.load %arg5[%c0_557, %c460] : memref<8x512xf32, #tpu.memory_space<vmem>>, vector<8x1xf32>
    tpu.vector_store %arg5[%c0_557, %c460], %804 {strides = array<i32>} : memref<8x512xf32, #tpu.memory_space<vmem>>, vector<8x1xf32>,
    %806 = vector.extract_strided_slice %513 {offsets = [0, 246], sizes = [8, 1], strides = [1, 1]} : vector<8x288xf32> to vector<8x1xf32>
    %c0_558 = arith.constant 0 : index
    %c461 = arith.constant 461 : index
    %807 = vector.load %arg5[%c0_558, %c461] : memref<8x512xf32, #tpu.memory_space<vmem>>, vector<8x1xf32>
    tpu.vector_store %arg5[%c0_558, %c461], %806 {strides = array<i32>} : memref<8x512xf32, #tpu.memory_space<vmem>>, vector<8x1xf32>,
    %808 = vector.extract_strided_slice %513 {offsets = [0, 216], sizes = [8, 16], strides = [1, 1]} : vector<8x288xf32> to vector<8x16xf32>
    %c0_559 = arith.constant 0 : index
    %c465 = arith.constant 465 : index
    %809 = vector.load %arg5[%c0_559, %c465] : memref<8x512xf32, #tpu.memory_space<vmem>>, vector<8x16xf32>
    tpu.vector_store %arg5[%c0_559, %c465], %808 {strides = array<i32>} : memref<8x512xf32, #tpu.memory_space<vmem>>, vector<8x16xf32>,
    %810 = vector.extract_strided_slice %513 {offsets = [0, 219], sizes = [8, 1], strides = [1, 1]} : vector<8x288xf32> to vector<8x1xf32>
    %c0_560 = arith.constant 0 : index
    %c462 = arith.constant 462 : index
    %811 = vector.load %arg5[%c0_560, %c462] : memref<8x512xf32, #tpu.memory_space<vmem>>, vector<8x1xf32>
    tpu.vector_store %arg5[%c0_560, %c462], %810 {strides = array<i32>} : memref<8x512xf32, #tpu.memory_space<vmem>>, vector<8x1xf32>,
    %812 = vector.extract_strided_slice %513 {offsets = [0, 218], sizes = [8, 1], strides = [1, 1]} : vector<8x288xf32> to vector<8x1xf32>
    %c0_561 = arith.constant 0 : index
    %c463 = arith.constant 463 : index
    %813 = vector.load %arg5[%c0_561, %c463] : memref<8x512xf32, #tpu.memory_space<vmem>>, vector<8x1xf32>
    tpu.vector_store %arg5[%c0_561, %c463], %812 {strides = array<i32>} : memref<8x512xf32, #tpu.memory_space<vmem>>, vector<8x1xf32>,
    %814 = vector.extract_strided_slice %513 {offsets = [0, 217], sizes = [8, 1], strides = [1, 1]} : vector<8x288xf32> to vector<8x1xf32>
    %c0_562 = arith.constant 0 : index
    %c464 = arith.constant 464 : index
    %815 = vector.load %arg5[%c0_562, %c464] : memref<8x512xf32, #tpu.memory_space<vmem>>, vector<8x1xf32>
    tpu.vector_store %arg5[%c0_562, %c464], %814 {strides = array<i32>} : memref<8x512xf32, #tpu.memory_space<vmem>>, vector<8x1xf32>,
    %816 = vector.extract_strided_slice %513 {offsets = [0, 230], sizes = [8, 1], strides = [1, 1]} : vector<8x288xf32> to vector<8x1xf32>
    %c0_563 = arith.constant 0 : index
    %c481 = arith.constant 481 : index
    %817 = vector.load %arg5[%c0_563, %c481] : memref<8x512xf32, #tpu.memory_space<vmem>>, vector<8x1xf32>
    tpu.vector_store %arg5[%c0_563, %c481], %816 {strides = array<i32>} : memref<8x512xf32, #tpu.memory_space<vmem>>, vector<8x1xf32>,
    %818 = vector.extract_strided_slice %513 {offsets = [0, 229], sizes = [8, 1], strides = [1, 1]} : vector<8x288xf32> to vector<8x1xf32>
    %c0_564 = arith.constant 0 : index
    %c482 = arith.constant 482 : index
    %819 = vector.load %arg5[%c0_564, %c482] : memref<8x512xf32, #tpu.memory_space<vmem>>, vector<8x1xf32>
    tpu.vector_store %arg5[%c0_564, %c482], %818 {strides = array<i32>} : memref<8x512xf32, #tpu.memory_space<vmem>>, vector<8x1xf32>,
    %820 = vector.extract_strided_slice %513 {offsets = [0, 228], sizes = [8, 1], strides = [1, 1]} : vector<8x288xf32> to vector<8x1xf32>
    %c0_565 = arith.constant 0 : index
    %c483 = arith.constant 483 : index
    %821 = vector.load %arg5[%c0_565, %c483] : memref<8x512xf32, #tpu.memory_space<vmem>>, vector<8x1xf32>
    tpu.vector_store %arg5[%c0_565, %c483], %820 {strides = array<i32>} : memref<8x512xf32, #tpu.memory_space<vmem>>, vector<8x1xf32>,
    %c0_566 = arith.constant 0 : index
    %c0_567 = arith.constant 0 : index
    %822 = vector.load %arg5[%c0_566, %c0_567] : memref<8x512xf32, #tpu.memory_space<vmem>>, vector<8x352xf32>
    %c0_568 = arith.constant 0 : index
    %c1_569 = arith.constant 1 : index
    %823 = vector.load %arg5[%c0_568, %c1_569] : memref<8x512xf32, #tpu.memory_space<vmem>>, vector<8x352xf32>
    %c0_570 = arith.constant 0 : index
    %c2_571 = arith.constant 2 : index
    %824 = vector.load %arg5[%c0_570, %c2_571] : memref<8x512xf32, #tpu.memory_space<vmem>>, vector<8x352xf32>
    %c0_572 = arith.constant 0 : index
    %c3_573 = arith.constant 3 : index
    %825 = vector.load %arg5[%c0_572, %c3_573] : memref<8x512xf32, #tpu.memory_space<vmem>>, vector<8x352xf32>
    %c0_574 = arith.constant 0 : index
    %c4_575 = arith.constant 4 : index
    %826 = vector.load %arg5[%c0_574, %c4_575] : memref<8x512xf32, #tpu.memory_space<vmem>>, vector<8x352xf32>
    %c0_576 = arith.constant 0 : index
    %c5_577 = arith.constant 5 : index
    %827 = vector.load %arg5[%c0_576, %c5_577] : memref<8x512xf32, #tpu.memory_space<vmem>>, vector<8x352xf32>
    %c0_578 = arith.constant 0 : index
    %c6_579 = arith.constant 6 : index
    %828 = vector.load %arg5[%c0_578, %c6_579] : memref<8x512xf32, #tpu.memory_space<vmem>>, vector<8x352xf32>
    %c0_580 = arith.constant 0 : index
    %c22_581 = arith.constant 22 : index
    %829 = vector.load %arg5[%c0_580, %c22_581] : memref<8x512xf32, #tpu.memory_space<vmem>>, vector<8x352xf32>
    %c0_582 = arith.constant 0 : index
    %c23_583 = arith.constant 23 : index
    %830 = vector.load %arg5[%c0_582, %c23_583] : memref<8x512xf32, #tpu.memory_space<vmem>>, vector<8x352xf32>
    %c0_584 = arith.constant 0 : index
    %c24_585 = arith.constant 24 : index
    %831 = vector.load %arg5[%c0_584, %c24_585] : memref<8x512xf32, #tpu.memory_space<vmem>>, vector<8x352xf32>
    %c0_586 = arith.constant 0 : index
    %c25_587 = arith.constant 25 : index
    %832 = vector.load %arg5[%c0_586, %c25_587] : memref<8x512xf32, #tpu.memory_space<vmem>>, vector<8x352xf32>
    %c0_588 = arith.constant 0 : index
    %c26 = arith.constant 26 : index
    %833 = vector.load %arg5[%c0_588, %c26] : memref<8x512xf32, #tpu.memory_space<vmem>>, vector<8x352xf32>
    %c0_589 = arith.constant 0 : index
    %c27 = arith.constant 27 : index
    %834 = vector.load %arg5[%c0_589, %c27] : memref<8x512xf32, #tpu.memory_space<vmem>>, vector<8x352xf32>
    %c0_590 = arith.constant 0 : index
    %c28 = arith.constant 28 : index
    %835 = vector.load %arg5[%c0_590, %c28] : memref<8x512xf32, #tpu.memory_space<vmem>>, vector<8x352xf32>
    %c0_591 = arith.constant 0 : index
    %c44_592 = arith.constant 44 : index
    %836 = vector.load %arg5[%c0_591, %c44_592] : memref<8x512xf32, #tpu.memory_space<vmem>>, vector<8x352xf32>
    %c0_593 = arith.constant 0 : index
    %c45_594 = arith.constant 45 : index
    %837 = vector.load %arg5[%c0_593, %c45_594] : memref<8x512xf32, #tpu.memory_space<vmem>>, vector<8x352xf32>
    %c0_595 = arith.constant 0 : index
    %c46_596 = arith.constant 46 : index
    %838 = vector.load %arg5[%c0_595, %c46_596] : memref<8x512xf32, #tpu.memory_space<vmem>>, vector<8x352xf32>
    %c0_597 = arith.constant 0 : index
    %c47_598 = arith.constant 47 : index
    %839 = vector.load %arg5[%c0_597, %c47_598] : memref<8x512xf32, #tpu.memory_space<vmem>>, vector<8x352xf32>
    %c0_599 = arith.constant 0 : index
    %c48 = arith.constant 48 : index
    %840 = vector.load %arg5[%c0_599, %c48] : memref<8x512xf32, #tpu.memory_space<vmem>>, vector<8x352xf32>
    %c0_600 = arith.constant 0 : index
    %c49 = arith.constant 49 : index
    %841 = vector.load %arg5[%c0_600, %c49] : memref<8x512xf32, #tpu.memory_space<vmem>>, vector<8x352xf32>
    %c0_601 = arith.constant 0 : index
    %c50 = arith.constant 50 : index
    %842 = vector.load %arg5[%c0_601, %c50] : memref<8x512xf32, #tpu.memory_space<vmem>>, vector<8x352xf32>
    %c0_602 = arith.constant 0 : index
    %c66_603 = arith.constant 66 : index
    %843 = vector.load %arg5[%c0_602, %c66_603] : memref<8x512xf32, #tpu.memory_space<vmem>>, vector<8x352xf32>
    %c0_604 = arith.constant 0 : index
    %c67_605 = arith.constant 67 : index
    %844 = vector.load %arg5[%c0_604, %c67_605] : memref<8x512xf32, #tpu.memory_space<vmem>>, vector<8x352xf32>
    %c0_606 = arith.constant 0 : index
    %c68_607 = arith.constant 68 : index
    %845 = vector.load %arg5[%c0_606, %c68_607] : memref<8x512xf32, #tpu.memory_space<vmem>>, vector<8x352xf32>
    %c0_608 = arith.constant 0 : index
    %c69_609 = arith.constant 69 : index
    %846 = vector.load %arg5[%c0_608, %c69_609] : memref<8x512xf32, #tpu.memory_space<vmem>>, vector<8x352xf32>
    %c0_610 = arith.constant 0 : index
    %c70 = arith.constant 70 : index
    %847 = vector.load %arg5[%c0_610, %c70] : memref<8x512xf32, #tpu.memory_space<vmem>>, vector<8x352xf32>
    %c0_611 = arith.constant 0 : index
    %c71_612 = arith.constant 71 : index
    %848 = vector.load %arg5[%c0_611, %c71_612] : memref<8x512xf32, #tpu.memory_space<vmem>>, vector<8x352xf32>
    %c0_613 = arith.constant 0 : index
    %c72_614 = arith.constant 72 : index
    %849 = vector.load %arg5[%c0_613, %c72_614] : memref<8x512xf32, #tpu.memory_space<vmem>>, vector<8x352xf32>
    %c0_615 = arith.constant 0 : index
    %c88_616 = arith.constant 88 : index
    %850 = vector.load %arg5[%c0_615, %c88_616] : memref<8x512xf32, #tpu.memory_space<vmem>>, vector<8x352xf32>
    %c0_617 = arith.constant 0 : index
    %c89_618 = arith.constant 89 : index
    %851 = vector.load %arg5[%c0_617, %c89_618] : memref<8x512xf32, #tpu.memory_space<vmem>>, vector<8x352xf32>
    %c0_619 = arith.constant 0 : index
    %c90_620 = arith.constant 90 : index
    %852 = vector.load %arg5[%c0_619, %c90_620] : memref<8x512xf32, #tpu.memory_space<vmem>>, vector<8x352xf32>
    %c0_621 = arith.constant 0 : index
    %c91_622 = arith.constant 91 : index
    %853 = vector.load %arg5[%c0_621, %c91_622] : memref<8x512xf32, #tpu.memory_space<vmem>>, vector<8x352xf32>
    %c0_623 = arith.constant 0 : index
    %c92 = arith.constant 92 : index
    %854 = vector.load %arg5[%c0_623, %c92] : memref<8x512xf32, #tpu.memory_space<vmem>>, vector<8x352xf32>
    %c0_624 = arith.constant 0 : index
    %c93 = arith.constant 93 : index
    %855 = vector.load %arg5[%c0_624, %c93] : memref<8x512xf32, #tpu.memory_space<vmem>>, vector<8x352xf32>
    %c0_625 = arith.constant 0 : index
    %c94 = arith.constant 94 : index
    %856 = vector.load %arg5[%c0_625, %c94] : memref<8x512xf32, #tpu.memory_space<vmem>>, vector<8x352xf32>
    %c0_626 = arith.constant 0 : index
    %c110_627 = arith.constant 110 : index
    %857 = vector.load %arg5[%c0_626, %c110_627] : memref<8x512xf32, #tpu.memory_space<vmem>>, vector<8x352xf32>
    %c0_628 = arith.constant 0 : index
    %c111_629 = arith.constant 111 : index
    %858 = vector.load %arg5[%c0_628, %c111_629] : memref<8x512xf32, #tpu.memory_space<vmem>>, vector<8x352xf32>
    %c0_630 = arith.constant 0 : index
    %c112_631 = arith.constant 112 : index
    %859 = vector.load %arg5[%c0_630, %c112_631] : memref<8x512xf32, #tpu.memory_space<vmem>>, vector<8x352xf32>
    %c0_632 = arith.constant 0 : index
    %c113_633 = arith.constant 113 : index
    %860 = vector.load %arg5[%c0_632, %c113_633] : memref<8x512xf32, #tpu.memory_space<vmem>>, vector<8x352xf32>
    %c0_634 = arith.constant 0 : index
    %c114 = arith.constant 114 : index
    %861 = vector.load %arg5[%c0_634, %c114] : memref<8x512xf32, #tpu.memory_space<vmem>>, vector<8x352xf32>
    %c0_635 = arith.constant 0 : index
    %c115 = arith.constant 115 : index
    %862 = vector.load %arg5[%c0_635, %c115] : memref<8x512xf32, #tpu.memory_space<vmem>>, vector<8x352xf32>
    %c0_636 = arith.constant 0 : index
    %c116 = arith.constant 116 : index
    %863 = vector.load %arg5[%c0_636, %c116] : memref<8x512xf32, #tpu.memory_space<vmem>>, vector<8x352xf32>
    %c0_637 = arith.constant 0 : index
    %c132_638 = arith.constant 132 : index
    %864 = vector.load %arg5[%c0_637, %c132_638] : memref<8x512xf32, #tpu.memory_space<vmem>>, vector<8x352xf32>
    %c0_639 = arith.constant 0 : index
    %c133_640 = arith.constant 133 : index
    %865 = vector.load %arg5[%c0_639, %c133_640] : memref<8x512xf32, #tpu.memory_space<vmem>>, vector<8x352xf32>
    %c0_641 = arith.constant 0 : index
    %c134_642 = arith.constant 134 : index
    %866 = vector.load %arg5[%c0_641, %c134_642] : memref<8x512xf32, #tpu.memory_space<vmem>>, vector<8x352xf32>
    %c0_643 = arith.constant 0 : index
    %c135_644 = arith.constant 135 : index
    %867 = vector.load %arg5[%c0_643, %c135_644] : memref<8x512xf32, #tpu.memory_space<vmem>>, vector<8x352xf32>
    %c0_645 = arith.constant 0 : index
    %c136 = arith.constant 136 : index
    %868 = vector.load %arg5[%c0_645, %c136] : memref<8x512xf32, #tpu.memory_space<vmem>>, vector<8x352xf32>
    %c0_646 = arith.constant 0 : index
    %c137 = arith.constant 137 : index
    %869 = vector.load %arg5[%c0_646, %c137] : memref<8x512xf32, #tpu.memory_space<vmem>>, vector<8x352xf32>
    %c0_647 = arith.constant 0 : index
    %c138 = arith.constant 138 : index
    %870 = vector.load %arg5[%c0_647, %c138] : memref<8x512xf32, #tpu.memory_space<vmem>>, vector<8x352xf32>
    %871 = tpu.concatenate %822, %823, %824, %825, %826, %827, %828, %829, %830, %831, %832, %833, %834, %835, %836, %837 in 0 : vector<8x352xf32>, vector<8x352xf32>, vector<8x352xf32>, vector<8x352xf32>, vector<8x352xf32>, vector<8x352xf32>, vector<8x352xf32>, vector<8x352xf32>, vector<8x352xf32>, vector<8x352xf32>, vector<8x352xf32>, vector<8x352xf32>, vector<8x352xf32>, vector<8x352xf32>, vector<8x352xf32>, vector<8x352xf32> -> vector<128x352xf32>
    %872 = tpu.concatenate %838, %839, %840, %841, %842, %843, %844, %845, %846, %847, %848, %849, %850, %851, %852, %853 in 0 : vector<8x352xf32>, vector<8x352xf32>, vector<8x352xf32>, vector<8x352xf32>, vector<8x352xf32>, vector<8x352xf32>, vector<8x352xf32>, vector<8x352xf32>, vector<8x352xf32>, vector<8x352xf32>, vector<8x352xf32>, vector<8x352xf32>, vector<8x352xf32>, vector<8x352xf32>, vector<8x352xf32>, vector<8x352xf32> -> vector<128x352xf32>
    %873 = tpu.concatenate %854, %855, %856, %857, %858, %859, %860, %861, %862, %863, %864, %865, %866, %867, %868, %869 in 0 : vector<8x352xf32>, vector<8x352xf32>, vector<8x352xf32>, vector<8x352xf32>, vector<8x352xf32>, vector<8x352xf32>, vector<8x352xf32>, vector<8x352xf32>, vector<8x352xf32>, vector<8x352xf32>, vector<8x352xf32>, vector<8x352xf32>, vector<8x352xf32>, vector<8x352xf32>, vector<8x352xf32>, vector<8x352xf32> -> vector<128x352xf32>
    %874 = tpu.concatenate %871, %872, %873, %870 in 0 : vector<128x352xf32>, vector<128x352xf32>, vector<128x352xf32>, vector<8x352xf32> -> vector<392x352xf32>
    %c0_648 = arith.constant 0 : index
    %c216_649 = arith.constant 216 : index
    %875 = vector.load %arg2[%c0_648, %c216_649] : memref<8x608xf32, #tpu.memory_space<vmem>>, vector<8x392xf32>
    %cst_650 = arith.constant dense<0.000000e+00> : vector<8x352xf32>
    %876 = tpu.matmul %875, %874, %cst_650 {dimension_numbers = #tpu.dot_dimension_numbers<[1], [0], [0], [1], [0, 0, 1, 1], [], []>} : vector<8x392xf32>, vector<392x352xf32>, vector<8x352xf32> -> vector<8x352xf32>
    %c0_651 = arith.constant 0 : index
    %c9 = arith.constant 9 : index
    %877 = vector.load %arg3[%c0_651, %c9] : memref<8x12xf32, #tpu.memory_space<vmem>>, vector<8x1xf32>
    %878 = vector.broadcast %877 : vector<8x1xf32> to vector<8x352xf32>
    %879 = arith.addf %876, %878 : vector<8x352xf32>
    %880 = vector.extract_strided_slice %879 {offsets = [0, 0], sizes = [1, 352], strides = [1, 1]} : vector<8x352xf32> to vector<1x352xf32>
    %881 = math.tanh %880 : vector<1x352xf32>
    %882 = vector.extract_strided_slice %881 {offsets = [0, 0], sizes = [1, 16], strides = [1, 1]} : vector<1x352xf32> to vector<1x16xf32>
    %c0_652 = arith.constant 0 : index
    %c0_653 = arith.constant 0 : index
    %c0_654 = arith.constant 0 : index
    %883 = vector.load %arg4[%c0_652, %c0_653, %c0_654] : memref<1x1x256xf32, #tpu.memory_space<vmem>>, vector<1x1x16xf32>
    %884 = vector.shape_cast %883 : vector<1x1x16xf32> to vector<1x16xf32>
    %885 = vector.shape_cast %882 : vector<1x16xf32> to vector<1x1x16xf32>
    tpu.vector_store %arg4[%c0_652, %c0_653, %c0_654], %885 {strides = array<i32>} : memref<1x1x256xf32, #tpu.memory_space<vmem>>, vector<1x1x16xf32>,
    %886 = vector.extract_strided_slice %881 {offsets = [0, 22], sizes = [1, 16], strides = [1, 1]} : vector<1x352xf32> to vector<1x16xf32>
    %c0_655 = arith.constant 0 : index
    %c0_656 = arith.constant 0 : index
    %c16 = arith.constant 16 : index
    %887 = vector.load %arg4[%c0_655, %c0_656, %c16] : memref<1x1x256xf32, #tpu.memory_space<vmem>>, vector<1x1x16xf32>
    %888 = vector.shape_cast %887 : vector<1x1x16xf32> to vector<1x16xf32>
    %889 = vector.shape_cast %886 : vector<1x16xf32> to vector<1x1x16xf32>
    tpu.vector_store %arg4[%c0_655, %c0_656, %c16], %889 {strides = array<i32>} : memref<1x1x256xf32, #tpu.memory_space<vmem>>, vector<1x1x16xf32>,
    %890 = vector.extract_strided_slice %881 {offsets = [0, 44], sizes = [1, 16], strides = [1, 1]} : vector<1x352xf32> to vector<1x16xf32>
    %c0_657 = arith.constant 0 : index
    %c0_658 = arith.constant 0 : index
    %c32 = arith.constant 32 : index
    %891 = vector.load %arg4[%c0_657, %c0_658, %c32] : memref<1x1x256xf32, #tpu.memory_space<vmem>>, vector<1x1x16xf32>
    %892 = vector.shape_cast %891 : vector<1x1x16xf32> to vector<1x16xf32>
    %893 = vector.shape_cast %890 : vector<1x16xf32> to vector<1x1x16xf32>
    tpu.vector_store %arg4[%c0_657, %c0_658, %c32], %893 {strides = array<i32>} : memref<1x1x256xf32, #tpu.memory_space<vmem>>, vector<1x1x16xf32>,
    %894 = vector.extract_strided_slice %881 {offsets = [0, 66], sizes = [1, 16], strides = [1, 1]} : vector<1x352xf32> to vector<1x16xf32>
    %c0_659 = arith.constant 0 : index
    %c0_660 = arith.constant 0 : index
    %c48_661 = arith.constant 48 : index
    %895 = vector.load %arg4[%c0_659, %c0_660, %c48_661] : memref<1x1x256xf32, #tpu.memory_space<vmem>>, vector<1x1x16xf32>
    %896 = vector.shape_cast %895 : vector<1x1x16xf32> to vector<1x16xf32>
    %897 = vector.shape_cast %894 : vector<1x16xf32> to vector<1x1x16xf32>
    tpu.vector_store %arg4[%c0_659, %c0_660, %c48_661], %897 {strides = array<i32>} : memref<1x1x256xf32, #tpu.memory_space<vmem>>, vector<1x1x16xf32>,
    %898 = vector.extract_strided_slice %881 {offsets = [0, 88], sizes = [1, 16], strides = [1, 1]} : vector<1x352xf32> to vector<1x16xf32>
    %c0_662 = arith.constant 0 : index
    %c0_663 = arith.constant 0 : index
    %c64_664 = arith.constant 64 : index
    %899 = vector.load %arg4[%c0_662, %c0_663, %c64_664] : memref<1x1x256xf32, #tpu.memory_space<vmem>>, vector<1x1x16xf32>
    %900 = vector.shape_cast %899 : vector<1x1x16xf32> to vector<1x16xf32>
    %901 = vector.shape_cast %898 : vector<1x16xf32> to vector<1x1x16xf32>
    tpu.vector_store %arg4[%c0_662, %c0_663, %c64_664], %901 {strides = array<i32>} : memref<1x1x256xf32, #tpu.memory_space<vmem>>, vector<1x1x16xf32>,
    %902 = vector.extract_strided_slice %881 {offsets = [0, 110], sizes = [1, 16], strides = [1, 1]} : vector<1x352xf32> to vector<1x16xf32>
    %c0_665 = arith.constant 0 : index
    %c0_666 = arith.constant 0 : index
    %c80 = arith.constant 80 : index
    %903 = vector.load %arg4[%c0_665, %c0_666, %c80] : memref<1x1x256xf32, #tpu.memory_space<vmem>>, vector<1x1x16xf32>
    %904 = vector.shape_cast %903 : vector<1x1x16xf32> to vector<1x16xf32>
    %905 = vector.shape_cast %902 : vector<1x16xf32> to vector<1x1x16xf32>
    tpu.vector_store %arg4[%c0_665, %c0_666, %c80], %905 {strides = array<i32>} : memref<1x1x256xf32, #tpu.memory_space<vmem>>, vector<1x1x16xf32>,
    %906 = vector.extract_strided_slice %881 {offsets = [0, 132], sizes = [1, 16], strides = [1, 1]} : vector<1x352xf32> to vector<1x16xf32>
    %c0_667 = arith.constant 0 : index
    %c0_668 = arith.constant 0 : index
    %c96 = arith.constant 96 : index
    %907 = vector.load %arg4[%c0_667, %c0_668, %c96] : memref<1x1x256xf32, #tpu.memory_space<vmem>>, vector<1x1x16xf32>
    %908 = vector.shape_cast %907 : vector<1x1x16xf32> to vector<1x16xf32>
    %909 = vector.shape_cast %906 : vector<1x16xf32> to vector<1x1x16xf32>
    tpu.vector_store %arg4[%c0_667, %c0_668, %c96], %909 {strides = array<i32>} : memref<1x1x256xf32, #tpu.memory_space<vmem>>, vector<1x1x16xf32>,
    %910 = vector.extract_strided_slice %881 {offsets = [0, 154], sizes = [1, 16], strides = [1, 1]} : vector<1x352xf32> to vector<1x16xf32>
    %c0_669 = arith.constant 0 : index
    %c0_670 = arith.constant 0 : index
    %c112_671 = arith.constant 112 : index
    %911 = vector.load %arg4[%c0_669, %c0_670, %c112_671] : memref<1x1x256xf32, #tpu.memory_space<vmem>>, vector<1x1x16xf32>
    %912 = vector.shape_cast %911 : vector<1x1x16xf32> to vector<1x16xf32>
    %913 = vector.shape_cast %910 : vector<1x16xf32> to vector<1x1x16xf32>
    tpu.vector_store %arg4[%c0_669, %c0_670, %c112_671], %913 {strides = array<i32>} : memref<1x1x256xf32, #tpu.memory_space<vmem>>, vector<1x1x16xf32>,
    %914 = vector.extract_strided_slice %881 {offsets = [0, 176], sizes = [1, 16], strides = [1, 1]} : vector<1x352xf32> to vector<1x16xf32>
    %c0_672 = arith.constant 0 : index
    %c0_673 = arith.constant 0 : index
    %c128 = arith.constant 128 : index
    %915 = vector.load %arg4[%c0_672, %c0_673, %c128] : memref<1x1x256xf32, #tpu.memory_space<vmem>>, vector<1x1x16xf32>
    %916 = vector.shape_cast %915 : vector<1x1x16xf32> to vector<1x16xf32>
    %917 = vector.shape_cast %914 : vector<1x16xf32> to vector<1x1x16xf32>
    tpu.vector_store %arg4[%c0_672, %c0_673, %c128], %917 {strides = array<i32>} : memref<1x1x256xf32, #tpu.memory_space<vmem>>, vector<1x1x16xf32>,
    %918 = vector.extract_strided_slice %881 {offsets = [0, 198], sizes = [1, 16], strides = [1, 1]} : vector<1x352xf32> to vector<1x16xf32>
    %c0_674 = arith.constant 0 : index
    %c0_675 = arith.constant 0 : index
    %c144_676 = arith.constant 144 : index
    %919 = vector.load %arg4[%c0_674, %c0_675, %c144_676] : memref<1x1x256xf32, #tpu.memory_space<vmem>>, vector<1x1x16xf32>
    %920 = vector.shape_cast %919 : vector<1x1x16xf32> to vector<1x16xf32>
    %921 = vector.shape_cast %918 : vector<1x16xf32> to vector<1x1x16xf32>
    tpu.vector_store %arg4[%c0_674, %c0_675, %c144_676], %921 {strides = array<i32>} : memref<1x1x256xf32, #tpu.memory_space<vmem>>, vector<1x1x16xf32>,
    %922 = vector.extract_strided_slice %881 {offsets = [0, 220], sizes = [1, 16], strides = [1, 1]} : vector<1x352xf32> to vector<1x16xf32>
    %c0_677 = arith.constant 0 : index
    %c0_678 = arith.constant 0 : index
    %c160 = arith.constant 160 : index
    %923 = vector.load %arg4[%c0_677, %c0_678, %c160] : memref<1x1x256xf32, #tpu.memory_space<vmem>>, vector<1x1x16xf32>
    %924 = vector.shape_cast %923 : vector<1x1x16xf32> to vector<1x16xf32>
    %925 = vector.shape_cast %922 : vector<1x16xf32> to vector<1x1x16xf32>
    tpu.vector_store %arg4[%c0_677, %c0_678, %c160], %925 {strides = array<i32>} : memref<1x1x256xf32, #tpu.memory_space<vmem>>, vector<1x1x16xf32>,
    %926 = vector.extract_strided_slice %881 {offsets = [0, 242], sizes = [1, 16], strides = [1, 1]} : vector<1x352xf32> to vector<1x16xf32>
    %c0_679 = arith.constant 0 : index
    %c0_680 = arith.constant 0 : index
    %c176_681 = arith.constant 176 : index
    %927 = vector.load %arg4[%c0_679, %c0_680, %c176_681] : memref<1x1x256xf32, #tpu.memory_space<vmem>>, vector<1x1x16xf32>
    %928 = vector.shape_cast %927 : vector<1x1x16xf32> to vector<1x16xf32>
    %929 = vector.shape_cast %926 : vector<1x16xf32> to vector<1x1x16xf32>
    tpu.vector_store %arg4[%c0_679, %c0_680, %c176_681], %929 {strides = array<i32>} : memref<1x1x256xf32, #tpu.memory_space<vmem>>, vector<1x1x16xf32>,
    %930 = vector.extract_strided_slice %881 {offsets = [0, 264], sizes = [1, 16], strides = [1, 1]} : vector<1x352xf32> to vector<1x16xf32>
    %c0_682 = arith.constant 0 : index
    %c0_683 = arith.constant 0 : index
    %c192 = arith.constant 192 : index
    %931 = vector.load %arg4[%c0_682, %c0_683, %c192] : memref<1x1x256xf32, #tpu.memory_space<vmem>>, vector<1x1x16xf32>
    %932 = vector.shape_cast %931 : vector<1x1x16xf32> to vector<1x16xf32>
    %933 = vector.shape_cast %930 : vector<1x16xf32> to vector<1x1x16xf32>
    tpu.vector_store %arg4[%c0_682, %c0_683, %c192], %933 {strides = array<i32>} : memref<1x1x256xf32, #tpu.memory_space<vmem>>, vector<1x1x16xf32>,
    %934 = vector.extract_strided_slice %881 {offsets = [0, 286], sizes = [1, 16], strides = [1, 1]} : vector<1x352xf32> to vector<1x16xf32>
    %c0_684 = arith.constant 0 : index
    %c0_685 = arith.constant 0 : index
    %c208 = arith.constant 208 : index
    %935 = vector.load %arg4[%c0_684, %c0_685, %c208] : memref<1x1x256xf32, #tpu.memory_space<vmem>>, vector<1x1x16xf32>
    %936 = vector.shape_cast %935 : vector<1x1x16xf32> to vector<1x16xf32>
    %937 = vector.shape_cast %934 : vector<1x16xf32> to vector<1x1x16xf32>
    tpu.vector_store %arg4[%c0_684, %c0_685, %c208], %937 {strides = array<i32>} : memref<1x1x256xf32, #tpu.memory_space<vmem>>, vector<1x1x16xf32>,
    %938 = vector.extract_strided_slice %881 {offsets = [0, 308], sizes = [1, 16], strides = [1, 1]} : vector<1x352xf32> to vector<1x16xf32>
    %c0_686 = arith.constant 0 : index
    %c0_687 = arith.constant 0 : index
    %c224 = arith.constant 224 : index
    %939 = vector.load %arg4[%c0_686, %c0_687, %c224] : memref<1x1x256xf32, #tpu.memory_space<vmem>>, vector<1x1x16xf32>
    %940 = vector.shape_cast %939 : vector<1x1x16xf32> to vector<1x16xf32>
    %941 = vector.shape_cast %938 : vector<1x16xf32> to vector<1x1x16xf32>
    tpu.vector_store %arg4[%c0_686, %c0_687, %c224], %941 {strides = array<i32>} : memref<1x1x256xf32, #tpu.memory_space<vmem>>, vector<1x1x16xf32>,
    %942 = vector.extract_strided_slice %881 {offsets = [0, 330], sizes = [1, 16], strides = [1, 1]} : vector<1x352xf32> to vector<1x16xf32>
    %c0_688 = arith.constant 0 : index
    %c0_689 = arith.constant 0 : index
    %c240_690 = arith.constant 240 : index
    %943 = vector.load %arg4[%c0_688, %c0_689, %c240_690] : memref<1x1x256xf32, #tpu.memory_space<vmem>>, vector<1x1x16xf32>
    %944 = vector.shape_cast %943 : vector<1x1x16xf32> to vector<1x16xf32>
    %945 = vector.shape_cast %942 : vector<1x16xf32> to vector<1x1x16xf32>
    tpu.vector_store %arg4[%c0_688, %c0_689, %c240_690], %945 {strides = array<i32>} : memref<1x1x256xf32, #tpu.memory_space<vmem>>, vector<1x1x16xf32>,
    return
  }
  func.func @transform_0(%arg0: i32) -> (i32, i32, i32) {
    %c0_i32 = arith.constant 0 : i32
    %c0_i32_0 = arith.constant 0 : i32
    %c0_i32_1 = arith.constant 0 : i32
    return %arg0, %c0_i32, %c0_i32_0 : i32, i32, i32
  }
  func.func @transform_1(%arg0: i32) -> (i32, i32) {
    %c0_i32 = arith.constant 0 : i32
    %c0_i32_0 = arith.constant 0 : i32
    %c0_i32_1 = arith.constant 0 : i32
    return %c0_i32, %c0_i32_0 : i32, i32
  }
  func.func @transform_2(%arg0: i32) -> (i32, i32) {
    %c0_i32 = arith.constant 0 : i32
    %c0_i32_0 = arith.constant 0 : i32
    %c0_i32_1 = arith.constant 0 : i32
    return %c0_i32, %c0_i32_0 : i32, i32
  }
  func.func @transform_3(%arg0: i32) -> (i32, i32, i32) {
    %c0_i32 = arith.constant 0 : i32
    %c0_i32_0 = arith.constant 0 : i32
    %c0_i32_1 = arith.constant 0 : i32
    return %arg0, %c0_i32, %c0_i32_0 : i32, i32, i32
  }
}

</mosaic_0001>

<llo_original>
// kernel: ada_decoder_forward.1
$region0: #{ada_decoder_forward.1}
  #allocation0 [shape = 'u32[]', space=smem, size = 0x4, offset = 0x4, fixed_abs, tag = 'smem constant byte address 0x4 - core index']
  #allocation1 [shape = 'u32[144,128]{1,0:T(1,128)}', space=vmem, size = 0x12000, scoped, tag = 'internal scratch']
  #allocation2 [shape = 'f32[8,512]{1,0:T(8,128)}', space=vmem, size = 0x4000, scoped, tag = 'scratch operand']
  %s0 = inlined_call_operand.vmem [shape: f32[2,8,256], index: 0, kind: input, shape index: {}]
  %s1 = inlined_call_operand.vmem [shape: f32[8,608], index: 1, kind: input, shape index: {}]
  %s2 = inlined_call_operand.vmem [shape: f32[8,12], index: 2, kind: input, shape index: {}]
  %s3 = inlined_call_operand.vmem [shape: f32[2,1,256], index: 3, kind: output, shape index: {}]
  %s4 = sld [smem:[#allocation0]]
  $region45: #{ada_decoder_forward.1} parent=0
    _
  %s6 = ssub.s32 1, %s4
  %s7 = scalar_select 0, %s6, %s4
  loop: start=0, step=1, limit=4
  $region2: #{ada_decoder_forward.1} parent=0 // loop_pre_header
    _
  $region3: #{ada_decoder_forward.1} parent=0 // loop_header
    %s9 = sphi 0, %s13
    %p10 = scmp.ge.s32.totalorder %s9, 4
    %s19 = sphi 0, %s21
    %s22 = sphi 0, %s19
    %s23 = sphi 0, %s22
    %s39 = sphi 0, %s23
    %s43 = sphi 0, %s43
    %s45 = sphi 0, %s43
    %s46 = sphi 0, %s45
    %s60 = sphi 0, %s46
    %s64 = sphi 0, %s64
    %s66 = sphi 0, %s64
    %s67 = sphi 0, %s66
    %s81 = sphi 0, %s67
    %s87 = sphi 0, %s89
    %s90 = sphi 0, %s87
    %s91 = sphi 0, %s90
    %s107 = sphi 0, %s91
  $region4: #{ada_decoder_forward.1} parent=0 // loop_header_branch
    %12 = sbr.rel (%p10) target = $region8
  $region5: #{ada_decoder_forward.1} parent=0 // loop_body
    %s14 = ssub.s32 %s9, 1
    %s15 = ssub.s32 %s9, 2
    %s16 = sadd.s32 %s9, 1
    %s17 = ssub.s32 %s9, %s16
    %p18 = scmp.eq.s32.totalorder %s17, 0
    %s20 = sadd.s32 %s19, 1
    %s21 = scalar_select %p18, %s19, %s20
    %p24 = pneg %p18
    %p25 = scmp.eq.s32.totalorder %s9, 1
    %p26 = por %p24, %p25
    %p27 = scmp.ne.s32.totalorder %s19, %s22
    %p28 = scmp.eq.s32.totalorder %s9, 0
    %p29 = por %p27, %p28
    %p30 = scmp.ne.s32.totalorder %s19, %s22
    %p31 = scmp.eq.s32.totalorder %s14, 1
    %p32 = por %p30, %p31
    %p33 = scmp.ne.s32.totalorder %s22, %s23
    %p34 = scmp.eq.s32.totalorder %s14, 0
    %p35 = por %p33, %p34
    %p36 = scmp.ne.s32.totalorder %s22, %s23
    %p37 = scmp.eq.s32.totalorder %s15, 1
    %p38 = por %p36, %p37
    %p40 = scmp.ne.s32.totalorder %s23, %s39
    %p41 = scmp.eq.s32.totalorder %s15, 0
    %p42 = por %p40, %p41
    %s44 = sadd.s32 %s43, 1
    %p47 = scmp.eq.s32.totalorder %s9, 1
    %p48 = scmp.ne.s32.totalorder %s43, %s45
    %p49 = scmp.eq.s32.totalorder %s9, 0
    %p50 = por %p48, %p49
    %p51 = scmp.ne.s32.totalorder %s43, %s45
    %p52 = scmp.eq.s32.totalorder %s14, 1
    %p53 = por %p51, %p52
    %p54 = scmp.ne.s32.totalorder %s45, %s46
    %p55 = scmp.eq.s32.totalorder %s14, 0
    %p56 = por %p54, %p55
    %p57 = scmp.ne.s32.totalorder %s45, %s46
    %p58 = scmp.eq.s32.totalorder %s15, 1
    %p59 = por %p57, %p58
    %p61 = scmp.ne.s32.totalorder %s46, %s60
    %p62 = scmp.eq.s32.totalorder %s15, 0
    %p63 = por %p61, %p62
    %s65 = sadd.s32 %s64, 1
    %p68 = scmp.eq.s32.totalorder %s9, 1
    %p69 = scmp.ne.s32.totalorder %s64, %s66
    %p70 = scmp.eq.s32.totalorder %s9, 0
    %p71 = por %p69, %p70
    %p72 = scmp.ne.s32.totalorder %s64, %s66
    %p73 = scmp.eq.s32.totalorder %s14, 1
    %p74 = por %p72, %p73
    %p75 = scmp.ne.s32.totalorder %s66, %s67
    %p76 = scmp.eq.s32.totalorder %s14, 0
    %p77 = por %p75, %p76
    %p78 = scmp.ne.s32.totalorder %s66, %s67
    %p79 = scmp.eq.s32.totalorder %s15, 1
    %p80 = por %p78, %p79
    %p82 = scmp.ne.s32.totalorder %s67, %s81
    %p83 = scmp.eq.s32.totalorder %s15, 0
    %p84 = por %p82, %p83
    %s85 = ssub.s32 %s9, %s16
    %p86 = scmp.eq.s32.totalorder %s85, 0
    %s88 = sadd.s32 %s87, 1
    %s89 = scalar_select %p86, %s87, %s88
    %p92 = pneg %p86
    %p93 = scmp.eq.s32.totalorder %s9, 1
    %p94 = por %p92, %p93
    %p95 = scmp.ne.s32.totalorder %s87, %s90
    %p96 = scmp.eq.s32.totalorder %s9, 0
    %p97 = por %p95, %p96
    %p98 = scmp.ne.s32.totalorder %s87, %s90
    %p99 = scmp.eq.s32.totalorder %s14, 1
    %p100 = por %p98, %p99
    %p101 = scmp.ne.s32.totalorder %s90, %s91
    %p102 = scmp.eq.s32.totalorder %s14, 0
    %p103 = por %p101, %p102
    %p104 = scmp.ne.s32.totalorder %s90, %s91
    %p105 = scmp.eq.s32.totalorder %s15, 1
    %p106 = por %p104, %p105
    %p108 = scmp.ne.s32.totalorder %s91, %s107
    %p109 = scmp.eq.s32.totalorder %s15, 0
    %p110 = por %p108, %p109
    %p111 = scmp.le.s32.totalorder 1, %s9
    %p112 = scmp.lt.s32.totalorder %s9, 3
    %p113 = pnand %p111, %p112
    %p114 = pneg %p113
    // Predicated region
    $region9: #{ada_decoder_forward.1} parent=5 // pred_check
      _
    $region10: #{ada_decoder_forward.1} parent=5 // pred_check_branch
      %116 = sbr.rel (%p113) target = $region12
    $region11: #{ada_decoder_forward.1} parent=5 // pred_region
      %s117 = ssub.s32 %s9, 1
      // Predicated region
      $region13: #{ada_decoder_forward.1} parent=11 // pred_check
        %p118 = pneg %p56
      $region14: #{ada_decoder_forward.1} parent=11 // pred_check_branch
        %120 = sbr.rel (%p118) target = $region16
      $region15: #{ada_decoder_forward.1} parent=11 // pred_region
        _
      $region16: #{ada_decoder_forward.1} parent=11 // pred_fallthru
        _
      // Predicated region
      $region17: #{ada_decoder_forward.1} parent=11 // pred_check
        %p121 = pneg %p77
      $region18: #{ada_decoder_forward.1} parent=11 // pred_check_branch
        %123 = sbr.rel (%p121) target = $region20
      $region19: #{ada_decoder_forward.1} parent=11 // pred_region
        _
      $region20: #{ada_decoder_forward.1} parent=11 // pred_fallthru
        _
    $region12: #{ada_decoder_forward.1} parent=5 // pred_fallthru
      _
    %p124 = scmp.lt.s32.totalorder %s9, 2
    // Predicated region
    $region21: #{ada_decoder_forward.1} parent=5 // pred_check
      %p125 = pneg %p124
    $region22: #{ada_decoder_forward.1} parent=5 // pred_check_branch
      %127 = sbr.rel (%p125) target = $region24
    $region23: #{ada_decoder_forward.1} parent=5 // pred_region
      // Predicated region
      $region25: #{ada_decoder_forward.1} parent=23 // pred_check
        %p128 = pneg %p29
      $region26: #{ada_decoder_forward.1} parent=23 // pred_check_branch
        %130 = sbr.rel (%p128) target = $region28
      $region27: #{ada_decoder_forward.1} parent=23 // pred_region
        %p131 = scmp.lt.s32.totalorder %s9, 1
        %s132 = scalar_select %p131, %s9, 1
        %s133 = smul.addr %s132, 2
        %s134 = smul.addr %s133, 8
        %s135 = scalar_lea.vmem %s0, %s134
      $region28: #{ada_decoder_forward.1} parent=23 // pred_fallthru
        _
    $region24: #{ada_decoder_forward.1} parent=5 // pred_fallthru
      _
    %p136 = scmp.le.s32.totalorder 1, %s9
    %p137 = scmp.lt.s32.totalorder %s9, 3
    %p138 = pnand %p136, %p137
    %p139 = pneg %p138
    // Predicated region
    $region29: #{ada_decoder_forward.1} parent=5 // pred_check
      _
    $region30: #{ada_decoder_forward.1} parent=5 // pred_check_branch
      %141 = sbr.rel (%p138) target = $region32
    $region31: #{ada_decoder_forward.1} parent=5 // pred_region
      %s142 = ssub.s32 %s9, 1
      %p143 = scmp.lt.s32.totalorder %s14, 1
      %s144 = scalar_select %p143, %s14, 1
      %s145 = smul.addr %s144, 2
      %s146 = smul.addr %s145, 8
      %s147 = scalar_lea.vmem %s0, %s146
      %p148 = pneg %p35
      %p149 = pneg %p32
      %p150 = pneg %p56
      %p151 = pneg %p53
      %p152 = pneg %p77
      %p153 = pneg %p74
      %p154 = pneg %p103
      %p155 = pneg %p100
      %p156 = scmp.lt.s32.totalorder %s14, 1
      %s157 = scalar_select %p156, %s14, 1
      %s158 = smul.addr %s157, 2
      %s159 = scalar_lea.vmem %s3, %s158
      %p160 = scmp.lt.s32.totalorder %s14, 1
      %s161 = scalar_select %p160, %s14, 1
      %s162 = smul.addr %s161, 2
      %s163 = smul.addr %s162, 8
      %s164 = scalar_lea.vmem %s0, %s163
      %p165 = scmp.lt.s32.totalorder %s14, 1
      %s166 = scalar_select %p165, %s14, 1
      %s167 = smul.addr %s166, 2
      %s168 = scalar_lea.vmem %s3, %s167
      %169 = vst [vmem:[#allocation2] sm:$0xff] 0.0
      %170 = vst [vmem:[#allocation2 + $0x8] sm:$0xff] 0.0
      %171 = vst [vmem:[#allocation2 + $0x10] sm:$0xff] 0.0
      %172 = vst [vmem:[#allocation2 + $0x18] sm:$0xff] 0.0
      %v173 = vld [vmem:[%s164] sm:$0xff]
      %v174 = vld [vmem:[%s164 + $0x8] sm:$0xff]
      %176 = vrot.lane.b32.xlu0 %v173, 113
      %v177 = vpop.permute.xlu0 %176
      %vm179 = vcmask 138248
      %180 = vst.msk [vmem:[#allocation2] sm:$0xff] %vm179, %v177
      %181 = vrot.lane.b32.xlu0 %v173, 111
      %v182 = vpop.permute.xlu0 %181
      %vm184 = vcmask 7168
      %185 = vst.msk [vmem:[#allocation2] sm:$0xff] %vm184, %v182
      %186 = vrot.lane.b32.xlu0 %v173, 115
      %v187 = vpop.permute.xlu0 %186
      %vm189 = vcmask 146568
      %190 = vst.msk [vmem:[#allocation2] sm:$0xff] %vm189, %v187
      %191 = vrot.lane.b32.xlu0 %v173, 19
      %v192 = vpop.permute.xlu0 %191
      %vm194 = vcmask 285848
      %195 = vst.msk [vmem:[#allocation2] sm:$0xff] %vm194, %v192
      %196 = vrot.lane.b32.xlu0 %v173, 17
      %v197 = vpop.permute.xlu0 %196
      %vm199 = vcmask 154768
      %200 = vst.msk [vmem:[#allocation2] sm:$0xff] %vm199, %v197
      %201 = vrot.lane.b32.xlu0 %v173, 21
      %v202 = vpop.permute.xlu0 %201
      %vm204 = vcmask 294168
      %205 = vst.msk [vmem:[#allocation2] sm:$0xff] %vm204, %v202
      %vm206 = vcmask 433448
      %207 = vst.msk [vmem:[#allocation2] sm:$0xff] %vm206, %v202
      %vm208 = vcmask 302368
      %209 = vst.msk [vmem:[#allocation2] sm:$0xff] %vm208, %v192
      %210 = vrot.lane.b32.xlu0 %v173, 23
      %v211 = vpop.permute.xlu0 %210
      %vm213 = vcmask 441768
      %214 = vst.msk [vmem:[#allocation2] sm:$0xff] %vm213, %v211
      %vm215 = vcmask 581048
      %216 = vst.msk [vmem:[#allocation2] sm:$0xff] %vm215, %v211
      %vm217 = vcmask 449968
      %218 = vst.msk [vmem:[#allocation2] sm:$0xff] %vm217, %v202
      %219 = vrot.lane.b32.xlu0 %v173, 25
      %v220 = vpop.permute.xlu0 %219
      %vm222 = vcmask 589368
      %223 = vst.msk [vmem:[#allocation2] sm:$0xff] %vm222, %v220
      %vm224 = vcmask 728648
      %225 = vst.msk [vmem:[#allocation2] sm:$0xff] %vm224, %v220
      %vm226 = vcmask 597568
      %227 = vst.msk [vmem:[#allocation2] sm:$0xff] %vm226, %v211
      %228 = vrot.lane.b32.xlu0 %v173, 27
      %v229 = vpop.permute.xlu0 %228
      %vm231 = vcmask 736968
      %232 = vst.msk [vmem:[#allocation2] sm:$0xff] %vm231, %v229
      %vm233 = vcmask 876248
      %234 = vst.msk [vmem:[#allocation2] sm:$0xff] %vm233, %v229
      %vm235 = vcmask 745168
      %236 = vst.msk [vmem:[#allocation2] sm:$0xff] %vm235, %v220
      %237 = vrot.lane.b32.xlu0 %v173, 29
      %v238 = vpop.permute.xlu0 %237
      %vm240 = vcmask 884568
      %241 = vst.msk [vmem:[#allocation2] sm:$0xff] %vm240, %v238
      %vm242 = vcmask 1023848
      %243 = vst.msk [vmem:[#allocation2] sm:$0xff] %vm242, %v238
      %vm244 = vcmask 892768
      %245 = vst.msk [vmem:[#allocation2] sm:$0xff] %vm244, %v229
      %246 = vrot.lane.b32.xlu0 %v173, 31
      %v247 = vpop.permute.xlu0 %246
      %vm249 = vcmask 1032168
      %250 = vst.msk [vmem:[#allocation2] sm:$0xff] %vm249, %v247
      %vm251 = vcmask 1048568
      %252 = vst.msk [vmem:[#allocation2] sm:$0xff] %vm251, %v247
      %vm253 = vcmask 121856
      %254 = vst.msk [vmem:[#allocation2 + $0x8] sm:$0xff] %vm253, %v247
      %vm255 = vcmask 1040368
      %256 = vst.msk [vmem:[#allocation2] sm:$0xff] %vm255, %v238
      %257 = vrot.lane.b32.xlu0 %v173, 33
      %v258 = vpop.permute.xlu0 %257
      %vm260 = vcmask 130168
      %261 = vst.msk [vmem:[#allocation2 + $0x8] sm:$0xff] %vm260, %v258
      %vm262 = vcmask 269448
      %263 = vst.msk [vmem:[#allocation2 + $0x8] sm:$0xff] %vm262, %v258
      %vm264 = vcmask 138368
      %265 = vst.msk [vmem:[#allocation2 + $0x8] sm:$0xff] %vm264, %v247
      %266 = vrot.lane.b32.xlu0 %v173, 35
      %v267 = vpop.permute.xlu0 %266
      %vm269 = vcmask 277768
      %270 = vst.msk [vmem:[#allocation2 + $0x8] sm:$0xff] %vm269, %v267
      %272 = vrot.lane.b32.xlu0 %v174, 35
      %v273 = vpop.permute.xlu0 %272
      %vm275 = vcmask 417048
      %276 = vst.msk [vmem:[#allocation2 + $0x8] sm:$0xff] %vm275, %v273
      %277 = vrot.lane.b32.xlu0 %v174, 33
      %v278 = vpop.permute.xlu0 %277
      %vm280 = vcmask 285968
      %281 = vst.msk [vmem:[#allocation2 + $0x8] sm:$0xff] %vm280, %v278
      %282 = vrot.lane.b32.xlu0 %v174, 37
      %v283 = vpop.permute.xlu0 %282
      %vm285 = vcmask 425368
      %286 = vst.msk [vmem:[#allocation2 + $0x8] sm:$0xff] %vm285, %v283
      %vm287 = vcmask 564648
      %288 = vst.msk [vmem:[#allocation2 + $0x8] sm:$0xff] %vm287, %v283
      %vm289 = vcmask 433568
      %290 = vst.msk [vmem:[#allocation2 + $0x8] sm:$0xff] %vm289, %v273
      %291 = vrot.lane.b32.xlu0 %v174, 39
      %v292 = vpop.permute.xlu0 %291
      %vm294 = vcmask 572968
      %295 = vst.msk [vmem:[#allocation2 + $0x8] sm:$0xff] %vm294, %v292
      %vm296 = vcmask 712248
      %297 = vst.msk [vmem:[#allocation2 + $0x8] sm:$0xff] %vm296, %v292
      %vm298 = vcmask 581168
      %299 = vst.msk [vmem:[#allocation2 + $0x8] sm:$0xff] %vm298, %v283
      %300 = vrot.lane.b32.xlu0 %v174, 41
      %v301 = vpop.permute.xlu0 %300
      %vm303 = vcmask 720568
      %304 = vst.msk [vmem:[#allocation2 + $0x8] sm:$0xff] %vm303, %v301
      %vm305 = vcmask 859848
      %306 = vst.msk [vmem:[#allocation2 + $0x8] sm:$0xff] %vm305, %v301
      %vm307 = vcmask 728768
      %308 = vst.msk [vmem:[#allocation2 + $0x8] sm:$0xff] %vm307, %v292
      %309 = vrot.lane.b32.xlu0 %v174, 43
      %v310 = vpop.permute.xlu0 %309
      %vm312 = vcmask 868168
      %313 = vst.msk [vmem:[#allocation2 + $0x8] sm:$0xff] %vm312, %v310
      %vm314 = vcmask 1007448
      %315 = vst.msk [vmem:[#allocation2 + $0x8] sm:$0xff] %vm314, %v310
      %vm316 = vcmask 876368
      %317 = vst.msk [vmem:[#allocation2 + $0x8] sm:$0xff] %vm316, %v301
      %318 = vrot.lane.b32.xlu0 %v174, 45
      %v319 = vpop.permute.xlu0 %318
      %vm321 = vcmask 1015768
      %322 = vst.msk [vmem:[#allocation2 + $0x8] sm:$0xff] %vm321, %v319
      %vm323 = vcmask 1048552
      %324 = vst.msk [vmem:[#allocation2 + $0x8] sm:$0xff] %vm323, %v319
      %vm325 = vcmask 105472
      %326 = vst.msk [vmem:[#allocation2 + $0x10] sm:$0xff] %vm325, %v319
      %vm327 = vcmask 1023968
      %328 = vst.msk [vmem:[#allocation2 + $0x8] sm:$0xff] %vm327, %v310
      %329 = vrot.lane.b32.xlu0 %v174, 47
      %v330 = vpop.permute.xlu0 %329
      %vm332 = vcmask 113768
      %333 = vst.msk [vmem:[#allocation2 + $0x10] sm:$0xff] %vm332, %v330
      %vm334 = vcmask 253048
      %335 = vst.msk [vmem:[#allocation2 + $0x10] sm:$0xff] %vm334, %v330
      %vm336 = vcmask 121968
      %337 = vst.msk [vmem:[#allocation2 + $0x10] sm:$0xff] %vm336, %v319
      %338 = vrot.lane.b32.xlu0 %v174, 49
      %v339 = vpop.permute.xlu0 %338
      %vm341 = vcmask 261368
      %342 = vst.msk [vmem:[#allocation2 + $0x10] sm:$0xff] %vm341, %v339
      %vm343 = vcmask 400648
      %344 = vst.msk [vmem:[#allocation2 + $0x10] sm:$0xff] %vm343, %v339
      %vm345 = vcmask 269568
      %346 = vst.msk [vmem:[#allocation2 + $0x10] sm:$0xff] %vm345, %v330
      %347 = vrot.lane.b32.xlu0 %v174, 51
      %v348 = vpop.permute.xlu0 %347
      %vm350 = vcmask 408968
      %351 = vst.msk [vmem:[#allocation2 + $0x10] sm:$0xff] %vm350, %v348
      %352 = vrot.lane.b32.xlu0 %v174, 83
      %v353 = vpop.permute.xlu0 %352
      %vm355 = vcmask 548248
      %356 = vst.msk [vmem:[#allocation2 + $0x10] sm:$0xff] %vm355, %v353
      %357 = vrot.lane.b32.xlu0 %v174, 81
      %v358 = vpop.permute.xlu0 %357
      %vm360 = vcmask 417168
      %361 = vst.msk [vmem:[#allocation2 + $0x10] sm:$0xff] %vm360, %v358
      %362 = vrot.lane.b32.xlu0 %v174, 85
      %v363 = vpop.permute.xlu0 %362
      %vm365 = vcmask 556568
      %366 = vst.msk [vmem:[#allocation2 + $0x10] sm:$0xff] %vm365, %v363
      %v367 = vld [vmem:[#allocation2] sm:$0xff]
      %v368 = vld [vmem:[#allocation2 + $0x8] sm:$0xff]
      %v369 = vld [vmem:[#allocation2 + $0x10] sm:$0xff]
      %373 = vrot.lane.b32.xlu0 %v367, 127
      %v374 = vpop.permute.xlu0 %373
      %375 = vrot.lane.b32.xlu0 %v368, 127
      %v376 = vpop.permute.xlu0 %375
      %377 = vrot.lane.b32.xlu0 %v369, 127
      %v378 = vpop.permute.xlu0 %377
      %vm379 = vcmask 1039360
      %v380 = vsel %vm379, %v374, %v376
      %v381 = vsel %vm379, %v376, %v378
      %385 = vrot.lane.b32.xlu0 %v367, 126
      %v386 = vpop.permute.xlu0 %385
      %387 = vrot.lane.b32.xlu0 %v368, 126
      %v388 = vpop.permute.xlu0 %387
      %389 = vrot.lane.b32.xlu0 %v369, 126
      %v390 = vpop.permute.xlu0 %389
      %vm391 = vcmask 1031168
      %v392 = vsel %vm391, %v386, %v388
      %v393 = vsel %vm391, %v388, %v390
      %397 = vrot.lane.b32.xlu0 %v367, 110
      %v398 = vpop.permute.xlu0 %397
      %399 = vrot.lane.b32.xlu0 %v368, 110
      %v400 = vpop.permute.xlu0 %399
      %401 = vrot.lane.b32.xlu0 %v369, 110
      %v402 = vpop.permute.xlu0 %401
      %vm403 = vcmask 900096
      %v404 = vsel %vm403, %v398, %v400
      %v405 = vsel %vm403, %v400, %v402
      %409 = vrot.lane.b32.xlu0 %v367, 109
      %v410 = vpop.permute.xlu0 %409
      %411 = vrot.lane.b32.xlu0 %v368, 109
      %v412 = vpop.permute.xlu0 %411
      %413 = vrot.lane.b32.xlu0 %v369, 109
      %v414 = vpop.permute.xlu0 %413
      %vm415 = vcmask 891904
      %v416 = vsel %vm415, %v410, %v412
      %v417 = vsel %vm415, %v412, %v414
      %421 = vrot.lane.b32.xlu0 %v367, 108
      %v422 = vpop.permute.xlu0 %421
      %423 = vrot.lane.b32.xlu0 %v368, 108
      %v424 = vpop.permute.xlu0 %423
      %425 = vrot.lane.b32.xlu0 %v369, 108
      %v426 = vpop.permute.xlu0 %425
      %vm427 = vcmask 883712
      %v428 = vsel %vm427, %v422, %v424
      %v429 = vsel %vm427, %v424, %v426
      %433 = vrot.lane.b32.xlu0 %v367, 92
      %v434 = vpop.permute.xlu0 %433
      %435 = vrot.lane.b32.xlu0 %v368, 92
      %v436 = vpop.permute.xlu0 %435
      %437 = vrot.lane.b32.xlu0 %v369, 92
      %v438 = vpop.permute.xlu0 %437
      %vm439 = vcmask 752640
      %v440 = vsel %vm439, %v434, %v436
      %v441 = vsel %vm439, %v436, %v438
      %445 = vrot.lane.b32.xlu0 %v367, 91
      %v446 = vpop.permute.xlu0 %445
      %447 = vrot.lane.b32.xlu0 %v368, 91
      %v448 = vpop.permute.xlu0 %447
      %449 = vrot.lane.b32.xlu0 %v369, 91
      %v450 = vpop.permute.xlu0 %449
      %vm451 = vcmask 744448
      %v452 = vsel %vm451, %v446, %v448
      %v453 = vsel %vm451, %v448, %v450
      %457 = vrot.lane.b32.xlu0 %v367, 90
      %v458 = vpop.permute.xlu0 %457
      %459 = vrot.lane.b32.xlu0 %v368, 90
      %v460 = vpop.permute.xlu0 %459
      %461 = vrot.lane.b32.xlu0 %v369, 90
      %v462 = vpop.permute.xlu0 %461
      %vm463 = vcmask 736256
      %v464 = vsel %vm463, %v458, %v460
      %v465 = vsel %vm463, %v460, %v462
      %v469 = vld [vmem:[%s1] sm:$0xff]
      %v470 = vld [vmem:[%s2] sm:$0xff]
      %472 = vset.pattern.permute.xlu0 0
      %473 = vperm.xlu0 %472, %v470
      %v474 = vpop.permute.xlu0 %473
      %vm476 = vcmask 588800
      %v478 = vsel %vm476, %v469, 0
      %480 = vmatprep.subr.mxu0 %v368
      %481 = vmatpush1.msra.mxu0 %v367
      %482 = vmatprep.subr.mxu0 %v381
      %483 = vmatpush1.msra.mxu0 %v380
      %484 = vmatprep.subr.mxu0 %v393
      %485 = vmatpush1.msra.mxu0 %v392
      %486 = vmatprep.subr.mxu0 %v405
      %487 = vmatpush1.msra.mxu0 %v404
      %488 = vmatprep.subr.mxu0 %v417
      %489 = vmatpush1.msra.mxu0 %v416
      %490 = vmatprep.subr.mxu0 %v429
      %491 = vmatpush1.msra.mxu0 %v428
      %492 = vmatprep.subr.mxu0 %v441
      %493 = vmatpush1.msra.mxu0 %v440
      %494 = vmatprep.subr.mxu0 %v453
      %495 = vmatpush1.msra.mxu0 %v452
      %496 = vmatprep.subr.mxu0 %v465
      %497 = vmatpush1.msra.mxu0 %v464
      %498 = vmatprep.subr.mxu0 0.0
      %499 = vmatpush1.msra.mxu0 0.0
      %500 = vmatprep.subr.mxu0 0.0
      %501 = vmatpush1.msra.mxu0 0.0
      %502 = vmatprep.subr.mxu0 0.0
      %503 = vmatpush1.msra.mxu0 0.0
      %504 = vmatprep.subr.mxu0 0.0
      %505 = vmatpush1.msra.mxu0 0.0
      %506 = vmatprep.subr.mxu0 0.0
      %507 = vmatpush1.msra.mxu0 0.0
      %508 = vmatprep.subr.mxu0 0.0
      %509 = vmatpush1.msra.mxu0 0.0
      %510 = vmatprep.subr.mxu0 0.0
      %511 = vmatpush1.msra.mxu0 0.0
      %512 = vmatprep.subr.mxu0 0.0
      %513 = vmatpush1.msra.mxu0 0.0
      %514 = vmatprep.subr.mxu0 0.0
      %515 = vmatpush1.msra.mxu0 0.0
      %516 = vmatprep.subr.mxu0 0.0
      %517 = vmatpush1.msra.mxu0 0.0
      %518 = vmatprep.subr.mxu0 0.0
      %519 = vmatpush1.msra.mxu0 0.0
      %520 = vmatprep.subr.mxu0 0.0
      %521 = vmatpush1.msra.mxu0 0.0
      %522 = vmatprep.subr.mxu0 0.0
      %523 = vmatpush1.msra.mxu0 0.0
      %524 = vmatprep.subr.mxu0 0.0
      %525 = vmatpush1.msra.mxu0 0.0
      %526 = vmatprep.subr.mxu0 0.0
      %527 = vmatpush1.msra.mxu0 0.0
      %528 = vmatprep.subr.mxu0 0.0
      %529 = vmatpush1.msra.mxu0 0.0
      %530 = vmatprep.subr.mxu0 0.0
      %531 = vmatpush1.msra.mxu0 0.0
      %532 = vmatprep.subr.mxu0 0.0
      %533 = vmatpush1.msra.mxu0 0.0
      %534 = vmatprep.subr.mxu0 0.0
      %535 = vmatpush1.msra.mxu0 0.0
      %536 = vmatprep.subr.mxu0 0.0
      %537 = vmatpush1.msra.mxu0 0.0
      %538 = vmatprep.subr.mxu0 0.0
      %539 = vmatpush1.msra.mxu0 0.0
      %540 = vmatprep.subr.mxu0 0.0
      %541 = vmatpush1.msra.mxu0 0.0
      %542 = vmatprep.subr.mxu0 0.0
      %543 = vmatpush1.msra.mxu0 0.0
      %544 = vmatprep.mubr.f32.mxu0 0.0
      %545 = vmatmul.mubr.f32.gmra.mrb[0].mxu0 %v478
      %v546 = vpop.f32.mrb[0].mxu0
      %v547 = vadd.f32 %v474, %v546
      %v548 = vpop.f32.mrb[0].mxu0
      %v549 = vadd.f32 %v474, %v548
      %550 = vdwg.mxu0
      %551 = vmatprep.subr.mxu0 0.0
      %552 = vmatpush1.msra.mxu0 %v369
      %553 = vmatprep.subr.mxu0 0.0
      %554 = vmatpush1.msra.mxu0 %v378
      %555 = vmatprep.subr.mxu0 0.0
      %556 = vmatpush1.msra.mxu0 %v390
      %557 = vmatprep.subr.mxu0 0.0
      %558 = vmatpush1.msra.mxu0 %v402
      %559 = vmatprep.subr.mxu0 0.0
      %560 = vmatpush1.msra.mxu0 %v414
      %561 = vmatprep.subr.mxu0 0.0
      %562 = vmatpush1.msra.mxu0 %v426
      %563 = vmatprep.subr.mxu0 0.0
      %564 = vmatpush1.msra.mxu0 %v438
      %565 = vmatprep.subr.mxu0 0.0
      %566 = vmatpush1.msra.mxu0 %v450
      %567 = vmatprep.subr.mxu0 0.0
      %568 = vmatpush1.msra.mxu0 %v462
      %569 = vmatprep.subr.mxu0 0.0
      %570 = vmatpush1.msra.mxu0 0.0
      %571 = vmatprep.subr.mxu0 0.0
      %572 = vmatpush1.msra.mxu0 0.0
      %573 = vmatprep.subr.mxu0 0.0
      %574 = vmatpush1.msra.mxu0 0.0
      %575 = vmatprep.subr.mxu0 0.0
      %576 = vmatpush1.msra.mxu0 0.0
      %577 = vmatprep.subr.mxu0 0.0
      %578 = vmatpush1.msra.mxu0 0.0
      %579 = vmatprep.subr.mxu0 0.0
      %580 = vmatpush1.msra.mxu0 0.0
      %581 = vmatprep.subr.mxu0 0.0
      %582 = vmatpush1.msra.mxu0 0.0
      %583 = vmatprep.subr.mxu0 0.0
      %584 = vmatpush1.msra.mxu0 0.0
      %585 = vmatprep.subr.mxu0 0.0
      %586 = vmatpush1.msra.mxu0 0.0
      %587 = vmatprep.subr.mxu0 0.0
      %588 = vmatpush1.msra.mxu0 0.0
      %589 = vmatprep.subr.mxu0 0.0
      %590 = vmatpush1.msra.mxu0 0.0
      %591 = vmatprep.subr.mxu0 0.0
      %592 = vmatpush1.msra.mxu0 0.0
      %593 = vmatprep.subr.mxu0 0.0
      %594 = vmatpush1.msra.mxu0 0.0
      %595 = vmatprep.subr.mxu0 0.0
      %596 = vmatpush1.msra.mxu0 0.0
      %597 = vmatprep.subr.mxu0 0.0
      %598 = vmatpush1.msra.mxu0 0.0
      %599 = vmatprep.subr.mxu0 0.0
      %600 = vmatpush1.msra.mxu0 0.0
      %601 = vmatprep.subr.mxu0 0.0
      %602 = vmatpush1.msra.mxu0 0.0
      %603 = vmatprep.subr.mxu0 0.0
      %604 = vmatpush1.msra.mxu0 0.0
      %605 = vmatprep.subr.mxu0 0.0
      %606 = vmatpush1.msra.mxu0 0.0
      %607 = vmatprep.subr.mxu0 0.0
      %608 = vmatpush1.msra.mxu0 0.0
      %609 = vmatprep.subr.mxu0 0.0
      %610 = vmatpush1.msra.mxu0 0.0
      %611 = vmatprep.subr.mxu0 0.0
      %612 = vmatpush1.msra.mxu0 0.0
      %613 = vmatprep.subr.mxu0 0.0
      %614 = vmatpush1.msra.mxu0 0.0
      %615 = vmatprep.mubr.f32.mxu0 0.0
      %616 = vmatmul.mubr.f32.gmra.mrb[0].mxu0 %v478
      %v617 = vpop.f32.mrb[0].mxu0
      %v618 = vadd.f32 %v474, %v617
      %v619 = vpop.f32.mrb[0].mxu0
      %620 = vdwg.mxu0
      %vm621 = vcmask 130048
      %v622 = vsel %vm621, 1.0, 0.0
      %624 = vrot.lane.b32.xlu0 %v622, 18
      %v625 = vpop.permute.xlu0 %624
      %627 = vrot.lane.b32.xlu0 %v622, 36
      %v628 = vpop.permute.xlu0 %627
      %630 = vrot.lane.b32.xlu0 %v622, 54
      %v631 = vpop.permute.xlu0 %630
      %633 = vrot.lane.b32.xlu0 %v622, 72
      %v634 = vpop.permute.xlu0 %633
      %636 = vrot.lane.b32.xlu0 %v622, 90
      %v637 = vpop.permute.xlu0 %636
      %639 = vrot.lane.b32.xlu0 %v622, 108
      %v640 = vpop.permute.xlu0 %639
      %642 = vrot.lane.b32.xlu0 %v622, 126
      %v643 = vpop.permute.xlu0 %642
      %645 = vrot.lane.b32.xlu0 %v622, 16
      %v646 = vpop.permute.xlu0 %645
      %648 = vrot.lane.b32.xlu0 %v622, 34
      %v649 = vpop.permute.xlu0 %648
      %651 = vrot.lane.b32.xlu0 %v622, 52
      %v652 = vpop.permute.xlu0 %651
      %654 = vrot.lane.b32.xlu0 %v622, 70
      %v655 = vpop.permute.xlu0 %654
      %657 = vrot.lane.b32.xlu0 %v622, 88
      %v658 = vpop.permute.xlu0 %657
      %660 = vrot.lane.b32.xlu0 %v622, 106
      %v661 = vpop.permute.xlu0 %660
      %663 = vrot.lane.b32.xlu0 %v622, 124
      %v664 = vpop.permute.xlu0 %663
      %666 = vrot.lane.b32.xlu0 %v622, 14
      %v667 = vpop.permute.xlu0 %666
      %vm669 = vcmask 146432
      %v670 = vsel %vm669, %v622, %v625
      %vm671 = vcmask 293888
      %v672 = vsel %vm671, %v670, %v628
      %vm673 = vcmask 441344
      %v674 = vsel %vm673, %v672, %v631
      %v675 = vsel %vm476, %v674, %v634
      %v676 = vsel %vm463, %v675, %v637
      %v677 = vsel %vm427, %v676, %v640
      %v678 = vsel %vm391, %v677, %v643
      %v679 = vsel %vm621, %v643, %v646
      %vm680 = vcmask 277504
      %v681 = vsel %vm680, %v679, %v649
      %vm682 = vcmask 424960
      %v683 = vsel %vm682, %v681, %v652
      %vm684 = vcmask 572416
      %v685 = vsel %vm684, %v683, %v655
      %vm686 = vcmask 719872
      %v687 = vsel %vm686, %v685, %v658
      %vm688 = vcmask 867328
      %v689 = vsel %vm688, %v687, %v661
      %vm690 = vcmask 1014784
      %v691 = vsel %vm690, %v689, %v664
      %vm692 = vcmask 113664
      %v693 = vsel %vm692, %v664, %v667
      %vm694 = vcmp.gt.f32.partialorder %v678, 0.5
      %vm695 = vcmp.gt.f32.partialorder %v691, 0.5
      %vm696 = vcmp.gt.f32.partialorder %v693, 0.5
      %v697 = vlaneseq
      %v698 = vshrl.u32 %v697, 7
      %vm699 = vcmp.lt.s32.totalorder %v698, 4
      %vm700 = vmand %vm694, %vm699
      %vm701 = vmand %vm695, %vm699
      %vm702 = vmand %vm696, %vm699
      %v703 = vsel %vm700, %v547, 0.0
      %v704 = vsel %vm701, %v549, 0.0
      %v705 = vsel %vm702, %v618, 0.0
      %v706 = vadd.f32 %v703, %v704
      %vm707 = vcmask 261120
      %v708 = vsel %vm707, %v705, 0.0
      %v709 = vadd.f32 %v706, %v708
      %710 = vadd.xlane.f32.xlu0 %v709
      %v711 = vpop.xlane.xlu0 %710
      %v712 = vrot.slane %v711, 4
      %v713 = vadd.f32 %v711, %v712
      %v714 = vrot.slane %v713, 2
      %v715 = vadd.f32 %v713, %v714
      %v716 = vrot.slane %v715, 1
      %v717 = vadd.f32 %v715, %v716
      %v718 = vrcp.pop 1024.0
      %v719 = vmul.f32 %v717, %v718
      %v720 = vsub.f32 %v547, %v719
      %v721 = vsub.f32 %v549, %v719
      %v722 = vsub.f32 %v618, %v719
      %v723 = vsel %vm700, %v720, 0.0
      %v724 = vsel %vm701, %v721, 0.0
      %v725 = vsel %vm702, %v722, 0.0
      %v726 = vmul.f32 %v723, %v723
      %v727 = vmul.f32 %v724, %v724
      %v728 = vmul.f32 %v725, %v725
      %v729 = vadd.f32 %v726, %v727
      %v730 = vsel %vm707, %v728, 0.0
      %v731 = vadd.f32 %v729, %v730
      %732 = vadd.xlane.f32.xlu0 %v731
      %v733 = vpop.xlane.xlu0 %732
      %v734 = vrot.slane %v733, 4
      %v735 = vadd.f32 %v733, %v734
      %v736 = vrot.slane %v735, 2
      %v737 = vadd.f32 %v735, %v736
      %v738 = vrot.slane %v737, 1
      %v739 = vadd.f32 %v737, %v738
      %v740 = vrcp.pop 1023.0
      %v741 = vmul.f32 %v739, %v740
      %v742 = vrsqrt.pop %v741
      %v743 = vmul.f32 %v741, %v742
      %vm744 = vcmp.eq.f32.partialorder %v741, inf
      %v745 = vsel %vm744, %v741, %v743
      %vm746 = vcmp.eq.f32.partialorder %v741, 0.0
      %v747 = vand.u32 %v741, 2147483648
      %v748 = vsel %vm746, %v747, %v745
      %v749 = vadd.f32 %v748, 1e-05
      %v750 = vrcp.pop %v749
      %v751 = vmul.f32 1.0, %v750
      %v752 = vmul.f32 %v470, %v751
      %v753 = vmul.f32 %v719, %v752
      %755 = vrot.lane.b32.xlu0 %v753, 1
      %v756 = vpop.permute.xlu0 %755
      %v758 = vsub.f32 %v470, %v756
      %760 = vset.pattern.permute.xlu0 1
      %761 = vperm.xlu0 %760, %v752
      %v762 = vpop.permute.xlu0 %761
      %v764 = vmul.f32 %v547, %v762
      %v765 = vmul.f32 %v549, %v762
      %v766 = vmul.f32 %v618, %v762
      %768 = vset.pattern.permute.xlu0 2
      %769 = vperm.xlu0 %768, %v758
      %v770 = vpop.permute.xlu0 %769
      %v772 = vadd.f32 %v764, %v770
      %v773 = vadd.f32 %v765, %v770
      %v774 = vadd.f32 %v766, %v770
      %v775 = vmax.f32 %v772, 0.0
      %v776 = vmax.f32 %v773, 0.0
      %v777 = vmax.f32 %v774, 0.0
      %779 = vrot.lane.b32.xlu0 %v775, 111
      %v780 = vpop.permute.xlu0 %779
      %782 = vst.msk [vmem:[#allocation2] sm:$0xff] %vm179, %v780
      %783 = vrot.lane.b32.xlu0 %v775, 109
      %v784 = vpop.permute.xlu0 %783
      %786 = vst.msk [vmem:[#allocation2] sm:$0xff] %vm184, %v784
      %787 = vrot.lane.b32.xlu0 %v775, 113
      %v788 = vpop.permute.xlu0 %787
      %790 = vst.msk [vmem:[#allocation2] sm:$0xff] %vm189, %v788
      %791 = vrot.lane.b32.xlu0 %v775, 19
      %v792 = vpop.permute.xlu0 %791
      %794 = vst.msk [vmem:[#allocation2] sm:$0xff] %vm194, %v792
      %795 = vrot.lane.b32.xlu0 %v775, 17
      %v796 = vpop.permute.xlu0 %795
      %798 = vst.msk [vmem:[#allocation2] sm:$0xff] %vm199, %v796
      %799 = vrot.lane.b32.xlu0 %v775, 21
      %v800 = vpop.permute.xlu0 %799
      %802 = vst.msk [vmem:[#allocation2] sm:$0xff] %vm204, %v800
      %803 = vst.msk [vmem:[#allocation2] sm:$0xff] %vm206, %v792
      %804 = vst.msk [vmem:[#allocation2] sm:$0xff] %vm208, %v796
      %805 = vst.msk [vmem:[#allocation2] sm:$0xff] %vm213, %v800
      %806 = vst.msk [vmem:[#allocation2] sm:$0xff] %vm215, %v792
      %807 = vst.msk [vmem:[#allocation2] sm:$0xff] %vm217, %v796
      %808 = vst.msk [vmem:[#allocation2] sm:$0xff] %vm222, %v800
      %809 = vst.msk [vmem:[#allocation2] sm:$0xff] %vm224, %v792
      %810 = vst.msk [vmem:[#allocation2] sm:$0xff] %vm226, %v796
      %811 = vst.msk [vmem:[#allocation2] sm:$0xff] %vm231, %v800
      %812 = vst.msk [vmem:[#allocation2] sm:$0xff] %vm233, %v792
      %813 = vst.msk [vmem:[#allocation2] sm:$0xff] %vm235, %v796
      %814 = vst.msk [vmem:[#allocation2] sm:$0xff] %vm240, %v800
      %815 = vst.msk [vmem:[#allocation2] sm:$0xff] %vm242, %v792
      %816 = vst.msk [vmem:[#allocation2] sm:$0xff] %vm244, %v796
      %817 = vst.msk [vmem:[#allocation2] sm:$0xff] %vm249, %v800
      %818 = vst.msk [vmem:[#allocation2] sm:$0xff] %vm251, %v792
      %819 = vst.msk [vmem:[#allocation2 + $0x8] sm:$0xff] %vm253, %v792
      %820 = vst.msk [vmem:[#allocation2] sm:$0xff] %vm255, %v796
      %821 = vst.msk [vmem:[#allocation2 + $0x8] sm:$0xff] %vm260, %v800
      %823 = vrot.lane.b32.xlu0 %v776, 19
      %v824 = vpop.permute.xlu0 %823
      %vm825 = vcmask 154624
      %v826 = vsel %vm825, %v792, %v824
      %828 = vst.msk [vmem:[#allocation2 + $0x8] sm:$0xff] %vm262, %v826
      %829 = vst.msk [vmem:[#allocation2 + $0x8] sm:$0xff] %vm264, %v796
      %830 = vrot.lane.b32.xlu0 %v776, 21
      %v831 = vpop.permute.xlu0 %830
      %833 = vst.msk [vmem:[#allocation2 + $0x8] sm:$0xff] %vm269, %v831
      %835 = vst.msk [vmem:[#allocation2 + $0x8] sm:$0xff] %vm275, %v824
      %836 = vrot.lane.b32.xlu0 %v776, 17
      %v837 = vpop.permute.xlu0 %836
      %839 = vst.msk [vmem:[#allocation2 + $0x8] sm:$0xff] %vm280, %v837
      %840 = vst.msk [vmem:[#allocation2 + $0x8] sm:$0xff] %vm285, %v831
      %841 = vst.msk [vmem:[#allocation2 + $0x8] sm:$0xff] %vm287, %v824
      %842 = vst.msk [vmem:[#allocation2 + $0x8] sm:$0xff] %vm289, %v837
      %843 = vst.msk [vmem:[#allocation2 + $0x8] sm:$0xff] %vm294, %v831
      %844 = vst.msk [vmem:[#allocation2 + $0x8] sm:$0xff] %vm296, %v824
      %845 = vst.msk [vmem:[#allocation2 + $0x8] sm:$0xff] %vm298, %v837
      %846 = vst.msk [vmem:[#allocation2 + $0x8] sm:$0xff] %vm303, %v831
      %847 = vst.msk [vmem:[#allocation2 + $0x8] sm:$0xff] %vm305, %v824
      %848 = vst.msk [vmem:[#allocation2 + $0x8] sm:$0xff] %vm307, %v837
      %849 = vst.msk [vmem:[#allocation2 + $0x8] sm:$0xff] %vm312, %v831
      %850 = vst.msk [vmem:[#allocation2 + $0x8] sm:$0xff] %vm314, %v824
      %851 = vst.msk [vmem:[#allocation2 + $0x8] sm:$0xff] %vm316, %v837
      %852 = vst.msk [vmem:[#allocation2 + $0x8] sm:$0xff] %vm321, %v831
      %853 = vst.msk [vmem:[#allocation2 + $0x8] sm:$0xff] %vm323, %v824
      %854 = vst.msk [vmem:[#allocation2 + $0x10] sm:$0xff] %vm325, %v824
      %855 = vst.msk [vmem:[#allocation2 + $0x8] sm:$0xff] %vm327, %v837
      %856 = vst.msk [vmem:[#allocation2 + $0x10] sm:$0xff] %vm332, %v831
      %858 = vrot.lane.b32.xlu0 %v777, 19
      %v859 = vpop.permute.xlu0 %858
      %v860 = vsel %vm825, %v824, %v859
      %862 = vst.msk [vmem:[#allocation2 + $0x10] sm:$0xff] %vm334, %v860
      %863 = vst.msk [vmem:[#allocation2 + $0x10] sm:$0xff] %vm336, %v837
      %864 = vrot.lane.b32.xlu0 %v777, 21
      %v865 = vpop.permute.xlu0 %864
      %867 = vst.msk [vmem:[#allocation2 + $0x10] sm:$0xff] %vm341, %v865
      %869 = vst.msk [vmem:[#allocation2 + $0x10] sm:$0xff] %vm343, %v859
      %870 = vrot.lane.b32.xlu0 %v777, 17
      %v871 = vpop.permute.xlu0 %870
      %873 = vst.msk [vmem:[#allocation2 + $0x10] sm:$0xff] %vm345, %v871
      %874 = vst.msk [vmem:[#allocation2 + $0x10] sm:$0xff] %vm350, %v865
      %875 = vrot.lane.b32.xlu0 %v776, 55
      %v876 = vpop.permute.xlu0 %875
      %877 = vrot.lane.b32.xlu0 %v777, 55
      %v878 = vpop.permute.xlu0 %877
      %vm879 = vcmask 449536
      %v880 = vsel %vm879, %v876, %v878
      %882 = vst.msk [vmem:[#allocation2 + $0x10] sm:$0xff] %vm355, %v880
      %883 = vrot.lane.b32.xlu0 %v776, 53
      %v884 = vpop.permute.xlu0 %883
      %886 = vst.msk [vmem:[#allocation2 + $0x10] sm:$0xff] %vm360, %v884
      %887 = vrot.lane.b32.xlu0 %v777, 57
      %v888 = vpop.permute.xlu0 %887
      %890 = vst.msk [vmem:[#allocation2 + $0x10] sm:$0xff] %vm365, %v888
      %v891 = vld [vmem:[#allocation2] sm:$0xff]
      %v892 = vld [vmem:[#allocation2 + $0x8] sm:$0xff]
      %v893 = vld [vmem:[#allocation2 + $0x10] sm:$0xff]
      %897 = vrot.lane.b32.xlu0 %v891, 127
      %v898 = vpop.permute.xlu0 %897
      %899 = vrot.lane.b32.xlu0 %v892, 127
      %v900 = vpop.permute.xlu0 %899
      %901 = vrot.lane.b32.xlu0 %v893, 127
      %v902 = vpop.permute.xlu0 %901
      %v903 = vsel %vm379, %v898, %v900
      %v904 = vsel %vm379, %v900, %v902
      %908 = vrot.lane.b32.xlu0 %v891, 126
      %v909 = vpop.permute.xlu0 %908
      %910 = vrot.lane.b32.xlu0 %v892, 126
      %v911 = vpop.permute.xlu0 %910
      %912 = vrot.lane.b32.xlu0 %v893, 126
      %v913 = vpop.permute.xlu0 %912
      %v914 = vsel %vm391, %v909, %v911
      %v915 = vsel %vm391, %v911, %v913
      %919 = vrot.lane.b32.xlu0 %v891, 110
      %v920 = vpop.permute.xlu0 %919
      %921 = vrot.lane.b32.xlu0 %v892, 110
      %v922 = vpop.permute.xlu0 %921
      %923 = vrot.lane.b32.xlu0 %v893, 110
      %v924 = vpop.permute.xlu0 %923
      %v925 = vsel %vm403, %v920, %v922
      %v926 = vsel %vm403, %v922, %v924
      %930 = vrot.lane.b32.xlu0 %v891, 109
      %v931 = vpop.permute.xlu0 %930
      %932 = vrot.lane.b32.xlu0 %v892, 109
      %v933 = vpop.permute.xlu0 %932
      %934 = vrot.lane.b32.xlu0 %v893, 109
      %v935 = vpop.permute.xlu0 %934
      %v936 = vsel %vm415, %v931, %v933
      %v937 = vsel %vm415, %v933, %v935
      %941 = vrot.lane.b32.xlu0 %v891, 108
      %v942 = vpop.permute.xlu0 %941
      %943 = vrot.lane.b32.xlu0 %v892, 108
      %v944 = vpop.permute.xlu0 %943
      %945 = vrot.lane.b32.xlu0 %v893, 108
      %v946 = vpop.permute.xlu0 %945
      %v947 = vsel %vm427, %v942, %v944
      %v948 = vsel %vm427, %v944, %v946
      %952 = vrot.lane.b32.xlu0 %v891, 92
      %v953 = vpop.permute.xlu0 %952
      %954 = vrot.lane.b32.xlu0 %v892, 92
      %v955 = vpop.permute.xlu0 %954
      %956 = vrot.lane.b32.xlu0 %v893, 92
      %v957 = vpop.permute.xlu0 %956
      %v958 = vsel %vm439, %v953, %v955
      %v959 = vsel %vm439, %v955, %v957
      %963 = vrot.lane.b32.xlu0 %v891, 91
      %v964 = vpop.permute.xlu0 %963
      %965 = vrot.lane.b32.xlu0 %v892, 91
      %v966 = vpop.permute.xlu0 %965
      %967 = vrot.lane.b32.xlu0 %v893, 91
      %v968 = vpop.permute.xlu0 %967
      %v969 = vsel %vm451, %v964, %v966
      %v970 = vsel %vm451, %v966, %v968
      %974 = vrot.lane.b32.xlu0 %v891, 90
      %v975 = vpop.permute.xlu0 %974
      %976 = vrot.lane.b32.xlu0 %v892, 90
      %v977 = vpop.permute.xlu0 %976
      %978 = vrot.lane.b32.xlu0 %v893, 90
      %v979 = vpop.permute.xlu0 %978
      %v980 = vsel %vm463, %v975, %v977
      %v981 = vsel %vm463, %v977, %v979
      %v985 = vld [vmem:[%s1] sm:$0xff]
      %v986 = vld [vmem:[%s1 + $0x8] sm:$0xff]
      %v987 = vld [vmem:[%s2] sm:$0xff]
      %989 = vset.pattern.permute.xlu0 3
      %990 = vperm.xlu0 %989, %v987
      %v991 = vpop.permute.xlu0 %990
      %995 = vrot.lane.b32.xlu0 %v985, 56
      %v996 = vpop.permute.xlu0 %995
      %997 = vrot.lane.b32.xlu0 %v986, 56
      %v998 = vpop.permute.xlu0 %997
      %vm999 = vcmask 457728
      %v1000 = vsel %vm999, %v996, %v998
      %v1001 = vsel %vm476, %v1000, 0
      %1003 = vmatprep.subr.mxu0 %v892
      %1004 = vmatpush1.msra.mxu0 %v891
      %1005 = vmatprep.subr.mxu0 %v904
      %1006 = vmatpush1.msra.mxu0 %v903
      %1007 = vmatprep.subr.mxu0 %v915
      %1008 = vmatpush1.msra.mxu0 %v914
      %1009 = vmatprep.subr.mxu0 %v926
      %1010 = vmatpush1.msra.mxu0 %v925
      %1011 = vmatprep.subr.mxu0 %v937
      %1012 = vmatpush1.msra.mxu0 %v936
      %1013 = vmatprep.subr.mxu0 %v948
      %1014 = vmatpush1.msra.mxu0 %v947
      %1015 = vmatprep.subr.mxu0 %v959
      %1016 = vmatpush1.msra.mxu0 %v958
      %1017 = vmatprep.subr.mxu0 %v970
      %1018 = vmatpush1.msra.mxu0 %v969
      %1019 = vmatprep.subr.mxu0 %v981
      %1020 = vmatpush1.msra.mxu0 %v980
      %1021 = vmatprep.subr.mxu0 0.0
      %1022 = vmatpush1.msra.mxu0 0.0
      %1023 = vmatprep.subr.mxu0 0.0
      %1024 = vmatpush1.msra.mxu0 0.0
      %1025 = vmatprep.subr.mxu0 0.0
      %1026 = vmatpush1.msra.mxu0 0.0
      %1027 = vmatprep.subr.mxu0 0.0
      %1028 = vmatpush1.msra.mxu0 0.0
      %1029 = vmatprep.subr.mxu0 0.0
      %1030 = vmatpush1.msra.mxu0 0.0
      %1031 = vmatprep.subr.mxu0 0.0
      %1032 = vmatpush1.msra.mxu0 0.0
      %1033 = vmatprep.subr.mxu0 0.0
      %1034 = vmatpush1.msra.mxu0 0.0
      %1035 = vmatprep.subr.mxu0 0.0
      %1036 = vmatpush1.msra.mxu0 0.0
      %1037 = vmatprep.subr.mxu0 0.0
      %1038 = vmatpush1.msra.mxu0 0.0
      %1039 = vmatprep.subr.mxu0 0.0
      %1040 = vmatpush1.msra.mxu0 0.0
      %1041 = vmatprep.subr.mxu0 0.0
      %1042 = vmatpush1.msra.mxu0 0.0
      %1043 = vmatprep.subr.mxu0 0.0
      %1044 = vmatpush1.msra.mxu0 0.0
      %1045 = vmatprep.subr.mxu0 0.0
      %1046 = vmatpush1.msra.mxu0 0.0
      %1047 = vmatprep.subr.mxu0 0.0
      %1048 = vmatpush1.msra.mxu0 0.0
      %1049 = vmatprep.subr.mxu0 0.0
      %1050 = vmatpush1.msra.mxu0 0.0
      %1051 = vmatprep.subr.mxu0 0.0
      %1052 = vmatpush1.msra.mxu0 0.0
      %1053 = vmatprep.subr.mxu0 0.0
      %1054 = vmatpush1.msra.mxu0 0.0
      %1055 = vmatprep.subr.mxu0 0.0
      %1056 = vmatpush1.msra.mxu0 0.0
      %1057 = vmatprep.subr.mxu0 0.0
      %1058 = vmatpush1.msra.mxu0 0.0
      %1059 = vmatprep.subr.mxu0 0.0
      %1060 = vmatpush1.msra.mxu0 0.0
      %1061 = vmatprep.subr.mxu0 0.0
      %1062 = vmatpush1.msra.mxu0 0.0
      %1063 = vmatprep.subr.mxu0 0.0
      %1064 = vmatpush1.msra.mxu0 0.0
      %1065 = vmatprep.subr.mxu0 0.0
      %1066 = vmatpush1.msra.mxu0 0.0
      %1067 = vmatprep.mubr.f32.mxu0 0.0
      %1068 = vmatmul.mubr.f32.gmra.mrb[0].mxu0 %v1001
      %v1069 = vpop.f32.mrb[0].mxu0
      %v1070 = vadd.f32 %v991, %v1069
      %v1071 = vpop.f32.mrb[0].mxu0
      %v1072 = vadd.f32 %v991, %v1071
      %1073 = vdwg.mxu0
      %1074 = vmatprep.subr.mxu0 0.0
      %1075 = vmatpush1.msra.mxu0 %v893
      %1076 = vmatprep.subr.mxu0 0.0
      %1077 = vmatpush1.msra.mxu0 %v902
      %1078 = vmatprep.subr.mxu0 0.0
      %1079 = vmatpush1.msra.mxu0 %v913
      %1080 = vmatprep.subr.mxu0 0.0
      %1081 = vmatpush1.msra.mxu0 %v924
      %1082 = vmatprep.subr.mxu0 0.0
      %1083 = vmatpush1.msra.mxu0 %v935
      %1084 = vmatprep.subr.mxu0 0.0
      %1085 = vmatpush1.msra.mxu0 %v946
      %1086 = vmatprep.subr.mxu0 0.0
      %1087 = vmatpush1.msra.mxu0 %v957
      %1088 = vmatprep.subr.mxu0 0.0
      %1089 = vmatpush1.msra.mxu0 %v968
      %1090 = vmatprep.subr.mxu0 0.0
      %1091 = vmatpush1.msra.mxu0 %v979
      %1092 = vmatprep.subr.mxu0 0.0
      %1093 = vmatpush1.msra.mxu0 0.0
      %1094 = vmatprep.subr.mxu0 0.0
      %1095 = vmatpush1.msra.mxu0 0.0
      %1096 = vmatprep.subr.mxu0 0.0
      %1097 = vmatpush1.msra.mxu0 0.0
      %1098 = vmatprep.subr.mxu0 0.0
      %1099 = vmatpush1.msra.mxu0 0.0
      %1100 = vmatprep.subr.mxu0 0.0
      %1101 = vmatpush1.msra.mxu0 0.0
      %1102 = vmatprep.subr.mxu0 0.0
      %1103 = vmatpush1.msra.mxu0 0.0
      %1104 = vmatprep.subr.mxu0 0.0
      %1105 = vmatpush1.msra.mxu0 0.0
      %1106 = vmatprep.subr.mxu0 0.0
      %1107 = vmatpush1.msra.mxu0 0.0
      %1108 = vmatprep.subr.mxu0 0.0
      %1109 = vmatpush1.msra.mxu0 0.0
      %1110 = vmatprep.subr.mxu0 0.0
      %1111 = vmatpush1.msra.mxu0 0.0
      %1112 = vmatprep.subr.mxu0 0.0
      %1113 = vmatpush1.msra.mxu0 0.0
      %1114 = vmatprep.subr.mxu0 0.0
      %1115 = vmatpush1.msra.mxu0 0.0
      %1116 = vmatprep.subr.mxu0 0.0
      %1117 = vmatpush1.msra.mxu0 0.0
      %1118 = vmatprep.subr.mxu0 0.0
      %1119 = vmatpush1.msra.mxu0 0.0
      %1120 = vmatprep.subr.mxu0 0.0
      %1121 = vmatpush1.msra.mxu0 0.0
      %1122 = vmatprep.subr.mxu0 0.0
      %1123 = vmatpush1.msra.mxu0 0.0
      %1124 = vmatprep.subr.mxu0 0.0
      %1125 = vmatpush1.msra.mxu0 0.0
      %1126 = vmatprep.subr.mxu0 0.0
      %1127 = vmatpush1.msra.mxu0 0.0
      %1128 = vmatprep.subr.mxu0 0.0
      %1129 = vmatpush1.msra.mxu0 0.0
      %1130 = vmatprep.subr.mxu0 0.0
      %1131 = vmatpush1.msra.mxu0 0.0
      %1132 = vmatprep.subr.mxu0 0.0
      %1133 = vmatpush1.msra.mxu0 0.0
      %1134 = vmatprep.subr.mxu0 0.0
      %1135 = vmatpush1.msra.mxu0 0.0
      %1136 = vmatprep.subr.mxu0 0.0
      %1137 = vmatpush1.msra.mxu0 0.0
      %1138 = vmatprep.mubr.f32.mxu0 0.0
      %1139 = vmatmul.mubr.f32.gmra.mrb[0].mxu0 %v1001
      %v1140 = vpop.f32.mrb[0].mxu0
      %v1141 = vadd.f32 %v991, %v1140
      %v1142 = vpop.f32.mrb[0].mxu0
      %1143 = vdwg.mxu0
      %vm1144 = vcmp.lt.s32.totalorder %v698, 2
      %vm1145 = vmand %vm694, %vm1144
      %vm1146 = vmand %vm695, %vm1144
      %vm1147 = vmand %vm696, %vm1144
      %v1148 = vsel %vm1145, %v1070, 0.0
      %v1149 = vsel %vm1146, %v1072, 0.0
      %v1150 = vsel %vm1147, %v1141, 0.0
      %v1151 = vadd.f32 %v1148, %v1149
      %v1152 = vsel %vm707, %v1150, 0.0
      %v1153 = vadd.f32 %v1151, %v1152
      %1154 = vadd.xlane.f32.xlu0 %v1153
      %v1155 = vpop.xlane.xlu0 %1154
      %v1156 = vrot.slane %v1155, 4
      %v1157 = vadd.f32 %v1155, %v1156
      %v1158 = vrot.slane %v1157, 2
      %v1159 = vadd.f32 %v1157, %v1158
      %v1160 = vrot.slane %v1159, 1
      %v1161 = vadd.f32 %v1159, %v1160
      %v1162 = vrcp.pop 512.0
      %v1163 = vmul.f32 %v1161, %v1162
      %v1164 = vsub.f32 %v1070, %v1163
      %v1165 = vsub.f32 %v1072, %v1163
      %v1166 = vsub.f32 %v1141, %v1163
      %v1167 = vsel %vm1145, %v1164, 0.0
      %v1168 = vsel %vm1146, %v1165, 0.0
      %v1169 = vsel %vm1147, %v1166, 0.0
      %v1170 = vmul.f32 %v1167, %v1167
      %v1171 = vmul.f32 %v1168, %v1168
      %v1172 = vmul.f32 %v1169, %v1169
      %v1173 = vadd.f32 %v1170, %v1171
      %v1174 = vsel %vm707, %v1172, 0.0
      %v1175 = vadd.f32 %v1173, %v1174
      %1176 = vadd.xlane.f32.xlu0 %v1175
      %v1177 = vpop.xlane.xlu0 %1176
      %v1178 = vrot.slane %v1177, 4
      %v1179 = vadd.f32 %v1177, %v1178
      %v1180 = vrot.slane %v1179, 2
      %v1181 = vadd.f32 %v1179, %v1180
      %v1182 = vrot.slane %v1181, 1
      %v1183 = vadd.f32 %v1181, %v1182
      %v1184 = vrcp.pop 511.0
      %v1185 = vmul.f32 %v1183, %v1184
      %v1186 = vrsqrt.pop %v1185
      %v1187 = vmul.f32 %v1185, %v1186
      %vm1188 = vcmp.eq.f32.partialorder %v1185, inf
      %v1189 = vsel %vm1188, %v1185, %v1187
      %vm1190 = vcmp.eq.f32.partialorder %v1185, 0.0
      %v1191 = vand.u32 %v1185, 2147483648
      %v1192 = vsel %vm1190, %v1191, %v1189
      %v1193 = vadd.f32 %v1192, 1e-05
      %v1194 = vrcp.pop %v1193
      %v1195 = vmul.f32 1.0, %v1194
      %v1196 = vmul.f32 %v987, %v1195
      %v1197 = vmul.f32 %v1163, %v1196
      %1199 = vrot.lane.b32.xlu0 %v1197, 1
      %v1200 = vpop.permute.xlu0 %1199
      %v1202 = vsub.f32 %v987, %v1200
      %1204 = vset.pattern.permute.xlu0 4
      %1205 = vperm.xlu0 %1204, %v1196
      %v1206 = vpop.permute.xlu0 %1205
      %v1208 = vmul.f32 %v1070, %v1206
      %v1209 = vmul.f32 %v1072, %v1206
      %v1210 = vmul.f32 %v1141, %v1206
      %1212 = vset.pattern.permute.xlu0 5
      %1213 = vperm.xlu0 %1212, %v1202
      %v1214 = vpop.permute.xlu0 %1213
      %v1216 = vadd.f32 %v1208, %v1214
      %v1217 = vadd.f32 %v1209, %v1214
      %v1218 = vadd.f32 %v1210, %v1214
      %v1219 = vmax.f32 %v1216, 0.0
      %v1220 = vmax.f32 %v1217, 0.0
      %v1221 = vmax.f32 %v1218, 0.0
      %1223 = vrot.lane.b32.xlu0 %v1219, 111
      %v1224 = vpop.permute.xlu0 %1223
      %1226 = vst.msk [vmem:[#allocation2] sm:$0xff] %vm179, %v1224
      %1227 = vrot.lane.b32.xlu0 %v1219, 109
      %v1228 = vpop.permute.xlu0 %1227
      %1230 = vst.msk [vmem:[#allocation2] sm:$0xff] %vm184, %v1228
      %1231 = vrot.lane.b32.xlu0 %v1219, 113
      %v1232 = vpop.permute.xlu0 %1231
      %1234 = vst.msk [vmem:[#allocation2] sm:$0xff] %vm189, %v1232
      %1235 = vrot.lane.b32.xlu0 %v1219, 19
      %v1236 = vpop.permute.xlu0 %1235
      %1238 = vst.msk [vmem:[#allocation2] sm:$0xff] %vm194, %v1236
      %1239 = vrot.lane.b32.xlu0 %v1219, 17
      %v1240 = vpop.permute.xlu0 %1239
      %1242 = vst.msk [vmem:[#allocation2] sm:$0xff] %vm199, %v1240
      %1243 = vrot.lane.b32.xlu0 %v1219, 21
      %v1244 = vpop.permute.xlu0 %1243
      %1246 = vst.msk [vmem:[#allocation2] sm:$0xff] %vm204, %v1244
      %1247 = vst.msk [vmem:[#allocation2] sm:$0xff] %vm206, %v1236
      %1248 = vst.msk [vmem:[#allocation2] sm:$0xff] %vm208, %v1240
      %1249 = vst.msk [vmem:[#allocation2] sm:$0xff] %vm213, %v1244
      %1250 = vst.msk [vmem:[#allocation2] sm:$0xff] %vm215, %v1236
      %1251 = vst.msk [vmem:[#allocation2] sm:$0xff] %vm217, %v1240
      %1252 = vst.msk [vmem:[#allocation2] sm:$0xff] %vm222, %v1244
      %1253 = vst.msk [vmem:[#allocation2] sm:$0xff] %vm224, %v1236
      %1254 = vst.msk [vmem:[#allocation2] sm:$0xff] %vm226, %v1240
      %1255 = vst.msk [vmem:[#allocation2] sm:$0xff] %vm231, %v1244
      %1256 = vst.msk [vmem:[#allocation2] sm:$0xff] %vm233, %v1236
      %1257 = vst.msk [vmem:[#allocation2] sm:$0xff] %vm235, %v1240
      %1258 = vst.msk [vmem:[#allocation2] sm:$0xff] %vm240, %v1244
      %1259 = vst.msk [vmem:[#allocation2] sm:$0xff] %vm242, %v1236
      %1260 = vst.msk [vmem:[#allocation2] sm:$0xff] %vm244, %v1240
      %1261 = vst.msk [vmem:[#allocation2] sm:$0xff] %vm249, %v1244
      %1262 = vst.msk [vmem:[#allocation2] sm:$0xff] %vm251, %v1236
      %1263 = vst.msk [vmem:[#allocation2 + $0x8] sm:$0xff] %vm253, %v1236
      %1264 = vst.msk [vmem:[#allocation2] sm:$0xff] %vm255, %v1240
      %1265 = vst.msk [vmem:[#allocation2 + $0x8] sm:$0xff] %vm260, %v1244
      %1267 = vrot.lane.b32.xlu0 %v1220, 19
      %v1268 = vpop.permute.xlu0 %1267
      %v1269 = vsel %vm825, %v1236, %v1268
      %1271 = vst.msk [vmem:[#allocation2 + $0x8] sm:$0xff] %vm262, %v1269
      %1272 = vst.msk [vmem:[#allocation2 + $0x8] sm:$0xff] %vm264, %v1240
      %1273 = vrot.lane.b32.xlu0 %v1220, 21
      %v1274 = vpop.permute.xlu0 %1273
      %1276 = vst.msk [vmem:[#allocation2 + $0x8] sm:$0xff] %vm269, %v1274
      %1278 = vst.msk [vmem:[#allocation2 + $0x8] sm:$0xff] %vm275, %v1268
      %1279 = vrot.lane.b32.xlu0 %v1220, 17
      %v1280 = vpop.permute.xlu0 %1279
      %1282 = vst.msk [vmem:[#allocation2 + $0x8] sm:$0xff] %vm280, %v1280
      %1283 = vst.msk [vmem:[#allocation2 + $0x8] sm:$0xff] %vm285, %v1274
      %1284 = vst.msk [vmem:[#allocation2 + $0x8] sm:$0xff] %vm287, %v1268
      %1285 = vst.msk [vmem:[#allocation2 + $0x8] sm:$0xff] %vm289, %v1280
      %1286 = vst.msk [vmem:[#allocation2 + $0x8] sm:$0xff] %vm294, %v1274
      %1287 = vst.msk [vmem:[#allocation2 + $0x8] sm:$0xff] %vm296, %v1268
      %1288 = vst.msk [vmem:[#allocation2 + $0x8] sm:$0xff] %vm298, %v1280
      %1289 = vst.msk [vmem:[#allocation2 + $0x8] sm:$0xff] %vm303, %v1274
      %1290 = vst.msk [vmem:[#allocation2 + $0x8] sm:$0xff] %vm305, %v1268
      %1291 = vst.msk [vmem:[#allocation2 + $0x8] sm:$0xff] %vm307, %v1280
      %1292 = vst.msk [vmem:[#allocation2 + $0x8] sm:$0xff] %vm312, %v1274
      %1293 = vst.msk [vmem:[#allocation2 + $0x8] sm:$0xff] %vm314, %v1268
      %1294 = vst.msk [vmem:[#allocation2 + $0x8] sm:$0xff] %vm316, %v1280
      %1295 = vst.msk [vmem:[#allocation2 + $0x8] sm:$0xff] %vm321, %v1274
      %1296 = vst.msk [vmem:[#allocation2 + $0x8] sm:$0xff] %vm323, %v1268
      %1297 = vst.msk [vmem:[#allocation2 + $0x10] sm:$0xff] %vm325, %v1268
      %1298 = vst.msk [vmem:[#allocation2 + $0x8] sm:$0xff] %vm327, %v1280
      %1299 = vst.msk [vmem:[#allocation2 + $0x10] sm:$0xff] %vm332, %v1274
      %1301 = vrot.lane.b32.xlu0 %v1221, 19
      %v1302 = vpop.permute.xlu0 %1301
      %v1303 = vsel %vm825, %v1268, %v1302
      %1305 = vst.msk [vmem:[#allocation2 + $0x10] sm:$0xff] %vm334, %v1303
      %1306 = vst.msk [vmem:[#allocation2 + $0x10] sm:$0xff] %vm336, %v1280
      %1307 = vrot.lane.b32.xlu0 %v1221, 21
      %v1308 = vpop.permute.xlu0 %1307
      %1310 = vst.msk [vmem:[#allocation2 + $0x10] sm:$0xff] %vm341, %v1308
      %1312 = vst.msk [vmem:[#allocation2 + $0x10] sm:$0xff] %vm343, %v1302
      %1313 = vrot.lane.b32.xlu0 %v1221, 17
      %v1314 = vpop.permute.xlu0 %1313
      %1316 = vst.msk [vmem:[#allocation2 + $0x10] sm:$0xff] %vm345, %v1314
      %1317 = vst.msk [vmem:[#allocation2 + $0x10] sm:$0xff] %vm350, %v1308
      %1318 = vrot.lane.b32.xlu0 %v1220, 55
      %v1319 = vpop.permute.xlu0 %1318
      %1320 = vrot.lane.b32.xlu0 %v1221, 55
      %v1321 = vpop.permute.xlu0 %1320
      %v1322 = vsel %vm879, %v1319, %v1321
      %1324 = vst.msk [vmem:[#allocation2 + $0x10] sm:$0xff] %vm355, %v1322
      %1325 = vrot.lane.b32.xlu0 %v1220, 53
      %v1326 = vpop.permute.xlu0 %1325
      %1328 = vst.msk [vmem:[#allocation2 + $0x10] sm:$0xff] %vm360, %v1326
      %1329 = vrot.lane.b32.xlu0 %v1221, 57
      %v1330 = vpop.permute.xlu0 %1329
      %1332 = vst.msk [vmem:[#allocation2 + $0x10] sm:$0xff] %vm365, %v1330
      %v1333 = vld [vmem:[#allocation2] sm:$0xff]
      %v1334 = vld [vmem:[#allocation2 + $0x8] sm:$0xff]
      %v1335 = vld [vmem:[#allocation2 + $0x10] sm:$0xff]
      %1339 = vrot.lane.b32.xlu0 %v1333, 127
      %v1340 = vpop.permute.xlu0 %1339
      %1341 = vrot.lane.b32.xlu0 %v1334, 127
      %v1342 = vpop.permute.xlu0 %1341
      %1343 = vrot.lane.b32.xlu0 %v1335, 127
      %v1344 = vpop.permute.xlu0 %1343
      %v1345 = vsel %vm379, %v1340, %v1342
      %v1346 = vsel %vm379, %v1342, %v1344
      %1350 = vrot.lane.b32.xlu0 %v1333, 126
      %v1351 = vpop.permute.xlu0 %1350
      %1352 = vrot.lane.b32.xlu0 %v1334, 126
      %v1353 = vpop.permute.xlu0 %1352
      %1354 = vrot.lane.b32.xlu0 %v1335, 126
      %v1355 = vpop.permute.xlu0 %1354
      %v1356 = vsel %vm391, %v1351, %v1353
      %v1357 = vsel %vm391, %v1353, %v1355
      %1361 = vrot.lane.b32.xlu0 %v1333, 110
      %v1362 = vpop.permute.xlu0 %1361
      %1363 = vrot.lane.b32.xlu0 %v1334, 110
      %v1364 = vpop.permute.xlu0 %1363
      %1365 = vrot.lane.b32.xlu0 %v1335, 110
      %v1366 = vpop.permute.xlu0 %1365
      %v1367 = vsel %vm403, %v1362, %v1364
      %v1368 = vsel %vm403, %v1364, %v1366
      %1372 = vrot.lane.b32.xlu0 %v1333, 109
      %v1373 = vpop.permute.xlu0 %1372
      %1374 = vrot.lane.b32.xlu0 %v1334, 109
      %v1375 = vpop.permute.xlu0 %1374
      %1376 = vrot.lane.b32.xlu0 %v1335, 109
      %v1377 = vpop.permute.xlu0 %1376
      %v1378 = vsel %vm415, %v1373, %v1375
      %v1379 = vsel %vm415, %v1375, %v1377
      %1383 = vrot.lane.b32.xlu0 %v1333, 108
      %v1384 = vpop.permute.xlu0 %1383
      %1385 = vrot.lane.b32.xlu0 %v1334, 108
      %v1386 = vpop.permute.xlu0 %1385
      %1387 = vrot.lane.b32.xlu0 %v1335, 108
      %v1388 = vpop.permute.xlu0 %1387
      %v1389 = vsel %vm427, %v1384, %v1386
      %v1390 = vsel %vm427, %v1386, %v1388
      %1394 = vrot.lane.b32.xlu0 %v1333, 92
      %v1395 = vpop.permute.xlu0 %1394
      %1396 = vrot.lane.b32.xlu0 %v1334, 92
      %v1397 = vpop.permute.xlu0 %1396
      %1398 = vrot.lane.b32.xlu0 %v1335, 92
      %v1399 = vpop.permute.xlu0 %1398
      %v1400 = vsel %vm439, %v1395, %v1397
      %v1401 = vsel %vm439, %v1397, %v1399
      %1405 = vrot.lane.b32.xlu0 %v1333, 91
      %v1406 = vpop.permute.xlu0 %1405
      %1407 = vrot.lane.b32.xlu0 %v1334, 91
      %v1408 = vpop.permute.xlu0 %1407
      %1409 = vrot.lane.b32.xlu0 %v1335, 91
      %v1410 = vpop.permute.xlu0 %1409
      %v1411 = vsel %vm451, %v1406, %v1408
      %v1412 = vsel %vm451, %v1408, %v1410
      %1416 = vrot.lane.b32.xlu0 %v1333, 90
      %v1417 = vpop.permute.xlu0 %1416
      %1418 = vrot.lane.b32.xlu0 %v1334, 90
      %v1419 = vpop.permute.xlu0 %1418
      %1420 = vrot.lane.b32.xlu0 %v1335, 90
      %v1421 = vpop.permute.xlu0 %1420
      %v1422 = vsel %vm463, %v1417, %v1419
      %v1423 = vsel %vm463, %v1419, %v1421
      %v1427 = vld [vmem:[%s1 + $0x8] sm:$0xff]
      %v1428 = vld [vmem:[%s2] sm:$0xff]
      %1430 = vset.pattern.permute.xlu0 6
      %1431 = vperm.xlu0 %1430, %v1428
      %v1432 = vpop.permute.xlu0 %1431
      %1435 = vrot.lane.b32.xlu0 %v1427, 112
      %v1436 = vpop.permute.xlu0 %1435
      %v1437 = vsel %vm476, %v1436, 0
      %1439 = vmatprep.subr.mxu0 %v1334
      %1440 = vmatpush1.msra.mxu0 %v1333
      %1441 = vmatprep.subr.mxu0 %v1346
      %1442 = vmatpush1.msra.mxu0 %v1345
      %1443 = vmatprep.subr.mxu0 %v1357
      %1444 = vmatpush1.msra.mxu0 %v1356
      %1445 = vmatprep.subr.mxu0 %v1368
      %1446 = vmatpush1.msra.mxu0 %v1367
      %1447 = vmatprep.subr.mxu0 %v1379
      %1448 = vmatpush1.msra.mxu0 %v1378
      %1449 = vmatprep.subr.mxu0 %v1390
      %1450 = vmatpush1.msra.mxu0 %v1389
      %1451 = vmatprep.subr.mxu0 %v1401
      %1452 = vmatpush1.msra.mxu0 %v1400
      %1453 = vmatprep.subr.mxu0 %v1412
      %1454 = vmatpush1.msra.mxu0 %v1411
      %1455 = vmatprep.subr.mxu0 %v1423
      %1456 = vmatpush1.msra.mxu0 %v1422
      %1457 = vmatprep.subr.mxu0 0.0
      %1458 = vmatpush1.msra.mxu0 0.0
      %1459 = vmatprep.subr.mxu0 0.0
      %1460 = vmatpush1.msra.mxu0 0.0
      %1461 = vmatprep.subr.mxu0 0.0
      %1462 = vmatpush1.msra.mxu0 0.0
      %1463 = vmatprep.subr.mxu0 0.0
      %1464 = vmatpush1.msra.mxu0 0.0
      %1465 = vmatprep.subr.mxu0 0.0
      %1466 = vmatpush1.msra.mxu0 0.0
      %1467 = vmatprep.subr.mxu0 0.0
      %1468 = vmatpush1.msra.mxu0 0.0
      %1469 = vmatprep.subr.mxu0 0.0
      %1470 = vmatpush1.msra.mxu0 0.0
      %1471 = vmatprep.subr.mxu0 0.0
      %1472 = vmatpush1.msra.mxu0 0.0
      %1473 = vmatprep.subr.mxu0 0.0
      %1474 = vmatpush1.msra.mxu0 0.0
      %1475 = vmatprep.subr.mxu0 0.0
      %1476 = vmatpush1.msra.mxu0 0.0
      %1477 = vmatprep.subr.mxu0 0.0
      %1478 = vmatpush1.msra.mxu0 0.0
      %1479 = vmatprep.subr.mxu0 0.0
      %1480 = vmatpush1.msra.mxu0 0.0
      %1481 = vmatprep.subr.mxu0 0.0
      %1482 = vmatpush1.msra.mxu0 0.0
      %1483 = vmatprep.subr.mxu0 0.0
      %1484 = vmatpush1.msra.mxu0 0.0
      %1485 = vmatprep.subr.mxu0 0.0
      %1486 = vmatpush1.msra.mxu0 0.0
      %1487 = vmatprep.subr.mxu0 0.0
      %1488 = vmatpush1.msra.mxu0 0.0
      %1489 = vmatprep.subr.mxu0 0.0
      %1490 = vmatpush1.msra.mxu0 0.0
      %1491 = vmatprep.subr.mxu0 0.0
      %1492 = vmatpush1.msra.mxu0 0.0
      %1493 = vmatprep.subr.mxu0 0.0
      %1494 = vmatpush1.msra.mxu0 0.0
      %1495 = vmatprep.subr.mxu0 0.0
      %1496 = vmatpush1.msra.mxu0 0.0
      %1497 = vmatprep.subr.mxu0 0.0
      %1498 = vmatpush1.msra.mxu0 0.0
      %1499 = vmatprep.subr.mxu0 0.0
      %1500 = vmatpush1.msra.mxu0 0.0
      %1501 = vmatprep.subr.mxu0 0.0
      %1502 = vmatpush1.msra.mxu0 0.0
      %1503 = vmatprep.mubr.f32.mxu0 0.0
      %1504 = vmatmul.mubr.f32.gmra.mrb[0].mxu0 %v1437
      %v1505 = vpop.f32.mrb[0].mxu0
      %v1506 = vadd.f32 %v1432, %v1505
      %v1507 = vpop.f32.mrb[0].mxu0
      %v1508 = vadd.f32 %v1432, %v1507
      %1509 = vdwg.mxu0
      %1510 = vmatprep.subr.mxu0 0.0
      %1511 = vmatpush1.msra.mxu0 %v1335
      %1512 = vmatprep.subr.mxu0 0.0
      %1513 = vmatpush1.msra.mxu0 %v1344
      %1514 = vmatprep.subr.mxu0 0.0
      %1515 = vmatpush1.msra.mxu0 %v1355
      %1516 = vmatprep.subr.mxu0 0.0
      %1517 = vmatpush1.msra.mxu0 %v1366
      %1518 = vmatprep.subr.mxu0 0.0
      %1519 = vmatpush1.msra.mxu0 %v1377
      %1520 = vmatprep.subr.mxu0 0.0
      %1521 = vmatpush1.msra.mxu0 %v1388
      %1522 = vmatprep.subr.mxu0 0.0
      %1523 = vmatpush1.msra.mxu0 %v1399
      %1524 = vmatprep.subr.mxu0 0.0
      %1525 = vmatpush1.msra.mxu0 %v1410
      %1526 = vmatprep.subr.mxu0 0.0
      %1527 = vmatpush1.msra.mxu0 %v1421
      %1528 = vmatprep.subr.mxu0 0.0
      %1529 = vmatpush1.msra.mxu0 0.0
      %1530 = vmatprep.subr.mxu0 0.0
      %1531 = vmatpush1.msra.mxu0 0.0
      %1532 = vmatprep.subr.mxu0 0.0
      %1533 = vmatpush1.msra.mxu0 0.0
      %1534 = vmatprep.subr.mxu0 0.0
      %1535 = vmatpush1.msra.mxu0 0.0
      %1536 = vmatprep.subr.mxu0 0.0
      %1537 = vmatpush1.msra.mxu0 0.0
      %1538 = vmatprep.subr.mxu0 0.0
      %1539 = vmatpush1.msra.mxu0 0.0
      %1540 = vmatprep.subr.mxu0 0.0
      %1541 = vmatpush1.msra.mxu0 0.0
      %1542 = vmatprep.subr.mxu0 0.0
      %1543 = vmatpush1.msra.mxu0 0.0
      %1544 = vmatprep.subr.mxu0 0.0
      %1545 = vmatpush1.msra.mxu0 0.0
      %1546 = vmatprep.subr.mxu0 0.0
      %1547 = vmatpush1.msra.mxu0 0.0
      %1548 = vmatprep.subr.mxu0 0.0
      %1549 = vmatpush1.msra.mxu0 0.0
      %1550 = vmatprep.subr.mxu0 0.0
      %1551 = vmatpush1.msra.mxu0 0.0
      %1552 = vmatprep.subr.mxu0 0.0
      %1553 = vmatpush1.msra.mxu0 0.0
      %1554 = vmatprep.subr.mxu0 0.0
      %1555 = vmatpush1.msra.mxu0 0.0
      %1556 = vmatprep.subr.mxu0 0.0
      %1557 = vmatpush1.msra.mxu0 0.0
      %1558 = vmatprep.subr.mxu0 0.0
      %1559 = vmatpush1.msra.mxu0 0.0
      %1560 = vmatprep.subr.mxu0 0.0
      %1561 = vmatpush1.msra.mxu0 0.0
      %1562 = vmatprep.subr.mxu0 0.0
      %1563 = vmatpush1.msra.mxu0 0.0
      %1564 = vmatprep.subr.mxu0 0.0
      %1565 = vmatpush1.msra.mxu0 0.0
      %1566 = vmatprep.subr.mxu0 0.0
      %1567 = vmatpush1.msra.mxu0 0.0
      %1568 = vmatprep.subr.mxu0 0.0
      %1569 = vmatpush1.msra.mxu0 0.0
      %1570 = vmatprep.subr.mxu0 0.0
      %1571 = vmatpush1.msra.mxu0 0.0
      %1572 = vmatprep.subr.mxu0 0.0
      %1573 = vmatpush1.msra.mxu0 0.0
      %1574 = vmatprep.mubr.f32.mxu0 0.0
      %1575 = vmatmul.mubr.f32.gmra.mrb[0].mxu0 %v1437
      %v1576 = vpop.f32.mrb[0].mxu0
      %v1577 = vadd.f32 %v1432, %v1576
      %v1578 = vpop.f32.mrb[0].mxu0
      %1579 = vdwg.mxu0
      %vm1580 = vcmp.lt.s32.totalorder %v698, 1
      %vm1581 = vmand %vm694, %vm1580
      %vm1582 = vmand %vm695, %vm1580
      %vm1583 = vmand %vm696, %vm1580
      %v1584 = vsel %vm1581, %v1506, 0.0
      %v1585 = vsel %vm1582, %v1508, 0.0
      %v1586 = vsel %vm1583, %v1577, 0.0
      %v1587 = vadd.f32 %v1584, %v1585
      %v1588 = vsel %vm707, %v1586, 0.0
      %v1589 = vadd.f32 %v1587, %v1588
      %1590 = vadd.xlane.f32.xlu0 %v1589
      %v1591 = vpop.xlane.xlu0 %1590
      %v1592 = vrot.slane %v1591, 4
      %v1593 = vadd.f32 %v1591, %v1592
      %v1594 = vrot.slane %v1593, 2
      %v1595 = vadd.f32 %v1593, %v1594
      %v1596 = vrot.slane %v1595, 1
      %v1597 = vadd.f32 %v1595, %v1596
      %v1598 = vrcp.pop 256.0
      %v1599 = vmul.f32 %v1597, %v1598
      %v1600 = vsub.f32 %v1506, %v1599
      %v1601 = vsub.f32 %v1508, %v1599
      %v1602 = vsub.f32 %v1577, %v1599
      %v1603 = vsel %vm1581, %v1600, 0.0
      %v1604 = vsel %vm1582, %v1601, 0.0
      %v1605 = vsel %vm1583, %v1602, 0.0
      %v1606 = vmul.f32 %v1603, %v1603
      %v1607 = vmul.f32 %v1604, %v1604
      %v1608 = vmul.f32 %v1605, %v1605
      %v1609 = vadd.f32 %v1606, %v1607
      %v1610 = vsel %vm707, %v1608, 0.0
      %v1611 = vadd.f32 %v1609, %v1610
      %1612 = vadd.xlane.f32.xlu0 %v1611
      %v1613 = vpop.xlane.xlu0 %1612
      %v1614 = vrot.slane %v1613, 4
      %v1615 = vadd.f32 %v1613, %v1614
      %v1616 = vrot.slane %v1615, 2
      %v1617 = vadd.f32 %v1615, %v1616
      %v1618 = vrot.slane %v1617, 1
      %v1619 = vadd.f32 %v1617, %v1618
      %v1620 = vrcp.pop 255.0
      %v1621 = vmul.f32 %v1619, %v1620
      %v1622 = vrsqrt.pop %v1621
      %v1623 = vmul.f32 %v1621, %v1622
      %vm1624 = vcmp.eq.f32.partialorder %v1621, inf
      %v1625 = vsel %vm1624, %v1621, %v1623
      %vm1626 = vcmp.eq.f32.partialorder %v1621, 0.0
      %v1627 = vand.u32 %v1621, 2147483648
      %v1628 = vsel %vm1626, %v1627, %v1625
      %v1629 = vadd.f32 %v1628, 1e-05
      %v1630 = vrcp.pop %v1629
      %v1631 = vmul.f32 1.0, %v1630
      %v1632 = vmul.f32 %v1428, %v1631
      %v1633 = vmul.f32 %v1599, %v1632
      %1635 = vrot.lane.b32.xlu0 %v1633, 1
      %v1636 = vpop.permute.xlu0 %1635
      %v1638 = vsub.f32 %v1428, %v1636
      %1640 = vset.pattern.permute.xlu0 7
      %1641 = vperm.xlu0 %1640, %v1632
      %v1642 = vpop.permute.xlu0 %1641
      %v1644 = vmul.f32 %v1506, %v1642
      %v1645 = vmul.f32 %v1508, %v1642
      %v1646 = vmul.f32 %v1577, %v1642
      %1648 = vset.pattern.permute.xlu0 8
      %1649 = vperm.xlu0 %1648, %v1638
      %v1650 = vpop.permute.xlu0 %1649
      %v1652 = vadd.f32 %v1644, %v1650
      %v1653 = vadd.f32 %v1645, %v1650
      %v1654 = vadd.f32 %v1646, %v1650
      %v1655 = vmax.f32 %v1652, 0.0
      %v1656 = vmax.f32 %v1653, 0.0
      %v1657 = vmax.f32 %v1654, 0.0
      %1659 = vrot.lane.b32.xlu0 %v1655, 77
      %v1660 = vpop.permute.xlu0 %1659
      %vm1662 = vcmask 154648
      %1663 = vst.msk [vmem:[#allocation2] sm:$0xff] %vm1662, %v1660
      %1664 = vrot.lane.b32.xlu0 %v1655, 71
      %v1665 = vpop.permute.xlu0 %1664
      %1667 = vst.msk [vmem:[#allocation2] sm:$0xff] %vm184, %v1665
      %1668 = vrot.lane.b32.xlu0 %v1655, 73
      %v1669 = vpop.permute.xlu0 %1668
      %vm1671 = vcmask 15368
      %1672 = vst.msk [vmem:[#allocation2] sm:$0xff] %vm1671, %v1669
      %1673 = vrot.lane.b32.xlu0 %v1655, 75
      %v1674 = vpop.permute.xlu0 %1673
      %vm1676 = vcmask 23568
      %1677 = vst.msk [vmem:[#allocation2] sm:$0xff] %vm1676, %v1674
      %1678 = vrot.lane.b32.xlu0 %v1655, 79
      %v1679 = vpop.permute.xlu0 %1678
      %vm1681 = vcmask 162968
      %1682 = vst.msk [vmem:[#allocation2] sm:$0xff] %vm1681, %v1679
      %1683 = vrot.lane.b32.xlu0 %v1655, 81
      %v1684 = vpop.permute.xlu0 %1683
      %vm1686 = vcmask 171168
      %1687 = vst.msk [vmem:[#allocation2] sm:$0xff] %vm1686, %v1684
      %1688 = vrot.lane.b32.xlu0 %v1655, 83
      %v1689 = vpop.permute.xlu0 %1688
      %vm1691 = vcmask 179368
      %1692 = vst.msk [vmem:[#allocation2] sm:$0xff] %vm1691, %v1689
      %1693 = vrot.lane.b32.xlu0 %v1655, 117
      %v1694 = vpop.permute.xlu0 %1693
      %vm1696 = vcmask 335048
      %1697 = vst.msk [vmem:[#allocation2] sm:$0xff] %vm1696, %v1694
      %1698 = vrot.lane.b32.xlu0 %v1655, 111
      %v1699 = vpop.permute.xlu0 %1698
      %vm1701 = vcmask 187568
      %1702 = vst.msk [vmem:[#allocation2] sm:$0xff] %vm1701, %v1699
      %1703 = vrot.lane.b32.xlu0 %v1655, 113
      %v1704 = vpop.permute.xlu0 %1703
      %vm1706 = vcmask 195768
      %1707 = vst.msk [vmem:[#allocation2] sm:$0xff] %vm1706, %v1704
      %1708 = vrot.lane.b32.xlu0 %v1655, 115
      %v1709 = vpop.permute.xlu0 %1708
      %vm1711 = vcmask 203968
      %1712 = vst.msk [vmem:[#allocation2] sm:$0xff] %vm1711, %v1709
      %1713 = vrot.lane.b32.xlu0 %v1655, 119
      %v1714 = vpop.permute.xlu0 %1713
      %vm1716 = vcmask 343368
      %1717 = vst.msk [vmem:[#allocation2] sm:$0xff] %vm1716, %v1714
      %1718 = vrot.lane.b32.xlu0 %v1655, 121
      %v1719 = vpop.permute.xlu0 %1718
      %vm1721 = vcmask 351568
      %1722 = vst.msk [vmem:[#allocation2] sm:$0xff] %vm1721, %v1719
      %1723 = vrot.lane.b32.xlu0 %v1655, 123
      %v1724 = vpop.permute.xlu0 %1723
      %vm1726 = vcmask 359768
      %1727 = vst.msk [vmem:[#allocation2] sm:$0xff] %vm1726, %v1724
      %1728 = vrot.lane.b32.xlu0 %v1655, 29
      %v1729 = vpop.permute.xlu0 %1728
      %vm1731 = vcmask 515448
      %1732 = vst.msk [vmem:[#allocation2] sm:$0xff] %vm1731, %v1729
      %1733 = vrot.lane.b32.xlu0 %v1655, 23
      %v1734 = vpop.permute.xlu0 %1733
      %vm1736 = vcmask 367968
      %1737 = vst.msk [vmem:[#allocation2] sm:$0xff] %vm1736, %v1734
      %1738 = vrot.lane.b32.xlu0 %v1655, 25
      %v1739 = vpop.permute.xlu0 %1738
      %vm1741 = vcmask 376168
      %1742 = vst.msk [vmem:[#allocation2] sm:$0xff] %vm1741, %v1739
      %1743 = vrot.lane.b32.xlu0 %v1655, 27
      %v1744 = vpop.permute.xlu0 %1743
      %vm1746 = vcmask 384368
      %1747 = vst.msk [vmem:[#allocation2] sm:$0xff] %vm1746, %v1744
      %1748 = vrot.lane.b32.xlu0 %v1655, 31
      %v1749 = vpop.permute.xlu0 %1748
      %vm1751 = vcmask 523768
      %1752 = vst.msk [vmem:[#allocation2] sm:$0xff] %vm1751, %v1749
      %1753 = vrot.lane.b32.xlu0 %v1655, 33
      %v1754 = vpop.permute.xlu0 %1753
      %vm1756 = vcmask 531968
      %1757 = vst.msk [vmem:[#allocation2] sm:$0xff] %vm1756, %v1754
      %1758 = vrot.lane.b32.xlu0 %v1655, 35
      %v1759 = vpop.permute.xlu0 %1758
      %vm1761 = vcmask 540168
      %1762 = vst.msk [vmem:[#allocation2] sm:$0xff] %vm1761, %v1759
      %1763 = vrot.lane.b32.xlu0 %v1655, 69
      %v1764 = vpop.permute.xlu0 %1763
      %vm1766 = vcmask 695848
      %1767 = vst.msk [vmem:[#allocation2] sm:$0xff] %vm1766, %v1764
      %1768 = vrot.lane.b32.xlu0 %v1655, 63
      %v1769 = vpop.permute.xlu0 %1768
      %vm1771 = vcmask 548368
      %1772 = vst.msk [vmem:[#allocation2] sm:$0xff] %vm1771, %v1769
      %1773 = vrot.lane.b32.xlu0 %v1655, 65
      %v1774 = vpop.permute.xlu0 %1773
      %1776 = vst.msk [vmem:[#allocation2] sm:$0xff] %vm365, %v1774
      %1777 = vrot.lane.b32.xlu0 %v1655, 67
      %v1778 = vpop.permute.xlu0 %1777
      %vm1780 = vcmask 564768
      %1781 = vst.msk [vmem:[#allocation2] sm:$0xff] %vm1780, %v1778
      %vm1782 = vcmask 704168
      %1783 = vst.msk [vmem:[#allocation2] sm:$0xff] %vm1782, %v1665
      %vm1784 = vcmask 712368
      %1785 = vst.msk [vmem:[#allocation2] sm:$0xff] %vm1784, %v1669
      %1786 = vst.msk [vmem:[#allocation2] sm:$0xff] %vm303, %v1674
      %1787 = vst.msk [vmem:[#allocation2] sm:$0xff] %vm233, %v1669
      %1788 = vst.msk [vmem:[#allocation2] sm:$0xff] %vm307, %v1778
      %1789 = vst.msk [vmem:[#allocation2] sm:$0xff] %vm231, %v1764
      %1790 = vst.msk [vmem:[#allocation2] sm:$0xff] %vm235, %v1665
      %1791 = vst.msk [vmem:[#allocation2] sm:$0xff] %vm240, %v1674
      %1792 = vst.msk [vmem:[#allocation2] sm:$0xff] %vm244, %v1660
      %vm1793 = vcmask 900968
      %1794 = vst.msk [vmem:[#allocation2] sm:$0xff] %vm1793, %v1679
      %vm1795 = vcmask 1048456
      %1796 = vst.msk [vmem:[#allocation2] sm:$0xff] %vm1795, %v1660
      %1797 = vst.msk [vmem:[#allocation2 + $0x8] sm:$0xff] %vm184, %v1660
      %vm1798 = vcmask 909168
      %1799 = vst.msk [vmem:[#allocation2] sm:$0xff] %vm1798, %v1665
      %vm1800 = vcmask 917368
      %1801 = vst.msk [vmem:[#allocation2] sm:$0xff] %vm1800, %v1669
      %vm1802 = vcmask 925568
      %1803 = vst.msk [vmem:[#allocation2] sm:$0xff] %vm1802, %v1674
      %1804 = vst.msk [vmem:[#allocation2 + $0x8] sm:$0xff] %vm1671, %v1679
      %1805 = vst.msk [vmem:[#allocation2 + $0x8] sm:$0xff] %vm1676, %v1684
      %vm1806 = vcmask 31768
      %1807 = vst.msk [vmem:[#allocation2 + $0x8] sm:$0xff] %vm1806, %v1689
      %vm1808 = vcmask 187448
      %1809 = vst.msk [vmem:[#allocation2 + $0x8] sm:$0xff] %vm1808, %v1684
      %vm1810 = vcmask 39968
      %1811 = vst.msk [vmem:[#allocation2 + $0x8] sm:$0xff] %vm1810, %v1674
      %vm1812 = vcmask 48168
      %1813 = vst.msk [vmem:[#allocation2 + $0x8] sm:$0xff] %vm1812, %v1660
      %vm1814 = vcmask 56368
      %1815 = vst.msk [vmem:[#allocation2 + $0x8] sm:$0xff] %vm1814, %v1679
      %1816 = vst.msk [vmem:[#allocation2 + $0x8] sm:$0xff] %vm1706, %v1689
      %1817 = vrot.lane.b32.xlu0 %v1655, 85
      %v1818 = vpop.permute.xlu0 %1817
      %1820 = vst.msk [vmem:[#allocation2 + $0x8] sm:$0xff] %vm1711, %v1818
      %1821 = vrot.lane.b32.xlu0 %v1655, 87
      %v1822 = vpop.permute.xlu0 %1821
      %vm1824 = vcmask 212168
      %1825 = vst.msk [vmem:[#allocation2 + $0x8] sm:$0xff] %vm1824, %v1822
      %vm1826 = vcmask 367848
      %1827 = vst.msk [vmem:[#allocation2 + $0x8] sm:$0xff] %vm1826, %v1818
      %vm1828 = vcmask 220368
      %1829 = vst.msk [vmem:[#allocation2 + $0x8] sm:$0xff] %vm1828, %v1679
      %vm1830 = vcmask 228568
      %1831 = vst.msk [vmem:[#allocation2 + $0x8] sm:$0xff] %vm1830, %v1684
      %vm1832 = vcmask 236768
      %1833 = vst.msk [vmem:[#allocation2 + $0x8] sm:$0xff] %vm1832, %v1689
      %1834 = vst.msk [vmem:[#allocation2 + $0x8] sm:$0xff] %vm1741, %v1822
      %1835 = vrot.lane.b32.xlu0 %v1655, 89
      %v1836 = vpop.permute.xlu0 %1835
      %1838 = vst.msk [vmem:[#allocation2 + $0x8] sm:$0xff] %vm1746, %v1836
      %1839 = vrot.lane.b32.xlu0 %v1655, 91
      %v1840 = vpop.permute.xlu0 %1839
      %vm1842 = vcmask 392568
      %1843 = vst.msk [vmem:[#allocation2 + $0x8] sm:$0xff] %vm1842, %v1840
      %1844 = vst.msk [vmem:[#allocation2 + $0x8] sm:$0xff] %vm355, %v1836
      %vm1845 = vcmask 400768
      %1846 = vst.msk [vmem:[#allocation2 + $0x8] sm:$0xff] %vm1845, %v1689
      %1847 = vst.msk [vmem:[#allocation2 + $0x8] sm:$0xff] %vm350, %v1818
      %1848 = vst.msk [vmem:[#allocation2 + $0x8] sm:$0xff] %vm360, %v1822
      %1849 = vst.msk [vmem:[#allocation2 + $0x8] sm:$0xff] %vm365, %v1840
      %1850 = vrot.lane.b32.xlu0 %v1655, 93
      %v1851 = vpop.permute.xlu0 %1850
      %1853 = vst.msk [vmem:[#allocation2 + $0x8] sm:$0xff] %vm1780, %v1851
      %1854 = vrot.lane.b32.xlu0 %v1655, 95
      %v1855 = vpop.permute.xlu0 %1854
      %1857 = vst.msk [vmem:[#allocation2 + $0x8] sm:$0xff] %vm294, %v1855
      %1858 = vst.msk [vmem:[#allocation2 + $0x8] sm:$0xff] %vm224, %v1851
      %1859 = vst.msk [vmem:[#allocation2 + $0x8] sm:$0xff] %vm298, %v1822
      %1860 = vst.msk [vmem:[#allocation2 + $0x8] sm:$0xff] %vm222, %v1836
      %1861 = vst.msk [vmem:[#allocation2 + $0x8] sm:$0xff] %vm226, %v1840
      %1862 = vst.msk [vmem:[#allocation2 + $0x8] sm:$0xff] %vm231, %v1855
      %1863 = vrot.lane.b32.xlu0 %v1655, 97
      %v1864 = vpop.permute.xlu0 %1863
      %1866 = vst.msk [vmem:[#allocation2 + $0x8] sm:$0xff] %vm235, %v1864
      %1867 = vrot.lane.b32.xlu0 %v1655, 99
      %v1868 = vpop.permute.xlu0 %1867
      %vm1870 = vcmask 753368
      %1871 = vst.msk [vmem:[#allocation2 + $0x8] sm:$0xff] %vm1870, %v1868
      %1873 = vrot.lane.b32.xlu0 %v1656, 97
      %v1874 = vpop.permute.xlu0 %1873
      %vm1875 = vcmask 793600
      %v1876 = vsel %vm1875, %v1864, %v1874
      %vm1878 = vcmask 909048
      %1879 = vst.msk [vmem:[#allocation2 + $0x8] sm:$0xff] %vm1878, %v1876
      %1880 = vrot.lane.b32.xlu0 %v1656, 91
      %v1881 = vpop.permute.xlu0 %1880
      %vm1883 = vcmask 761568
      %1884 = vst.msk [vmem:[#allocation2 + $0x8] sm:$0xff] %vm1883, %v1881
      %1885 = vrot.lane.b32.xlu0 %v1656, 93
      %v1886 = vpop.permute.xlu0 %1885
      %vm1888 = vcmask 769768
      %1889 = vst.msk [vmem:[#allocation2 + $0x8] sm:$0xff] %vm1888, %v1886
      %vm1890 = vcmask 777968
      %1891 = vst.msk [vmem:[#allocation2 + $0x8] sm:$0xff] %vm1890, %v1855
      %1892 = vrot.lane.b32.xlu0 %v1656, 99
      %v1893 = vpop.permute.xlu0 %1892
      %1895 = vst.msk [vmem:[#allocation2 + $0x8] sm:$0xff] %vm1800, %v1893
      %1896 = vrot.lane.b32.xlu0 %v1656, 101
      %v1897 = vpop.permute.xlu0 %1896
      %1899 = vst.msk [vmem:[#allocation2 + $0x8] sm:$0xff] %vm1802, %v1897
      %1900 = vrot.lane.b32.xlu0 %v1656, 103
      %v1901 = vpop.permute.xlu0 %1900
      %vm1903 = vcmask 933768
      %1904 = vst.msk [vmem:[#allocation2 + $0x8] sm:$0xff] %vm1903, %v1901
      %vm1905 = vcmask 1048488
      %1906 = vst.msk [vmem:[#allocation2 + $0x8] sm:$0xff] %vm1905, %v1897
      %vm1907 = vcmask 39936
      %1908 = vst.msk [vmem:[#allocation2 + $0x10] sm:$0xff] %vm1907, %v1897
      %1909 = vrot.lane.b32.xlu0 %v1656, 95
      %v1910 = vpop.permute.xlu0 %1909
      %vm1912 = vcmask 941968
      %1913 = vst.msk [vmem:[#allocation2 + $0x8] sm:$0xff] %vm1912, %v1910
      %vm1915 = vcmask 950168
      %1916 = vst.msk [vmem:[#allocation2 + $0x8] sm:$0xff] %vm1915, %v1874
      %vm1917 = vcmask 958368
      %1918 = vst.msk [vmem:[#allocation2 + $0x8] sm:$0xff] %vm1917, %v1893
      %1919 = vst.msk [vmem:[#allocation2 + $0x10] sm:$0xff] %vm1812, %v1901
      %1920 = vrot.lane.b32.xlu0 %v1656, 105
      %v1921 = vpop.permute.xlu0 %1920
      %1923 = vst.msk [vmem:[#allocation2 + $0x10] sm:$0xff] %vm1814, %v1921
      %1924 = vrot.lane.b32.xlu0 %v1656, 107
      %v1925 = vpop.permute.xlu0 %1924
      %vm1927 = vcmask 64568
      %1928 = vst.msk [vmem:[#allocation2 + $0x10] sm:$0xff] %vm1927, %v1925
      %vm1929 = vcmask 220248
      %1930 = vst.msk [vmem:[#allocation2 + $0x10] sm:$0xff] %vm1929, %v1921
      %vm1931 = vcmask 72768
      %1932 = vst.msk [vmem:[#allocation2 + $0x10] sm:$0xff] %vm1931, %v1893
      %vm1933 = vcmask 80968
      %1934 = vst.msk [vmem:[#allocation2 + $0x10] sm:$0xff] %vm1933, %v1897
      %vm1935 = vcmask 89168
      %1936 = vst.msk [vmem:[#allocation2 + $0x10] sm:$0xff] %vm1935, %v1901
      %1937 = vst.msk [vmem:[#allocation2 + $0x10] sm:$0xff] %vm1830, %v1925
      %1938 = vrot.lane.b32.xlu0 %v1656, 109
      %v1939 = vpop.permute.xlu0 %1938
      %1941 = vst.msk [vmem:[#allocation2 + $0x10] sm:$0xff] %vm1832, %v1939
      %1942 = vrot.lane.b32.xlu0 %v1656, 111
      %v1943 = vpop.permute.xlu0 %1942
      %vm1945 = vcmask 244968
      %1946 = vst.msk [vmem:[#allocation2 + $0x10] sm:$0xff] %vm1945, %v1943
      %1947 = vst.msk [vmem:[#allocation2 + $0x10] sm:$0xff] %vm343, %v1939
      %vm1948 = vcmask 253168
      %1949 = vst.msk [vmem:[#allocation2 + $0x10] sm:$0xff] %vm1948, %v1901
      %1950 = vst.msk [vmem:[#allocation2 + $0x10] sm:$0xff] %vm341, %v1921
      %1951 = vst.msk [vmem:[#allocation2 + $0x10] sm:$0xff] %vm345, %v1925
      %1952 = vst.msk [vmem:[#allocation2 + $0x10] sm:$0xff] %vm350, %v1943
      %1953 = vrot.lane.b32.xlu0 %v1656, 113
      %v1954 = vpop.permute.xlu0 %1953
      %1956 = vst.msk [vmem:[#allocation2 + $0x10] sm:$0xff] %vm360, %v1954
      %1957 = vrot.lane.b32.xlu0 %v1656, 115
      %v1958 = vpop.permute.xlu0 %1957
      %1960 = vst.msk [vmem:[#allocation2 + $0x10] sm:$0xff] %vm285, %v1958
      %1961 = vst.msk [vmem:[#allocation2 + $0x10] sm:$0xff] %vm215, %v1954
      %1962 = vst.msk [vmem:[#allocation2 + $0x10] sm:$0xff] %vm289, %v1925
      %1963 = vst.msk [vmem:[#allocation2 + $0x10] sm:$0xff] %vm213, %v1939
      %1964 = vst.msk [vmem:[#allocation2 + $0x10] sm:$0xff] %vm217, %v1943
      %1965 = vst.msk [vmem:[#allocation2 + $0x10] sm:$0xff] %vm222, %v1958
      %1966 = vrot.lane.b32.xlu0 %v1656, 117
      %v1967 = vpop.permute.xlu0 %1966
      %1969 = vst.msk [vmem:[#allocation2 + $0x10] sm:$0xff] %vm226, %v1967
      %1970 = vrot.lane.b32.xlu0 %v1656, 119
      %v1971 = vpop.permute.xlu0 %1970
      %vm1973 = vcmask 605768
      %1974 = vst.msk [vmem:[#allocation2 + $0x10] sm:$0xff] %vm1973, %v1971
      %vm1975 = vcmask 761448
      %1976 = vst.msk [vmem:[#allocation2 + $0x10] sm:$0xff] %vm1975, %v1967
      %vm1977 = vcmask 613968
      %1978 = vst.msk [vmem:[#allocation2 + $0x10] sm:$0xff] %vm1977, %v1943
      %vm1979 = vcmask 622168
      %1980 = vst.msk [vmem:[#allocation2 + $0x10] sm:$0xff] %vm1979, %v1954
      %vm1981 = vcmask 630368
      %1982 = vst.msk [vmem:[#allocation2 + $0x10] sm:$0xff] %vm1981, %v1958
      %1983 = vst.msk [vmem:[#allocation2 + $0x10] sm:$0xff] %vm1888, %v1971
      %1984 = vrot.lane.b32.xlu0 %v1656, 121
      %v1985 = vpop.permute.xlu0 %1984
      %1987 = vst.msk [vmem:[#allocation2 + $0x10] sm:$0xff] %vm1890, %v1985
      %1988 = vrot.lane.b32.xlu0 %v1656, 123
      %v1989 = vpop.permute.xlu0 %1988
      %vm1991 = vcmask 786168
      %1992 = vst.msk [vmem:[#allocation2 + $0x10] sm:$0xff] %vm1991, %v1989
      %vm1993 = vcmask 941848
      %1994 = vst.msk [vmem:[#allocation2 + $0x10] sm:$0xff] %vm1993, %v1985
      %vm1995 = vcmask 794368
      %1996 = vst.msk [vmem:[#allocation2 + $0x10] sm:$0xff] %vm1995, %v1958
      %vm1997 = vcmask 802568
      %1998 = vst.msk [vmem:[#allocation2 + $0x10] sm:$0xff] %vm1997, %v1967
      %vm1999 = vcmask 810768
      %2000 = vst.msk [vmem:[#allocation2 + $0x10] sm:$0xff] %vm1999, %v1971
      %2001 = vst.msk [vmem:[#allocation2 + $0x10] sm:$0xff] %vm1915, %v1989
      %2002 = vrot.lane.b32.xlu0 %v1656, 125
      %v2003 = vpop.permute.xlu0 %2002
      %2005 = vst.msk [vmem:[#allocation2 + $0x10] sm:$0xff] %vm1917, %v2003
      %2006 = vrot.lane.b32.xlu0 %v1656, 127
      %v2007 = vpop.permute.xlu0 %2006
      %vm2009 = vcmask 966568
      %2010 = vst.msk [vmem:[#allocation2 + $0x10] sm:$0xff] %vm2009, %v2007
      %2012 = vrot.lane.b32.xlu0 %v1657, 125
      %v2013 = vpop.permute.xlu0 %2012
      %vm2014 = vcmask 1022976
      %v2015 = vsel %vm2014, %v2003, %v2013
      %vm2018 = vcmask 1048520
      %2019 = vst.msk [vmem:[#allocation2 + $0x10] sm:$0xff] %vm2018, %v2015
      %vm2020 = vcmask 72704
      %2021 = vst.msk [vmem:[#allocation2 + $0x18] sm:$0xff] %vm2020, %v2013
      %vm2022 = vcmask 974768
      %2023 = vst.msk [vmem:[#allocation2 + $0x10] sm:$0xff] %vm2022, %v1971
      %vm2024 = vcmask 982968
      %2025 = vst.msk [vmem:[#allocation2 + $0x10] sm:$0xff] %vm2024, %v1985
      %vm2026 = vcmask 991168
      %2027 = vst.msk [vmem:[#allocation2 + $0x10] sm:$0xff] %vm2026, %v1989
      %2028 = vrot.lane.b32.xlu0 %v1657, 127
      %v2029 = vpop.permute.xlu0 %2028
      %2031 = vst.msk [vmem:[#allocation2 + $0x18] sm:$0xff] %vm1933, %v2029
      %2032 = vrot.lane.b32.xlu0 %v1657, 1
      %v2033 = vpop.permute.xlu0 %2032
      %2035 = vst.msk [vmem:[#allocation2 + $0x18] sm:$0xff] %vm1935, %v2033
      %2036 = vrot.lane.b32.xlu0 %v1657, 3
      %v2037 = vpop.permute.xlu0 %2036
      %vm2039 = vcmask 97368
      %2040 = vst.msk [vmem:[#allocation2 + $0x18] sm:$0xff] %vm2039, %v2037
      %2041 = vst.msk [vmem:[#allocation2 + $0x18] sm:$0xff] %vm334, %v2033
      %2042 = vrot.lane.b32.xlu0 %v1657, 123
      %v2043 = vpop.permute.xlu0 %2042
      %vm2045 = vcmask 105568
      %2046 = vst.msk [vmem:[#allocation2 + $0x18] sm:$0xff] %vm2045, %v2043
      %2047 = vst.msk [vmem:[#allocation2 + $0x18] sm:$0xff] %vm332, %v2013
      %2048 = vst.msk [vmem:[#allocation2 + $0x18] sm:$0xff] %vm336, %v2029
      %2049 = vst.msk [vmem:[#allocation2 + $0x18] sm:$0xff] %vm341, %v2037
      %2050 = vrot.lane.b32.xlu0 %v1657, 5
      %v2051 = vpop.permute.xlu0 %2050
      %2053 = vst.msk [vmem:[#allocation2 + $0x18] sm:$0xff] %vm345, %v2051
      %2054 = vrot.lane.b32.xlu0 %v1657, 7
      %v2055 = vpop.permute.xlu0 %2054
      %2057 = vst.msk [vmem:[#allocation2 + $0x18] sm:$0xff] %vm269, %v2055
      %2058 = vrot.lane.b32.xlu0 %v1656, 41
      %v2059 = vpop.permute.xlu0 %2058
      %2060 = vrot.lane.b32.xlu0 %v1657, 41
      %v2061 = vpop.permute.xlu0 %2060
      %vm2062 = vcmask 334848
      %v2063 = vsel %vm2062, %v2059, %v2061
      %2065 = vst.msk [vmem:[#allocation2 + $0x18] sm:$0xff] %vm206, %v2063
      %2066 = vrot.lane.b32.xlu0 %v1656, 35
      %v2067 = vpop.permute.xlu0 %2066
      %2069 = vst.msk [vmem:[#allocation2 + $0x18] sm:$0xff] %vm280, %v2067
      %2070 = vrot.lane.b32.xlu0 %v1656, 37
      %v2071 = vpop.permute.xlu0 %2070
      %2073 = vst.msk [vmem:[#allocation2 + $0x18] sm:$0xff] %vm204, %v2071
      %2074 = vrot.lane.b32.xlu0 %v1656, 39
      %v2075 = vpop.permute.xlu0 %2074
      %2077 = vst.msk [vmem:[#allocation2 + $0x18] sm:$0xff] %vm208, %v2075
      %2078 = vrot.lane.b32.xlu0 %v1657, 43
      %v2079 = vpop.permute.xlu0 %2078
      %2081 = vst.msk [vmem:[#allocation2 + $0x18] sm:$0xff] %vm213, %v2079
      %2082 = vrot.lane.b32.xlu0 %v1657, 45
      %v2083 = vpop.permute.xlu0 %2082
      %2085 = vst.msk [vmem:[#allocation2 + $0x18] sm:$0xff] %vm217, %v2083
      %2086 = vrot.lane.b32.xlu0 %v1657, 47
      %v2087 = vpop.permute.xlu0 %2086
      %vm2089 = vcmask 458168
      %2090 = vst.msk [vmem:[#allocation2 + $0x18] sm:$0xff] %vm2089, %v2087
      %2091 = vrot.lane.b32.xlu0 %v1656, 81
      %v2092 = vpop.permute.xlu0 %2091
      %vm2094 = vcmask 613848
      %2095 = vst.msk [vmem:[#allocation2 + $0x18] sm:$0xff] %vm2094, %v2092
      %2096 = vrot.lane.b32.xlu0 %v1656, 75
      %v2097 = vpop.permute.xlu0 %2096
      %vm2099 = vcmask 466368
      %2100 = vst.msk [vmem:[#allocation2 + $0x18] sm:$0xff] %vm2099, %v2097
      %2101 = vrot.lane.b32.xlu0 %v1656, 77
      %v2102 = vpop.permute.xlu0 %2101
      %vm2104 = vcmask 474568
      %2105 = vst.msk [vmem:[#allocation2 + $0x18] sm:$0xff] %vm2104, %v2102
      %2106 = vrot.lane.b32.xlu0 %v1656, 79
      %v2107 = vpop.permute.xlu0 %2106
      %vm2109 = vcmask 482768
      %2110 = vst.msk [vmem:[#allocation2 + $0x18] sm:$0xff] %vm2109, %v2107
      %2111 = vrot.lane.b32.xlu0 %v1656, 83
      %v2112 = vpop.permute.xlu0 %2111
      %2114 = vst.msk [vmem:[#allocation2 + $0x18] sm:$0xff] %vm1979, %v2112
      %2115 = vrot.lane.b32.xlu0 %v1656, 85
      %v2116 = vpop.permute.xlu0 %2115
      %2118 = vst.msk [vmem:[#allocation2 + $0x18] sm:$0xff] %vm1981, %v2116
      %2119 = vrot.lane.b32.xlu0 %v1656, 87
      %v2120 = vpop.permute.xlu0 %2119
      %vm2122 = vcmask 638568
      %2123 = vst.msk [vmem:[#allocation2 + $0x18] sm:$0xff] %vm2122, %v2120
      %vm2124 = vcmask 794248
      %2125 = vst.msk [vmem:[#allocation2 + $0x18] sm:$0xff] %vm2124, %v1985
      %vm2126 = vcmask 646768
      %2127 = vst.msk [vmem:[#allocation2 + $0x18] sm:$0xff] %vm2126, %v1958
      %vm2128 = vcmask 654968
      %2129 = vst.msk [vmem:[#allocation2 + $0x18] sm:$0xff] %vm2128, %v1967
      %vm2130 = vcmask 663168
      %2131 = vst.msk [vmem:[#allocation2 + $0x18] sm:$0xff] %vm2130, %v1971
      %2132 = vst.msk [vmem:[#allocation2 + $0x18] sm:$0xff] %vm1997, %v1989
      %2133 = vst.msk [vmem:[#allocation2 + $0x18] sm:$0xff] %vm1999, %v2003
      %vm2134 = vcmask 818968
      %2135 = vst.msk [vmem:[#allocation2 + $0x18] sm:$0xff] %vm2134, %v2007
      %v2136 = vld [vmem:[#allocation2] sm:$0xff]
      %v2137 = vld [vmem:[#allocation2 + $0x8] sm:$0xff]
      %v2138 = vld [vmem:[#allocation2 + $0x10] sm:$0xff]
      %v2139 = vld [vmem:[#allocation2] sm:$0xff]
      %v2140 = vld [vmem:[#allocation2 + $0x8] sm:$0xff]
      %v2141 = vld [vmem:[#allocation2 + $0x10] sm:$0xff]
      %v2142 = vld [vmem:[#allocation2 + $0x18] sm:$0xff]
      %2146 = vrot.lane.b32.xlu0 %v2136, 127
      %v2147 = vpop.permute.xlu0 %2146
      %2148 = vrot.lane.b32.xlu0 %v2137, 127
      %v2149 = vpop.permute.xlu0 %2148
      %2150 = vrot.lane.b32.xlu0 %v2138, 127
      %v2151 = vpop.permute.xlu0 %2150
      %v2152 = vsel %vm379, %v2147, %v2149
      %v2153 = vsel %vm379, %v2149, %v2151
      %2157 = vrot.lane.b32.xlu0 %v2136, 126
      %v2158 = vpop.permute.xlu0 %2157
      %2159 = vrot.lane.b32.xlu0 %v2137, 126
      %v2160 = vpop.permute.xlu0 %2159
      %2161 = vrot.lane.b32.xlu0 %v2138, 126
      %v2162 = vpop.permute.xlu0 %2161
      %v2163 = vsel %vm391, %v2158, %v2160
      %v2164 = vsel %vm391, %v2160, %v2162
      %2168 = vrot.lane.b32.xlu0 %v2136, 125
      %v2169 = vpop.permute.xlu0 %2168
      %2170 = vrot.lane.b32.xlu0 %v2137, 125
      %v2171 = vpop.permute.xlu0 %2170
      %2172 = vrot.lane.b32.xlu0 %v2138, 125
      %v2173 = vpop.permute.xlu0 %2172
      %v2174 = vsel %vm2014, %v2169, %v2171
      %v2175 = vsel %vm2014, %v2171, %v2173
      %2179 = vrot.lane.b32.xlu0 %v2136, 124
      %v2180 = vpop.permute.xlu0 %2179
      %2181 = vrot.lane.b32.xlu0 %v2137, 124
      %v2182 = vpop.permute.xlu0 %2181
      %2183 = vrot.lane.b32.xlu0 %v2138, 124
      %v2184 = vpop.permute.xlu0 %2183
      %v2185 = vsel %vm690, %v2180, %v2182
      %v2186 = vsel %vm690, %v2182, %v2184
      %2190 = vrot.lane.b32.xlu0 %v2136, 123
      %v2191 = vpop.permute.xlu0 %2190
      %2192 = vrot.lane.b32.xlu0 %v2137, 123
      %v2193 = vpop.permute.xlu0 %2192
      %2194 = vrot.lane.b32.xlu0 %v2138, 123
      %v2195 = vpop.permute.xlu0 %2194
      %vm2196 = vcmask 1006592
      %v2197 = vsel %vm2196, %v2191, %v2193
      %v2198 = vsel %vm2196, %v2193, %v2195
      %2202 = vrot.lane.b32.xlu0 %v2136, 122
      %v2203 = vpop.permute.xlu0 %2202
      %2204 = vrot.lane.b32.xlu0 %v2137, 122
      %v2205 = vpop.permute.xlu0 %2204
      %2206 = vrot.lane.b32.xlu0 %v2138, 122
      %v2207 = vpop.permute.xlu0 %2206
      %vm2208 = vcmask 998400
      %v2209 = vsel %vm2208, %v2203, %v2205
      %v2210 = vsel %vm2208, %v2205, %v2207
      %2214 = vrot.lane.b32.xlu0 %v2136, 106
      %v2215 = vpop.permute.xlu0 %2214
      %2216 = vrot.lane.b32.xlu0 %v2137, 106
      %v2217 = vpop.permute.xlu0 %2216
      %2218 = vrot.lane.b32.xlu0 %v2138, 106
      %v2219 = vpop.permute.xlu0 %2218
      %v2220 = vsel %vm688, %v2215, %v2217
      %v2221 = vsel %vm688, %v2217, %v2219
      %2225 = vrot.lane.b32.xlu0 %v2136, 105
      %v2226 = vpop.permute.xlu0 %2225
      %2227 = vrot.lane.b32.xlu0 %v2137, 105
      %v2228 = vpop.permute.xlu0 %2227
      %2229 = vrot.lane.b32.xlu0 %v2138, 105
      %v2230 = vpop.permute.xlu0 %2229
      %vm2231 = vcmask 859136
      %v2232 = vsel %vm2231, %v2226, %v2228
      %v2233 = vsel %vm2231, %v2228, %v2230
      %2237 = vrot.lane.b32.xlu0 %v2136, 104
      %v2238 = vpop.permute.xlu0 %2237
      %2239 = vrot.lane.b32.xlu0 %v2137, 104
      %v2240 = vpop.permute.xlu0 %2239
      %2241 = vrot.lane.b32.xlu0 %v2138, 104
      %v2242 = vpop.permute.xlu0 %2241
      %vm2243 = vcmask 850944
      %v2244 = vsel %vm2243, %v2238, %v2240
      %v2245 = vsel %vm2243, %v2240, %v2242
      %2249 = vrot.lane.b32.xlu0 %v2136, 103
      %v2250 = vpop.permute.xlu0 %2249
      %2251 = vrot.lane.b32.xlu0 %v2137, 103
      %v2252 = vpop.permute.xlu0 %2251
      %2253 = vrot.lane.b32.xlu0 %v2138, 103
      %v2254 = vpop.permute.xlu0 %2253
      %vm2255 = vcmask 842752
      %v2256 = vsel %vm2255, %v2250, %v2252
      %v2257 = vsel %vm2255, %v2252, %v2254
      %2261 = vrot.lane.b32.xlu0 %v2136, 102
      %v2262 = vpop.permute.xlu0 %2261
      %2263 = vrot.lane.b32.xlu0 %v2137, 102
      %v2264 = vpop.permute.xlu0 %2263
      %2265 = vrot.lane.b32.xlu0 %v2138, 102
      %v2266 = vpop.permute.xlu0 %2265
      %vm2267 = vcmask 834560
      %v2268 = vsel %vm2267, %v2262, %v2264
      %v2269 = vsel %vm2267, %v2264, %v2266
      %2273 = vrot.lane.b32.xlu0 %v2136, 101
      %v2274 = vpop.permute.xlu0 %2273
      %2275 = vrot.lane.b32.xlu0 %v2137, 101
      %v2276 = vpop.permute.xlu0 %2275
      %2277 = vrot.lane.b32.xlu0 %v2138, 101
      %v2278 = vpop.permute.xlu0 %2277
      %vm2279 = vcmask 826368
      %v2280 = vsel %vm2279, %v2274, %v2276
      %v2281 = vsel %vm2279, %v2276, %v2278
      %2285 = vrot.lane.b32.xlu0 %v2136, 100
      %v2286 = vpop.permute.xlu0 %2285
      %2287 = vrot.lane.b32.xlu0 %v2137, 100
      %v2288 = vpop.permute.xlu0 %2287
      %2289 = vrot.lane.b32.xlu0 %v2138, 100
      %v2290 = vpop.permute.xlu0 %2289
      %vm2291 = vcmask 818176
      %v2292 = vsel %vm2291, %v2286, %v2288
      %v2293 = vsel %vm2291, %v2288, %v2290
      %2301 = vrot.lane.b32.xlu0 %v2139, 84
      %v2302 = vpop.permute.xlu0 %2301
      %2303 = vrot.lane.b32.xlu0 %v2140, 84
      %v2304 = vpop.permute.xlu0 %2303
      %2305 = vrot.lane.b32.xlu0 %v2141, 84
      %v2306 = vpop.permute.xlu0 %2305
      %2307 = vrot.lane.b32.xlu0 %v2142, 84
      %v2308 = vpop.permute.xlu0 %2307
      %vm2309 = vcmask 687104
      %v2310 = vsel %vm2309, %v2302, %v2304
      %v2311 = vsel %vm2309, %v2304, %v2306
      %v2312 = vsel %vm2309, %v2306, %v2308
      %2316 = vrot.lane.b32.xlu0 %v2139, 83
      %v2317 = vpop.permute.xlu0 %2316
      %2318 = vrot.lane.b32.xlu0 %v2140, 83
      %v2319 = vpop.permute.xlu0 %2318
      %2320 = vrot.lane.b32.xlu0 %v2141, 83
      %v2321 = vpop.permute.xlu0 %2320
      %2322 = vrot.lane.b32.xlu0 %v2142, 83
      %v2323 = vpop.permute.xlu0 %2322
      %vm2324 = vcmask 678912
      %v2325 = vsel %vm2324, %v2317, %v2319
      %v2326 = vsel %vm2324, %v2319, %v2321
      %v2327 = vsel %vm2324, %v2321, %v2323
      %2331 = vrot.lane.b32.xlu0 %v2139, 127
      %v2332 = vpop.permute.xlu0 %2331
      %2333 = vrot.lane.b32.xlu0 %v2140, 127
      %v2334 = vpop.permute.xlu0 %2333
      %2335 = vrot.lane.b32.xlu0 %v2141, 127
      %v2336 = vpop.permute.xlu0 %2335
      %2337 = vrot.lane.b32.xlu0 %v2142, 127
      %v2338 = vpop.permute.xlu0 %2337
      %v2339 = vsel %vm379, %v2332, %v2334
      %v2340 = vsel %vm379, %v2334, %v2336
      %v2341 = vsel %vm379, %v2336, %v2338
      %2342 = vrot.lane.b32.xlu0 %v2139, 126
      %v2343 = vpop.permute.xlu0 %2342
      %2344 = vrot.lane.b32.xlu0 %v2140, 126
      %v2345 = vpop.permute.xlu0 %2344
      %2346 = vrot.lane.b32.xlu0 %v2141, 126
      %v2347 = vpop.permute.xlu0 %2346
      %2348 = vrot.lane.b32.xlu0 %v2142, 126
      %v2349 = vpop.permute.xlu0 %2348
      %v2350 = vsel %vm391, %v2343, %v2345
      %v2351 = vsel %vm391, %v2345, %v2347
      %v2352 = vsel %vm391, %v2347, %v2349
      %2353 = vrot.lane.b32.xlu0 %v2139, 125
      %v2354 = vpop.permute.xlu0 %2353
      %2355 = vrot.lane.b32.xlu0 %v2140, 125
      %v2356 = vpop.permute.xlu0 %2355
      %2357 = vrot.lane.b32.xlu0 %v2141, 125
      %v2358 = vpop.permute.xlu0 %2357
      %2359 = vrot.lane.b32.xlu0 %v2142, 125
      %v2360 = vpop.permute.xlu0 %2359
      %v2361 = vsel %vm2014, %v2354, %v2356
      %v2362 = vsel %vm2014, %v2356, %v2358
      %v2363 = vsel %vm2014, %v2358, %v2360
      %2364 = vrot.lane.b32.xlu0 %v2139, 124
      %v2365 = vpop.permute.xlu0 %2364
      %2366 = vrot.lane.b32.xlu0 %v2140, 124
      %v2367 = vpop.permute.xlu0 %2366
      %2368 = vrot.lane.b32.xlu0 %v2141, 124
      %v2369 = vpop.permute.xlu0 %2368
      %2370 = vrot.lane.b32.xlu0 %v2142, 124
      %v2371 = vpop.permute.xlu0 %2370
      %v2372 = vsel %vm690, %v2365, %v2367
      %v2373 = vsel %vm690, %v2367, %v2369
      %v2374 = vsel %vm690, %v2369, %v2371
      %2375 = vrot.lane.b32.xlu0 %v2139, 108
      %v2376 = vpop.permute.xlu0 %2375
      %2377 = vrot.lane.b32.xlu0 %v2140, 108
      %v2378 = vpop.permute.xlu0 %2377
      %2379 = vrot.lane.b32.xlu0 %v2141, 108
      %v2380 = vpop.permute.xlu0 %2379
      %2381 = vrot.lane.b32.xlu0 %v2142, 108
      %v2382 = vpop.permute.xlu0 %2381
      %v2383 = vsel %vm427, %v2376, %v2378
      %v2384 = vsel %vm427, %v2378, %v2380
      %v2385 = vsel %vm427, %v2380, %v2382
      %2386 = vrot.lane.b32.xlu0 %v2139, 107
      %v2387 = vpop.permute.xlu0 %2386
      %2388 = vrot.lane.b32.xlu0 %v2140, 107
      %v2389 = vpop.permute.xlu0 %2388
      %2390 = vrot.lane.b32.xlu0 %v2141, 107
      %v2391 = vpop.permute.xlu0 %2390
      %2392 = vrot.lane.b32.xlu0 %v2142, 107
      %v2393 = vpop.permute.xlu0 %2392
      %vm2394 = vcmask 875520
      %v2395 = vsel %vm2394, %v2387, %v2389
      %v2396 = vsel %vm2394, %v2389, %v2391
      %v2397 = vsel %vm2394, %v2391, %v2393
      %2398 = vrot.lane.b32.xlu0 %v2139, 106
      %v2399 = vpop.permute.xlu0 %2398
      %2400 = vrot.lane.b32.xlu0 %v2140, 106
      %v2401 = vpop.permute.xlu0 %2400
      %2402 = vrot.lane.b32.xlu0 %v2141, 106
      %v2403 = vpop.permute.xlu0 %2402
      %2404 = vrot.lane.b32.xlu0 %v2142, 106
      %v2405 = vpop.permute.xlu0 %2404
      %v2406 = vsel %vm688, %v2399, %v2401
      %v2407 = vsel %vm688, %v2401, %v2403
      %v2408 = vsel %vm688, %v2403, %v2405
      %2409 = vrot.lane.b32.xlu0 %v2139, 105
      %v2410 = vpop.permute.xlu0 %2409
      %2411 = vrot.lane.b32.xlu0 %v2140, 105
      %v2412 = vpop.permute.xlu0 %2411
      %2413 = vrot.lane.b32.xlu0 %v2141, 105
      %v2414 = vpop.permute.xlu0 %2413
      %2415 = vrot.lane.b32.xlu0 %v2142, 105
      %v2416 = vpop.permute.xlu0 %2415
      %v2417 = vsel %vm2231, %v2410, %v2412
      %v2418 = vsel %vm2231, %v2412, %v2414
      %v2419 = vsel %vm2231, %v2414, %v2416
      %2420 = vrot.lane.b32.xlu0 %v2139, 104
      %v2421 = vpop.permute.xlu0 %2420
      %2422 = vrot.lane.b32.xlu0 %v2140, 104
      %v2423 = vpop.permute.xlu0 %2422
      %2424 = vrot.lane.b32.xlu0 %v2141, 104
      %v2425 = vpop.permute.xlu0 %2424
      %2426 = vrot.lane.b32.xlu0 %v2142, 104
      %v2427 = vpop.permute.xlu0 %2426
      %v2428 = vsel %vm2243, %v2421, %v2423
      %v2429 = vsel %vm2243, %v2423, %v2425
      %v2430 = vsel %vm2243, %v2425, %v2427
      %2431 = vrot.lane.b32.xlu0 %v2139, 103
      %v2432 = vpop.permute.xlu0 %2431
      %2433 = vrot.lane.b32.xlu0 %v2140, 103
      %v2434 = vpop.permute.xlu0 %2433
      %2435 = vrot.lane.b32.xlu0 %v2141, 103
      %v2436 = vpop.permute.xlu0 %2435
      %2437 = vrot.lane.b32.xlu0 %v2142, 103
      %v2438 = vpop.permute.xlu0 %2437
      %v2439 = vsel %vm2255, %v2432, %v2434
      %v2440 = vsel %vm2255, %v2434, %v2436
      %v2441 = vsel %vm2255, %v2436, %v2438
      %2442 = vrot.lane.b32.xlu0 %v2139, 102
      %v2443 = vpop.permute.xlu0 %2442
      %2444 = vrot.lane.b32.xlu0 %v2140, 102
      %v2445 = vpop.permute.xlu0 %2444
      %2446 = vrot.lane.b32.xlu0 %v2141, 102
      %v2447 = vpop.permute.xlu0 %2446
      %2448 = vrot.lane.b32.xlu0 %v2142, 102
      %v2449 = vpop.permute.xlu0 %2448
      %v2450 = vsel %vm2267, %v2443, %v2445
      %v2451 = vsel %vm2267, %v2445, %v2447
      %v2452 = vsel %vm2267, %v2447, %v2449
      %2453 = vrot.lane.b32.xlu0 %v2139, 86
      %v2454 = vpop.permute.xlu0 %2453
      %2455 = vrot.lane.b32.xlu0 %v2140, 86
      %v2456 = vpop.permute.xlu0 %2455
      %2457 = vrot.lane.b32.xlu0 %v2141, 86
      %v2458 = vpop.permute.xlu0 %2457
      %2459 = vrot.lane.b32.xlu0 %v2142, 86
      %v2460 = vpop.permute.xlu0 %2459
      %vm2461 = vcmask 703488
      %v2462 = vsel %vm2461, %v2454, %v2456
      %v2463 = vsel %vm2461, %v2456, %v2458
      %v2464 = vsel %vm2461, %v2458, %v2460
      %2465 = vrot.lane.b32.xlu0 %v2139, 85
      %v2466 = vpop.permute.xlu0 %2465
      %2467 = vrot.lane.b32.xlu0 %v2140, 85
      %v2468 = vpop.permute.xlu0 %2467
      %2469 = vrot.lane.b32.xlu0 %v2141, 85
      %v2470 = vpop.permute.xlu0 %2469
      %2471 = vrot.lane.b32.xlu0 %v2142, 85
      %v2472 = vpop.permute.xlu0 %2471
      %vm2473 = vcmask 695296
      %v2474 = vsel %vm2473, %v2466, %v2468
      %v2475 = vsel %vm2473, %v2468, %v2470
      %v2476 = vsel %vm2473, %v2470, %v2472
      %2477 = vrot.lane.b32.xlu0 %v2139, 110
      %v2478 = vpop.permute.xlu0 %2477
      %2479 = vrot.lane.b32.xlu0 %v2140, 110
      %v2480 = vpop.permute.xlu0 %2479
      %2481 = vrot.lane.b32.xlu0 %v2141, 110
      %v2482 = vpop.permute.xlu0 %2481
      %2483 = vrot.lane.b32.xlu0 %v2142, 110
      %v2484 = vpop.permute.xlu0 %2483
      %v2485 = vsel %vm403, %v2478, %v2480
      %v2486 = vsel %vm403, %v2480, %v2482
      %v2487 = vsel %vm403, %v2482, %v2484
      %2488 = vrot.lane.b32.xlu0 %v2139, 109
      %v2489 = vpop.permute.xlu0 %2488
      %2490 = vrot.lane.b32.xlu0 %v2140, 109
      %v2491 = vpop.permute.xlu0 %2490
      %2492 = vrot.lane.b32.xlu0 %v2141, 109
      %v2493 = vpop.permute.xlu0 %2492
      %2494 = vrot.lane.b32.xlu0 %v2142, 109
      %v2495 = vpop.permute.xlu0 %2494
      %v2496 = vsel %vm415, %v2489, %v2491
      %v2497 = vsel %vm415, %v2491, %v2493
      %v2498 = vsel %vm415, %v2493, %v2495
      %2499 = vrot.lane.b32.xlu0 %v2140, 88
      %v2500 = vpop.permute.xlu0 %2499
      %2501 = vrot.lane.b32.xlu0 %v2141, 88
      %v2502 = vpop.permute.xlu0 %2501
      %2503 = vrot.lane.b32.xlu0 %v2142, 88
      %v2504 = vpop.permute.xlu0 %2503
      %v2505 = vsel %vm686, %v2500, %v2502
      %v2506 = vsel %vm686, %v2502, %v2504
      %2507 = vrot.lane.b32.xlu0 %v2140, 87
      %v2508 = vpop.permute.xlu0 %2507
      %2509 = vrot.lane.b32.xlu0 %v2141, 87
      %v2510 = vpop.permute.xlu0 %2509
      %2511 = vrot.lane.b32.xlu0 %v2142, 87
      %v2512 = vpop.permute.xlu0 %2511
      %vm2513 = vcmask 711680
      %v2514 = vsel %vm2513, %v2508, %v2510
      %v2515 = vsel %vm2513, %v2510, %v2512
      %2516 = vrot.lane.b32.xlu0 %v2139, 82
      %v2517 = vpop.permute.xlu0 %2516
      %2518 = vrot.lane.b32.xlu0 %v2140, 82
      %v2519 = vpop.permute.xlu0 %2518
      %2520 = vrot.lane.b32.xlu0 %v2141, 82
      %v2521 = vpop.permute.xlu0 %2520
      %2522 = vrot.lane.b32.xlu0 %v2142, 82
      %v2523 = vpop.permute.xlu0 %2522
      %2524 = vrot.lane.b32.xlu0 %v2339, 82
      %v2525 = vpop.permute.xlu0 %2524
      %2526 = vrot.lane.b32.xlu0 %v2340, 82
      %v2527 = vpop.permute.xlu0 %2526
      %2528 = vrot.lane.b32.xlu0 %v2341, 82
      %v2529 = vpop.permute.xlu0 %2528
      %2530 = vrot.lane.b32.xlu0 %v2338, 82
      %v2531 = vpop.permute.xlu0 %2530
      %2532 = vrot.lane.b32.xlu0 %v2350, 82
      %v2533 = vpop.permute.xlu0 %2532
      %2534 = vrot.lane.b32.xlu0 %v2351, 82
      %v2535 = vpop.permute.xlu0 %2534
      %2536 = vrot.lane.b32.xlu0 %v2352, 82
      %v2537 = vpop.permute.xlu0 %2536
      %2538 = vrot.lane.b32.xlu0 %v2349, 82
      %v2539 = vpop.permute.xlu0 %2538
      %2540 = vrot.lane.b32.xlu0 %v2361, 82
      %v2541 = vpop.permute.xlu0 %2540
      %2542 = vrot.lane.b32.xlu0 %v2362, 82
      %v2543 = vpop.permute.xlu0 %2542
      %2544 = vrot.lane.b32.xlu0 %v2363, 82
      %v2545 = vpop.permute.xlu0 %2544
      %2546 = vrot.lane.b32.xlu0 %v2360, 82
      %v2547 = vpop.permute.xlu0 %2546
      %2548 = vrot.lane.b32.xlu0 %v2372, 82
      %v2549 = vpop.permute.xlu0 %2548
      %2550 = vrot.lane.b32.xlu0 %v2373, 82
      %v2551 = vpop.permute.xlu0 %2550
      %2552 = vrot.lane.b32.xlu0 %v2374, 82
      %v2553 = vpop.permute.xlu0 %2552
      %2554 = vrot.lane.b32.xlu0 %v2371, 82
      %v2555 = vpop.permute.xlu0 %2554
      %2556 = vrot.lane.b32.xlu0 %v2383, 82
      %v2557 = vpop.permute.xlu0 %2556
      %2558 = vrot.lane.b32.xlu0 %v2384, 82
      %v2559 = vpop.permute.xlu0 %2558
      %2560 = vrot.lane.b32.xlu0 %v2385, 82
      %v2561 = vpop.permute.xlu0 %2560
      %2562 = vrot.lane.b32.xlu0 %v2382, 82
      %v2563 = vpop.permute.xlu0 %2562
      %2564 = vrot.lane.b32.xlu0 %v2395, 82
      %v2565 = vpop.permute.xlu0 %2564
      %2566 = vrot.lane.b32.xlu0 %v2396, 82
      %v2567 = vpop.permute.xlu0 %2566
      %2568 = vrot.lane.b32.xlu0 %v2397, 82
      %v2569 = vpop.permute.xlu0 %2568
      %2570 = vrot.lane.b32.xlu0 %v2393, 82
      %v2571 = vpop.permute.xlu0 %2570
      %2572 = vrot.lane.b32.xlu0 %v2406, 82
      %v2573 = vpop.permute.xlu0 %2572
      %2574 = vrot.lane.b32.xlu0 %v2407, 82
      %v2575 = vpop.permute.xlu0 %2574
      %2576 = vrot.lane.b32.xlu0 %v2408, 82
      %v2577 = vpop.permute.xlu0 %2576
      %2578 = vrot.lane.b32.xlu0 %v2405, 82
      %v2579 = vpop.permute.xlu0 %2578
      %2580 = vrot.lane.b32.xlu0 %v2417, 82
      %v2581 = vpop.permute.xlu0 %2580
      %2582 = vrot.lane.b32.xlu0 %v2418, 82
      %v2583 = vpop.permute.xlu0 %2582
      %2584 = vrot.lane.b32.xlu0 %v2419, 82
      %v2585 = vpop.permute.xlu0 %2584
      %2586 = vrot.lane.b32.xlu0 %v2416, 82
      %v2587 = vpop.permute.xlu0 %2586
      %2588 = vrot.lane.b32.xlu0 %v2428, 82
      %v2589 = vpop.permute.xlu0 %2588
      %2590 = vrot.lane.b32.xlu0 %v2429, 82
      %v2591 = vpop.permute.xlu0 %2590
      %2592 = vrot.lane.b32.xlu0 %v2430, 82
      %v2593 = vpop.permute.xlu0 %2592
      %2594 = vrot.lane.b32.xlu0 %v2427, 82
      %v2595 = vpop.permute.xlu0 %2594
      %2596 = vrot.lane.b32.xlu0 %v2439, 82
      %v2597 = vpop.permute.xlu0 %2596
      %2598 = vrot.lane.b32.xlu0 %v2440, 82
      %v2599 = vpop.permute.xlu0 %2598
      %2600 = vrot.lane.b32.xlu0 %v2441, 82
      %v2601 = vpop.permute.xlu0 %2600
      %2602 = vrot.lane.b32.xlu0 %v2438, 82
      %v2603 = vpop.permute.xlu0 %2602
      %2604 = vrot.lane.b32.xlu0 %v2450, 82
      %v2605 = vpop.permute.xlu0 %2604
      %2606 = vrot.lane.b32.xlu0 %v2451, 82
      %v2607 = vpop.permute.xlu0 %2606
      %2608 = vrot.lane.b32.xlu0 %v2452, 82
      %v2609 = vpop.permute.xlu0 %2608
      %2610 = vrot.lane.b32.xlu0 %v2449, 82
      %v2611 = vpop.permute.xlu0 %2610
      %2612 = vrot.lane.b32.xlu0 %v2462, 82
      %v2613 = vpop.permute.xlu0 %2612
      %2614 = vrot.lane.b32.xlu0 %v2463, 82
      %v2615 = vpop.permute.xlu0 %2614
      %2616 = vrot.lane.b32.xlu0 %v2464, 82
      %v2617 = vpop.permute.xlu0 %2616
      %2618 = vrot.lane.b32.xlu0 %v2460, 82
      %v2619 = vpop.permute.xlu0 %2618
      %2620 = vrot.lane.b32.xlu0 %v2474, 82
      %v2621 = vpop.permute.xlu0 %2620
      %2622 = vrot.lane.b32.xlu0 %v2475, 82
      %v2623 = vpop.permute.xlu0 %2622
      %2624 = vrot.lane.b32.xlu0 %v2476, 82
      %v2625 = vpop.permute.xlu0 %2624
      %2626 = vrot.lane.b32.xlu0 %v2472, 82
      %v2627 = vpop.permute.xlu0 %2626
      %2628 = vrot.lane.b32.xlu0 %v2310, 82
      %v2629 = vpop.permute.xlu0 %2628
      %2630 = vrot.lane.b32.xlu0 %v2311, 82
      %v2631 = vpop.permute.xlu0 %2630
      %2632 = vrot.lane.b32.xlu0 %v2312, 82
      %v2633 = vpop.permute.xlu0 %2632
      %2634 = vrot.lane.b32.xlu0 %v2308, 82
      %v2635 = vpop.permute.xlu0 %2634
      %2636 = vrot.lane.b32.xlu0 %v2325, 82
      %v2637 = vpop.permute.xlu0 %2636
      %2638 = vrot.lane.b32.xlu0 %v2326, 82
      %v2639 = vpop.permute.xlu0 %2638
      %2640 = vrot.lane.b32.xlu0 %v2327, 82
      %v2641 = vpop.permute.xlu0 %2640
      %2642 = vrot.lane.b32.xlu0 %v2323, 82
      %v2643 = vpop.permute.xlu0 %2642
      %vm2644 = vcmask 670720
      %v2645 = vsel %vm2644, %v2517, %v2519
      %v2646 = vsel %vm2644, %v2519, %v2521
      %v2647 = vsel %vm2644, %v2521, %v2523
      %v2648 = vsel %vm2644, %v2525, %v2527
      %v2649 = vsel %vm2644, %v2527, %v2529
      %v2650 = vsel %vm2644, %v2529, %v2531
      %v2651 = vsel %vm2644, %v2533, %v2535
      %v2652 = vsel %vm2644, %v2535, %v2537
      %v2653 = vsel %vm2644, %v2537, %v2539
      %v2654 = vsel %vm2644, %v2541, %v2543
      %v2655 = vsel %vm2644, %v2543, %v2545
      %v2656 = vsel %vm2644, %v2545, %v2547
      %v2657 = vsel %vm2644, %v2549, %v2551
      %v2658 = vsel %vm2644, %v2551, %v2553
      %v2659 = vsel %vm2644, %v2553, %v2555
      %v2660 = vsel %vm2644, %v2557, %v2559
      %v2661 = vsel %vm2644, %v2559, %v2561
      %v2662 = vsel %vm2644, %v2561, %v2563
      %v2663 = vsel %vm2644, %v2565, %v2567
      %v2664 = vsel %vm2644, %v2567, %v2569
      %v2665 = vsel %vm2644, %v2569, %v2571
      %v2666 = vsel %vm2644, %v2573, %v2575
      %v2667 = vsel %vm2644, %v2575, %v2577
      %v2668 = vsel %vm2644, %v2577, %v2579
      %v2669 = vsel %vm2644, %v2581, %v2583
      %v2670 = vsel %vm2644, %v2583, %v2585
      %v2671 = vsel %vm2644, %v2585, %v2587
      %v2672 = vsel %vm2644, %v2589, %v2591
      %v2673 = vsel %vm2644, %v2591, %v2593
      %v2674 = vsel %vm2644, %v2593, %v2595
      %v2675 = vsel %vm2644, %v2597, %v2599
      %v2676 = vsel %vm2644, %v2599, %v2601
      %v2677 = vsel %vm2644, %v2601, %v2603
      %v2678 = vsel %vm2644, %v2605, %v2607
      %v2679 = vsel %vm2644, %v2607, %v2609
      %v2680 = vsel %vm2644, %v2609, %v2611
      %v2681 = vsel %vm2644, %v2613, %v2615
      %v2682 = vsel %vm2644, %v2615, %v2617
      %v2683 = vsel %vm2644, %v2617, %v2619
      %v2684 = vsel %vm2644, %v2621, %v2623
      %v2685 = vsel %vm2644, %v2623, %v2625
      %v2686 = vsel %vm2644, %v2625, %v2627
      %v2687 = vsel %vm2644, %v2629, %v2631
      %v2688 = vsel %vm2644, %v2631, %v2633
      %v2689 = vsel %vm2644, %v2633, %v2635
      %v2690 = vsel %vm2644, %v2637, %v2639
      %v2691 = vsel %vm2644, %v2639, %v2641
      %v2692 = vsel %vm2644, %v2641, %v2643
      %2741 = vrot.lane.b32.xlu0 %v2139, 36
      %v2742 = vpop.permute.xlu0 %2741
      %2743 = vrot.lane.b32.xlu0 %v2140, 36
      %v2744 = vpop.permute.xlu0 %2743
      %2745 = vrot.lane.b32.xlu0 %v2141, 36
      %v2746 = vpop.permute.xlu0 %2745
      %2747 = vrot.lane.b32.xlu0 %v2142, 36
      %v2748 = vpop.permute.xlu0 %2747
      %2749 = vrot.lane.b32.xlu0 %v2339, 36
      %v2750 = vpop.permute.xlu0 %2749
      %2751 = vrot.lane.b32.xlu0 %v2340, 36
      %v2752 = vpop.permute.xlu0 %2751
      %2753 = vrot.lane.b32.xlu0 %v2341, 36
      %v2754 = vpop.permute.xlu0 %2753
      %2755 = vrot.lane.b32.xlu0 %v2338, 36
      %v2756 = vpop.permute.xlu0 %2755
      %2757 = vrot.lane.b32.xlu0 %v2350, 36
      %v2758 = vpop.permute.xlu0 %2757
      %2759 = vrot.lane.b32.xlu0 %v2351, 36
      %v2760 = vpop.permute.xlu0 %2759
      %2761 = vrot.lane.b32.xlu0 %v2352, 36
      %v2762 = vpop.permute.xlu0 %2761
      %2763 = vrot.lane.b32.xlu0 %v2349, 36
      %v2764 = vpop.permute.xlu0 %2763
      %2765 = vrot.lane.b32.xlu0 %v2485, 36
      %v2766 = vpop.permute.xlu0 %2765
      %2767 = vrot.lane.b32.xlu0 %v2486, 36
      %v2768 = vpop.permute.xlu0 %2767
      %2769 = vrot.lane.b32.xlu0 %v2487, 36
      %v2770 = vpop.permute.xlu0 %2769
      %2771 = vrot.lane.b32.xlu0 %v2484, 36
      %v2772 = vpop.permute.xlu0 %2771
      %2773 = vrot.lane.b32.xlu0 %v2496, 36
      %v2774 = vpop.permute.xlu0 %2773
      %2775 = vrot.lane.b32.xlu0 %v2497, 36
      %v2776 = vpop.permute.xlu0 %2775
      %2777 = vrot.lane.b32.xlu0 %v2498, 36
      %v2778 = vpop.permute.xlu0 %2777
      %2779 = vrot.lane.b32.xlu0 %v2495, 36
      %v2780 = vpop.permute.xlu0 %2779
      %2781 = vrot.lane.b32.xlu0 %v2383, 36
      %v2782 = vpop.permute.xlu0 %2781
      %2783 = vrot.lane.b32.xlu0 %v2384, 36
      %v2784 = vpop.permute.xlu0 %2783
      %2785 = vrot.lane.b32.xlu0 %v2385, 36
      %v2786 = vpop.permute.xlu0 %2785
      %2787 = vrot.lane.b32.xlu0 %v2382, 36
      %v2788 = vpop.permute.xlu0 %2787
      %2789 = vrot.lane.b32.xlu0 %v2395, 36
      %v2790 = vpop.permute.xlu0 %2789
      %2791 = vrot.lane.b32.xlu0 %v2396, 36
      %v2792 = vpop.permute.xlu0 %2791
      %2793 = vrot.lane.b32.xlu0 %v2397, 36
      %v2794 = vpop.permute.xlu0 %2793
      %2795 = vrot.lane.b32.xlu0 %v2393, 36
      %v2796 = vpop.permute.xlu0 %2795
      %2797 = vrot.lane.b32.xlu0 %v2406, 36
      %v2798 = vpop.permute.xlu0 %2797
      %2799 = vrot.lane.b32.xlu0 %v2407, 36
      %v2800 = vpop.permute.xlu0 %2799
      %2801 = vrot.lane.b32.xlu0 %v2408, 36
      %v2802 = vpop.permute.xlu0 %2801
      %2803 = vrot.lane.b32.xlu0 %v2405, 36
      %v2804 = vpop.permute.xlu0 %2803
      %2805 = vrot.lane.b32.xlu0 %v2417, 36
      %v2806 = vpop.permute.xlu0 %2805
      %2807 = vrot.lane.b32.xlu0 %v2418, 36
      %v2808 = vpop.permute.xlu0 %2807
      %2809 = vrot.lane.b32.xlu0 %v2419, 36
      %v2810 = vpop.permute.xlu0 %2809
      %2811 = vrot.lane.b32.xlu0 %v2416, 36
      %v2812 = vpop.permute.xlu0 %2811
      %2813 = vrot.lane.b32.xlu0 %v2428, 36
      %v2814 = vpop.permute.xlu0 %2813
      %2815 = vrot.lane.b32.xlu0 %v2429, 36
      %v2816 = vpop.permute.xlu0 %2815
      %2817 = vrot.lane.b32.xlu0 %v2430, 36
      %v2818 = vpop.permute.xlu0 %2817
      %2819 = vrot.lane.b32.xlu0 %v2427, 36
      %v2820 = vpop.permute.xlu0 %2819
      %2821 = vrot.lane.b32.xlu0 %v2500, 36
      %v2822 = vpop.permute.xlu0 %2821
      %2823 = vrot.lane.b32.xlu0 %v2505, 36
      %v2824 = vpop.permute.xlu0 %2823
      %2825 = vrot.lane.b32.xlu0 %v2506, 36
      %v2826 = vpop.permute.xlu0 %2825
      %2827 = vrot.lane.b32.xlu0 %v2504, 36
      %v2828 = vpop.permute.xlu0 %2827
      %2829 = vrot.lane.b32.xlu0 %v2508, 36
      %v2830 = vpop.permute.xlu0 %2829
      %2831 = vrot.lane.b32.xlu0 %v2514, 36
      %v2832 = vpop.permute.xlu0 %2831
      %2833 = vrot.lane.b32.xlu0 %v2515, 36
      %v2834 = vpop.permute.xlu0 %2833
      %2835 = vrot.lane.b32.xlu0 %v2512, 36
      %v2836 = vpop.permute.xlu0 %2835
      %2837 = vrot.lane.b32.xlu0 %v2456, 36
      %v2838 = vpop.permute.xlu0 %2837
      %2839 = vrot.lane.b32.xlu0 %v2463, 36
      %v2840 = vpop.permute.xlu0 %2839
      %2841 = vrot.lane.b32.xlu0 %v2464, 36
      %v2842 = vpop.permute.xlu0 %2841
      %2843 = vrot.lane.b32.xlu0 %v2460, 36
      %v2844 = vpop.permute.xlu0 %2843
      %2845 = vrot.lane.b32.xlu0 %v2468, 36
      %v2846 = vpop.permute.xlu0 %2845
      %2847 = vrot.lane.b32.xlu0 %v2475, 36
      %v2848 = vpop.permute.xlu0 %2847
      %2849 = vrot.lane.b32.xlu0 %v2476, 36
      %v2850 = vpop.permute.xlu0 %2849
      %2851 = vrot.lane.b32.xlu0 %v2472, 36
      %v2852 = vpop.permute.xlu0 %2851
      %2853 = vrot.lane.b32.xlu0 %v2304, 36
      %v2854 = vpop.permute.xlu0 %2853
      %2855 = vrot.lane.b32.xlu0 %v2311, 36
      %v2856 = vpop.permute.xlu0 %2855
      %2857 = vrot.lane.b32.xlu0 %v2312, 36
      %v2858 = vpop.permute.xlu0 %2857
      %2859 = vrot.lane.b32.xlu0 %v2308, 36
      %v2860 = vpop.permute.xlu0 %2859
      %2861 = vrot.lane.b32.xlu0 %v2319, 36
      %v2862 = vpop.permute.xlu0 %2861
      %2863 = vrot.lane.b32.xlu0 %v2326, 36
      %v2864 = vpop.permute.xlu0 %2863
      %2865 = vrot.lane.b32.xlu0 %v2327, 36
      %v2866 = vpop.permute.xlu0 %2865
      %2867 = vrot.lane.b32.xlu0 %v2323, 36
      %v2868 = vpop.permute.xlu0 %2867
      %v2869 = vsel %vm671, %v2742, %v2744
      %v2870 = vsel %vm671, %v2744, %v2746
      %v2871 = vsel %vm671, %v2746, %v2748
      %v2872 = vsel %vm671, %v2750, %v2752
      %v2873 = vsel %vm671, %v2752, %v2754
      %v2874 = vsel %vm671, %v2754, %v2756
      %v2875 = vsel %vm671, %v2758, %v2760
      %v2876 = vsel %vm671, %v2760, %v2762
      %v2877 = vsel %vm671, %v2762, %v2764
      %v2878 = vsel %vm671, %v2766, %v2768
      %v2879 = vsel %vm671, %v2768, %v2770
      %v2880 = vsel %vm671, %v2770, %v2772
      %v2881 = vsel %vm671, %v2774, %v2776
      %v2882 = vsel %vm671, %v2776, %v2778
      %v2883 = vsel %vm671, %v2778, %v2780
      %v2884 = vsel %vm671, %v2782, %v2784
      %v2885 = vsel %vm671, %v2784, %v2786
      %v2886 = vsel %vm671, %v2786, %v2788
      %v2887 = vsel %vm671, %v2790, %v2792
      %v2888 = vsel %vm671, %v2792, %v2794
      %v2889 = vsel %vm671, %v2794, %v2796
      %v2890 = vsel %vm671, %v2798, %v2800
      %v2891 = vsel %vm671, %v2800, %v2802
      %v2892 = vsel %vm671, %v2802, %v2804
      %v2893 = vsel %vm671, %v2806, %v2808
      %v2894 = vsel %vm671, %v2808, %v2810
      %v2895 = vsel %vm671, %v2810, %v2812
      %v2896 = vsel %vm671, %v2814, %v2816
      %v2897 = vsel %vm671, %v2816, %v2818
      %v2898 = vsel %vm671, %v2818, %v2820
      %v2899 = vsel %vm671, %v2822, %v2824
      %v2900 = vsel %vm671, %v2824, %v2826
      %v2901 = vsel %vm671, %v2826, %v2828
      %v2902 = vsel %vm671, %v2830, %v2832
      %v2903 = vsel %vm671, %v2832, %v2834
      %v2904 = vsel %vm671, %v2834, %v2836
      %v2905 = vsel %vm671, %v2838, %v2840
      %v2906 = vsel %vm671, %v2840, %v2842
      %v2907 = vsel %vm671, %v2842, %v2844
      %v2908 = vsel %vm671, %v2846, %v2848
      %v2909 = vsel %vm671, %v2848, %v2850
      %v2910 = vsel %vm671, %v2850, %v2852
      %v2911 = vsel %vm671, %v2854, %v2856
      %v2912 = vsel %vm671, %v2856, %v2858
      %v2913 = vsel %vm671, %v2858, %v2860
      %v2914 = vsel %vm671, %v2862, %v2864
      %v2915 = vsel %vm671, %v2864, %v2866
      %v2916 = vsel %vm671, %v2866, %v2868
      %2965 = vrot.lane.b32.xlu0 %v2140, 118
      %v2966 = vpop.permute.xlu0 %2965
      %2967 = vrot.lane.b32.xlu0 %v2141, 118
      %v2968 = vpop.permute.xlu0 %2967
      %2969 = vrot.lane.b32.xlu0 %v2142, 118
      %v2970 = vpop.permute.xlu0 %2969
      %vm2971 = vcmask 965632
      %v2972 = vsel %vm2971, %v2966, %v2968
      %v2973 = vsel %vm2971, %v2968, %v2970
      %v2977 = vld [vmem:[%s1 + $0x8] sm:$0xff]
      %v2978 = vld [vmem:[%s1 + $0x10] sm:$0xff]
      %v2979 = vld [vmem:[%s1 + $0x18] sm:$0xff]
      %v2980 = vld [vmem:[%s1 + $0x20] sm:$0xff]
      %v2981 = vld [vmem:[%s2] sm:$0xff]
      %2983 = vset.pattern.permute.xlu0 9
      %2984 = vperm.xlu0 %2983, %v2981
      %v2985 = vpop.permute.xlu0 %2984
      %2991 = vrot.lane.b32.xlu0 %v2977, 40
      %v2992 = vpop.permute.xlu0 %2991
      %2993 = vrot.lane.b32.xlu0 %v2978, 40
      %v2994 = vpop.permute.xlu0 %2993
      %2995 = vrot.lane.b32.xlu0 %v2979, 40
      %v2996 = vpop.permute.xlu0 %2995
      %2997 = vrot.lane.b32.xlu0 %v2980, 40
      %v2998 = vpop.permute.xlu0 %2997
      %vm2999 = vcmask 326656
      %v3000 = vsel %vm2999, %v2992, %v2994
      %v3001 = vsel %vm2999, %v2994, %v2996
      %v3002 = vsel %vm2999, %v2996, %v2998
      %vm3006 = vcmask 64512
      %v3007 = vsel %vm3006, %v2998, 0
      %3009 = vmatprep.subr.mxu0 %v2137
      %3010 = vmatpush1.msra.mxu0 %v2136
      %3011 = vmatprep.subr.mxu0 %v2153
      %3012 = vmatpush1.msra.mxu0 %v2152
      %3013 = vmatprep.subr.mxu0 %v2164
      %3014 = vmatpush1.msra.mxu0 %v2163
      %3015 = vmatprep.subr.mxu0 %v2175
      %3016 = vmatpush1.msra.mxu0 %v2174
      %3017 = vmatprep.subr.mxu0 %v2186
      %3018 = vmatpush1.msra.mxu0 %v2185
      %3019 = vmatprep.subr.mxu0 %v2198
      %3020 = vmatpush1.msra.mxu0 %v2197
      %3021 = vmatprep.subr.mxu0 %v2210
      %3022 = vmatpush1.msra.mxu0 %v2209
      %3023 = vmatprep.subr.mxu0 %v2221
      %3024 = vmatpush1.msra.mxu0 %v2220
      %3025 = vmatprep.subr.mxu0 %v2233
      %3026 = vmatpush1.msra.mxu0 %v2232
      %3027 = vmatprep.subr.mxu0 %v2245
      %3028 = vmatpush1.msra.mxu0 %v2244
      %3029 = vmatprep.subr.mxu0 %v2257
      %3030 = vmatpush1.msra.mxu0 %v2256
      %3031 = vmatprep.subr.mxu0 %v2269
      %3032 = vmatpush1.msra.mxu0 %v2268
      %3033 = vmatprep.subr.mxu0 %v2281
      %3034 = vmatpush1.msra.mxu0 %v2280
      %3035 = vmatprep.subr.mxu0 %v2293
      %3036 = vmatpush1.msra.mxu0 %v2292
      %3037 = vmatprep.subr.mxu0 %v2311
      %3038 = vmatpush1.msra.mxu0 %v2310
      %3039 = vmatprep.subr.mxu0 %v2326
      %3040 = vmatpush1.msra.mxu0 %v2325
      %3041 = vmatprep.subr.mxu0 %v2646
      %3042 = vmatpush1.msra.mxu0 %v2645
      %3043 = vmatprep.subr.mxu0 %v2649
      %3044 = vmatpush1.msra.mxu0 %v2648
      %3045 = vmatprep.subr.mxu0 %v2652
      %3046 = vmatpush1.msra.mxu0 %v2651
      %3047 = vmatprep.subr.mxu0 %v2655
      %3048 = vmatpush1.msra.mxu0 %v2654
      %3049 = vmatprep.subr.mxu0 %v2658
      %3050 = vmatpush1.msra.mxu0 %v2657
      %3051 = vmatprep.subr.mxu0 %v2661
      %3052 = vmatpush1.msra.mxu0 %v2660
      %3053 = vmatprep.subr.mxu0 %v2664
      %3054 = vmatpush1.msra.mxu0 %v2663
      %3055 = vmatprep.subr.mxu0 %v2667
      %3056 = vmatpush1.msra.mxu0 %v2666
      %3057 = vmatprep.subr.mxu0 %v2670
      %3058 = vmatpush1.msra.mxu0 %v2669
      %3059 = vmatprep.subr.mxu0 %v2673
      %3060 = vmatpush1.msra.mxu0 %v2672
      %3061 = vmatprep.subr.mxu0 %v2676
      %3062 = vmatpush1.msra.mxu0 %v2675
      %3063 = vmatprep.subr.mxu0 %v2679
      %3064 = vmatpush1.msra.mxu0 %v2678
      %3065 = vmatprep.subr.mxu0 %v2682
      %3066 = vmatpush1.msra.mxu0 %v2681
      %3067 = vmatprep.subr.mxu0 %v2685
      %3068 = vmatpush1.msra.mxu0 %v2684
      %3069 = vmatprep.subr.mxu0 %v2688
      %3070 = vmatpush1.msra.mxu0 %v2687
      %3071 = vmatprep.subr.mxu0 %v2691
      %3072 = vmatpush1.msra.mxu0 %v2690
      %3073 = vmatprep.mubr.f32.mxu0 %v3001
      %3074 = vmatmul.mubr.f32.gmra.mrb[0].mxu0 %v3000
      %v3075 = vpop.f32.mrb[0].mxu0
      %v3076 = vadd.f32 %v2985, %v3075
      %v3077 = vpop.f32.mrb[0].mxu0
      %v3078 = vadd.f32 %v2985, %v3077
      %3079 = vdwg.mxu0
      %3080 = vmatprep.subr.mxu0 %v2870
      %3081 = vmatpush1.msra.mxu0 %v2869
      %3082 = vmatprep.subr.mxu0 %v2873
      %3083 = vmatpush1.msra.mxu0 %v2872
      %3084 = vmatprep.subr.mxu0 %v2876
      %3085 = vmatpush1.msra.mxu0 %v2875
      %3086 = vmatprep.subr.mxu0 %v2879
      %3087 = vmatpush1.msra.mxu0 %v2878
      %3088 = vmatprep.subr.mxu0 %v2882
      %3089 = vmatpush1.msra.mxu0 %v2881
      %3090 = vmatprep.subr.mxu0 %v2885
      %3091 = vmatpush1.msra.mxu0 %v2884
      %3092 = vmatprep.subr.mxu0 %v2888
      %3093 = vmatpush1.msra.mxu0 %v2887
      %3094 = vmatprep.subr.mxu0 %v2891
      %3095 = vmatpush1.msra.mxu0 %v2890
      %3096 = vmatprep.subr.mxu0 %v2894
      %3097 = vmatpush1.msra.mxu0 %v2893
      %3098 = vmatprep.subr.mxu0 %v2897
      %3099 = vmatpush1.msra.mxu0 %v2896
      %3100 = vmatprep.subr.mxu0 %v2900
      %3101 = vmatpush1.msra.mxu0 %v2899
      %3102 = vmatprep.subr.mxu0 %v2903
      %3103 = vmatpush1.msra.mxu0 %v2902
      %3104 = vmatprep.subr.mxu0 %v2906
      %3105 = vmatpush1.msra.mxu0 %v2905
      %3106 = vmatprep.subr.mxu0 %v2909
      %3107 = vmatpush1.msra.mxu0 %v2908
      %3108 = vmatprep.subr.mxu0 %v2912
      %3109 = vmatpush1.msra.mxu0 %v2911
      %3110 = vmatprep.subr.mxu0 %v2915
      %3111 = vmatpush1.msra.mxu0 %v2914
      %3112 = vmatprep.subr.mxu0 %v2973
      %3113 = vmatpush1.msra.mxu0 %v2972
      %3114 = vmatprep.subr.mxu0 0.0
      %3115 = vmatpush1.msra.mxu0 0.0
      %3116 = vmatprep.subr.mxu0 0.0
      %3117 = vmatpush1.msra.mxu0 0.0
      %3118 = vmatprep.subr.mxu0 0.0
      %3119 = vmatpush1.msra.mxu0 0.0
      %3120 = vmatprep.subr.mxu0 0.0
      %3121 = vmatpush1.msra.mxu0 0.0
      %3122 = vmatprep.subr.mxu0 0.0
      %3123 = vmatpush1.msra.mxu0 0.0
      %3124 = vmatprep.subr.mxu0 0.0
      %3125 = vmatpush1.msra.mxu0 0.0
      %3126 = vmatprep.subr.mxu0 0.0
      %3127 = vmatpush1.msra.mxu0 0.0
      %3128 = vmatprep.subr.mxu0 0.0
      %3129 = vmatpush1.msra.mxu0 0.0
      %3130 = vmatprep.subr.mxu0 0.0
      %3131 = vmatpush1.msra.mxu0 0.0
      %3132 = vmatprep.subr.mxu0 0.0
      %3133 = vmatpush1.msra.mxu0 0.0
      %3134 = vmatprep.subr.mxu0 0.0
      %3135 = vmatpush1.msra.mxu0 0.0
      %3136 = vmatprep.subr.mxu0 0.0
      %3137 = vmatpush1.msra.mxu0 0.0
      %3138 = vmatprep.subr.mxu0 0.0
      %3139 = vmatpush1.msra.mxu0 0.0
      %3140 = vmatprep.subr.mxu0 0.0
      %3141 = vmatpush1.msra.mxu0 0.0
      %3142 = vmatprep.subr.mxu0 0.0
      %3143 = vmatpush1.msra.mxu0 0.0
      %3144 = vmatprep.mubr.f32.mxu0 %v3007
      %3145 = vmatmul.mubr.f32.gmra.mrb[0].mxu0 %v3002
      %v3146 = vpop.f32.mrb[0].mxu0
      %v3147 = vadd.f32 %v3076, %v3146
      %v3148 = vpop.f32.mrb[0].mxu0
      %v3149 = vadd.f32 %v3078, %v3148
      %3150 = vdwg.mxu0
      %3151 = vmatprep.subr.mxu0 0.0
      %3152 = vmatpush1.msra.mxu0 %v2138
      %3153 = vmatprep.subr.mxu0 0.0
      %3154 = vmatpush1.msra.mxu0 %v2151
      %3155 = vmatprep.subr.mxu0 0.0
      %3156 = vmatpush1.msra.mxu0 %v2162
      %3157 = vmatprep.subr.mxu0 0.0
      %3158 = vmatpush1.msra.mxu0 %v2173
      %3159 = vmatprep.subr.mxu0 0.0
      %3160 = vmatpush1.msra.mxu0 %v2184
      %3161 = vmatprep.subr.mxu0 0.0
      %3162 = vmatpush1.msra.mxu0 %v2195
      %3163 = vmatprep.subr.mxu0 0.0
      %3164 = vmatpush1.msra.mxu0 %v2207
      %3165 = vmatprep.subr.mxu0 0.0
      %3166 = vmatpush1.msra.mxu0 %v2219
      %3167 = vmatprep.subr.mxu0 0.0
      %3168 = vmatpush1.msra.mxu0 %v2230
      %3169 = vmatprep.subr.mxu0 0.0
      %3170 = vmatpush1.msra.mxu0 %v2242
      %3171 = vmatprep.subr.mxu0 0.0
      %3172 = vmatpush1.msra.mxu0 %v2254
      %3173 = vmatprep.subr.mxu0 0.0
      %3174 = vmatpush1.msra.mxu0 %v2266
      %3175 = vmatprep.subr.mxu0 0.0
      %3176 = vmatpush1.msra.mxu0 %v2278
      %3177 = vmatprep.subr.mxu0 0.0
      %3178 = vmatpush1.msra.mxu0 %v2290
      %3179 = vmatprep.subr.mxu0 0.0
      %3180 = vmatpush1.msra.mxu0 %v2312
      %3181 = vmatprep.subr.mxu0 0.0
      %3182 = vmatpush1.msra.mxu0 %v2327
      %3183 = vmatprep.subr.mxu0 0.0
      %3184 = vmatpush1.msra.mxu0 %v2647
      %3185 = vmatprep.subr.mxu0 0.0
      %3186 = vmatpush1.msra.mxu0 %v2650
      %3187 = vmatprep.subr.mxu0 0.0
      %3188 = vmatpush1.msra.mxu0 %v2653
      %3189 = vmatprep.subr.mxu0 0.0
      %3190 = vmatpush1.msra.mxu0 %v2656
      %3191 = vmatprep.subr.mxu0 0.0
      %3192 = vmatpush1.msra.mxu0 %v2659
      %3193 = vmatprep.subr.mxu0 0.0
      %3194 = vmatpush1.msra.mxu0 %v2662
      %3195 = vmatprep.subr.mxu0 0.0
      %3196 = vmatpush1.msra.mxu0 %v2665
      %3197 = vmatprep.subr.mxu0 0.0
      %3198 = vmatpush1.msra.mxu0 %v2668
      %3199 = vmatprep.subr.mxu0 0.0
      %3200 = vmatpush1.msra.mxu0 %v2671
      %3201 = vmatprep.subr.mxu0 0.0
      %3202 = vmatpush1.msra.mxu0 %v2674
      %3203 = vmatprep.subr.mxu0 0.0
      %3204 = vmatpush1.msra.mxu0 %v2677
      %3205 = vmatprep.subr.mxu0 0.0
      %3206 = vmatpush1.msra.mxu0 %v2680
      %3207 = vmatprep.subr.mxu0 0.0
      %3208 = vmatpush1.msra.mxu0 %v2683
      %3209 = vmatprep.subr.mxu0 0.0
      %3210 = vmatpush1.msra.mxu0 %v2686
      %3211 = vmatprep.subr.mxu0 0.0
      %3212 = vmatpush1.msra.mxu0 %v2689
      %3213 = vmatprep.subr.mxu0 0.0
      %3214 = vmatpush1.msra.mxu0 %v2692
      %3215 = vmatprep.mubr.f32.mxu0 %v3001
      %3216 = vmatmul.mubr.f32.gmra.mrb[0].mxu0 %v3000
      %v3217 = vpop.f32.mrb[0].mxu0
      %v3218 = vadd.f32 %v2985, %v3217
      %v3219 = vpop.f32.mrb[0].mxu0
      %3220 = vdwg.mxu0
      %3221 = vmatprep.subr.mxu0 0.0
      %3222 = vmatpush1.msra.mxu0 %v2871
      %3223 = vmatprep.subr.mxu0 0.0
      %3224 = vmatpush1.msra.mxu0 %v2874
      %3225 = vmatprep.subr.mxu0 0.0
      %3226 = vmatpush1.msra.mxu0 %v2877
      %3227 = vmatprep.subr.mxu0 0.0
      %3228 = vmatpush1.msra.mxu0 %v2880
      %3229 = vmatprep.subr.mxu0 0.0
      %3230 = vmatpush1.msra.mxu0 %v2883
      %3231 = vmatprep.subr.mxu0 0.0
      %3232 = vmatpush1.msra.mxu0 %v2886
      %3233 = vmatprep.subr.mxu0 0.0
      %3234 = vmatpush1.msra.mxu0 %v2889
      %3235 = vmatprep.subr.mxu0 0.0
      %3236 = vmatpush1.msra.mxu0 %v2892
      %3237 = vmatprep.subr.mxu0 0.0
      %3238 = vmatpush1.msra.mxu0 %v2895
      %3239 = vmatprep.subr.mxu0 0.0
      %3240 = vmatpush1.msra.mxu0 %v2898
      %3241 = vmatprep.subr.mxu0 0.0
      %3242 = vmatpush1.msra.mxu0 %v2901
      %3243 = vmatprep.subr.mxu0 0.0
      %3244 = vmatpush1.msra.mxu0 %v2904
      %3245 = vmatprep.subr.mxu0 0.0
      %3246 = vmatpush1.msra.mxu0 %v2907
      %3247 = vmatprep.subr.mxu0 0.0
      %3248 = vmatpush1.msra.mxu0 %v2910
      %3249 = vmatprep.subr.mxu0 0.0
      %3250 = vmatpush1.msra.mxu0 %v2913
      %3251 = vmatprep.subr.mxu0 0.0
      %3252 = vmatpush1.msra.mxu0 %v2916
      %3253 = vmatprep.subr.mxu0 0.0
      %3254 = vmatpush1.msra.mxu0 %v2970
      %3255 = vmatprep.subr.mxu0 0.0
      %3256 = vmatpush1.msra.mxu0 0.0
      %3257 = vmatprep.subr.mxu0 0.0
      %3258 = vmatpush1.msra.mxu0 0.0
      %3259 = vmatprep.subr.mxu0 0.0
      %3260 = vmatpush1.msra.mxu0 0.0
      %3261 = vmatprep.subr.mxu0 0.0
      %3262 = vmatpush1.msra.mxu0 0.0
      %3263 = vmatprep.subr.mxu0 0.0
      %3264 = vmatpush1.msra.mxu0 0.0
      %3265 = vmatprep.subr.mxu0 0.0
      %3266 = vmatpush1.msra.mxu0 0.0
      %3267 = vmatprep.subr.mxu0 0.0
      %3268 = vmatpush1.msra.mxu0 0.0
      %3269 = vmatprep.subr.mxu0 0.0
      %3270 = vmatpush1.msra.mxu0 0.0
      %3271 = vmatprep.subr.mxu0 0.0
      %3272 = vmatpush1.msra.mxu0 0.0
      %3273 = vmatprep.subr.mxu0 0.0
      %3274 = vmatpush1.msra.mxu0 0.0
      %3275 = vmatprep.subr.mxu0 0.0
      %3276 = vmatpush1.msra.mxu0 0.0
      %3277 = vmatprep.subr.mxu0 0.0
      %3278 = vmatpush1.msra.mxu0 0.0
      %3279 = vmatprep.subr.mxu0 0.0
      %3280 = vmatpush1.msra.mxu0 0.0
      %3281 = vmatprep.subr.mxu0 0.0
      %3282 = vmatpush1.msra.mxu0 0.0
      %3283 = vmatprep.subr.mxu0 0.0
      %3284 = vmatpush1.msra.mxu0 0.0
      %3285 = vmatprep.mubr.f32.mxu0 %v3007
      %3286 = vmatmul.mubr.f32.gmra.mrb[0].mxu0 %v3002
      %v3287 = vpop.f32.mrb[0].mxu0
      %v3288 = vadd.f32 %v3218, %v3287
      %v3289 = vpop.f32.mrb[0].mxu0
      %3290 = vdwg.mxu0
      %v3291 = vtanh.pop %v3147
      %v3292 = vtanh.pop %v3149
      %v3293 = vtanh.pop %v3288
      %v3294 = vlaneseq
      %vm3295 = vcmp.ge.s32.totalorder %v3294, 0
      %vm3296 = vcmp.lt.s32.totalorder %v3294, 16
      %vm3297 = vmand %vm3295, %vm3296
      %3298 = vst.msk [vmem:[%s168] sm:$0x1] %vm3297, %v3291
      %v3301 = vunpack.c.l.s4 1966171168
      %v3302 = vunpack.c.0.s8 %v3301
      %v3303 = vlaneseq
      %v3304 = vshrl.u32 %v3303, 7
      %v3305 = vsub.s32 %v3302, %v3304
      %v3306 = vrot.slane %v3291, %v3305
      %v3308 = vunpack.c.l.s4 1966171168
      %v3309 = vunpack.c.0.s8 %v3308
      %v3310 = vlaneseq
      %v3311 = vshrl.u32 %v3310, 7
      %v3312 = vsub.s32 %v3309, %v3311
      %v3313 = vrot.slane %v3306, %v3312
      %3314 = vrot.lane.b32.xlu0 %v3313, 122
      %v3315 = vpop.permute.xlu0 %3314
      %vm3317 = vcmp.ge.s32.totalorder %v3294, 16
      %vm3318 = vcmp.lt.s32.totalorder %v3294, 32
      %vm3319 = vmand %vm3317, %vm3318
      %3320 = vst.msk [vmem:[%s168] sm:$0x1] %vm3319, %v3315
      %3321 = vrot.lane.b32.xlu0 %v3313, 116
      %v3322 = vpop.permute.xlu0 %3321
      %vm3324 = vcmp.ge.s32.totalorder %v3294, 32
      %vm3325 = vcmp.lt.s32.totalorder %v3294, 48
      %vm3326 = vmand %vm3324, %vm3325
      %3327 = vst.msk [vmem:[%s168] sm:$0x1] %vm3326, %v3322
      %3328 = vrot.lane.b32.xlu0 %v3313, 110
      %v3329 = vpop.permute.xlu0 %3328
      %vm3331 = vcmp.ge.s32.totalorder %v3294, 48
      %vm3332 = vcmp.lt.s32.totalorder %v3294, 64
      %vm3333 = vmand %vm3331, %vm3332
      %3334 = vst.msk [vmem:[%s168] sm:$0x1] %vm3333, %v3329
      %3335 = vrot.lane.b32.xlu0 %v3313, 104
      %v3336 = vpop.permute.xlu0 %3335
      %vm3338 = vcmp.ge.s32.totalorder %v3294, 64
      %vm3339 = vcmp.lt.s32.totalorder %v3294, 80
      %vm3340 = vmand %vm3338, %vm3339
      %3341 = vst.msk [vmem:[%s168] sm:$0x1] %vm3340, %v3336
      %3342 = vrot.lane.b32.xlu0 %v3313, 98
      %v3343 = vpop.permute.xlu0 %3342
      %vm3345 = vcmp.ge.s32.totalorder %v3294, 80
      %vm3346 = vcmp.lt.s32.totalorder %v3294, 96
      %vm3347 = vmand %vm3345, %vm3346
      %3348 = vst.msk [vmem:[%s168] sm:$0x1] %vm3347, %v3343
      %v3351 = vunpack.c.l.s4 1966171168
      %v3352 = vunpack.c.0.s8 %v3351
      %v3353 = vlaneseq
      %v3354 = vshrl.u32 %v3353, 7
      %v3355 = vsub.s32 %v3352, %v3354
      %v3356 = vrot.slane %v3292, %v3355
      %v3358 = vunpack.c.l.s4 1966171168
      %v3359 = vunpack.c.0.s8 %v3358
      %v3360 = vlaneseq
      %v3361 = vshrl.u32 %v3360, 7
      %v3362 = vsub.s32 %v3359, %v3361
      %v3363 = vrot.slane %v3356, %v3362
      %3364 = vrot.lane.b32.xlu0 %v3363, 92
      %v3365 = vpop.permute.xlu0 %3364
      %vm3367 = vcmp.ge.s32.totalorder %v3294, 96
      %vm3368 = vcmp.lt.s32.totalorder %v3294, 112
      %vm3369 = vmand %vm3367, %vm3368
      %3370 = vst.msk [vmem:[%s168] sm:$0x1] %vm3369, %v3365
      %3371 = vrot.lane.b32.xlu0 %v3363, 86
      %v3372 = vpop.permute.xlu0 %3371
      %vm3374 = vcmp.ge.s32.totalorder %v3294, 112
      %vm3375 = vcmp.lt.s32.totalorder %v3294, 128
      %vm3376 = vmand %vm3374, %vm3375
      %3377 = vst.msk [vmem:[%s168] sm:$0x1] %vm3376, %v3372
      %3378 = vrot.lane.b32.xlu0 %v3363, 80
      %v3379 = vpop.permute.xlu0 %3378
      %3381 = vst.msk [vmem:[%s168 + $0x1] sm:$0x1] %vm3297, %v3379
      %3382 = vrot.lane.b32.xlu0 %v3363, 74
      %v3383 = vpop.permute.xlu0 %3382
      %3385 = vst.msk [vmem:[%s168 + $0x1] sm:$0x1] %vm3319, %v3383
      %3386 = vrot.lane.b32.xlu0 %v3363, 68
      %v3387 = vpop.permute.xlu0 %3386
      %3389 = vst.msk [vmem:[%s168 + $0x1] sm:$0x1] %vm3326, %v3387
      %v3391 = vcombine.low %v3292, %v3293
      %v3393 = vunpack.c.l.s4 1966171168
      %v3394 = vunpack.c.0.s8 %v3393
      %v3395 = vlaneseq
      %v3396 = vshrl.u32 %v3395, 7
      %v3397 = vsub.s32 %v3394, %v3396
      %v3398 = vrot.slane %v3391, %v3397
      %v3400 = vunpack.c.l.s4 1966171168
      %v3401 = vunpack.c.0.s8 %v3400
      %v3402 = vlaneseq
      %v3403 = vshrl.u32 %v3402, 7
      %v3404 = vsub.s32 %v3401, %v3403
      %v3405 = vrot.slane %v3398, %v3404
      %3406 = vrot.lane.b32.xlu0 %v3405, 62
      %v3407 = vpop.permute.xlu0 %3406
      %v3408 = vrot.slane %v3407, 1
      %vm3409 = vcmask 506880
      %v3410 = vsel %vm3409, %v3407, %v3408
      %3412 = vst.msk [vmem:[%s168 + $0x1] sm:$0x1] %vm3333, %v3410
      %v3414 = vunpack.c.l.s4 1966171168
      %v3415 = vunpack.c.0.s8 %v3414
      %v3416 = vlaneseq
      %v3417 = vshrl.u32 %v3416, 7
      %v3418 = vsub.s32 %v3415, %v3417
      %v3419 = vrot.slane %v3293, %v3418
      %v3421 = vunpack.c.l.s4 1966171168
      %v3422 = vunpack.c.0.s8 %v3421
      %v3423 = vlaneseq
      %v3424 = vshrl.u32 %v3423, 7
      %v3425 = vsub.s32 %v3422, %v3424
      %v3426 = vrot.slane %v3419, %v3425
      %3427 = vrot.lane.b32.xlu0 %v3426, 56
      %v3428 = vpop.permute.xlu0 %3427
      %3430 = vst.msk [vmem:[%s168 + $0x1] sm:$0x1] %vm3340, %v3428
      %3431 = vrot.lane.b32.xlu0 %v3426, 50
      %v3432 = vpop.permute.xlu0 %3431
      %3434 = vst.msk [vmem:[%s168 + $0x1] sm:$0x1] %vm3347, %v3432
      %3435 = vrot.lane.b32.xlu0 %v3426, 44
      %v3436 = vpop.permute.xlu0 %3435
      %3438 = vst.msk [vmem:[%s168 + $0x1] sm:$0x1] %vm3369, %v3436
      %3439 = vrot.lane.b32.xlu0 %v3426, 38
      %v3440 = vpop.permute.xlu0 %3439
      %3442 = vst.msk [vmem:[%s168 + $0x1] sm:$0x1] %vm3376, %v3440
      %p3443 = scmp.lt.s32.totalorder %s14, 1
      %s3444 = scalar_select %p3443, %s14, 1
      %s3445 = smul.addr %s3444, 2
      %s3446 = scalar_lea.vmem %s3, %s3445
      // Predicated region
      $region33: #{ada_decoder_forward.1} parent=31 // pred_check
        %p3447 = pneg %p100
      $region34: #{ada_decoder_forward.1} parent=31 // pred_check_branch
        %3449 = sbr.rel (%p3447) target = $region36
      $region35: #{ada_decoder_forward.1} parent=31 // pred_region
        _
      $region36: #{ada_decoder_forward.1} parent=31 // pred_fallthru
        _
    $region32: #{ada_decoder_forward.1} parent=5 // pred_fallthru
      _
    %p3450 = scmp.le.s32.totalorder 2, %s9
    // Predicated region
    $region37: #{ada_decoder_forward.1} parent=5 // pred_check
      %p3451 = pneg %p3450
    $region38: #{ada_decoder_forward.1} parent=5 // pred_check_branch
      %3453 = sbr.rel (%p3451) target = $region40
    $region39: #{ada_decoder_forward.1} parent=5 // pred_region
      %s3454 = ssub.s32 %s9, 2
      // Predicated region
      $region41: #{ada_decoder_forward.1} parent=39 // pred_check
        %p3455 = pneg %p106
      $region42: #{ada_decoder_forward.1} parent=39 // pred_check_branch
        %3457 = sbr.rel (%p3455) target = $region44
      $region43: #{ada_decoder_forward.1} parent=39 // pred_region
        %p3458 = scmp.lt.s32.totalorder %s15, 1
        %s3459 = scalar_select %p3458, %s15, 1
        %s3460 = smul.addr %s3459, 2
        %s3461 = scalar_lea.vmem %s3, %s3460
      $region44: #{ada_decoder_forward.1} parent=39 // pred_fallthru
        _
    $region40: #{ada_decoder_forward.1} parent=5 // pred_fallthru
      _
  $region6: #{ada_decoder_forward.1} parent=0 // loop_footer
    %s13 = sadd.s32 1, %s9
  $region7: #{ada_decoder_forward.1} parent=0 // loop_footer_branch
    %8 = sbr.rel target = $region3
  $region8: #{ada_decoder_forward.1} parent=0 // loop_exit
    _

</llo_original>
